<compile_context>
chip_gen: v6e
topology: v6e:2x2x1
jax: 0.10.0
libtpu: 0.0.40
codegen_flags: <defaults>
</compile_context>

<pallas_src>
import functools

import jax
import jax.numpy as jnp
from jax.experimental import pallas as pl
from jax.experimental.pallas import tpu as pltpu


# ---------------------------------------------------------------------------
# helpers
# ---------------------------------------------------------------------------
def _round_up(x, m):
    return (x + m - 1) // m * m


# ---------------------------------------------------------------------------
# Kernel A: fused linear1 + bn1 + relu + q/k/v projection (bf16 output)
# ---------------------------------------------------------------------------
def _linear1_qkv_kernel(x_ref, w1_ref, b1_ref, wqkv_ref, bqkv_ref, o_ref):
    h = jnp.dot(x_ref[...], w1_ref[...], preferred_element_type=jnp.float32)
    h = jnp.maximum(h + b1_ref[...], 0.0)
    qkv = jnp.dot(h, wqkv_ref[...], preferred_element_type=jnp.float32)
    o_ref[...] = (qkv + bqkv_ref[...]).astype(o_ref.dtype)


def linear1_qkv(x, w1, b1, wqkv, bqkv, *, tile):
    n, cin = x.shape
    c3 = wqkv.shape[1]
    return pl.pallas_call(
        _linear1_qkv_kernel,
        out_shape=jax.ShapeDtypeStruct((n, c3), jnp.bfloat16),
        grid_spec=pltpu.PrefetchScalarGridSpec(
            num_scalar_prefetch=0,
            grid=(n // tile,),
            in_specs=[
                pl.BlockSpec((tile, cin), lambda i: (i, 0)),
                pl.BlockSpec(w1.shape, lambda i: (0, 0)),
                pl.BlockSpec(b1.shape, lambda i: (0, 0)),
                pl.BlockSpec(wqkv.shape, lambda i: (0, 0)),
                pl.BlockSpec(bqkv.shape, lambda i: (0, 0)),
            ],
            out_specs=pl.BlockSpec((tile, c3), lambda i: (i, 0)),
        ),
        compiler_params=pltpu.CompilerParams(
            dimension_semantics=("parallel",),
            vmem_limit_bytes=48 << 20),
    )(x, w1, b1, wqkv, bqkv)


# ---------------------------------------------------------------------------
# Kernel B: fused point-transformer attention + bn2 + relu + linear3 + bn3
#           + residual + relu
# ---------------------------------------------------------------------------
def _pt_block_kernel(kq_ref, gv_ref, pr_ref, idn_ref,
                     wp1_ref, bp1_ref, wp2_ref, bp2_ref,
                     sw1_ref, bw1c_ref, ww1_ref, bw1_ref, ww2_ref, bw2_ref,
                     rep_ref, s2_ref, b2_ref, wl3_ref, bl3_ref,
                     o_ref, *, nsample):
    rows, cpad = kq_ref.shape
    t = rows // nsample
    cs = ww2_ref.shape[0]

    # bf16-stored grouped tensors -> f32 compute (accumulation stays f32)
    kq = kq_ref[...].astype(jnp.float32)
    gv = gv_ref[...].astype(jnp.float32)

    # positional-encoding MLP: relu(bn(linear(p_rel))) -> linear   (BN folded)
    z = jnp.dot(pr_ref[...], wp1_ref[...], preferred_element_type=jnp.float32)
    z = jnp.maximum(z + bp1_ref[...], 0.0)
    p_r = jnp.dot(z, wp2_ref[...], preferred_element_type=jnp.float32) + bp2_ref[...]

    # attention-weight branch: bn -> relu -> linear(+bn folded) -> relu -> linear
    w = kq + p_r                                 # (x_k - x_q) + p_r
    w = jnp.maximum(w * sw1_ref[...] + bw1c_ref[...], 0.0)
    w = jnp.dot(w, ww1_ref[...], preferred_element_type=jnp.float32) + bw1_ref[...]
    w = jnp.maximum(w, 0.0)
    w = jnp.dot(w, ww2_ref[...], preferred_element_type=jnp.float32) + bw2_ref[...]

    # softmax over the nsample neighbours (EUP reciprocal for the denominator)
    w3 = w.reshape(t, nsample, cs)
    w3 = w3 - jnp.max(w3, axis=1, keepdims=True)
    e = jnp.exp(w3)
    attn = e * pl.reciprocal(jnp.sum(e, axis=1, keepdims=True), approx=True)

    # broadcast the cs-wide weights across the share_planes groups with a
    # constant 0/1 matmul (MXU) instead of a lane-splitting reshape.
    wt = jnp.dot(attn.reshape(rows, cs), rep_ref[...],
                 preferred_element_type=jnp.float32)
    y = jnp.sum(((gv + p_r) * wt).reshape(t, nsample, cpad), axis=1)

    # bn2 + relu, then fused linear3 (+bn3 folded) + identity residual + relu
    a = jnp.maximum(y * s2_ref[...] + b2_ref[...], 0.0)
    out = jnp.dot(a, wl3_ref[...], preferred_element_type=jnp.float32)
    out = out + bl3_ref[...] + idn_ref[...]
    o_ref[...] = jnp.maximum(out, 0.0).astype(o_ref.dtype)


def pt_block_attention(kq, gv, p_rel, identity, params, *, nsample, tile):
    """kq = grouped(x_k) - x_q, gv = grouped(x_v): (N_pad, nsample, C_pad) bf16;
    p_rel: (N_pad, nsample, 8) relative xyz (f32, lane-padded);
    identity: (N_pad, C_pad) f32 residual input. N_pad % tile == 0."""
    n, ns, cpad = kq.shape
    dp = p_rel.shape[2]
    rows = tile * ns
    # contiguous reshapes (no copy) so kernel blocks are straight 2-D tile reads
    kq_f = kq.reshape(n * ns, cpad)
    gv_f = gv.reshape(n * ns, cpad)
    pr_f = p_rel.reshape(n * ns, dp)
    wnames = ("Wp1f", "bp1f", "Wp2", "bp2", "sw1", "bw1c", "Ww1f", "bw1f",
              "Ww2", "bw2", "rep", "s2", "b2", "W3f", "b3")
    weights = [params[k] for k in wnames]
    return pl.pallas_call(
        functools.partial(_pt_block_kernel, nsample=ns),
        out_shape=jax.ShapeDtypeStruct((n, cpad), jnp.float32),
        grid_spec=pltpu.PrefetchScalarGridSpec(
            num_scalar_prefetch=0,
            grid=(n // tile,),
            in_specs=[
                pl.BlockSpec((rows, cpad), lambda i: (i, 0)),
                pl.BlockSpec((rows, cpad), lambda i: (i, 0)),
                pl.BlockSpec((rows, dp), lambda i: (i, 0)),
                pl.BlockSpec((tile, cpad), lambda i: (i, 0)),
            ] + [pl.BlockSpec(w.shape, lambda i: (0, 0)) for w in weights],
            out_specs=pl.BlockSpec((tile, cpad), lambda i: (i, 0)),
        ),
        compiler_params=pltpu.CompilerParams(
            dimension_semantics=("parallel",),
            vmem_limit_bytes=48 << 20),
    )(kq_f, gv_f, pr_f, identity, *weights)


# ---------------------------------------------------------------------------
# Plain-JAX glue: batched kNN (no host sync, no per-batch python loop)
# ---------------------------------------------------------------------------
def knn_self(p, o, nsample):
    """nsample nearest neighbours of every point within its own batch segment.
    o = cumulative point counts per batch (point-transformer offsets)."""
    # TODO(synk): if a segment has fewer than nsample points, top_k falls back to
    #             cross-segment (+inf distance) candidates; pointops repeats
    #             within the segment instead.  Not hit for typical inputs.
    n = p.shape[0]
    batch_id = jnp.searchsorted(o, jnp.arange(n, dtype=o.dtype), side="right")
    d2 = jnp.sum((p[:, None, :] - p[None, :, :]) ** 2, axis=-1)
    d2 = jnp.where(batch_id[:, None] == batch_id[None, :], d2, jnp.inf)
    _, idx = jax.lax.top_k(-d2, nsample)
    return idx


# ---------------------------------------------------------------------------
# Forward pipeline (jit-able; params are channel-padded, BN-folded)
# ---------------------------------------------------------------------------
def _forward(params, p, x, o, *, planes, cpad, nsample, tile):
    n = x.shape[0]
    n_pad = _round_up(n, tile)
    # Cheap row/lane pads of the SMALL per-point arrays so everything downstream
    # (including the big grouped tensors) is born padded -- no jnp.pad copy of
    # the ~nsample*cpad bytes/point grouped tensors.
    xp = jnp.pad(x, ((0, n_pad - n), (0, cpad - x.shape[1])))
    pp = jnp.pad(p, ((0, n_pad - n), (0, 8 - p.shape[1])))

    # 1+2) fused: qkv = relu(bn1(linear1(x))) @ [Wq|Wk|Wv] + b   (bf16 output)
    qkv = linear1_qkv(xp, params["W1f"], params["b1"],
                      params["Wqkv"], params["bqkv"], tile=tile)
    q, k, v = qkv[:, :cpad], qkv[:, cpad:2 * cpad], qkv[:, 2 * cpad:]

    # 3) kNN grouping (queryandgroup) in plain JAX.  Padded points form their own
    #    segment, so real points never select them.
    # TODO(synk): replace with an in-kernel DMA gather driven by a scalar-prefetched
    #             idx table to avoid materialising kq/gv in HBM.
    idx = knn_self(pp, o, nsample)
    p_rel = pp[idx] - pp[:, None, :]          # (n_pad, ns, 8)   f32
    kq = k[idx] - q[:, None, :]               # (n_pad, ns, cpad) bf16
    gv = v[idx]                               # (n_pad, ns, cpad) bf16

    # 4) fused attention + bn2 + relu + linear3 + bn3 + residual + relu
    out = pt_block_attention(kq, gv, p_rel, xp, params, nsample=nsample, tile=tile)
    return out[:n, :planes]


# ---------------------------------------------------------------------------
# Module (deterministic parameters, inference-mode BN folded at init)
# ---------------------------------------------------------------------------
class PointTransformerBlockTPU:
    def __init__(self, in_planes, planes, share_planes=8, nsample=16, key=None):
        assert in_planes == planes, "residual add needs in_planes == planes"
        assert planes % share_planes == 0
        self.planes, self.share_planes, self.nsample = planes, share_planes, nsample
        self.cpad = _round_up(planes, 128)
        C, cs, cpad, eps = planes, planes // share_planes, self.cpad, 1e-5
        key = jax.random.PRNGKey(42) if key is None else key
        (k_w1, k_bn1, k_q, k_k, k_v, k_p1, k_bnp, k_p2, k_bnw1,
         k_ww1, k_bnw2, k_ww2, k_bn2, k_w3, k_bn3, _) = jax.random.split(key, 16)

        def linear(k, fi, fo, bias=True):
            kw, kb = jax.random.split(k)
            bound = fi ** -0.5
            w = jax.random.uniform(kw, (fi, fo), jnp.float32, -bound, bound)
            b = (jax.random.uniform(kb, (fo,), jnp.float32, -bound, bound)
                 if bias else None)
            return w, b

        def bn(k, c):
            kg, kb, km, kv = jax.random.split(k, 4)
            gamma = 1.0 + 0.1 * jax.random.normal(kg, (c,), jnp.float32)
            beta = 0.1 * jax.random.normal(kb, (c,), jnp.float32)
            mean = 0.05 * jax.random.normal(km, (c,), jnp.float32)
            var = 1.0 + 0.1 * jax.random.uniform(kv, (c,), jnp.float32)
            scale = gamma / jnp.sqrt(var + eps)
            bias = beta - mean * scale
            return scale, bias

        W1, _ = linear(k_w1, in_planes, C, bias=False)
        s1, b1 = bn(k_bn1, C)
        Wq, bq = linear(k_q, C, C)
        Wk, bk = linear(k_k, C, C)
        Wv, bv = linear(k_v, C, C)
        Wp1, bp1 = linear(k_p1, 3, 3)
        sp, bp = bn(k_bnp, 3)
        Wp2, bp2 = linear(k_p2, 3, C)
        sw1, bw1c = bn(k_bnw1, C)
        Ww1, bw1 = linear(k_ww1, C, cs)
        sw2, bw2c = bn(k_bnw2, cs)
        Ww2, bw2 = linear(k_ww2, cs, cs)
        s2, b2 = bn(k_bn2, C)
        W3, _ = linear(k_w3, C, C, bias=False)
        s3, b3 = bn(k_bn3, C)

        self.raw = dict(W1=W1, s1=s1, b1=b1, Wq=Wq, bq=bq, Wk=Wk, bk=bk, Wv=Wv,
                        bv=bv, Wp1=Wp1, bp1=bp1, sp=sp, bp=bp, Wp2=Wp2, bp2=bp2,
                        sw1=sw1, bw1c=bw1c, Ww1=Ww1, bw1=bw1, sw2=sw2, bw2c=bw2c,
                        Ww2=Ww2, bw2=bw2, s2=s2, b2=b2, W3=W3, s3=s3, b3=b3)

        def pad2(a, r, c):
            return jnp.pad(a, ((0, r - a.shape[0]), (0, c - a.shape[1])))

        def padrow(v, c):
            return jnp.pad(v, (0, c - v.shape[0])).reshape(1, c)

        cols = jnp.arange(cpad)
        rep = ((cols[None, :] < C)
               & (cols[None, :] % cs == jnp.arange(cs)[:, None])).astype(jnp.float32)

        self.params = dict(
            W1f=pad2(W1 * s1[None, :], cpad, cpad), b1=padrow(b1, cpad),
            Wqkv=jnp.concatenate([pad2(Wq, cpad, cpad), pad2(Wk, cpad, cpad),
                                  pad2(Wv, cpad, cpad)], axis=1),
            bqkv=jnp.concatenate([padrow(bq, cpad), padrow(bk, cpad),
                                  padrow(bv, cpad)], axis=1),
            Wp1f=pad2(Wp1 * sp[None, :], 8, 8),
            bp1f=padrow(bp1 * sp + bp, 8),
            Wp2=pad2(Wp2, 8, cpad), bp2=padrow(bp2, cpad),
            sw1=padrow(sw1, cpad), bw1c=padrow(bw1c, cpad),
            Ww1f=pad2(Ww1 * sw2[None, :], cpad, cs),
            bw1f=(bw1 * sw2 + bw2c).reshape(1, cs),
            Ww2=Ww2, bw2=bw2.reshape(1, cs),
            rep=rep,
            s2=padrow(s2, cpad), b2=padrow(b2, cpad),
            W3f=pad2(W3 * s3[None, :], cpad, cpad), b3=padrow(b3, cpad),
        )

        # Row-tile cap for the fused attention kernel: budget counts the
        # double-buffered inputs/outputs AND ~5 live (tile*nsample, cpad) f32
        # in-kernel temporaries (conservative for v7x 64 MiB / v5e 16 MiB default).
        io = 2 * (2 * nsample * cpad * 2    # kq + gv, bf16, double-buffered
                  + nsample * 8 * 4         # p_rel, f32
                  + 2 * cpad * 4)           # identity + output, f32
        tmp = 5 * nsample * cpad * 4
        self.tile_cap = int(max(16, min(256, ((12 << 20) // (io + tmp)) // 16 * 16)))
        self._fwd_cache = {}

    def _get_fwd(self, tile):
        if tile not in self._fwd_cache:
            self._fwd_cache[tile] = jax.jit(functools.partial(
                _forward, planes=self.planes, cpad=self.cpad,
                nsample=self.nsample, tile=tile))
        return self._fwd_cache[tile]

    def __call__(self, pxo):
        p, x, o = pxo
        tile = min(self.tile_cap, _round_up(max(int(x.shape[0]), 1), 16))
        return [p, self._get_fwd(tile)(self.params, p, x, o), o]


# ---------------------------------------------------------------------------
# Plain-JAX reference (unpadded params, same kNN indices) for verification.
# quantize_qkv=True applies the same bf16 rounding points as the TPU pipeline
# (q/k/v and the grouped kq are stored bf16 there); compute otherwise f32.
# ---------------------------------------------------------------------------
def reference_block(raw, p, x, idx, share_planes, *, quantize_qkv=False):
    relu = lambda t: jnp.maximum(t, 0.0)
    h = relu(x @ raw["W1"] * raw["s1"] + raw["b1"])
    q = h @ raw["Wq"] + raw["bq"]
    k = h @ raw["Wk"] + raw["bk"]
    v = h @ raw["Wv"] + raw["bv"]
    if quantize_qkv:
        bf = lambda t: t.astype(jnp.bfloat16).astype(jnp.float32)
        q, k, v = bf(q), bf(k), bf(v)
        kq = bf(k[idx] - q[:, None, :])
    else:
        kq = k[idx] - q[:, None, :]
    gv = v[idx]
    p_rel = p[idx] - p[:, None, :]
    z = relu((p_rel @ raw["Wp1"] + raw["bp1"]) * raw["sp"] + raw["bp"])
    p_r = z @ raw["Wp2"] + raw["bp2"]
    w = kq + p_r
    w = relu(w * raw["sw1"] + raw["bw1c"])
    w = w @ raw["Ww1"] + raw["bw1"]
    w = relu(w * raw["sw2"] + raw["bw2c"])
    w = w @ raw["Ww2"] + raw["bw2"]
    w = jax.nn.softmax(w, axis=1)
    n, ns, c = gv.shape
    s = share_planes
    vpr = gv + p_r
    y = jnp.sum(vpr.reshape(n, ns, s, c // s) * w[:, :, None, :], axis=1).reshape(n, c)
    a = relu(y * raw["s2"] + raw["b2"])
    return relu(a @ raw["W3"] * raw["s3"] + raw["b3"] + x)


if __name__ == "__main__":
    in_planes = planes = 32
    share_planes, nsample = 8, 16
    block = PointTransformerBlockTPU(in_planes, planes, share_planes, nsample,
                                     key=jax.random.PRNGKey(1))

    def run_case(seed, sizes):
        kp, kx = jax.random.split(jax.random.PRNGKey(seed))
        N = int(sum(sizes))
        p = jax.random.normal(kp, (N, 3), jnp.float32)
        x = jax.random.normal(kx, (N, in_planes), jnp.float32)
        o = jnp.cumsum(jnp.asarray(sizes, jnp.int32)).astype(jnp.int32)

        p_out, x_out, o_out = block([p, x, o])
        jax.block_until_ready(x_out)
        assert x_out.shape == (N, planes)
        assert p_out.shape == p.shape and o_out.shape == o.shape

        # reference uses the same kNN indices and the same bf16 rounding points
        tile = min(block.tile_cap, _round_up(N, 16))
        n_pad = _round_up(N, tile)
        pp = jnp.pad(p, ((0, n_pad - N), (0, 5)))
        idx = knn_self(pp, o, nsample)[:N]
        ref = reference_block(block.raw, p, x, idx, share_planes, quantize_qkv=True)
        err = float(jnp.max(jnp.abs(x_out - ref)))
        assert jnp.allclose(x_out, ref, atol=5e-2, rtol=5e-2), (
            f"N={N}: max abs err {err}")

    run_case(0, (32, 32))   # tile == N: no row padding
    run_case(2, (35, 35))   # N=70 -> padded to 80 rows: exercises the pad path
    print("KERNEL_OK")
</pallas_src>

<mosaic_0001>
module attributes {stable_mosaic.version = 11 : i64} {
  func.func @_linear1_qkv_kernel(%arg0: i32, %arg1: memref<64x128xf32, #tpu.memory_space<vmem>>, %arg2: memref<128x128xf32, #tpu.memory_space<vmem>>, %arg3: memref<1x128xf32, #tpu.memory_space<vmem>>, %arg4: memref<128x384xf32, #tpu.memory_space<vmem>>, %arg5: memref<1x384xf32, #tpu.memory_space<vmem>>, %arg6: memref<64x384xbf16, #tpu.memory_space<vmem>>) attributes {dimension_semantics = [#tpu.dimension_semantics<parallel>], iteration_bounds = array<i64: 1>, scalar_prefetch = 0 : i64, scratch_operands = 0 : i64, tpu.core_type = #tpu.core_type<tc>, window_params = [{transform_indices = @transform_0, window_bounds = array<i64: 64, 128>}, {pipeline_mode = #tpu.pipeline_mode<synchronous>, transform_indices = @transform_1, window_bounds = array<i64: 128, 128>}, {pipeline_mode = #tpu.pipeline_mode<synchronous>, transform_indices = @transform_2, window_bounds = array<i64: 1, 128>}, {pipeline_mode = #tpu.pipeline_mode<synchronous>, transform_indices = @transform_3, window_bounds = array<i64: 128, 384>}, {pipeline_mode = #tpu.pipeline_mode<synchronous>, transform_indices = @transform_4, window_bounds = array<i64: 1, 384>}, {transform_indices = @transform_5, window_bounds = array<i64: 64, 384>}]} {
    %c0 = arith.constant 0 : index
    %c0_0 = arith.constant 0 : index
    %0 = vector.load %arg1[%c0, %c0_0] : memref<64x128xf32, #tpu.memory_space<vmem>>, vector<64x128xf32>
    %c0_1 = arith.constant 0 : index
    %c0_2 = arith.constant 0 : index
    %1 = vector.load %arg2[%c0_1, %c0_2] : memref<128x128xf32, #tpu.memory_space<vmem>>, vector<128x128xf32>
    %cst = arith.constant dense<0.000000e+00> : vector<64x128xf32>
    %2 = tpu.matmul %0, %1, %cst {dimension_numbers = #tpu.dot_dimension_numbers<[1], [0], [0], [1], [0, 0, 1, 1], [], []>} : vector<64x128xf32>, vector<128x128xf32>, vector<64x128xf32> -> vector<64x128xf32>
    %c0_3 = arith.constant 0 : index
    %c0_4 = arith.constant 0 : index
    %3 = vector.load %arg3[%c0_3, %c0_4] : memref<1x128xf32, #tpu.memory_space<vmem>>, vector<1x128xf32>
    %4 = vector.broadcast %3 : vector<1x128xf32> to vector<64x128xf32>
    %5 = arith.addf %2, %4 : vector<64x128xf32>
    %cst_5 = arith.constant 0.000000e+00 : f32
    %6 = vector.broadcast %cst_5 : f32 to vector<64x128xf32>
    %7 = arith.maximumf %5, %6 : vector<64x128xf32>
    %c0_6 = arith.constant 0 : index
    %c0_7 = arith.constant 0 : index
    %8 = vector.load %arg4[%c0_6, %c0_7] : memref<128x384xf32, #tpu.memory_space<vmem>>, vector<128x384xf32>
    %cst_8 = arith.constant dense<0.000000e+00> : vector<64x384xf32>
    %9 = tpu.matmul %7, %8, %cst_8 {dimension_numbers = #tpu.dot_dimension_numbers<[1], [0], [0], [1], [0, 0, 1, 1], [], []>} : vector<64x128xf32>, vector<128x384xf32>, vector<64x384xf32> -> vector<64x384xf32>
    %c0_9 = arith.constant 0 : index
    %c0_10 = arith.constant 0 : index
    %10 = vector.load %arg5[%c0_9, %c0_10] : memref<1x384xf32, #tpu.memory_space<vmem>>, vector<1x384xf32>
    %11 = vector.broadcast %10 : vector<1x384xf32> to vector<64x384xf32>
    %12 = arith.addf %9, %11 : vector<64x384xf32>
    %13 = arith.truncf %12 : vector<64x384xf32> to vector<64x384xbf16>
    %c0_11 = arith.constant 0 : index
    %c0_12 = arith.constant 0 : index
    %14 = vector.load %arg6[%c0_11, %c0_12] : memref<64x384xbf16, #tpu.memory_space<vmem>>, vector<64x384xbf16>
    tpu.vector_store %arg6[%c0_11, %c0_12], %13 {strides = array<i32>} : memref<64x384xbf16, #tpu.memory_space<vmem>>, vector<64x384xbf16>,
    return
  }
  func.func @transform_0(%arg0: i32) -> (i32, i32) {
    %c0_i32 = arith.constant 0 : i32
    %c0_i32_0 = arith.constant 0 : i32
    return %arg0, %c0_i32 : i32, i32
  }
  func.func @transform_1(%arg0: i32) -> (i32, i32) {
    %c0_i32 = arith.constant 0 : i32
    %c0_i32_0 = arith.constant 0 : i32
    %c0_i32_1 = arith.constant 0 : i32
    return %c0_i32, %c0_i32_0 : i32, i32
  }
  func.func @transform_2(%arg0: i32) -> (i32, i32) {
    %c0_i32 = arith.constant 0 : i32
    %c0_i32_0 = arith.constant 0 : i32
    %c0_i32_1 = arith.constant 0 : i32
    return %c0_i32, %c0_i32_0 : i32, i32
  }
  func.func @transform_3(%arg0: i32) -> (i32, i32) {
    %c0_i32 = arith.constant 0 : i32
    %c0_i32_0 = arith.constant 0 : i32
    %c0_i32_1 = arith.constant 0 : i32
    return %c0_i32, %c0_i32_0 : i32, i32
  }
  func.func @transform_4(%arg0: i32) -> (i32, i32) {
    %c0_i32 = arith.constant 0 : i32
    %c0_i32_0 = arith.constant 0 : i32
    %c0_i32_1 = arith.constant 0 : i32
    return %c0_i32, %c0_i32_0 : i32, i32
  }
  func.func @transform_5(%arg0: i32) -> (i32, i32) {
    %c0_i32 = arith.constant 0 : i32
    %c0_i32_0 = arith.constant 0 : i32
    return %arg0, %c0_i32 : i32, i32
  }
}

module attributes {stable_mosaic.version = 11 : i64} {
  func.func @_pt_block_kernel(%arg0: i32, %arg1: memref<1024x128xbf16, #tpu.memory_space<vmem>>, %arg2: memref<1024x128xbf16, #tpu.memory_space<vmem>>, %arg3: memref<1024x8xf32, #tpu.memory_space<vmem>>, %arg4: memref<64x128xf32, #tpu.memory_space<vmem>>, %arg5: memref<8x8xf32, #tpu.memory_space<vmem>>, %arg6: memref<1x8xf32, #tpu.memory_space<vmem>>, %arg7: memref<8x128xf32, #tpu.memory_space<vmem>>, %arg8: memref<1x128xf32, #tpu.memory_space<vmem>>, %arg9: memref<1x128xf32, #tpu.memory_space<vmem>>, %arg10: memref<1x128xf32, #tpu.memory_space<vmem>>, %arg11: memref<128x4xf32, #tpu.memory_space<vmem>>, %arg12: memref<1x4xf32, #tpu.memory_space<vmem>>, %arg13: memref<4x4xf32, #tpu.memory_space<vmem>>, %arg14: memref<1x4xf32, #tpu.memory_space<vmem>>, %arg15: memref<4x128xf32, #tpu.memory_space<vmem>>, %arg16: memref<1x128xf32, #tpu.memory_space<vmem>>, %arg17: memref<1x128xf32, #tpu.memory_space<vmem>>, %arg18: memref<128x128xf32, #tpu.memory_space<vmem>>, %arg19: memref<1x128xf32, #tpu.memory_space<vmem>>, %arg20: memref<64x128xf32, #tpu.memory_space<vmem>>) attributes {dimension_semantics = [#tpu.dimension_semantics<parallel>], iteration_bounds = array<i64: 1>, scalar_prefetch = 0 : i64, scratch_operands = 0 : i64, tpu.core_type = #tpu.core_type<tc>, window_params = [{transform_indices = @transform_0, window_bounds = array<i64: 1024, 128>}, {transform_indices = @transform_1, window_bounds = array<i64: 1024, 128>}, {transform_indices = @transform_2, window_bounds = array<i64: 1024, 8>}, {transform_indices = @transform_3, window_bounds = array<i64: 64, 128>}, {pipeline_mode = #tpu.pipeline_mode<synchronous>, transform_indices = @transform_4, window_bounds = array<i64: 8, 8>}, {pipeline_mode = #tpu.pipeline_mode<synchronous>, transform_indices = @transform_5, window_bounds = array<i64: 1, 8>}, {pipeline_mode = #tpu.pipeline_mode<synchronous>, transform_indices = @transform_6, window_bounds = array<i64: 8, 128>}, {pipeline_mode = #tpu.pipeline_mode<synchronous>, transform_indices = @transform_7, window_bounds = array<i64: 1, 128>}, {pipeline_mode = #tpu.pipeline_mode<synchronous>, transform_indices = @transform_8, window_bounds = array<i64: 1, 128>}, {pipeline_mode = #tpu.pipeline_mode<synchronous>, transform_indices = @transform_9, window_bounds = array<i64: 1, 128>}, {pipeline_mode = #tpu.pipeline_mode<synchronous>, transform_indices = @transform_10, window_bounds = array<i64: 128, 4>}, {pipeline_mode = #tpu.pipeline_mode<synchronous>, transform_indices = @transform_11, window_bounds = array<i64: 1, 4>}, {pipeline_mode = #tpu.pipeline_mode<synchronous>, transform_indices = @transform_12, window_bounds = array<i64: 4, 4>}, {pipeline_mode = #tpu.pipeline_mode<synchronous>, transform_indices = @transform_13, window_bounds = array<i64: 1, 4>}, {pipeline_mode = #tpu.pipeline_mode<synchronous>, transform_indices = @transform_14, window_bounds = array<i64: 4, 128>}, {pipeline_mode = #tpu.pipeline_mode<synchronous>, transform_indices = @transform_15, window_bounds = array<i64: 1, 128>}, {pipeline_mode = #tpu.pipeline_mode<synchronous>, transform_indices = @transform_16, window_bounds = array<i64: 1, 128>}, {pipeline_mode = #tpu.pipeline_mode<synchronous>, transform_indices = @transform_17, window_bounds = array<i64: 128, 128>}, {pipeline_mode = #tpu.pipeline_mode<synchronous>, transform_indices = @transform_18, window_bounds = array<i64: 1, 128>}, {transform_indices = @transform_19, window_bounds = array<i64: 64, 128>}]} {
    %c0 = arith.constant 0 : index
    %c0_0 = arith.constant 0 : index
    %0 = vector.load %arg1[%c0, %c0_0] : memref<1024x128xbf16, #tpu.memory_space<vmem>>, vector<1024x128xbf16>
    %1 = arith.extf %0 : vector<1024x128xbf16> to vector<1024x128xf32>
    %c0_1 = arith.constant 0 : index
    %c0_2 = arith.constant 0 : index
    %2 = vector.load %arg2[%c0_1, %c0_2] : memref<1024x128xbf16, #tpu.memory_space<vmem>>, vector<1024x128xbf16>
    %3 = arith.extf %2 : vector<1024x128xbf16> to vector<1024x128xf32>
    %c0_3 = arith.constant 0 : index
    %c0_4 = arith.constant 0 : index
    %4 = vector.load %arg3[%c0_3, %c0_4] : memref<1024x8xf32, #tpu.memory_space<vmem>>, vector<1024x8xf32>
    %c0_5 = arith.constant 0 : index
    %c0_6 = arith.constant 0 : index
    %5 = vector.load %arg5[%c0_5, %c0_6] : memref<8x8xf32, #tpu.memory_space<vmem>>, vector<8x8xf32>
    %cst = arith.constant dense<0.000000e+00> : vector<1024x8xf32>
    %6 = tpu.matmul %4, %5, %cst {dimension_numbers = #tpu.dot_dimension_numbers<[1], [0], [0], [1], [0, 0, 1, 1], [], []>} : vector<1024x8xf32>, vector<8x8xf32>, vector<1024x8xf32> -> vector<1024x8xf32>
    %c0_7 = arith.constant 0 : index
    %c0_8 = arith.constant 0 : index
    %7 = vector.load %arg6[%c0_7, %c0_8] : memref<1x8xf32, #tpu.memory_space<vmem>>, vector<1x8xf32>
    %8 = vector.broadcast %7 : vector<1x8xf32> to vector<1024x8xf32>
    %9 = arith.addf %6, %8 : vector<1024x8xf32>
    %cst_9 = arith.constant 0.000000e+00 : f32
    %10 = vector.broadcast %cst_9 : f32 to vector<1024x8xf32>
    %11 = arith.maximumf %9, %10 : vector<1024x8xf32>
    %c0_10 = arith.constant 0 : index
    %c0_11 = arith.constant 0 : index
    %12 = vector.load %arg7[%c0_10, %c0_11] : memref<8x128xf32, #tpu.memory_space<vmem>>, vector<8x128xf32>
    %cst_12 = arith.constant dense<0.000000e+00> : vector<1024x128xf32>
    %13 = tpu.matmul %11, %12, %cst_12 {dimension_numbers = #tpu.dot_dimension_numbers<[1], [0], [0], [1], [0, 0, 1, 1], [], []>} : vector<1024x8xf32>, vector<8x128xf32>, vector<1024x128xf32> -> vector<1024x128xf32>
    %c0_13 = arith.constant 0 : index
    %c0_14 = arith.constant 0 : index
    %14 = vector.load %arg8[%c0_13, %c0_14] : memref<1x128xf32, #tpu.memory_space<vmem>>, vector<1x128xf32>
    %15 = vector.broadcast %14 : vector<1x128xf32> to vector<1024x128xf32>
    %16 = arith.addf %13, %15 : vector<1024x128xf32>
    %17 = arith.addf %1, %16 : vector<1024x128xf32>
    %c0_15 = arith.constant 0 : index
    %c0_16 = arith.constant 0 : index
    %18 = vector.load %arg9[%c0_15, %c0_16] : memref<1x128xf32, #tpu.memory_space<vmem>>, vector<1x128xf32>
    %19 = vector.broadcast %18 : vector<1x128xf32> to vector<1024x128xf32>
    %20 = arith.mulf %17, %19 : vector<1024x128xf32>
    %c0_17 = arith.constant 0 : index
    %c0_18 = arith.constant 0 : index
    %21 = vector.load %arg10[%c0_17, %c0_18] : memref<1x128xf32, #tpu.memory_space<vmem>>, vector<1x128xf32>
    %22 = vector.broadcast %21 : vector<1x128xf32> to vector<1024x128xf32>
    %23 = arith.addf %20, %22 : vector<1024x128xf32>
    %cst_19 = arith.constant 0.000000e+00 : f32
    %24 = vector.broadcast %cst_19 : f32 to vector<1024x128xf32>
    %25 = arith.maximumf %23, %24 : vector<1024x128xf32>
    %c0_20 = arith.constant 0 : index
    %c0_21 = arith.constant 0 : index
    %26 = vector.load %arg11[%c0_20, %c0_21] : memref<128x4xf32, #tpu.memory_space<vmem>>, vector<128x4xf32>
    %cst_22 = arith.constant dense<0.000000e+00> : vector<1024x4xf32>
    %27 = tpu.matmul %25, %26, %cst_22 {dimension_numbers = #tpu.dot_dimension_numbers<[1], [0], [0], [1], [0, 0, 1, 1], [], []>} : vector<1024x128xf32>, vector<128x4xf32>, vector<1024x4xf32> -> vector<1024x4xf32>
    %c0_23 = arith.constant 0 : index
    %c0_24 = arith.constant 0 : index
    %28 = vector.load %arg12[%c0_23, %c0_24] : memref<1x4xf32, #tpu.memory_space<vmem>>, vector<1x4xf32>
    %29 = vector.broadcast %28 : vector<1x4xf32> to vector<1024x4xf32>
    %30 = arith.addf %27, %29 : vector<1024x4xf32>
    %cst_25 = arith.constant 0.000000e+00 : f32
    %31 = vector.broadcast %cst_25 : f32 to vector<1024x4xf32>
    %32 = arith.maximumf %30, %31 : vector<1024x4xf32>
    %c0_26 = arith.constant 0 : index
    %c0_27 = arith.constant 0 : index
    %33 = vector.load %arg13[%c0_26, %c0_27] : memref<4x4xf32, #tpu.memory_space<vmem>>, vector<4x4xf32>
    %cst_28 = arith.constant dense<0.000000e+00> : vector<1024x4xf32>
    %34 = tpu.matmul %32, %33, %cst_28 {dimension_numbers = #tpu.dot_dimension_numbers<[1], [0], [0], [1], [0, 0, 1, 1], [], []>} : vector<1024x4xf32>, vector<4x4xf32>, vector<1024x4xf32> -> vector<1024x4xf32>
    %c0_29 = arith.constant 0 : index
    %c0_30 = arith.constant 0 : index
    %35 = vector.load %arg14[%c0_29, %c0_30] : memref<1x4xf32, #tpu.memory_space<vmem>>, vector<1x4xf32>
    %36 = vector.broadcast %35 : vector<1x4xf32> to vector<1024x4xf32>
    %37 = arith.addf %34, %36 : vector<1024x4xf32>
    %38 = vector.shape_cast %37 : vector<1024x4xf32> to vector<64x16x4xf32>
    %cst_31 = arith.constant dense<0xFF800000> : vector<64x4xf32>
    %39 = vector.multi_reduction <maximumf>, %38, %cst_31 [1] : vector<64x16x4xf32> to vector<64x4xf32>
    %40 = vector.shape_cast %39 : vector<64x4xf32> to vector<64x1x4xf32>
    %41 = vector.broadcast %40 : vector<64x1x4xf32> to vector<64x16x4xf32>
    %42 = arith.subf %38, %41 : vector<64x16x4xf32>
    %43 = math.exp %42 : vector<64x16x4xf32>
    %cst_32 = arith.constant dense<0.000000e+00> : vector<64x4xf32>
    %44 = vector.multi_reduction <add>, %43, %cst_32 [1] : vector<64x16x4xf32> to vector<64x4xf32>
    %45 = vector.shape_cast %44 : vector<64x4xf32> to vector<64x1x4xf32>
    %46 = tpu.reciprocal %45 {approx = true} : vector<64x1x4xf32> -> vector<64x1x4xf32>
    %47 = vector.broadcast %46 : vector<64x1x4xf32> to vector<64x16x4xf32>
    %48 = arith.mulf %43, %47 : vector<64x16x4xf32>
    %49 = vector.shape_cast %48 : vector<64x16x4xf32> to vector<1024x4xf32>
    %c0_33 = arith.constant 0 : index
    %c0_34 = arith.constant 0 : index
    %50 = vector.load %arg15[%c0_33, %c0_34] : memref<4x128xf32, #tpu.memory_space<vmem>>, vector<4x128xf32>
    %cst_35 = arith.constant dense<0.000000e+00> : vector<1024x128xf32>
    %51 = tpu.matmul %49, %50, %cst_35 {dimension_numbers = #tpu.dot_dimension_numbers<[1], [0], [0], [1], [0, 0, 1, 1], [], []>} : vector<1024x4xf32>, vector<4x128xf32>, vector<1024x128xf32> -> vector<1024x128xf32>
    %52 = arith.addf %3, %16 : vector<1024x128xf32>
    %53 = arith.mulf %52, %51 : vector<1024x128xf32>
    %54 = vector.shape_cast %53 : vector<1024x128xf32> to vector<64x16x128xf32>
    %cst_36 = arith.constant dense<0.000000e+00> : vector<64x128xf32>
    %55 = vector.multi_reduction <add>, %54, %cst_36 [1] : vector<64x16x128xf32> to vector<64x128xf32>
    %c0_37 = arith.constant 0 : index
    %c0_38 = arith.constant 0 : index
    %56 = vector.load %arg16[%c0_37, %c0_38] : memref<1x128xf32, #tpu.memory_space<vmem>>, vector<1x128xf32>
    %57 = vector.broadcast %56 : vector<1x128xf32> to vector<64x128xf32>
    %58 = arith.mulf %55, %57 : vector<64x128xf32>
    %c0_39 = arith.constant 0 : index
    %c0_40 = arith.constant 0 : index
    %59 = vector.load %arg17[%c0_39, %c0_40] : memref<1x128xf32, #tpu.memory_space<vmem>>, vector<1x128xf32>
    %60 = vector.broadcast %59 : vector<1x128xf32> to vector<64x128xf32>
    %61 = arith.addf %58, %60 : vector<64x128xf32>
    %cst_41 = arith.constant 0.000000e+00 : f32
    %62 = vector.broadcast %cst_41 : f32 to vector<64x128xf32>
    %63 = arith.maximumf %61, %62 : vector<64x128xf32>
    %c0_42 = arith.constant 0 : index
    %c0_43 = arith.constant 0 : index
    %64 = vector.load %arg18[%c0_42, %c0_43] : memref<128x128xf32, #tpu.memory_space<vmem>>, vector<128x128xf32>
    %cst_44 = arith.constant dense<0.000000e+00> : vector<64x128xf32>
    %65 = tpu.matmul %63, %64, %cst_44 {dimension_numbers = #tpu.dot_dimension_numbers<[1], [0], [0], [1], [0, 0, 1, 1], [], []>} : vector<64x128xf32>, vector<128x128xf32>, vector<64x128xf32> -> vector<64x128xf32>
    %c0_45 = arith.constant 0 : index
    %c0_46 = arith.constant 0 : index
    %66 = vector.load %arg19[%c0_45, %c0_46] : memref<1x128xf32, #tpu.memory_space<vmem>>, vector<1x128xf32>
    %67 = vector.broadcast %66 : vector<1x128xf32> to vector<64x128xf32>
    %68 = arith.addf %65, %67 : vector<64x128xf32>
    %c0_47 = arith.constant 0 : index
    %c0_48 = arith.constant 0 : index
    %69 = vector.load %arg4[%c0_47, %c0_48] : memref<64x128xf32, #tpu.memory_space<vmem>>, vector<64x128xf32>
    %70 = arith.addf %68, %69 : vector<64x128xf32>
    %cst_49 = arith.constant 0.000000e+00 : f32
    %71 = vector.broadcast %cst_49 : f32 to vector<64x128xf32>
    %72 = arith.maximumf %70, %71 : vector<64x128xf32>
    %c0_50 = arith.constant 0 : index
    %c0_51 = arith.constant 0 : index
    %73 = vector.load %arg20[%c0_50, %c0_51] : memref<64x128xf32, #tpu.memory_space<vmem>>, vector<64x128xf32>
    tpu.vector_store %arg20[%c0_50, %c0_51], %72 {strides = array<i32>} : memref<64x128xf32, #tpu.memory_space<vmem>>, vector<64x128xf32>,
    return
  }
  func.func @transform_0(%arg0: i32) -> (i32, i32) {
    %c0_i32 = arith.constant 0 : i32
    %c0_i32_0 = arith.constant 0 : i32
    return %arg0, %c0_i32 : i32, i32
  }
  func.func @transform_1(%arg0: i32) -> (i32, i32) {
    %c0_i32 = arith.constant 0 : i32
    %c0_i32_0 = arith.constant 0 : i32
    return %arg0, %c0_i32 : i32, i32
  }
  func.func @transform_2(%arg0: i32) -> (i32, i32) {
    %c0_i32 = arith.constant 0 : i32
    %c0_i32_0 = arith.constant 0 : i32
    return %arg0, %c0_i32 : i32, i32
  }
  func.func @transform_3(%arg0: i32) -> (i32, i32) {
    %c0_i32 = arith.constant 0 : i32
    %c0_i32_0 = arith.constant 0 : i32
    return %arg0, %c0_i32 : i32, i32
  }
  func.func @transform_4(%arg0: i32) -> (i32, i32) {
    %c0_i32 = arith.constant 0 : i32
    %c0_i32_0 = arith.constant 0 : i32
    %c0_i32_1 = arith.constant 0 : i32
    return %c0_i32, %c0_i32_0 : i32, i32
  }
  func.func @transform_5(%arg0: i32) -> (i32, i32) {
    %c0_i32 = arith.constant 0 : i32
    %c0_i32_0 = arith.constant 0 : i32
    %c0_i32_1 = arith.constant 0 : i32
    return %c0_i32, %c0_i32_0 : i32, i32
  }
  func.func @transform_6(%arg0: i32) -> (i32, i32) {
    %c0_i32 = arith.constant 0 : i32
    %c0_i32_0 = arith.constant 0 : i32
    %c0_i32_1 = arith.constant 0 : i32
    return %c0_i32, %c0_i32_0 : i32, i32
  }
  func.func @transform_7(%arg0: i32) -> (i32, i32) {
    %c0_i32 = arith.constant 0 : i32
    %c0_i32_0 = arith.constant 0 : i32
    %c0_i32_1 = arith.constant 0 : i32
    return %c0_i32, %c0_i32_0 : i32, i32
  }
  func.func @transform_8(%arg0: i32) -> (i32, i32) {
    %c0_i32 = arith.constant 0 : i32
    %c0_i32_0 = arith.constant 0 : i32
    %c0_i32_1 = arith.constant 0 : i32
    return %c0_i32, %c0_i32_0 : i32, i32
  }
  func.func @transform_9(%arg0: i32) -> (i32, i32) {
    %c0_i32 = arith.constant 0 : i32
    %c0_i32_0 = arith.constant 0 : i32
    %c0_i32_1 = arith.constant 0 : i32
    return %c0_i32, %c0_i32_0 : i32, i32
  }
  func.func @transform_10(%arg0: i32) -> (i32, i32) {
    %c0_i32 = arith.constant 0 : i32
    %c0_i32_0 = arith.constant 0 : i32
    %c0_i32_1 = arith.constant 0 : i32
    return %c0_i32, %c0_i32_0 : i32, i32
  }
  func.func @transform_11(%arg0: i32) -> (i32, i32) {
    %c0_i32 = arith.constant 0 : i32
    %c0_i32_0 = arith.constant 0 : i32
    %c0_i32_1 = arith.constant 0 : i32
    return %c0_i32, %c0_i32_0 : i32, i32
  }
  func.func @transform_12(%arg0: i32) -> (i32, i32) {
    %c0_i32 = arith.constant 0 : i32
    %c0_i32_0 = arith.constant 0 : i32
    %c0_i32_1 = arith.constant 0 : i32
    return %c0_i32, %c0_i32_0 : i32, i32
  }
  func.func @transform_13(%arg0: i32) -> (i32, i32) {
    %c0_i32 = arith.constant 0 : i32
    %c0_i32_0 = arith.constant 0 : i32
    %c0_i32_1 = arith.constant 0 : i32
    return %c0_i32, %c0_i32_0 : i32, i32
  }
  func.func @transform_14(%arg0: i32) -> (i32, i32) {
    %c0_i32 = arith.constant 0 : i32
    %c0_i32_0 = arith.constant 0 : i32
    %c0_i32_1 = arith.constant 0 : i32
    return %c0_i32, %c0_i32_0 : i32, i32
  }
  func.func @transform_15(%arg0: i32) -> (i32, i32) {
    %c0_i32 = arith.constant 0 : i32
    %c0_i32_0 = arith.constant 0 : i32
    %c0_i32_1 = arith.constant 0 : i32
    return %c0_i32, %c0_i32_0 : i32, i32
  }
  func.func @transform_16(%arg0: i32) -> (i32, i32) {
    %c0_i32 = arith.constant 0 : i32
    %c0_i32_0 = arith.constant 0 : i32
    %c0_i32_1 = arith.constant 0 : i32
    return %c0_i32, %c0_i32_0 : i32, i32
  }
  func.func @transform_17(%arg0: i32) -> (i32, i32) {
    %c0_i32 = arith.constant 0 : i32
    %c0_i32_0 = arith.constant 0 : i32
    %c0_i32_1 = arith.constant 0 : i32
    return %c0_i32, %c0_i32_0 : i32, i32
  }
  func.func @transform_18(%arg0: i32) -> (i32, i32) {
    %c0_i32 = arith.constant 0 : i32
    %c0_i32_0 = arith.constant 0 : i32
    %c0_i32_1 = arith.constant 0 : i32
    return %c0_i32, %c0_i32_0 : i32, i32
  }
  func.func @transform_19(%arg0: i32) -> (i32, i32) {
    %c0_i32 = arith.constant 0 : i32
    %c0_i32_0 = arith.constant 0 : i32
    return %arg0, %c0_i32 : i32, i32
  }
}

</mosaic_0001>

<llo_original>
// kernel: custom-call
$region0: #{custom-call}
  %s0 = inlined_call_operand.vmem [shape: u32[64], index: 0, kind: output, shape index: {}]

// kernel: _forward.2
$region0: #{_forward.2}
  #allocation0 [shape = 'u32[]', space=smem, size = 0x4, offset = 0x4, fixed_abs, tag = 'smem constant byte address 0x4 - core index']
  #allocation1 [shape = 'u32[144,128]{1,0:T(1,128)}', space=vmem, size = 0x12000, scoped, tag = 'internal scratch']
  %s0 = inlined_call_operand.vmem [shape: f32[64,128], index: 0, kind: input, shape index: {}]
  %s1 = inlined_call_operand.vmem [shape: f32[128,128], index: 1, kind: input, shape index: {}]
  %s2 = inlined_call_operand.vmem [shape: f32[1,128], index: 2, kind: input, shape index: {}]
  %s3 = inlined_call_operand.vmem [shape: f32[128,384], index: 3, kind: input, shape index: {}]
  %s4 = inlined_call_operand.vmem [shape: f32[1,384], index: 4, kind: input, shape index: {}]
  %s5 = inlined_call_operand.vmem [shape: bf16[64,384], index: 5, kind: output, shape index: {}]
  %s6 = sld [smem:[#allocation0]]
  $region30: #{_forward.2} parent=0
    _
  %s8 = ssub.s32 1, %s6
  %s9 = scalar_select 0, %s8, %s6
  // Predicated region
  $region2: #{_forward.2} parent=0 // pred_check
    _
  $region3: #{_forward.2} parent=0 // pred_check_branch
    %11 = sbr.rel (0) target = $region5
  $region4: #{_forward.2} parent=0 // pred_region
    _
  $region5: #{_forward.2} parent=0 // pred_fallthru
    _
  // Predicated region
  $region6: #{_forward.2} parent=0 // pred_check
    _
  $region7: #{_forward.2} parent=0 // pred_check_branch
    %13 = sbr.rel (0) target = $region9
  $region8: #{_forward.2} parent=0 // pred_region
    _
  $region9: #{_forward.2} parent=0 // pred_fallthru
    _
  // Predicated region
  $region10: #{_forward.2} parent=0 // pred_check
    _
  $region11: #{_forward.2} parent=0 // pred_check_branch
    %15 = sbr.rel (0) target = $region13
  $region12: #{_forward.2} parent=0 // pred_region
    _
  $region13: #{_forward.2} parent=0 // pred_fallthru
    _
  // Predicated region
  $region14: #{_forward.2} parent=0 // pred_check
    _
  $region15: #{_forward.2} parent=0 // pred_check_branch
    %17 = sbr.rel (0) target = $region17
  $region16: #{_forward.2} parent=0 // pred_region
    _
  $region17: #{_forward.2} parent=0 // pred_fallthru
    _
  // Predicated region
  $region18: #{_forward.2} parent=0 // pred_check
    _
  $region19: #{_forward.2} parent=0 // pred_check_branch
    %19 = sbr.rel (0) target = $region21
  $region20: #{_forward.2} parent=0 // pred_region
    _
  $region21: #{_forward.2} parent=0 // pred_fallthru
    _
  %v20 = vld [vmem:[%s0] sm:$0xff]
  %v21 = vld [vmem:[%s0 + $0x8] sm:$0xff]
  %v22 = vld [vmem:[%s0 + $0x10] sm:$0xff]
  %v23 = vld [vmem:[%s0 + $0x18] sm:$0xff]
  %v24 = vld [vmem:[%s0 + $0x20] sm:$0xff]
  %v25 = vld [vmem:[%s0 + $0x28] sm:$0xff]
  %v26 = vld [vmem:[%s0 + $0x30] sm:$0xff]
  %v27 = vld [vmem:[%s0 + $0x38] sm:$0xff]
  %v28 = vld [vmem:[%s1] sm:$0xff]
  %v29 = vld [vmem:[%s1 + $0x8] sm:$0xff]
  %v30 = vld [vmem:[%s1 + $0x10] sm:$0xff]
  %v31 = vld [vmem:[%s1 + $0x18] sm:$0xff]
  %v32 = vld [vmem:[%s1 + $0x20] sm:$0xff]
  %v33 = vld [vmem:[%s1 + $0x28] sm:$0xff]
  %v34 = vld [vmem:[%s1 + $0x30] sm:$0xff]
  %v35 = vld [vmem:[%s1 + $0x38] sm:$0xff]
  %v36 = vld [vmem:[%s1 + $0x40] sm:$0xff]
  %v37 = vld [vmem:[%s1 + $0x48] sm:$0xff]
  %v38 = vld [vmem:[%s1 + $0x50] sm:$0xff]
  %v39 = vld [vmem:[%s1 + $0x58] sm:$0xff]
  %v40 = vld [vmem:[%s1 + $0x60] sm:$0xff]
  %v41 = vld [vmem:[%s1 + $0x68] sm:$0xff]
  %v42 = vld [vmem:[%s1 + $0x70] sm:$0xff]
  %v43 = vld [vmem:[%s1 + $0x78] sm:$0xff]
  %v44 = vld [vmem:[%s2] sm:$0x1]
  %v46 = vlaneseq
  %v47 = vshrl.u32 %v46, 7
  %v48 = vsub.s32 0, %v47
  %v49 = vrot.slane %v44, %v48
  %51 = vmatprep.subr.mxu0 0.0
  %52 = vmatpush1.msra.mxu0 %v43
  %53 = vmatprep.subr.mxu0 0.0
  %54 = vmatpush1.msra.mxu0 %v42
  %55 = vmatprep.subr.mxu0 0.0
  %56 = vmatpush1.msra.mxu0 %v41
  %57 = vmatprep.subr.mxu0 0.0
  %58 = vmatpush1.msra.mxu0 %v40
  %59 = vmatprep.subr.mxu0 0.0
  %60 = vmatpush1.msra.mxu0 %v39
  %61 = vmatprep.subr.mxu0 0.0
  %62 = vmatpush1.msra.mxu0 %v38
  %63 = vmatprep.subr.mxu0 0.0
  %64 = vmatpush1.msra.mxu0 %v37
  %65 = vmatprep.subr.mxu0 0.0
  %66 = vmatpush1.msra.mxu0 %v36
  %67 = vmatprep.subr.mxu0 0.0
  %68 = vmatpush1.msra.mxu0 %v35
  %69 = vmatprep.subr.mxu0 0.0
  %70 = vmatpush1.msra.mxu0 %v34
  %71 = vmatprep.subr.mxu0 0.0
  %72 = vmatpush1.msra.mxu0 %v33
  %73 = vmatprep.subr.mxu0 0.0
  %74 = vmatpush1.msra.mxu0 %v32
  %75 = vmatprep.subr.mxu0 0.0
  %76 = vmatpush1.msra.mxu0 %v31
  %77 = vmatprep.subr.mxu0 0.0
  %78 = vmatpush1.msra.mxu0 %v30
  %79 = vmatprep.subr.mxu0 0.0
  %80 = vmatpush1.msra.mxu0 %v29
  %81 = vmatprep.subr.mxu0 0.0
  %82 = vmatpush1.msra.mxu0 %v28
  %83 = vmatprep.subr.mxu0 0.0
  %84 = vmatpush2.msra.mxu0 0.0
  %85 = vmatprep.subr.mxu0 0.0
  %86 = vmatpush2.msra.mxu0 0.0
  %87 = vmatprep.subr.mxu0 0.0
  %88 = vmatpush2.msra.mxu0 0.0
  %89 = vmatprep.subr.mxu0 0.0
  %90 = vmatpush2.msra.mxu0 0.0
  %91 = vmatprep.subr.mxu0 0.0
  %92 = vmatpush2.msra.mxu0 0.0
  %93 = vmatprep.subr.mxu0 0.0
  %94 = vmatpush2.msra.mxu0 0.0
  %95 = vmatprep.subr.mxu0 0.0
  %96 = vmatpush2.msra.mxu0 0.0
  %97 = vmatprep.subr.mxu0 0.0
  %98 = vmatpush2.msra.mxu0 0.0
  %99 = vmatprep.subr.mxu0 0.0
  %100 = vmatpush2.msra.mxu0 0.0
  %101 = vmatprep.subr.mxu0 0.0
  %102 = vmatpush2.msra.mxu0 0.0
  %103 = vmatprep.subr.mxu0 0.0
  %104 = vmatpush2.msra.mxu0 0.0
  %105 = vmatprep.subr.mxu0 0.0
  %106 = vmatpush2.msra.mxu0 0.0
  %107 = vmatprep.subr.mxu0 0.0
  %108 = vmatpush2.msra.mxu0 0.0
  %109 = vmatprep.subr.mxu0 0.0
  %110 = vmatpush2.msra.mxu0 0.0
  %111 = vmatprep.subr.mxu0 0.0
  %112 = vmatpush2.msra.mxu0 0.0
  %113 = vmatprep.subr.mxu0 0.0
  %114 = vmatpush2.msra.mxu0 0.0
  %115 = vmatprep.mubr.f32.mxu0 0.0
  %116 = vmatmul.mubr.f32.gmra.mxu0 %v20
  %v117 = vpop.f32.mrf.mxu0
  %v118 = vadd.f32 %v49, %v117
  %v119 = vpop.f32.mrf.mxu0
  %120 = vmatprep.mubr.f32.mxu0 0.0
  %121 = vmatmul.mubr.f32.gmra.mxu0 %v21
  %v122 = vpop.f32.mrf.mxu0
  %v123 = vadd.f32 %v49, %v122
  %v124 = vpop.f32.mrf.mxu0
  %125 = vmatprep.mubr.f32.mxu0 0.0
  %126 = vmatmul.mubr.f32.gmra.mxu0 %v22
  %v127 = vpop.f32.mrf.mxu0
  %v128 = vadd.f32 %v49, %v127
  %v129 = vpop.f32.mrf.mxu0
  %130 = vmatprep.mubr.f32.mxu0 0.0
  %131 = vmatmul.mubr.f32.gmra.mxu0 %v23
  %v132 = vpop.f32.mrf.mxu0
  %v133 = vadd.f32 %v49, %v132
  %v134 = vpop.f32.mrf.mxu0
  %135 = vmatprep.mubr.f32.mxu0 0.0
  %136 = vmatmul.mubr.f32.gmra.mxu0 %v24
  %v137 = vpop.f32.mrf.mxu0
  %v138 = vadd.f32 %v49, %v137
  %v139 = vpop.f32.mrf.mxu0
  %140 = vmatprep.mubr.f32.mxu0 0.0
  %141 = vmatmul.mubr.f32.gmra.mxu0 %v25
  %v142 = vpop.f32.mrf.mxu0
  %v143 = vadd.f32 %v49, %v142
  %v144 = vpop.f32.mrf.mxu0
  %145 = vmatprep.mubr.f32.mxu0 0.0
  %146 = vmatmul.mubr.f32.gmra.mxu0 %v26
  %v147 = vpop.f32.mrf.mxu0
  %v148 = vadd.f32 %v49, %v147
  %v149 = vpop.f32.mrf.mxu0
  %150 = vmatprep.mubr.f32.mxu0 0.0
  %151 = vmatmul.mubr.f32.gmra.mxu0 %v27
  %v152 = vpop.f32.mrf.mxu0
  %v153 = vadd.f32 %v49, %v152
  %v154 = vpop.f32.mrf.mxu0
  %155 = vdwg.mxu0
  %v156 = vmax.f32 %v118, 0.0
  %v157 = vmax.f32 %v123, 0.0
  %v158 = vmax.f32 %v128, 0.0
  %v159 = vmax.f32 %v133, 0.0
  %v160 = vmax.f32 %v138, 0.0
  %v161 = vmax.f32 %v143, 0.0
  %v162 = vmax.f32 %v148, 0.0
  %v163 = vmax.f32 %v153, 0.0
  %v164 = vld [vmem:[%s3] sm:$0xff]
  %v165 = vld [vmem:[%s3 + $0x8] sm:$0xff]
  %v166 = vld [vmem:[%s3 + $0x10] sm:$0xff]
  %v167 = vld [vmem:[%s3 + $0x18] sm:$0xff]
  %v168 = vld [vmem:[%s3 + $0x20] sm:$0xff]
  %v169 = vld [vmem:[%s3 + $0x28] sm:$0xff]
  %v170 = vld [vmem:[%s3 + $0x30] sm:$0xff]
  %v171 = vld [vmem:[%s3 + $0x38] sm:$0xff]
  %v172 = vld [vmem:[%s3 + $0x40] sm:$0xff]
  %v173 = vld [vmem:[%s3 + $0x48] sm:$0xff]
  %v174 = vld [vmem:[%s3 + $0x50] sm:$0xff]
  %v175 = vld [vmem:[%s3 + $0x58] sm:$0xff]
  %v176 = vld [vmem:[%s3 + $0x60] sm:$0xff]
  %v177 = vld [vmem:[%s3 + $0x68] sm:$0xff]
  %v178 = vld [vmem:[%s3 + $0x70] sm:$0xff]
  %v179 = vld [vmem:[%s3 + $0x78] sm:$0xff]
  %v180 = vld [vmem:[%s3 + $0x80] sm:$0xff]
  %v181 = vld [vmem:[%s3 + $0x88] sm:$0xff]
  %v182 = vld [vmem:[%s3 + $0x90] sm:$0xff]
  %v183 = vld [vmem:[%s3 + $0x98] sm:$0xff]
  %v184 = vld [vmem:[%s3 + $0xa0] sm:$0xff]
  %v185 = vld [vmem:[%s3 + $0xa8] sm:$0xff]
  %v186 = vld [vmem:[%s3 + $0xb0] sm:$0xff]
  %v187 = vld [vmem:[%s3 + $0xb8] sm:$0xff]
  %v188 = vld [vmem:[%s3 + $0xc0] sm:$0xff]
  %v189 = vld [vmem:[%s3 + $0xc8] sm:$0xff]
  %v190 = vld [vmem:[%s3 + $0xd0] sm:$0xff]
  %v191 = vld [vmem:[%s3 + $0xd8] sm:$0xff]
  %v192 = vld [vmem:[%s3 + $0xe0] sm:$0xff]
  %v193 = vld [vmem:[%s3 + $0xe8] sm:$0xff]
  %v194 = vld [vmem:[%s3 + $0xf0] sm:$0xff]
  %v195 = vld [vmem:[%s3 + $0xf8] sm:$0xff]
  %v196 = vld [vmem:[%s3 + $0x100] sm:$0xff]
  %v197 = vld [vmem:[%s3 + $0x108] sm:$0xff]
  %v198 = vld [vmem:[%s3 + $0x110] sm:$0xff]
  %v199 = vld [vmem:[%s3 + $0x118] sm:$0xff]
  %v200 = vld [vmem:[%s3 + $0x120] sm:$0xff]
  %v201 = vld [vmem:[%s3 + $0x128] sm:$0xff]
  %v202 = vld [vmem:[%s3 + $0x130] sm:$0xff]
  %v203 = vld [vmem:[%s3 + $0x138] sm:$0xff]
  %v204 = vld [vmem:[%s3 + $0x140] sm:$0xff]
  %v205 = vld [vmem:[%s3 + $0x148] sm:$0xff]
  %v206 = vld [vmem:[%s3 + $0x150] sm:$0xff]
  %v207 = vld [vmem:[%s3 + $0x158] sm:$0xff]
  %v208 = vld [vmem:[%s3 + $0x160] sm:$0xff]
  %v209 = vld [vmem:[%s3 + $0x168] sm:$0xff]
  %v210 = vld [vmem:[%s3 + $0x170] sm:$0xff]
  %v211 = vld [vmem:[%s3 + $0x178] sm:$0xff]
  %v212 = vld [vmem:[%s4] sm:$0x7]
  %v214 = vlaneseq
  %v215 = vshrl.u32 %v214, 7
  %v216 = vsub.s32 0, %v215
  %v217 = vrot.slane %v212, %v216
  %v218 = vlaneseq
  %v219 = vshrl.u32 %v218, 7
  %v220 = vsub.s32 1, %v219
  %v221 = vrot.slane %v212, %v220
  %v222 = vlaneseq
  %v223 = vshrl.u32 %v222, 7
  %v224 = vsub.s32 2, %v223
  %v225 = vrot.slane %v212, %v224
  %229 = vmatprep.subr.mxu0 %v210
  %230 = vmatpush1.msra.mxu0 %v209
  %231 = vmatprep.subr.mxu0 %v207
  %232 = vmatpush1.msra.mxu0 %v206
  %233 = vmatprep.subr.mxu0 %v204
  %234 = vmatpush1.msra.mxu0 %v203
  %235 = vmatprep.subr.mxu0 %v201
  %236 = vmatpush1.msra.mxu0 %v200
  %237 = vmatprep.subr.mxu0 %v198
  %238 = vmatpush1.msra.mxu0 %v197
  %239 = vmatprep.subr.mxu0 %v195
  %240 = vmatpush1.msra.mxu0 %v194
  %241 = vmatprep.subr.mxu0 %v192
  %242 = vmatpush1.msra.mxu0 %v191
  %243 = vmatprep.subr.mxu0 %v189
  %244 = vmatpush1.msra.mxu0 %v188
  %245 = vmatprep.subr.mxu0 %v186
  %246 = vmatpush1.msra.mxu0 %v185
  %247 = vmatprep.subr.mxu0 %v183
  %248 = vmatpush1.msra.mxu0 %v182
  %249 = vmatprep.subr.mxu0 %v180
  %250 = vmatpush1.msra.mxu0 %v179
  %251 = vmatprep.subr.mxu0 %v177
  %252 = vmatpush1.msra.mxu0 %v176
  %253 = vmatprep.subr.mxu0 %v174
  %254 = vmatpush1.msra.mxu0 %v173
  %255 = vmatprep.subr.mxu0 %v171
  %256 = vmatpush1.msra.mxu0 %v170
  %257 = vmatprep.subr.mxu0 %v168
  %258 = vmatpush1.msra.mxu0 %v167
  %259 = vmatprep.subr.mxu0 %v165
  %260 = vmatpush1.msra.mxu0 %v164
  %261 = vmatprep.subr.mxu0 0.0
  %262 = vmatpush2.msra.mxu0 0.0
  %263 = vmatprep.subr.mxu0 0.0
  %264 = vmatpush2.msra.mxu0 0.0
  %265 = vmatprep.subr.mxu0 0.0
  %266 = vmatpush2.msra.mxu0 0.0
  %267 = vmatprep.subr.mxu0 0.0
  %268 = vmatpush2.msra.mxu0 0.0
  %269 = vmatprep.subr.mxu0 0.0
  %270 = vmatpush2.msra.mxu0 0.0
  %271 = vmatprep.subr.mxu0 0.0
  %272 = vmatpush2.msra.mxu0 0.0
  %273 = vmatprep.subr.mxu0 0.0
  %274 = vmatpush2.msra.mxu0 0.0
  %275 = vmatprep.subr.mxu0 0.0
  %276 = vmatpush2.msra.mxu0 0.0
  %277 = vmatprep.subr.mxu0 0.0
  %278 = vmatpush2.msra.mxu0 0.0
  %279 = vmatprep.subr.mxu0 0.0
  %280 = vmatpush2.msra.mxu0 0.0
  %281 = vmatprep.subr.mxu0 0.0
  %282 = vmatpush2.msra.mxu0 0.0
  %283 = vmatprep.subr.mxu0 0.0
  %284 = vmatpush2.msra.mxu0 0.0
  %285 = vmatprep.subr.mxu0 0.0
  %286 = vmatpush2.msra.mxu0 0.0
  %287 = vmatprep.subr.mxu0 0.0
  %288 = vmatpush2.msra.mxu0 0.0
  %289 = vmatprep.subr.mxu0 0.0
  %290 = vmatpush2.msra.mxu0 0.0
  %291 = vmatprep.subr.mxu0 0.0
  %292 = vmatpush2.msra.mxu0 0.0
  %293 = vmatprep.mubr.f32.mxu0 0.0
  %294 = vmatmul.mubr.f32.gmra.mxu0 %v156
  %v295 = vpop.f32.mrf.mxu0
  %v296 = vadd.f32 %v217, %v295
  %v297 = vpop.f32.mrf.mxu0
  %v298 = vadd.f32 %v221, %v297
  %299 = vmatprep.mubr.f32.mxu0 0.0
  %300 = vmatmul.mubr.f32.gmra.mxu0 %v157
  %v301 = vpop.f32.mrf.mxu0
  %v302 = vadd.f32 %v217, %v301
  %v303 = vpop.f32.mrf.mxu0
  %v304 = vadd.f32 %v221, %v303
  %305 = vmatprep.mubr.f32.mxu0 0.0
  %306 = vmatmul.mubr.f32.gmra.mxu0 %v158
  %v307 = vpop.f32.mrf.mxu0
  %v308 = vadd.f32 %v217, %v307
  %v309 = vpop.f32.mrf.mxu0
  %v310 = vadd.f32 %v221, %v309
  %311 = vmatprep.mubr.f32.mxu0 0.0
  %312 = vmatmul.mubr.f32.gmra.mxu0 %v159
  %v313 = vpop.f32.mrf.mxu0
  %v314 = vadd.f32 %v217, %v313
  %v315 = vpop.f32.mrf.mxu0
  %v316 = vadd.f32 %v221, %v315
  %317 = vmatprep.mubr.f32.mxu0 0.0
  %318 = vmatmul.mubr.f32.gmra.mxu0 %v160
  %v319 = vpop.f32.mrf.mxu0
  %v320 = vadd.f32 %v217, %v319
  %v321 = vpop.f32.mrf.mxu0
  %v322 = vadd.f32 %v221, %v321
  %323 = vmatprep.mubr.f32.mxu0 0.0
  %324 = vmatmul.mubr.f32.gmra.mxu0 %v161
  %v325 = vpop.f32.mrf.mxu0
  %v326 = vadd.f32 %v217, %v325
  %v327 = vpop.f32.mrf.mxu0
  %v328 = vadd.f32 %v221, %v327
  %329 = vmatprep.mubr.f32.mxu0 0.0
  %330 = vmatmul.mubr.f32.gmra.mxu0 %v162
  %v331 = vpop.f32.mrf.mxu0
  %v332 = vadd.f32 %v217, %v331
  %v333 = vpop.f32.mrf.mxu0
  %v334 = vadd.f32 %v221, %v333
  %335 = vmatprep.mubr.f32.mxu0 0.0
  %336 = vmatmul.mubr.f32.gmra.mxu0 %v163
  %v337 = vpop.f32.mrf.mxu0
  %v338 = vadd.f32 %v217, %v337
  %v339 = vpop.f32.mrf.mxu0
  %v340 = vadd.f32 %v221, %v339
  %341 = vdwg.mxu0
  %342 = vmatprep.subr.mxu0 0.0
  %343 = vmatpush1.msra.mxu0 %v211
  %344 = vmatprep.subr.mxu0 0.0
  %345 = vmatpush1.msra.mxu0 %v208
  %346 = vmatprep.subr.mxu0 0.0
  %347 = vmatpush1.msra.mxu0 %v205
  %348 = vmatprep.subr.mxu0 0.0
  %349 = vmatpush1.msra.mxu0 %v202
  %350 = vmatprep.subr.mxu0 0.0
  %351 = vmatpush1.msra.mxu0 %v199
  %352 = vmatprep.subr.mxu0 0.0
  %353 = vmatpush1.msra.mxu0 %v196
  %354 = vmatprep.subr.mxu0 0.0
  %355 = vmatpush1.msra.mxu0 %v193
  %356 = vmatprep.subr.mxu0 0.0
  %357 = vmatpush1.msra.mxu0 %v190
  %358 = vmatprep.subr.mxu0 0.0
  %359 = vmatpush1.msra.mxu0 %v187
  %360 = vmatprep.subr.mxu0 0.0
  %361 = vmatpush1.msra.mxu0 %v184
  %362 = vmatprep.subr.mxu0 0.0
  %363 = vmatpush1.msra.mxu0 %v181
  %364 = vmatprep.subr.mxu0 0.0
  %365 = vmatpush1.msra.mxu0 %v178
  %366 = vmatprep.subr.mxu0 0.0
  %367 = vmatpush1.msra.mxu0 %v175
  %368 = vmatprep.subr.mxu0 0.0
  %369 = vmatpush1.msra.mxu0 %v172
  %370 = vmatprep.subr.mxu0 0.0
  %371 = vmatpush1.msra.mxu0 %v169
  %372 = vmatprep.subr.mxu0 0.0
  %373 = vmatpush1.msra.mxu0 %v166
  %374 = vmatprep.subr.mxu0 0.0
  %375 = vmatpush2.msra.mxu0 0.0
  %376 = vmatprep.subr.mxu0 0.0
  %377 = vmatpush2.msra.mxu0 0.0
  %378 = vmatprep.subr.mxu0 0.0
  %379 = vmatpush2.msra.mxu0 0.0
  %380 = vmatprep.subr.mxu0 0.0
  %381 = vmatpush2.msra.mxu0 0.0
  %382 = vmatprep.subr.mxu0 0.0
  %383 = vmatpush2.msra.mxu0 0.0
  %384 = vmatprep.subr.mxu0 0.0
  %385 = vmatpush2.msra.mxu0 0.0
  %386 = vmatprep.subr.mxu0 0.0
  %387 = vmatpush2.msra.mxu0 0.0
  %388 = vmatprep.subr.mxu0 0.0
  %389 = vmatpush2.msra.mxu0 0.0
  %390 = vmatprep.subr.mxu0 0.0
  %391 = vmatpush2.msra.mxu0 0.0
  %392 = vmatprep.subr.mxu0 0.0
  %393 = vmatpush2.msra.mxu0 0.0
  %394 = vmatprep.subr.mxu0 0.0
  %395 = vmatpush2.msra.mxu0 0.0
  %396 = vmatprep.subr.mxu0 0.0
  %397 = vmatpush2.msra.mxu0 0.0
  %398 = vmatprep.subr.mxu0 0.0
  %399 = vmatpush2.msra.mxu0 0.0
  %400 = vmatprep.subr.mxu0 0.0
  %401 = vmatpush2.msra.mxu0 0.0
  %402 = vmatprep.subr.mxu0 0.0
  %403 = vmatpush2.msra.mxu0 0.0
  %404 = vmatprep.subr.mxu0 0.0
  %405 = vmatpush2.msra.mxu0 0.0
  %406 = vmatprep.mubr.f32.mxu0 0.0
  %407 = vmatmul.mubr.f32.gmra.mxu0 %v156
  %v408 = vpop.f32.mrf.mxu0
  %v409 = vadd.f32 %v225, %v408
  %v410 = vpop.f32.mrf.mxu0
  %411 = vmatprep.mubr.f32.mxu0 0.0
  %412 = vmatmul.mubr.f32.gmra.mxu0 %v157
  %v413 = vpop.f32.mrf.mxu0
  %v414 = vadd.f32 %v225, %v413
  %v415 = vpop.f32.mrf.mxu0
  %416 = vmatprep.mubr.f32.mxu0 0.0
  %417 = vmatmul.mubr.f32.gmra.mxu0 %v158
  %v418 = vpop.f32.mrf.mxu0
  %v419 = vadd.f32 %v225, %v418
  %v420 = vpop.f32.mrf.mxu0
  %421 = vmatprep.mubr.f32.mxu0 0.0
  %422 = vmatmul.mubr.f32.gmra.mxu0 %v159
  %v423 = vpop.f32.mrf.mxu0
  %v424 = vadd.f32 %v225, %v423
  %v425 = vpop.f32.mrf.mxu0
  %426 = vmatprep.mubr.f32.mxu0 0.0
  %427 = vmatmul.mubr.f32.gmra.mxu0 %v160
  %v428 = vpop.f32.mrf.mxu0
  %v429 = vadd.f32 %v225, %v428
  %v430 = vpop.f32.mrf.mxu0
  %431 = vmatprep.mubr.f32.mxu0 0.0
  %432 = vmatmul.mubr.f32.gmra.mxu0 %v161
  %v433 = vpop.f32.mrf.mxu0
  %v434 = vadd.f32 %v225, %v433
  %v435 = vpop.f32.mrf.mxu0
  %436 = vmatprep.mubr.f32.mxu0 0.0
  %437 = vmatmul.mubr.f32.gmra.mxu0 %v162
  %v438 = vpop.f32.mrf.mxu0
  %v439 = vadd.f32 %v225, %v438
  %v440 = vpop.f32.mrf.mxu0
  %441 = vmatprep.mubr.f32.mxu0 0.0
  %442 = vmatmul.mubr.f32.gmra.mxu0 %v163
  %v443 = vpop.f32.mrf.mxu0
  %v444 = vadd.f32 %v225, %v443
  %v445 = vpop.f32.mrf.mxu0
  %446 = vdwg.mxu0
  %v447 = vpack.c.bf16 %v302, %v296
  %v448 = vpack.c.bf16 %v304, %v298
  %v449 = vpack.c.bf16 %v414, %v409
  %v450 = vpack.c.bf16 %v314, %v308
  %v451 = vpack.c.bf16 %v316, %v310
  %v452 = vpack.c.bf16 %v424, %v419
  %v453 = vpack.c.bf16 %v326, %v320
  %v454 = vpack.c.bf16 %v328, %v322
  %v455 = vpack.c.bf16 %v434, %v429
  %v456 = vpack.c.bf16 %v338, %v332
  %v457 = vpack.c.bf16 %v340, %v334
  %v458 = vpack.c.bf16 %v444, %v439
  %v471 = vunpack.c.l.b16 %v447
  %v472 = vunpack.c.l.b16 %v448
  %v473 = vunpack.c.l.b16 %v449
  %v474 = vunpack.c.h.b16 %v447
  %v475 = vunpack.c.h.b16 %v448
  %v476 = vunpack.c.h.b16 %v449
  %v477 = vunpack.c.l.b16 %v450
  %v478 = vunpack.c.l.b16 %v451
  %v479 = vunpack.c.l.b16 %v452
  %v480 = vunpack.c.h.b16 %v450
  %v481 = vunpack.c.h.b16 %v451
  %v482 = vunpack.c.h.b16 %v452
  %v483 = vunpack.c.l.b16 %v453
  %v484 = vunpack.c.l.b16 %v454
  %v485 = vunpack.c.l.b16 %v455
  %v486 = vunpack.c.h.b16 %v453
  %v487 = vunpack.c.h.b16 %v454
  %v488 = vunpack.c.h.b16 %v455
  %v489 = vunpack.c.l.b16 %v456
  %v490 = vunpack.c.l.b16 %v457
  %v491 = vunpack.c.l.b16 %v458
  %v492 = vunpack.c.h.b16 %v456
  %v493 = vunpack.c.h.b16 %v457
  %v494 = vunpack.c.h.b16 %v458
  %v495 = vpack.c.b16 %v472, %v471
  %v496 = vpack.c.b16 %v473, %v473
  %v497 = vpack.c.b16 %v475, %v474
  %v498 = vpack.c.b16 %v476, %v476
  %v499 = vpack.c.b16 %v478, %v477
  %v500 = vpack.c.b16 %v479, %v479
  %v501 = vpack.c.b16 %v481, %v480
  %v502 = vpack.c.b16 %v482, %v482
  %v503 = vpack.c.b16 %v484, %v483
  %v504 = vpack.c.b16 %v485, %v485
  %v505 = vpack.c.b16 %v487, %v486
  %v506 = vpack.c.b16 %v488, %v488
  %v507 = vpack.c.b16 %v490, %v489
  %v508 = vpack.c.b16 %v491, %v491
  %v509 = vpack.c.b16 %v493, %v492
  %v510 = vpack.c.b16 %v494, %v494
  %527 = vst [vmem:[%s5] sm:$0xff] %v495
  %528 = vst [vmem:[%s5 + $0x8] sm:$0xf] %v496
  %529 = vst [vmem:[%s5 + $0xc] sm:$0xff] %v497
  %530 = vst [vmem:[%s5 + $0x14] sm:$0xf] %v498
  %531 = vst [vmem:[%s5 + $0x18] sm:$0xff] %v499
  %532 = vst [vmem:[%s5 + $0x20] sm:$0xf] %v500
  %533 = vst [vmem:[%s5 + $0x24] sm:$0xff] %v501
  %534 = vst [vmem:[%s5 + $0x2c] sm:$0xf] %v502
  %535 = vst [vmem:[%s5 + $0x30] sm:$0xff] %v503
  %536 = vst [vmem:[%s5 + $0x38] sm:$0xf] %v504
  %537 = vst [vmem:[%s5 + $0x3c] sm:$0xff] %v505
  %538 = vst [vmem:[%s5 + $0x44] sm:$0xf] %v506
  %539 = vst [vmem:[%s5 + $0x48] sm:$0xff] %v507
  %540 = vst [vmem:[%s5 + $0x50] sm:$0xf] %v508
  %541 = vst [vmem:[%s5 + $0x54] sm:$0xff] %v509
  %542 = vst [vmem:[%s5 + $0x5c] sm:$0xf] %v510
  // Predicated region
  $region22: #{_forward.2} parent=0 // pred_check
    _
  $region23: #{_forward.2} parent=0 // pred_check_branch
    %544 = sbr.rel (0) target = $region25
  $region24: #{_forward.2} parent=0 // pred_region
    _
  $region25: #{_forward.2} parent=0 // pred_fallthru
    _
  // Predicated region
  $region26: #{_forward.2} parent=0 // pred_check
    _
  $region27: #{_forward.2} parent=0 // pred_check_branch
    %546 = sbr.rel (0) target = $region29
  $region28: #{_forward.2} parent=0 // pred_region
    _
  $region29: #{_forward.2} parent=0 // pred_fallthru
    _

// kernel: _forward.3
$region0: #{_forward.3}
  #allocation0 [shape = 'u32[]', space=smem, size = 0x4, offset = 0x4, fixed_abs, tag = 'smem constant byte address 0x4 - core index']
  #allocation1 [shape = 'u32[144,128]{1,0:T(1,128)}', space=vmem, size = 0x12000, scoped, tag = 'internal scratch']
  %s0 = inlined_call_operand.vmem [shape: bf16[1024,128], index: 0, kind: input, shape index: {}]
  %s1 = inlined_call_operand.vmem [shape: bf16[1024,128], index: 1, kind: input, shape index: {}]
  %s2 = inlined_call_operand.vmem [shape: f32[1024,8], index: 2, kind: input, shape index: {}]
  %s3 = inlined_call_operand.vmem [shape: f32[64,128], index: 3, kind: input, shape index: {}]
  %s4 = inlined_call_operand.vmem [shape: f32[8,8], index: 4, kind: input, shape index: {}]
  %s5 = inlined_call_operand.vmem [shape: f32[1,8], index: 5, kind: input, shape index: {}]
  %s6 = inlined_call_operand.vmem [shape: f32[8,128], index: 6, kind: input, shape index: {}]
  %s7 = inlined_call_operand.vmem [shape: f32[1,128], index: 7, kind: input, shape index: {}]
  %s8 = inlined_call_operand.vmem [shape: f32[1,128], index: 8, kind: input, shape index: {}]
  %s9 = inlined_call_operand.vmem [shape: f32[1,128], index: 9, kind: input, shape index: {}]
  %s10 = inlined_call_operand.vmem [shape: f32[128,4], index: 10, kind: input, shape index: {}]
  %s11 = inlined_call_operand.vmem [shape: f32[1,4], index: 11, kind: input, shape index: {}]
  %s12 = inlined_call_operand.vmem [shape: f32[4,4], index: 12, kind: input, shape index: {}]
  %s13 = inlined_call_operand.vmem [shape: f32[1,4], index: 13, kind: input, shape index: {}]
  %s14 = inlined_call_operand.vmem [shape: f32[4,128], index: 14, kind: input, shape index: {}]
  %s15 = inlined_call_operand.vmem [shape: f32[1,128], index: 15, kind: input, shape index: {}]
  %s16 = inlined_call_operand.vmem [shape: f32[1,128], index: 16, kind: input, shape index: {}]
  %s17 = inlined_call_operand.vmem [shape: f32[128,128], index: 17, kind: input, shape index: {}]
  %s18 = inlined_call_operand.vmem [shape: f32[1,128], index: 18, kind: input, shape index: {}]
  %s19 = inlined_call_operand.vmem [shape: f32[64,128], index: 19, kind: output, shape index: {}]
  %s20 = sld [smem:[#allocation0]]
  $region86: #{_forward.3} parent=0
    _
  %s22 = ssub.s32 1, %s20
  %s23 = scalar_select 0, %s22, %s20
  // Predicated region
  $region2: #{_forward.3} parent=0 // pred_check
    _
  $region3: #{_forward.3} parent=0 // pred_check_branch
    %25 = sbr.rel (0) target = $region5
  $region4: #{_forward.3} parent=0 // pred_region
    _
  $region5: #{_forward.3} parent=0 // pred_fallthru
    _
  // Predicated region
  $region6: #{_forward.3} parent=0 // pred_check
    _
  $region7: #{_forward.3} parent=0 // pred_check_branch
    %27 = sbr.rel (0) target = $region9
  $region8: #{_forward.3} parent=0 // pred_region
    _
  $region9: #{_forward.3} parent=0 // pred_fallthru
    _
  // Predicated region
  $region10: #{_forward.3} parent=0 // pred_check
    _
  $region11: #{_forward.3} parent=0 // pred_check_branch
    %29 = sbr.rel (0) target = $region13
  $region12: #{_forward.3} parent=0 // pred_region
    _
  $region13: #{_forward.3} parent=0 // pred_fallthru
    _
  // Predicated region
  $region14: #{_forward.3} parent=0 // pred_check
    _
  $region15: #{_forward.3} parent=0 // pred_check_branch
    %31 = sbr.rel (0) target = $region17
  $region16: #{_forward.3} parent=0 // pred_region
    _
  $region17: #{_forward.3} parent=0 // pred_fallthru
    _
  // Predicated region
  $region18: #{_forward.3} parent=0 // pred_check
    _
  $region19: #{_forward.3} parent=0 // pred_check_branch
    %33 = sbr.rel (0) target = $region21
  $region20: #{_forward.3} parent=0 // pred_region
    _
  $region21: #{_forward.3} parent=0 // pred_fallthru
    _
  // Predicated region
  $region22: #{_forward.3} parent=0 // pred_check
    _
  $region23: #{_forward.3} parent=0 // pred_check_branch
    %35 = sbr.rel (0) target = $region25
  $region24: #{_forward.3} parent=0 // pred_region
    _
  $region25: #{_forward.3} parent=0 // pred_fallthru
    _
  // Predicated region
  $region26: #{_forward.3} parent=0 // pred_check
    _
  $region27: #{_forward.3} parent=0 // pred_check_branch
    %37 = sbr.rel (0) target = $region29
  $region28: #{_forward.3} parent=0 // pred_region
    _
  $region29: #{_forward.3} parent=0 // pred_fallthru
    _
  // Predicated region
  $region30: #{_forward.3} parent=0 // pred_check
    _
  $region31: #{_forward.3} parent=0 // pred_check_branch
    %39 = sbr.rel (0) target = $region33
  $region32: #{_forward.3} parent=0 // pred_region
    _
  $region33: #{_forward.3} parent=0 // pred_fallthru
    _
  // Predicated region
  $region34: #{_forward.3} parent=0 // pred_check
    _
  $region35: #{_forward.3} parent=0 // pred_check_branch
    %41 = sbr.rel (0) target = $region37
  $region36: #{_forward.3} parent=0 // pred_region
    _
  $region37: #{_forward.3} parent=0 // pred_fallthru
    _
  // Predicated region
  $region38: #{_forward.3} parent=0 // pred_check
    _
  $region39: #{_forward.3} parent=0 // pred_check_branch
    %43 = sbr.rel (0) target = $region41
  $region40: #{_forward.3} parent=0 // pred_region
    _
  $region41: #{_forward.3} parent=0 // pred_fallthru
    _
  // Predicated region
  $region42: #{_forward.3} parent=0 // pred_check
    _
  $region43: #{_forward.3} parent=0 // pred_check_branch
    %45 = sbr.rel (0) target = $region45
  $region44: #{_forward.3} parent=0 // pred_region
    _
  $region45: #{_forward.3} parent=0 // pred_fallthru
    _
  // Predicated region
  $region46: #{_forward.3} parent=0 // pred_check
    _
  $region47: #{_forward.3} parent=0 // pred_check_branch
    %47 = sbr.rel (0) target = $region49
  $region48: #{_forward.3} parent=0 // pred_region
    _
  $region49: #{_forward.3} parent=0 // pred_fallthru
    _
  // Predicated region
  $region50: #{_forward.3} parent=0 // pred_check
    _
  $region51: #{_forward.3} parent=0 // pred_check_branch
    %49 = sbr.rel (0) target = $region53
  $region52: #{_forward.3} parent=0 // pred_region
    _
  $region53: #{_forward.3} parent=0 // pred_fallthru
    _
  // Predicated region
  $region54: #{_forward.3} parent=0 // pred_check
    _
  $region55: #{_forward.3} parent=0 // pred_check_branch
    %51 = sbr.rel (0) target = $region57
  $region56: #{_forward.3} parent=0 // pred_region
    _
  $region57: #{_forward.3} parent=0 // pred_fallthru
    _
  // Predicated region
  $region58: #{_forward.3} parent=0 // pred_check
    _
  $region59: #{_forward.3} parent=0 // pred_check_branch
    %53 = sbr.rel (0) target = $region61
  $region60: #{_forward.3} parent=0 // pred_region
    _
  $region61: #{_forward.3} parent=0 // pred_fallthru
    _
  // Predicated region
  $region62: #{_forward.3} parent=0 // pred_check
    _
  $region63: #{_forward.3} parent=0 // pred_check_branch
    %55 = sbr.rel (0) target = $region65
  $region64: #{_forward.3} parent=0 // pred_region
    _
  $region65: #{_forward.3} parent=0 // pred_fallthru
    _
  // Predicated region
  $region66: #{_forward.3} parent=0 // pred_check
    _
  $region67: #{_forward.3} parent=0 // pred_check_branch
    %57 = sbr.rel (0) target = $region69
  $region68: #{_forward.3} parent=0 // pred_region
    _
  $region69: #{_forward.3} parent=0 // pred_fallthru
    _
  // Predicated region
  $region70: #{_forward.3} parent=0 // pred_check
    _
  $region71: #{_forward.3} parent=0 // pred_check_branch
    %59 = sbr.rel (0) target = $region73
  $region72: #{_forward.3} parent=0 // pred_region
    _
  $region73: #{_forward.3} parent=0 // pred_fallthru
    _
  // Predicated region
  $region74: #{_forward.3} parent=0 // pred_check
    _
  $region75: #{_forward.3} parent=0 // pred_check_branch
    %61 = sbr.rel (0) target = $region77
  $region76: #{_forward.3} parent=0 // pred_region
    _
  $region77: #{_forward.3} parent=0 // pred_fallthru
    _
  %v62 = vld [vmem:[%s0] sm:$0xf]
  %v63 = vld [vmem:[%s0 + $0x4] sm:$0xf]
  %v64 = vld [vmem:[%s0 + $0x8] sm:$0xf]
  %v65 = vld [vmem:[%s0 + $0xc] sm:$0xf]
  %v66 = vld [vmem:[%s0 + $0x10] sm:$0xf]
  %v67 = vld [vmem:[%s0 + $0x14] sm:$0xf]
  %v68 = vld [vmem:[%s0 + $0x18] sm:$0xf]
  %v69 = vld [vmem:[%s0 + $0x1c] sm:$0xf]
  %v70 = vld [vmem:[%s0 + $0x20] sm:$0xf]
  %v71 = vld [vmem:[%s0 + $0x24] sm:$0xf]
  %v72 = vld [vmem:[%s0 + $0x28] sm:$0xf]
  %v73 = vld [vmem:[%s0 + $0x2c] sm:$0xf]
  %v74 = vld [vmem:[%s0 + $0x30] sm:$0xf]
  %v75 = vld [vmem:[%s0 + $0x34] sm:$0xf]
  %v76 = vld [vmem:[%s0 + $0x38] sm:$0xf]
  %v77 = vld [vmem:[%s0 + $0x3c] sm:$0xf]
  %v78 = vld [vmem:[%s0 + $0x40] sm:$0xf]
  %v79 = vld [vmem:[%s0 + $0x44] sm:$0xf]
  %v80 = vld [vmem:[%s0 + $0x48] sm:$0xf]
  %v81 = vld [vmem:[%s0 + $0x4c] sm:$0xf]
  %v82 = vld [vmem:[%s0 + $0x50] sm:$0xf]
  %v83 = vld [vmem:[%s0 + $0x54] sm:$0xf]
  %v84 = vld [vmem:[%s0 + $0x58] sm:$0xf]
  %v85 = vld [vmem:[%s0 + $0x5c] sm:$0xf]
  %v86 = vld [vmem:[%s0 + $0x60] sm:$0xf]
  %v87 = vld [vmem:[%s0 + $0x64] sm:$0xf]
  %v88 = vld [vmem:[%s0 + $0x68] sm:$0xf]
  %v89 = vld [vmem:[%s0 + $0x6c] sm:$0xf]
  %v90 = vld [vmem:[%s0 + $0x70] sm:$0xf]
  %v91 = vld [vmem:[%s0 + $0x74] sm:$0xf]
  %v92 = vld [vmem:[%s0 + $0x78] sm:$0xf]
  %v93 = vld [vmem:[%s0 + $0x7c] sm:$0xf]
  %v94 = vld [vmem:[%s0 + $0x80] sm:$0xf]
  %v95 = vld [vmem:[%s0 + $0x84] sm:$0xf]
  %v96 = vld [vmem:[%s0 + $0x88] sm:$0xf]
  %v97 = vld [vmem:[%s0 + $0x8c] sm:$0xf]
  %v98 = vld [vmem:[%s0 + $0x90] sm:$0xf]
  %v99 = vld [vmem:[%s0 + $0x94] sm:$0xf]
  %v100 = vld [vmem:[%s0 + $0x98] sm:$0xf]
  %v101 = vld [vmem:[%s0 + $0x9c] sm:$0xf]
  %v102 = vld [vmem:[%s0 + $0xa0] sm:$0xf]
  %v103 = vld [vmem:[%s0 + $0xa4] sm:$0xf]
  %v104 = vld [vmem:[%s0 + $0xa8] sm:$0xf]
  %v105 = vld [vmem:[%s0 + $0xac] sm:$0xf]
  %v106 = vld [vmem:[%s0 + $0xb0] sm:$0xf]
  %v107 = vld [vmem:[%s0 + $0xb4] sm:$0xf]
  %v108 = vld [vmem:[%s0 + $0xb8] sm:$0xf]
  %v109 = vld [vmem:[%s0 + $0xbc] sm:$0xf]
  %v110 = vld [vmem:[%s0 + $0xc0] sm:$0xf]
  %v111 = vld [vmem:[%s0 + $0xc4] sm:$0xf]
  %v112 = vld [vmem:[%s0 + $0xc8] sm:$0xf]
  %v113 = vld [vmem:[%s0 + $0xcc] sm:$0xf]
  %v114 = vld [vmem:[%s0 + $0xd0] sm:$0xf]
  %v115 = vld [vmem:[%s0 + $0xd4] sm:$0xf]
  %v116 = vld [vmem:[%s0 + $0xd8] sm:$0xf]
  %v117 = vld [vmem:[%s0 + $0xdc] sm:$0xf]
  %v118 = vld [vmem:[%s0 + $0xe0] sm:$0xf]
  %v119 = vld [vmem:[%s0 + $0xe4] sm:$0xf]
  %v120 = vld [vmem:[%s0 + $0xe8] sm:$0xf]
  %v121 = vld [vmem:[%s0 + $0xec] sm:$0xf]
  %v122 = vld [vmem:[%s0 + $0xf0] sm:$0xf]
  %v123 = vld [vmem:[%s0 + $0xf4] sm:$0xf]
  %v124 = vld [vmem:[%s0 + $0xf8] sm:$0xf]
  %v125 = vld [vmem:[%s0 + $0xfc] sm:$0xf]
  %v126 = vld [vmem:[%s0 + $0x100] sm:$0xf]
  %v127 = vld [vmem:[%s0 + $0x104] sm:$0xf]
  %v128 = vld [vmem:[%s0 + $0x108] sm:$0xf]
  %v129 = vld [vmem:[%s0 + $0x10c] sm:$0xf]
  %v130 = vld [vmem:[%s0 + $0x110] sm:$0xf]
  %v131 = vld [vmem:[%s0 + $0x114] sm:$0xf]
  %v132 = vld [vmem:[%s0 + $0x118] sm:$0xf]
  %v133 = vld [vmem:[%s0 + $0x11c] sm:$0xf]
  %v134 = vld [vmem:[%s0 + $0x120] sm:$0xf]
  %v135 = vld [vmem:[%s0 + $0x124] sm:$0xf]
  %v136 = vld [vmem:[%s0 + $0x128] sm:$0xf]
  %v137 = vld [vmem:[%s0 + $0x12c] sm:$0xf]
  %v138 = vld [vmem:[%s0 + $0x130] sm:$0xf]
  %v139 = vld [vmem:[%s0 + $0x134] sm:$0xf]
  %v140 = vld [vmem:[%s0 + $0x138] sm:$0xf]
  %v141 = vld [vmem:[%s0 + $0x13c] sm:$0xf]
  %v142 = vld [vmem:[%s0 + $0x140] sm:$0xf]
  %v143 = vld [vmem:[%s0 + $0x144] sm:$0xf]
  %v144 = vld [vmem:[%s0 + $0x148] sm:$0xf]
  %v145 = vld [vmem:[%s0 + $0x14c] sm:$0xf]
  %v146 = vld [vmem:[%s0 + $0x150] sm:$0xf]
  %v147 = vld [vmem:[%s0 + $0x154] sm:$0xf]
  %v148 = vld [vmem:[%s0 + $0x158] sm:$0xf]
  %v149 = vld [vmem:[%s0 + $0x15c] sm:$0xf]
  %v150 = vld [vmem:[%s0 + $0x160] sm:$0xf]
  %v151 = vld [vmem:[%s0 + $0x164] sm:$0xf]
  %v152 = vld [vmem:[%s0 + $0x168] sm:$0xf]
  %v153 = vld [vmem:[%s0 + $0x16c] sm:$0xf]
  %v154 = vld [vmem:[%s0 + $0x170] sm:$0xf]
  %v155 = vld [vmem:[%s0 + $0x174] sm:$0xf]
  %v156 = vld [vmem:[%s0 + $0x178] sm:$0xf]
  %v157 = vld [vmem:[%s0 + $0x17c] sm:$0xf]
  %v158 = vld [vmem:[%s0 + $0x180] sm:$0xf]
  %v159 = vld [vmem:[%s0 + $0x184] sm:$0xf]
  %v160 = vld [vmem:[%s0 + $0x188] sm:$0xf]
  %v161 = vld [vmem:[%s0 + $0x18c] sm:$0xf]
  %v162 = vld [vmem:[%s0 + $0x190] sm:$0xf]
  %v163 = vld [vmem:[%s0 + $0x194] sm:$0xf]
  %v164 = vld [vmem:[%s0 + $0x198] sm:$0xf]
  %v165 = vld [vmem:[%s0 + $0x19c] sm:$0xf]
  %v166 = vld [vmem:[%s0 + $0x1a0] sm:$0xf]
  %v167 = vld [vmem:[%s0 + $0x1a4] sm:$0xf]
  %v168 = vld [vmem:[%s0 + $0x1a8] sm:$0xf]
  %v169 = vld [vmem:[%s0 + $0x1ac] sm:$0xf]
  %v170 = vld [vmem:[%s0 + $0x1b0] sm:$0xf]
  %v171 = vld [vmem:[%s0 + $0x1b4] sm:$0xf]
  %v172 = vld [vmem:[%s0 + $0x1b8] sm:$0xf]
  %v173 = vld [vmem:[%s0 + $0x1bc] sm:$0xf]
  %v174 = vld [vmem:[%s0 + $0x1c0] sm:$0xf]
  %v175 = vld [vmem:[%s0 + $0x1c4] sm:$0xf]
  %v176 = vld [vmem:[%s0 + $0x1c8] sm:$0xf]
  %v177 = vld [vmem:[%s0 + $0x1cc] sm:$0xf]
  %v178 = vld [vmem:[%s0 + $0x1d0] sm:$0xf]
  %v179 = vld [vmem:[%s0 + $0x1d4] sm:$0xf]
  %v180 = vld [vmem:[%s0 + $0x1d8] sm:$0xf]
  %v181 = vld [vmem:[%s0 + $0x1dc] sm:$0xf]
  %v182 = vld [vmem:[%s0 + $0x1e0] sm:$0xf]
  %v183 = vld [vmem:[%s0 + $0x1e4] sm:$0xf]
  %v184 = vld [vmem:[%s0 + $0x1e8] sm:$0xf]
  %v185 = vld [vmem:[%s0 + $0x1ec] sm:$0xf]
  %v186 = vld [vmem:[%s0 + $0x1f0] sm:$0xf]
  %v187 = vld [vmem:[%s0 + $0x1f4] sm:$0xf]
  %v188 = vld [vmem:[%s0 + $0x1f8] sm:$0xf]
  %v189 = vld [vmem:[%s0 + $0x1fc] sm:$0xf]
  %v190 = vunpack.c.l.bf16 %v62
  %v191 = vunpack.c.l.bf16 %v63
  %v192 = vunpack.c.l.bf16 %v64
  %v193 = vunpack.c.l.bf16 %v65
  %v194 = vunpack.c.l.bf16 %v66
  %v195 = vunpack.c.l.bf16 %v67
  %v196 = vunpack.c.l.bf16 %v68
  %v197 = vunpack.c.l.bf16 %v69
  %v198 = vunpack.c.l.bf16 %v70
  %v199 = vunpack.c.l.bf16 %v71
  %v200 = vunpack.c.l.bf16 %v72
  %v201 = vunpack.c.l.bf16 %v73
  %v202 = vunpack.c.l.bf16 %v74
  %v203 = vunpack.c.l.bf16 %v75
  %v204 = vunpack.c.l.bf16 %v76
  %v205 = vunpack.c.l.bf16 %v77
  %v206 = vunpack.c.l.bf16 %v78
  %v207 = vunpack.c.l.bf16 %v79
  %v208 = vunpack.c.l.bf16 %v80
  %v209 = vunpack.c.l.bf16 %v81
  %v210 = vunpack.c.l.bf16 %v82
  %v211 = vunpack.c.l.bf16 %v83
  %v212 = vunpack.c.l.bf16 %v84
  %v213 = vunpack.c.l.bf16 %v85
  %v214 = vunpack.c.l.bf16 %v86
  %v215 = vunpack.c.l.bf16 %v87
  %v216 = vunpack.c.l.bf16 %v88
  %v217 = vunpack.c.l.bf16 %v89
  %v218 = vunpack.c.l.bf16 %v90
  %v219 = vunpack.c.l.bf16 %v91
  %v220 = vunpack.c.l.bf16 %v92
  %v221 = vunpack.c.l.bf16 %v93
  %v222 = vunpack.c.l.bf16 %v94
  %v223 = vunpack.c.l.bf16 %v95
  %v224 = vunpack.c.l.bf16 %v96
  %v225 = vunpack.c.l.bf16 %v97
  %v226 = vunpack.c.l.bf16 %v98
  %v227 = vunpack.c.l.bf16 %v99
  %v228 = vunpack.c.l.bf16 %v100
  %v229 = vunpack.c.l.bf16 %v101
  %v230 = vunpack.c.l.bf16 %v102
  %v231 = vunpack.c.l.bf16 %v103
  %v232 = vunpack.c.l.bf16 %v104
  %v233 = vunpack.c.l.bf16 %v105
  %v234 = vunpack.c.l.bf16 %v106
  %v235 = vunpack.c.l.bf16 %v107
  %v236 = vunpack.c.l.bf16 %v108
  %v237 = vunpack.c.l.bf16 %v109
  %v238 = vunpack.c.l.bf16 %v110
  %v239 = vunpack.c.l.bf16 %v111
  %v240 = vunpack.c.l.bf16 %v112
  %v241 = vunpack.c.l.bf16 %v113
  %v242 = vunpack.c.l.bf16 %v114
  %v243 = vunpack.c.l.bf16 %v115
  %v244 = vunpack.c.l.bf16 %v116
  %v245 = vunpack.c.l.bf16 %v117
  %v246 = vunpack.c.l.bf16 %v118
  %v247 = vunpack.c.l.bf16 %v119
  %v248 = vunpack.c.l.bf16 %v120
  %v249 = vunpack.c.l.bf16 %v121
  %v250 = vunpack.c.l.bf16 %v122
  %v251 = vunpack.c.l.bf16 %v123
  %v252 = vunpack.c.l.bf16 %v124
  %v253 = vunpack.c.l.bf16 %v125
  %v254 = vunpack.c.l.bf16 %v126
  %v255 = vunpack.c.l.bf16 %v127
  %v256 = vunpack.c.l.bf16 %v128
  %v257 = vunpack.c.l.bf16 %v129
  %v258 = vunpack.c.l.bf16 %v130
  %v259 = vunpack.c.l.bf16 %v131
  %v260 = vunpack.c.l.bf16 %v132
  %v261 = vunpack.c.l.bf16 %v133
  %v262 = vunpack.c.l.bf16 %v134
  %v263 = vunpack.c.l.bf16 %v135
  %v264 = vunpack.c.l.bf16 %v136
  %v265 = vunpack.c.l.bf16 %v137
  %v266 = vunpack.c.l.bf16 %v138
  %v267 = vunpack.c.l.bf16 %v139
  %v268 = vunpack.c.l.bf16 %v140
  %v269 = vunpack.c.l.bf16 %v141
  %v270 = vunpack.c.l.bf16 %v142
  %v271 = vunpack.c.l.bf16 %v143
  %v272 = vunpack.c.l.bf16 %v144
  %v273 = vunpack.c.l.bf16 %v145
  %v274 = vunpack.c.l.bf16 %v146
  %v275 = vunpack.c.l.bf16 %v147
  %v276 = vunpack.c.l.bf16 %v148
  %v277 = vunpack.c.l.bf16 %v149
  %v278 = vunpack.c.l.bf16 %v150
  %v279 = vunpack.c.l.bf16 %v151
  %v280 = vunpack.c.l.bf16 %v152
  %v281 = vunpack.c.l.bf16 %v153
  %v282 = vunpack.c.l.bf16 %v154
  %v283 = vunpack.c.l.bf16 %v155
  %v284 = vunpack.c.l.bf16 %v156
  %v285 = vunpack.c.l.bf16 %v157
  %v286 = vunpack.c.l.bf16 %v158
  %v287 = vunpack.c.l.bf16 %v159
  %v288 = vunpack.c.l.bf16 %v160
  %v289 = vunpack.c.l.bf16 %v161
  %v290 = vunpack.c.l.bf16 %v162
  %v291 = vunpack.c.l.bf16 %v163
  %v292 = vunpack.c.l.bf16 %v164
  %v293 = vunpack.c.l.bf16 %v165
  %v294 = vunpack.c.l.bf16 %v166
  %v295 = vunpack.c.l.bf16 %v167
  %v296 = vunpack.c.l.bf16 %v168
  %v297 = vunpack.c.l.bf16 %v169
  %v298 = vunpack.c.l.bf16 %v170
  %v299 = vunpack.c.l.bf16 %v171
  %v300 = vunpack.c.l.bf16 %v172
  %v301 = vunpack.c.l.bf16 %v173
  %v302 = vunpack.c.l.bf16 %v174
  %v303 = vunpack.c.l.bf16 %v175
  %v304 = vunpack.c.l.bf16 %v176
  %v305 = vunpack.c.l.bf16 %v177
  %v306 = vunpack.c.l.bf16 %v178
  %v307 = vunpack.c.l.bf16 %v179
  %v308 = vunpack.c.l.bf16 %v180
  %v309 = vunpack.c.l.bf16 %v181
  %v310 = vunpack.c.l.bf16 %v182
  %v311 = vunpack.c.l.bf16 %v183
  %v312 = vunpack.c.l.bf16 %v184
  %v313 = vunpack.c.l.bf16 %v185
  %v314 = vunpack.c.l.bf16 %v186
  %v315 = vunpack.c.l.bf16 %v187
  %v316 = vunpack.c.l.bf16 %v188
  %v317 = vunpack.c.l.bf16 %v189
  %v318 = vld [vmem:[%s1] sm:$0xf]
  %v319 = vld [vmem:[%s1 + $0x4] sm:$0xf]
  %v320 = vld [vmem:[%s1 + $0x8] sm:$0xf]
  %v321 = vld [vmem:[%s1 + $0xc] sm:$0xf]
  %v322 = vld [vmem:[%s1 + $0x10] sm:$0xf]
  %v323 = vld [vmem:[%s1 + $0x14] sm:$0xf]
  %v324 = vld [vmem:[%s1 + $0x18] sm:$0xf]
  %v325 = vld [vmem:[%s1 + $0x1c] sm:$0xf]
  %v326 = vld [vmem:[%s1 + $0x20] sm:$0xf]
  %v327 = vld [vmem:[%s1 + $0x24] sm:$0xf]
  %v328 = vld [vmem:[%s1 + $0x28] sm:$0xf]
  %v329 = vld [vmem:[%s1 + $0x2c] sm:$0xf]
  %v330 = vld [vmem:[%s1 + $0x30] sm:$0xf]
  %v331 = vld [vmem:[%s1 + $0x34] sm:$0xf]
  %v332 = vld [vmem:[%s1 + $0x38] sm:$0xf]
  %v333 = vld [vmem:[%s1 + $0x3c] sm:$0xf]
  %v334 = vld [vmem:[%s1 + $0x40] sm:$0xf]
  %v335 = vld [vmem:[%s1 + $0x44] sm:$0xf]
  %v336 = vld [vmem:[%s1 + $0x48] sm:$0xf]
  %v337 = vld [vmem:[%s1 + $0x4c] sm:$0xf]
  %v338 = vld [vmem:[%s1 + $0x50] sm:$0xf]
  %v339 = vld [vmem:[%s1 + $0x54] sm:$0xf]
  %v340 = vld [vmem:[%s1 + $0x58] sm:$0xf]
  %v341 = vld [vmem:[%s1 + $0x5c] sm:$0xf]
  %v342 = vld [vmem:[%s1 + $0x60] sm:$0xf]
  %v343 = vld [vmem:[%s1 + $0x64] sm:$0xf]
  %v344 = vld [vmem:[%s1 + $0x68] sm:$0xf]
  %v345 = vld [vmem:[%s1 + $0x6c] sm:$0xf]
  %v346 = vld [vmem:[%s1 + $0x70] sm:$0xf]
  %v347 = vld [vmem:[%s1 + $0x74] sm:$0xf]
  %v348 = vld [vmem:[%s1 + $0x78] sm:$0xf]
  %v349 = vld [vmem:[%s1 + $0x7c] sm:$0xf]
  %v350 = vld [vmem:[%s1 + $0x80] sm:$0xf]
  %v351 = vld [vmem:[%s1 + $0x84] sm:$0xf]
  %v352 = vld [vmem:[%s1 + $0x88] sm:$0xf]
  %v353 = vld [vmem:[%s1 + $0x8c] sm:$0xf]
  %v354 = vld [vmem:[%s1 + $0x90] sm:$0xf]
  %v355 = vld [vmem:[%s1 + $0x94] sm:$0xf]
  %v356 = vld [vmem:[%s1 + $0x98] sm:$0xf]
  %v357 = vld [vmem:[%s1 + $0x9c] sm:$0xf]
  %v358 = vld [vmem:[%s1 + $0xa0] sm:$0xf]
  %v359 = vld [vmem:[%s1 + $0xa4] sm:$0xf]
  %v360 = vld [vmem:[%s1 + $0xa8] sm:$0xf]
  %v361 = vld [vmem:[%s1 + $0xac] sm:$0xf]
  %v362 = vld [vmem:[%s1 + $0xb0] sm:$0xf]
  %v363 = vld [vmem:[%s1 + $0xb4] sm:$0xf]
  %v364 = vld [vmem:[%s1 + $0xb8] sm:$0xf]
  %v365 = vld [vmem:[%s1 + $0xbc] sm:$0xf]
  %v366 = vld [vmem:[%s1 + $0xc0] sm:$0xf]
  %v367 = vld [vmem:[%s1 + $0xc4] sm:$0xf]
  %v368 = vld [vmem:[%s1 + $0xc8] sm:$0xf]
  %v369 = vld [vmem:[%s1 + $0xcc] sm:$0xf]
  %v370 = vld [vmem:[%s1 + $0xd0] sm:$0xf]
  %v371 = vld [vmem:[%s1 + $0xd4] sm:$0xf]
  %v372 = vld [vmem:[%s1 + $0xd8] sm:$0xf]
  %v373 = vld [vmem:[%s1 + $0xdc] sm:$0xf]
  %v374 = vld [vmem:[%s1 + $0xe0] sm:$0xf]
  %v375 = vld [vmem:[%s1 + $0xe4] sm:$0xf]
  %v376 = vld [vmem:[%s1 + $0xe8] sm:$0xf]
  %v377 = vld [vmem:[%s1 + $0xec] sm:$0xf]
  %v378 = vld [vmem:[%s1 + $0xf0] sm:$0xf]
  %v379 = vld [vmem:[%s1 + $0xf4] sm:$0xf]
  %v380 = vld [vmem:[%s1 + $0xf8] sm:$0xf]
  %v381 = vld [vmem:[%s1 + $0xfc] sm:$0xf]
  %v382 = vld [vmem:[%s1 + $0x100] sm:$0xf]
  %v383 = vld [vmem:[%s1 + $0x104] sm:$0xf]
  %v384 = vld [vmem:[%s1 + $0x108] sm:$0xf]
  %v385 = vld [vmem:[%s1 + $0x10c] sm:$0xf]
  %v386 = vld [vmem:[%s1 + $0x110] sm:$0xf]
  %v387 = vld [vmem:[%s1 + $0x114] sm:$0xf]
  %v388 = vld [vmem:[%s1 + $0x118] sm:$0xf]
  %v389 = vld [vmem:[%s1 + $0x11c] sm:$0xf]
  %v390 = vld [vmem:[%s1 + $0x120] sm:$0xf]
  %v391 = vld [vmem:[%s1 + $0x124] sm:$0xf]
  %v392 = vld [vmem:[%s1 + $0x128] sm:$0xf]
  %v393 = vld [vmem:[%s1 + $0x12c] sm:$0xf]
  %v394 = vld [vmem:[%s1 + $0x130] sm:$0xf]
  %v395 = vld [vmem:[%s1 + $0x134] sm:$0xf]
  %v396 = vld [vmem:[%s1 + $0x138] sm:$0xf]
  %v397 = vld [vmem:[%s1 + $0x13c] sm:$0xf]
  %v398 = vld [vmem:[%s1 + $0x140] sm:$0xf]
  %v399 = vld [vmem:[%s1 + $0x144] sm:$0xf]
  %v400 = vld [vmem:[%s1 + $0x148] sm:$0xf]
  %v401 = vld [vmem:[%s1 + $0x14c] sm:$0xf]
  %v402 = vld [vmem:[%s1 + $0x150] sm:$0xf]
  %v403 = vld [vmem:[%s1 + $0x154] sm:$0xf]
  %v404 = vld [vmem:[%s1 + $0x158] sm:$0xf]
  %v405 = vld [vmem:[%s1 + $0x15c] sm:$0xf]
  %v406 = vld [vmem:[%s1 + $0x160] sm:$0xf]
  %v407 = vld [vmem:[%s1 + $0x164] sm:$0xf]
  %v408 = vld [vmem:[%s1 + $0x168] sm:$0xf]
  %v409 = vld [vmem:[%s1 + $0x16c] sm:$0xf]
  %v410 = vld [vmem:[%s1 + $0x170] sm:$0xf]
  %v411 = vld [vmem:[%s1 + $0x174] sm:$0xf]
  %v412 = vld [vmem:[%s1 + $0x178] sm:$0xf]
  %v413 = vld [vmem:[%s1 + $0x17c] sm:$0xf]
  %v414 = vld [vmem:[%s1 + $0x180] sm:$0xf]
  %v415 = vld [vmem:[%s1 + $0x184] sm:$0xf]
  %v416 = vld [vmem:[%s1 + $0x188] sm:$0xf]
  %v417 = vld [vmem:[%s1 + $0x18c] sm:$0xf]
  %v418 = vld [vmem:[%s1 + $0x190] sm:$0xf]
  %v419 = vld [vmem:[%s1 + $0x194] sm:$0xf]
  %v420 = vld [vmem:[%s1 + $0x198] sm:$0xf]
  %v421 = vld [vmem:[%s1 + $0x19c] sm:$0xf]
  %v422 = vld [vmem:[%s1 + $0x1a0] sm:$0xf]
  %v423 = vld [vmem:[%s1 + $0x1a4] sm:$0xf]
  %v424 = vld [vmem:[%s1 + $0x1a8] sm:$0xf]
  %v425 = vld [vmem:[%s1 + $0x1ac] sm:$0xf]
  %v426 = vld [vmem:[%s1 + $0x1b0] sm:$0xf]
  %v427 = vld [vmem:[%s1 + $0x1b4] sm:$0xf]
  %v428 = vld [vmem:[%s1 + $0x1b8] sm:$0xf]
  %v429 = vld [vmem:[%s1 + $0x1bc] sm:$0xf]
  %v430 = vld [vmem:[%s1 + $0x1c0] sm:$0xf]
  %v431 = vld [vmem:[%s1 + $0x1c4] sm:$0xf]
  %v432 = vld [vmem:[%s1 + $0x1c8] sm:$0xf]
  %v433 = vld [vmem:[%s1 + $0x1cc] sm:$0xf]
  %v434 = vld [vmem:[%s1 + $0x1d0] sm:$0xf]
  %v435 = vld [vmem:[%s1 + $0x1d4] sm:$0xf]
  %v436 = vld [vmem:[%s1 + $0x1d8] sm:$0xf]
  %v437 = vld [vmem:[%s1 + $0x1dc] sm:$0xf]
  %v438 = vld [vmem:[%s1 + $0x1e0] sm:$0xf]
  %v439 = vld [vmem:[%s1 + $0x1e4] sm:$0xf]
  %v440 = vld [vmem:[%s1 + $0x1e8] sm:$0xf]
  %v441 = vld [vmem:[%s1 + $0x1ec] sm:$0xf]
  %v442 = vld [vmem:[%s1 + $0x1f0] sm:$0xf]
  %v443 = vld [vmem:[%s1 + $0x1f4] sm:$0xf]
  %v444 = vld [vmem:[%s1 + $0x1f8] sm:$0xf]
  %v445 = vld [vmem:[%s1 + $0x1fc] sm:$0xf]
  %v446 = vunpack.c.l.bf16 %v318
  %v447 = vunpack.c.l.bf16 %v319
  %v448 = vunpack.c.l.bf16 %v320
  %v449 = vunpack.c.l.bf16 %v321
  %v450 = vunpack.c.l.bf16 %v322
  %v451 = vunpack.c.l.bf16 %v323
  %v452 = vunpack.c.l.bf16 %v324
  %v453 = vunpack.c.l.bf16 %v325
  %v454 = vunpack.c.l.bf16 %v326
  %v455 = vunpack.c.l.bf16 %v327
  %v456 = vunpack.c.l.bf16 %v328
  %v457 = vunpack.c.l.bf16 %v329
  %v458 = vunpack.c.l.bf16 %v330
  %v459 = vunpack.c.l.bf16 %v331
  %v460 = vunpack.c.l.bf16 %v332
  %v461 = vunpack.c.l.bf16 %v333
  %v462 = vunpack.c.l.bf16 %v334
  %v463 = vunpack.c.l.bf16 %v335
  %v464 = vunpack.c.l.bf16 %v336
  %v465 = vunpack.c.l.bf16 %v337
  %v466 = vunpack.c.l.bf16 %v338
  %v467 = vunpack.c.l.bf16 %v339
  %v468 = vunpack.c.l.bf16 %v340
  %v469 = vunpack.c.l.bf16 %v341
  %v470 = vunpack.c.l.bf16 %v342
  %v471 = vunpack.c.l.bf16 %v343
  %v472 = vunpack.c.l.bf16 %v344
  %v473 = vunpack.c.l.bf16 %v345
  %v474 = vunpack.c.l.bf16 %v346
  %v475 = vunpack.c.l.bf16 %v347
  %v476 = vunpack.c.l.bf16 %v348
  %v477 = vunpack.c.l.bf16 %v349
  %v478 = vunpack.c.l.bf16 %v350
  %v479 = vunpack.c.l.bf16 %v351
  %v480 = vunpack.c.l.bf16 %v352
  %v481 = vunpack.c.l.bf16 %v353
  %v482 = vunpack.c.l.bf16 %v354
  %v483 = vunpack.c.l.bf16 %v355
  %v484 = vunpack.c.l.bf16 %v356
  %v485 = vunpack.c.l.bf16 %v357
  %v486 = vunpack.c.l.bf16 %v358
  %v487 = vunpack.c.l.bf16 %v359
  %v488 = vunpack.c.l.bf16 %v360
  %v489 = vunpack.c.l.bf16 %v361
  %v490 = vunpack.c.l.bf16 %v362
  %v491 = vunpack.c.l.bf16 %v363
  %v492 = vunpack.c.l.bf16 %v364
  %v493 = vunpack.c.l.bf16 %v365
  %v494 = vunpack.c.l.bf16 %v366
  %v495 = vunpack.c.l.bf16 %v367
  %v496 = vunpack.c.l.bf16 %v368
  %v497 = vunpack.c.l.bf16 %v369
  %v498 = vunpack.c.l.bf16 %v370
  %v499 = vunpack.c.l.bf16 %v371
  %v500 = vunpack.c.l.bf16 %v372
  %v501 = vunpack.c.l.bf16 %v373
  %v502 = vunpack.c.l.bf16 %v374
  %v503 = vunpack.c.l.bf16 %v375
  %v504 = vunpack.c.l.bf16 %v376
  %v505 = vunpack.c.l.bf16 %v377
  %v506 = vunpack.c.l.bf16 %v378
  %v507 = vunpack.c.l.bf16 %v379
  %v508 = vunpack.c.l.bf16 %v380
  %v509 = vunpack.c.l.bf16 %v381
  %v510 = vunpack.c.l.bf16 %v382
  %v511 = vunpack.c.l.bf16 %v383
  %v512 = vunpack.c.l.bf16 %v384
  %v513 = vunpack.c.l.bf16 %v385
  %v514 = vunpack.c.l.bf16 %v386
  %v515 = vunpack.c.l.bf16 %v387
  %v516 = vunpack.c.l.bf16 %v388
  %v517 = vunpack.c.l.bf16 %v389
  %v518 = vunpack.c.l.bf16 %v390
  %v519 = vunpack.c.l.bf16 %v391
  %v520 = vunpack.c.l.bf16 %v392
  %v521 = vunpack.c.l.bf16 %v393
  %v522 = vunpack.c.l.bf16 %v394
  %v523 = vunpack.c.l.bf16 %v395
  %v524 = vunpack.c.l.bf16 %v396
  %v525 = vunpack.c.l.bf16 %v397
  %v526 = vunpack.c.l.bf16 %v398
  %v527 = vunpack.c.l.bf16 %v399
  %v528 = vunpack.c.l.bf16 %v400
  %v529 = vunpack.c.l.bf16 %v401
  %v530 = vunpack.c.l.bf16 %v402
  %v531 = vunpack.c.l.bf16 %v403
  %v532 = vunpack.c.l.bf16 %v404
  %v533 = vunpack.c.l.bf16 %v405
  %v534 = vunpack.c.l.bf16 %v406
  %v535 = vunpack.c.l.bf16 %v407
  %v536 = vunpack.c.l.bf16 %v408
  %v537 = vunpack.c.l.bf16 %v409
  %v538 = vunpack.c.l.bf16 %v410
  %v539 = vunpack.c.l.bf16 %v411
  %v540 = vunpack.c.l.bf16 %v412
  %v541 = vunpack.c.l.bf16 %v413
  %v542 = vunpack.c.l.bf16 %v414
  %v543 = vunpack.c.l.bf16 %v415
  %v544 = vunpack.c.l.bf16 %v416
  %v545 = vunpack.c.l.bf16 %v417
  %v546 = vunpack.c.l.bf16 %v418
  %v547 = vunpack.c.l.bf16 %v419
  %v548 = vunpack.c.l.bf16 %v420
  %v549 = vunpack.c.l.bf16 %v421
  %v550 = vunpack.c.l.bf16 %v422
  %v551 = vunpack.c.l.bf16 %v423
  %v552 = vunpack.c.l.bf16 %v424
  %v553 = vunpack.c.l.bf16 %v425
  %v554 = vunpack.c.l.bf16 %v426
  %v555 = vunpack.c.l.bf16 %v427
  %v556 = vunpack.c.l.bf16 %v428
  %v557 = vunpack.c.l.bf16 %v429
  %v558 = vunpack.c.l.bf16 %v430
  %v559 = vunpack.c.l.bf16 %v431
  %v560 = vunpack.c.l.bf16 %v432
  %v561 = vunpack.c.l.bf16 %v433
  %v562 = vunpack.c.l.bf16 %v434
  %v563 = vunpack.c.l.bf16 %v435
  %v564 = vunpack.c.l.bf16 %v436
  %v565 = vunpack.c.l.bf16 %v437
  %v566 = vunpack.c.l.bf16 %v438
  %v567 = vunpack.c.l.bf16 %v439
  %v568 = vunpack.c.l.bf16 %v440
  %v569 = vunpack.c.l.bf16 %v441
  %v570 = vunpack.c.l.bf16 %v442
  %v571 = vunpack.c.l.bf16 %v443
  %v572 = vunpack.c.l.bf16 %v444
  %v573 = vunpack.c.l.bf16 %v445
  %v574 = vld [vmem:[%s2] sm:$0xff]
  %v575 = vld [vmem:[%s2 + $0x8] sm:$0xff]
  %v576 = vld [vmem:[%s2 + $0x10] sm:$0xff]
  %v577 = vld [vmem:[%s2 + $0x18] sm:$0xff]
  %v578 = vld [vmem:[%s2 + $0x20] sm:$0xff]
  %v579 = vld [vmem:[%s2 + $0x28] sm:$0xff]
  %v580 = vld [vmem:[%s2 + $0x30] sm:$0xff]
  %v581 = vld [vmem:[%s2 + $0x38] sm:$0xff]
  %v582 = vld [vmem:[%s2 + $0x40] sm:$0xff]
  %v583 = vld [vmem:[%s2 + $0x48] sm:$0xff]
  %v584 = vld [vmem:[%s2 + $0x50] sm:$0xff]
  %v585 = vld [vmem:[%s2 + $0x58] sm:$0xff]
  %v586 = vld [vmem:[%s2 + $0x60] sm:$0xff]
  %v587 = vld [vmem:[%s2 + $0x68] sm:$0xff]
  %v588 = vld [vmem:[%s2 + $0x70] sm:$0xff]
  %v589 = vld [vmem:[%s2 + $0x78] sm:$0xff]
  %v590 = vld [vmem:[%s2 + $0x80] sm:$0xff]
  %v591 = vld [vmem:[%s2 + $0x88] sm:$0xff]
  %v592 = vld [vmem:[%s2 + $0x90] sm:$0xff]
  %v593 = vld [vmem:[%s2 + $0x98] sm:$0xff]
  %v594 = vld [vmem:[%s2 + $0xa0] sm:$0xff]
  %v595 = vld [vmem:[%s2 + $0xa8] sm:$0xff]
  %v596 = vld [vmem:[%s2 + $0xb0] sm:$0xff]
  %v597 = vld [vmem:[%s2 + $0xb8] sm:$0xff]
  %v598 = vld [vmem:[%s2 + $0xc0] sm:$0xff]
  %v599 = vld [vmem:[%s2 + $0xc8] sm:$0xff]
  %v600 = vld [vmem:[%s2 + $0xd0] sm:$0xff]
  %v601 = vld [vmem:[%s2 + $0xd8] sm:$0xff]
  %v602 = vld [vmem:[%s2 + $0xe0] sm:$0xff]
  %v603 = vld [vmem:[%s2 + $0xe8] sm:$0xff]
  %v604 = vld [vmem:[%s2 + $0xf0] sm:$0xff]
  %v605 = vld [vmem:[%s2 + $0xf8] sm:$0xff]
  %v606 = vld [vmem:[%s2 + $0x100] sm:$0xff]
  %v607 = vld [vmem:[%s2 + $0x108] sm:$0xff]
  %v608 = vld [vmem:[%s2 + $0x110] sm:$0xff]
  %v609 = vld [vmem:[%s2 + $0x118] sm:$0xff]
  %v610 = vld [vmem:[%s2 + $0x120] sm:$0xff]
  %v611 = vld [vmem:[%s2 + $0x128] sm:$0xff]
  %v612 = vld [vmem:[%s2 + $0x130] sm:$0xff]
  %v613 = vld [vmem:[%s2 + $0x138] sm:$0xff]
  %v614 = vld [vmem:[%s2 + $0x140] sm:$0xff]
  %v615 = vld [vmem:[%s2 + $0x148] sm:$0xff]
  %v616 = vld [vmem:[%s2 + $0x150] sm:$0xff]
  %v617 = vld [vmem:[%s2 + $0x158] sm:$0xff]
  %v618 = vld [vmem:[%s2 + $0x160] sm:$0xff]
  %v619 = vld [vmem:[%s2 + $0x168] sm:$0xff]
  %v620 = vld [vmem:[%s2 + $0x170] sm:$0xff]
  %v621 = vld [vmem:[%s2 + $0x178] sm:$0xff]
  %v622 = vld [vmem:[%s2 + $0x180] sm:$0xff]
  %v623 = vld [vmem:[%s2 + $0x188] sm:$0xff]
  %v624 = vld [vmem:[%s2 + $0x190] sm:$0xff]
  %v625 = vld [vmem:[%s2 + $0x198] sm:$0xff]
  %v626 = vld [vmem:[%s2 + $0x1a0] sm:$0xff]
  %v627 = vld [vmem:[%s2 + $0x1a8] sm:$0xff]
  %v628 = vld [vmem:[%s2 + $0x1b0] sm:$0xff]
  %v629 = vld [vmem:[%s2 + $0x1b8] sm:$0xff]
  %v630 = vld [vmem:[%s2 + $0x1c0] sm:$0xff]
  %v631 = vld [vmem:[%s2 + $0x1c8] sm:$0xff]
  %v632 = vld [vmem:[%s2 + $0x1d0] sm:$0xff]
  %v633 = vld [vmem:[%s2 + $0x1d8] sm:$0xff]
  %v634 = vld [vmem:[%s2 + $0x1e0] sm:$0xff]
  %v635 = vld [vmem:[%s2 + $0x1e8] sm:$0xff]
  %v636 = vld [vmem:[%s2 + $0x1f0] sm:$0xff]
  %v637 = vld [vmem:[%s2 + $0x1f8] sm:$0xff]
  %v638 = vld [vmem:[%s2 + $0x200] sm:$0xff]
  %v639 = vld [vmem:[%s2 + $0x208] sm:$0xff]
  %v640 = vld [vmem:[%s2 + $0x210] sm:$0xff]
  %v641 = vld [vmem:[%s2 + $0x218] sm:$0xff]
  %v642 = vld [vmem:[%s2 + $0x220] sm:$0xff]
  %v643 = vld [vmem:[%s2 + $0x228] sm:$0xff]
  %v644 = vld [vmem:[%s2 + $0x230] sm:$0xff]
  %v645 = vld [vmem:[%s2 + $0x238] sm:$0xff]
  %v646 = vld [vmem:[%s2 + $0x240] sm:$0xff]
  %v647 = vld [vmem:[%s2 + $0x248] sm:$0xff]
  %v648 = vld [vmem:[%s2 + $0x250] sm:$0xff]
  %v649 = vld [vmem:[%s2 + $0x258] sm:$0xff]
  %v650 = vld [vmem:[%s2 + $0x260] sm:$0xff]
  %v651 = vld [vmem:[%s2 + $0x268] sm:$0xff]
  %v652 = vld [vmem:[%s2 + $0x270] sm:$0xff]
  %v653 = vld [vmem:[%s2 + $0x278] sm:$0xff]
  %v654 = vld [vmem:[%s2 + $0x280] sm:$0xff]
  %v655 = vld [vmem:[%s2 + $0x288] sm:$0xff]
  %v656 = vld [vmem:[%s2 + $0x290] sm:$0xff]
  %v657 = vld [vmem:[%s2 + $0x298] sm:$0xff]
  %v658 = vld [vmem:[%s2 + $0x2a0] sm:$0xff]
  %v659 = vld [vmem:[%s2 + $0x2a8] sm:$0xff]
  %v660 = vld [vmem:[%s2 + $0x2b0] sm:$0xff]
  %v661 = vld [vmem:[%s2 + $0x2b8] sm:$0xff]
  %v662 = vld [vmem:[%s2 + $0x2c0] sm:$0xff]
  %v663 = vld [vmem:[%s2 + $0x2c8] sm:$0xff]
  %v664 = vld [vmem:[%s2 + $0x2d0] sm:$0xff]
  %v665 = vld [vmem:[%s2 + $0x2d8] sm:$0xff]
  %v666 = vld [vmem:[%s2 + $0x2e0] sm:$0xff]
  %v667 = vld [vmem:[%s2 + $0x2e8] sm:$0xff]
  %v668 = vld [vmem:[%s2 + $0x2f0] sm:$0xff]
  %v669 = vld [vmem:[%s2 + $0x2f8] sm:$0xff]
  %v670 = vld [vmem:[%s2 + $0x300] sm:$0xff]
  %v671 = vld [vmem:[%s2 + $0x308] sm:$0xff]
  %v672 = vld [vmem:[%s2 + $0x310] sm:$0xff]
  %v673 = vld [vmem:[%s2 + $0x318] sm:$0xff]
  %v674 = vld [vmem:[%s2 + $0x320] sm:$0xff]
  %v675 = vld [vmem:[%s2 + $0x328] sm:$0xff]
  %v676 = vld [vmem:[%s2 + $0x330] sm:$0xff]
  %v677 = vld [vmem:[%s2 + $0x338] sm:$0xff]
  %v678 = vld [vmem:[%s2 + $0x340] sm:$0xff]
  %v679 = vld [vmem:[%s2 + $0x348] sm:$0xff]
  %v680 = vld [vmem:[%s2 + $0x350] sm:$0xff]
  %v681 = vld [vmem:[%s2 + $0x358] sm:$0xff]
  %v682 = vld [vmem:[%s2 + $0x360] sm:$0xff]
  %v683 = vld [vmem:[%s2 + $0x368] sm:$0xff]
  %v684 = vld [vmem:[%s2 + $0x370] sm:$0xff]
  %v685 = vld [vmem:[%s2 + $0x378] sm:$0xff]
  %v686 = vld [vmem:[%s2 + $0x380] sm:$0xff]
  %v687 = vld [vmem:[%s2 + $0x388] sm:$0xff]
  %v688 = vld [vmem:[%s2 + $0x390] sm:$0xff]
  %v689 = vld [vmem:[%s2 + $0x398] sm:$0xff]
  %v690 = vld [vmem:[%s2 + $0x3a0] sm:$0xff]
  %v691 = vld [vmem:[%s2 + $0x3a8] sm:$0xff]
  %v692 = vld [vmem:[%s2 + $0x3b0] sm:$0xff]
  %v693 = vld [vmem:[%s2 + $0x3b8] sm:$0xff]
  %v694 = vld [vmem:[%s2 + $0x3c0] sm:$0xff]
  %v695 = vld [vmem:[%s2 + $0x3c8] sm:$0xff]
  %v696 = vld [vmem:[%s2 + $0x3d0] sm:$0xff]
  %v697 = vld [vmem:[%s2 + $0x3d8] sm:$0xff]
  %v698 = vld [vmem:[%s2 + $0x3e0] sm:$0xff]
  %v699 = vld [vmem:[%s2 + $0x3e8] sm:$0xff]
  %v700 = vld [vmem:[%s2 + $0x3f0] sm:$0xff]
  %v701 = vld [vmem:[%s2 + $0x3f8] sm:$0xff]
  %v702 = vld [vmem:[%s4] sm:$0xff]
  %v703 = vld [vmem:[%s5] sm:$0x1]
  %v705 = vlaneseq
  %v706 = vshrl.u32 %v705, 7
  %v707 = vsub.s32 0, %v706
  %v708 = vrot.slane %v703, %v707
  %vm710 = vcmask 64512
  %v712 = vsel %vm710, %v574, 0
  %v715 = vsel %vm710, %v575, 0
  %v718 = vsel %vm710, %v576, 0
  %v721 = vsel %vm710, %v577, 0
  %v724 = vsel %vm710, %v578, 0
  %v727 = vsel %vm710, %v579, 0
  %v730 = vsel %vm710, %v580, 0
  %v733 = vsel %vm710, %v581, 0
  %v736 = vsel %vm710, %v582, 0
  %v739 = vsel %vm710, %v583, 0
  %v742 = vsel %vm710, %v584, 0
  %v745 = vsel %vm710, %v585, 0
  %v748 = vsel %vm710, %v586, 0
  %v751 = vsel %vm710, %v587, 0
  %v754 = vsel %vm710, %v588, 0
  %v757 = vsel %vm710, %v589, 0
  %v760 = vsel %vm710, %v590, 0
  %v763 = vsel %vm710, %v591, 0
  %v766 = vsel %vm710, %v592, 0
  %v769 = vsel %vm710, %v593, 0
  %v772 = vsel %vm710, %v594, 0
  %v775 = vsel %vm710, %v595, 0
  %v778 = vsel %vm710, %v596, 0
  %v781 = vsel %vm710, %v597, 0
  %v784 = vsel %vm710, %v598, 0
  %v787 = vsel %vm710, %v599, 0
  %v790 = vsel %vm710, %v600, 0
  %v793 = vsel %vm710, %v601, 0
  %v796 = vsel %vm710, %v602, 0
  %v799 = vsel %vm710, %v603, 0
  %v802 = vsel %vm710, %v604, 0
  %v805 = vsel %vm710, %v605, 0
  %v808 = vsel %vm710, %v606, 0
  %v811 = vsel %vm710, %v607, 0
  %v814 = vsel %vm710, %v608, 0
  %v817 = vsel %vm710, %v609, 0
  %v820 = vsel %vm710, %v610, 0
  %v823 = vsel %vm710, %v611, 0
  %v826 = vsel %vm710, %v612, 0
  %v829 = vsel %vm710, %v613, 0
  %v832 = vsel %vm710, %v614, 0
  %v835 = vsel %vm710, %v615, 0
  %v838 = vsel %vm710, %v616, 0
  %v841 = vsel %vm710, %v617, 0
  %v844 = vsel %vm710, %v618, 0
  %v847 = vsel %vm710, %v619, 0
  %v850 = vsel %vm710, %v620, 0
  %v853 = vsel %vm710, %v621, 0
  %v856 = vsel %vm710, %v622, 0
  %v859 = vsel %vm710, %v623, 0
  %v862 = vsel %vm710, %v624, 0
  %v865 = vsel %vm710, %v625, 0
  %v868 = vsel %vm710, %v626, 0
  %v871 = vsel %vm710, %v627, 0
  %v874 = vsel %vm710, %v628, 0
  %v877 = vsel %vm710, %v629, 0
  %v880 = vsel %vm710, %v630, 0
  %v883 = vsel %vm710, %v631, 0
  %v886 = vsel %vm710, %v632, 0
  %v889 = vsel %vm710, %v633, 0
  %v892 = vsel %vm710, %v634, 0
  %v895 = vsel %vm710, %v635, 0
  %v898 = vsel %vm710, %v636, 0
  %v901 = vsel %vm710, %v637, 0
  %v904 = vsel %vm710, %v638, 0
  %v907 = vsel %vm710, %v639, 0
  %v910 = vsel %vm710, %v640, 0
  %v913 = vsel %vm710, %v641, 0
  %v916 = vsel %vm710, %v642, 0
  %v919 = vsel %vm710, %v643, 0
  %v922 = vsel %vm710, %v644, 0
  %v925 = vsel %vm710, %v645, 0
  %v928 = vsel %vm710, %v646, 0
  %v931 = vsel %vm710, %v647, 0
  %v934 = vsel %vm710, %v648, 0
  %v937 = vsel %vm710, %v649, 0
  %v940 = vsel %vm710, %v650, 0
  %v943 = vsel %vm710, %v651, 0
  %v946 = vsel %vm710, %v652, 0
  %v949 = vsel %vm710, %v653, 0
  %v952 = vsel %vm710, %v654, 0
  %v955 = vsel %vm710, %v655, 0
  %v958 = vsel %vm710, %v656, 0
  %v961 = vsel %vm710, %v657, 0
  %v964 = vsel %vm710, %v658, 0
  %v967 = vsel %vm710, %v659, 0
  %v970 = vsel %vm710, %v660, 0
  %v973 = vsel %vm710, %v661, 0
  %v976 = vsel %vm710, %v662, 0
  %v979 = vsel %vm710, %v663, 0
  %v982 = vsel %vm710, %v664, 0
  %v985 = vsel %vm710, %v665, 0
  %v988 = vsel %vm710, %v666, 0
  %v991 = vsel %vm710, %v667, 0
  %v994 = vsel %vm710, %v668, 0
  %v997 = vsel %vm710, %v669, 0
  %v1000 = vsel %vm710, %v670, 0
  %v1003 = vsel %vm710, %v671, 0
  %v1006 = vsel %vm710, %v672, 0
  %v1009 = vsel %vm710, %v673, 0
  %v1012 = vsel %vm710, %v674, 0
  %v1015 = vsel %vm710, %v675, 0
  %v1018 = vsel %vm710, %v676, 0
  %v1021 = vsel %vm710, %v677, 0
  %v1024 = vsel %vm710, %v678, 0
  %v1027 = vsel %vm710, %v679, 0
  %v1030 = vsel %vm710, %v680, 0
  %v1033 = vsel %vm710, %v681, 0
  %v1036 = vsel %vm710, %v682, 0
  %v1039 = vsel %vm710, %v683, 0
  %v1042 = vsel %vm710, %v684, 0
  %v1045 = vsel %vm710, %v685, 0
  %v1048 = vsel %vm710, %v686, 0
  %v1051 = vsel %vm710, %v687, 0
  %v1054 = vsel %vm710, %v688, 0
  %v1057 = vsel %vm710, %v689, 0
  %v1060 = vsel %vm710, %v690, 0
  %v1063 = vsel %vm710, %v691, 0
  %v1066 = vsel %vm710, %v692, 0
  %v1069 = vsel %vm710, %v693, 0
  %v1072 = vsel %vm710, %v694, 0
  %v1075 = vsel %vm710, %v695, 0
  %v1078 = vsel %vm710, %v696, 0
  %v1081 = vsel %vm710, %v697, 0
  %v1084 = vsel %vm710, %v698, 0
  %v1087 = vsel %vm710, %v699, 0
  %v1090 = vsel %vm710, %v700, 0
  %v1093 = vsel %vm710, %v701, 0
  %1095 = vmatprep.subr.mxu0 0.0
  %1096 = vmatpush1.msra.mxu0 0.0
  %1097 = vmatprep.subr.mxu0 0.0
  %1098 = vmatpush1.msra.mxu0 0.0
  %1099 = vmatprep.subr.mxu0 0.0
  %1100 = vmatpush1.msra.mxu0 0.0
  %1101 = vmatprep.subr.mxu0 0.0
  %1102 = vmatpush1.msra.mxu0 0.0
  %1103 = vmatprep.subr.mxu0 0.0
  %1104 = vmatpush1.msra.mxu0 0.0
  %1105 = vmatprep.subr.mxu0 0.0
  %1106 = vmatpush1.msra.mxu0 0.0
  %1107 = vmatprep.subr.mxu0 0.0
  %1108 = vmatpush1.msra.mxu0 0.0
  %1109 = vmatprep.subr.mxu0 0.0
  %1110 = vmatpush1.msra.mxu0 0.0
  %1111 = vmatprep.subr.mxu0 0.0
  %1112 = vmatpush1.msra.mxu0 0.0
  %1113 = vmatprep.subr.mxu0 0.0
  %1114 = vmatpush1.msra.mxu0 0.0
  %1115 = vmatprep.subr.mxu0 0.0
  %1116 = vmatpush1.msra.mxu0 0.0
  %1117 = vmatprep.subr.mxu0 0.0
  %1118 = vmatpush1.msra.mxu0 0.0
  %1119 = vmatprep.subr.mxu0 0.0
  %1120 = vmatpush1.msra.mxu0 0.0
  %1121 = vmatprep.subr.mxu0 0.0
  %1122 = vmatpush1.msra.mxu0 0.0
  %1123 = vmatprep.subr.mxu0 0.0
  %1124 = vmatpush1.msra.mxu0 0.0
  %1125 = vmatprep.subr.mxu0 0.0
  %1126 = vmatpush1.msra.mxu0 %v702
  %1127 = vmatprep.subr.mxu0 0.0
  %1128 = vmatpush2.msra.mxu0 0.0
  %1129 = vmatprep.subr.mxu0 0.0
  %1130 = vmatpush2.msra.mxu0 0.0
  %1131 = vmatprep.subr.mxu0 0.0
  %1132 = vmatpush2.msra.mxu0 0.0
  %1133 = vmatprep.subr.mxu0 0.0
  %1134 = vmatpush2.msra.mxu0 0.0
  %1135 = vmatprep.subr.mxu0 0.0
  %1136 = vmatpush2.msra.mxu0 0.0
  %1137 = vmatprep.subr.mxu0 0.0
  %1138 = vmatpush2.msra.mxu0 0.0
  %1139 = vmatprep.subr.mxu0 0.0
  %1140 = vmatpush2.msra.mxu0 0.0
  %1141 = vmatprep.subr.mxu0 0.0
  %1142 = vmatpush2.msra.mxu0 0.0
  %1143 = vmatprep.subr.mxu0 0.0
  %1144 = vmatpush2.msra.mxu0 0.0
  %1145 = vmatprep.subr.mxu0 0.0
  %1146 = vmatpush2.msra.mxu0 0.0
  %1147 = vmatprep.subr.mxu0 0.0
  %1148 = vmatpush2.msra.mxu0 0.0
  %1149 = vmatprep.subr.mxu0 0.0
  %1150 = vmatpush2.msra.mxu0 0.0
  %1151 = vmatprep.subr.mxu0 0.0
  %1152 = vmatpush2.msra.mxu0 0.0
  %1153 = vmatprep.subr.mxu0 0.0
  %1154 = vmatpush2.msra.mxu0 0.0
  %1155 = vmatprep.subr.mxu0 0.0
  %1156 = vmatpush2.msra.mxu0 0.0
  %1157 = vmatprep.subr.mxu0 0.0
  %1158 = vmatpush2.msra.mxu0 0.0
  %1159 = vmatprep.mubr.f32.mxu0 0.0
  %1160 = vmatmul.mubr.f32.gmra.mxu0 %v712
  %v1161 = vpop.f32.mrf.mxu0
  %v1162 = vadd.f32 %v708, %v1161
  %v1163 = vpop.f32.mrf.mxu0
  %1164 = vmatprep.mubr.f32.mxu0 0.0
  %1165 = vmatmul.mubr.f32.gmra.mxu0 %v715
  %v1166 = vpop.f32.mrf.mxu0
  %v1167 = vadd.f32 %v708, %v1166
  %v1168 = vpop.f32.mrf.mxu0
  %1169 = vmatprep.mubr.f32.mxu0 0.0
  %1170 = vmatmul.mubr.f32.gmra.mxu0 %v718
  %v1171 = vpop.f32.mrf.mxu0
  %v1172 = vadd.f32 %v708, %v1171
  %v1173 = vpop.f32.mrf.mxu0
  %1174 = vmatprep.mubr.f32.mxu0 0.0
  %1175 = vmatmul.mubr.f32.gmra.mxu0 %v721
  %v1176 = vpop.f32.mrf.mxu0
  %v1177 = vadd.f32 %v708, %v1176
  %v1178 = vpop.f32.mrf.mxu0
  %1179 = vmatprep.mubr.f32.mxu0 0.0
  %1180 = vmatmul.mubr.f32.gmra.mxu0 %v724
  %v1181 = vpop.f32.mrf.mxu0
  %v1182 = vadd.f32 %v708, %v1181
  %v1183 = vpop.f32.mrf.mxu0
  %1184 = vmatprep.mubr.f32.mxu0 0.0
  %1185 = vmatmul.mubr.f32.gmra.mxu0 %v727
  %v1186 = vpop.f32.mrf.mxu0
  %v1187 = vadd.f32 %v708, %v1186
  %v1188 = vpop.f32.mrf.mxu0
  %1189 = vmatprep.mubr.f32.mxu0 0.0
  %1190 = vmatmul.mubr.f32.gmra.mxu0 %v730
  %v1191 = vpop.f32.mrf.mxu0
  %v1192 = vadd.f32 %v708, %v1191
  %v1193 = vpop.f32.mrf.mxu0
  %1194 = vmatprep.mubr.f32.mxu0 0.0
  %1195 = vmatmul.mubr.f32.gmra.mxu0 %v733
  %v1196 = vpop.f32.mrf.mxu0
  %v1197 = vadd.f32 %v708, %v1196
  %v1198 = vpop.f32.mrf.mxu0
  %1199 = vmatprep.mubr.f32.mxu0 0.0
  %1200 = vmatmul.mubr.f32.gmra.mxu0 %v736
  %v1201 = vpop.f32.mrf.mxu0
  %v1202 = vadd.f32 %v708, %v1201
  %v1203 = vpop.f32.mrf.mxu0
  %1204 = vmatprep.mubr.f32.mxu0 0.0
  %1205 = vmatmul.mubr.f32.gmra.mxu0 %v739
  %v1206 = vpop.f32.mrf.mxu0
  %v1207 = vadd.f32 %v708, %v1206
  %v1208 = vpop.f32.mrf.mxu0
  %1209 = vmatprep.mubr.f32.mxu0 0.0
  %1210 = vmatmul.mubr.f32.gmra.mxu0 %v742
  %v1211 = vpop.f32.mrf.mxu0
  %v1212 = vadd.f32 %v708, %v1211
  %v1213 = vpop.f32.mrf.mxu0
  %1214 = vmatprep.mubr.f32.mxu0 0.0
  %1215 = vmatmul.mubr.f32.gmra.mxu0 %v745
  %v1216 = vpop.f32.mrf.mxu0
  %v1217 = vadd.f32 %v708, %v1216
  %v1218 = vpop.f32.mrf.mxu0
  %1219 = vmatprep.mubr.f32.mxu0 0.0
  %1220 = vmatmul.mubr.f32.gmra.mxu0 %v748
  %v1221 = vpop.f32.mrf.mxu0
  %v1222 = vadd.f32 %v708, %v1221
  %v1223 = vpop.f32.mrf.mxu0
  %1224 = vmatprep.mubr.f32.mxu0 0.0
  %1225 = vmatmul.mubr.f32.gmra.mxu0 %v751
  %v1226 = vpop.f32.mrf.mxu0
  %v1227 = vadd.f32 %v708, %v1226
  %v1228 = vpop.f32.mrf.mxu0
  %1229 = vmatprep.mubr.f32.mxu0 0.0
  %1230 = vmatmul.mubr.f32.gmra.mxu0 %v754
  %v1231 = vpop.f32.mrf.mxu0
  %v1232 = vadd.f32 %v708, %v1231
  %v1233 = vpop.f32.mrf.mxu0
  %1234 = vmatprep.mubr.f32.mxu0 0.0
  %1235 = vmatmul.mubr.f32.gmra.mxu0 %v757
  %v1236 = vpop.f32.mrf.mxu0
  %v1237 = vadd.f32 %v708, %v1236
  %v1238 = vpop.f32.mrf.mxu0
  %1239 = vmatprep.mubr.f32.mxu0 0.0
  %1240 = vmatmul.mubr.f32.gmra.mxu0 %v760
  %v1241 = vpop.f32.mrf.mxu0
  %v1242 = vadd.f32 %v708, %v1241
  %v1243 = vpop.f32.mrf.mxu0
  %1244 = vmatprep.mubr.f32.mxu0 0.0
  %1245 = vmatmul.mubr.f32.gmra.mxu0 %v763
  %v1246 = vpop.f32.mrf.mxu0
  %v1247 = vadd.f32 %v708, %v1246
  %v1248 = vpop.f32.mrf.mxu0
  %1249 = vmatprep.mubr.f32.mxu0 0.0
  %1250 = vmatmul.mubr.f32.gmra.mxu0 %v766
  %v1251 = vpop.f32.mrf.mxu0
  %v1252 = vadd.f32 %v708, %v1251
  %v1253 = vpop.f32.mrf.mxu0
  %1254 = vmatprep.mubr.f32.mxu0 0.0
  %1255 = vmatmul.mubr.f32.gmra.mxu0 %v769
  %v1256 = vpop.f32.mrf.mxu0
  %v1257 = vadd.f32 %v708, %v1256
  %v1258 = vpop.f32.mrf.mxu0
  %1259 = vmatprep.mubr.f32.mxu0 0.0
  %1260 = vmatmul.mubr.f32.gmra.mxu0 %v772
  %v1261 = vpop.f32.mrf.mxu0
  %v1262 = vadd.f32 %v708, %v1261
  %v1263 = vpop.f32.mrf.mxu0
  %1264 = vmatprep.mubr.f32.mxu0 0.0
  %1265 = vmatmul.mubr.f32.gmra.mxu0 %v775
  %v1266 = vpop.f32.mrf.mxu0
  %v1267 = vadd.f32 %v708, %v1266
  %v1268 = vpop.f32.mrf.mxu0
  %1269 = vmatprep.mubr.f32.mxu0 0.0
  %1270 = vmatmul.mubr.f32.gmra.mxu0 %v778
  %v1271 = vpop.f32.mrf.mxu0
  %v1272 = vadd.f32 %v708, %v1271
  %v1273 = vpop.f32.mrf.mxu0
  %1274 = vmatprep.mubr.f32.mxu0 0.0
  %1275 = vmatmul.mubr.f32.gmra.mxu0 %v781
  %v1276 = vpop.f32.mrf.mxu0
  %v1277 = vadd.f32 %v708, %v1276
  %v1278 = vpop.f32.mrf.mxu0
  %1279 = vmatprep.mubr.f32.mxu0 0.0
  %1280 = vmatmul.mubr.f32.gmra.mxu0 %v784
  %v1281 = vpop.f32.mrf.mxu0
  %v1282 = vadd.f32 %v708, %v1281
  %v1283 = vpop.f32.mrf.mxu0
  %1284 = vmatprep.mubr.f32.mxu0 0.0
  %1285 = vmatmul.mubr.f32.gmra.mxu0 %v787
  %v1286 = vpop.f32.mrf.mxu0
  %v1287 = vadd.f32 %v708, %v1286
  %v1288 = vpop.f32.mrf.mxu0
  %1289 = vmatprep.mubr.f32.mxu0 0.0
  %1290 = vmatmul.mubr.f32.gmra.mxu0 %v790
  %v1291 = vpop.f32.mrf.mxu0
  %v1292 = vadd.f32 %v708, %v1291
  %v1293 = vpop.f32.mrf.mxu0
  %1294 = vmatprep.mubr.f32.mxu0 0.0
  %1295 = vmatmul.mubr.f32.gmra.mxu0 %v793
  %v1296 = vpop.f32.mrf.mxu0
  %v1297 = vadd.f32 %v708, %v1296
  %v1298 = vpop.f32.mrf.mxu0
  %1299 = vmatprep.mubr.f32.mxu0 0.0
  %1300 = vmatmul.mubr.f32.gmra.mxu0 %v796
  %v1301 = vpop.f32.mrf.mxu0
  %v1302 = vadd.f32 %v708, %v1301
  %v1303 = vpop.f32.mrf.mxu0
  %1304 = vmatprep.mubr.f32.mxu0 0.0
  %1305 = vmatmul.mubr.f32.gmra.mxu0 %v799
  %v1306 = vpop.f32.mrf.mxu0
  %v1307 = vadd.f32 %v708, %v1306
  %v1308 = vpop.f32.mrf.mxu0
  %1309 = vmatprep.mubr.f32.mxu0 0.0
  %1310 = vmatmul.mubr.f32.gmra.mxu0 %v802
  %v1311 = vpop.f32.mrf.mxu0
  %v1312 = vadd.f32 %v708, %v1311
  %v1313 = vpop.f32.mrf.mxu0
  %1314 = vmatprep.mubr.f32.mxu0 0.0
  %1315 = vmatmul.mubr.f32.gmra.mxu0 %v805
  %v1316 = vpop.f32.mrf.mxu0
  %v1317 = vadd.f32 %v708, %v1316
  %v1318 = vpop.f32.mrf.mxu0
  %1319 = vmatprep.mubr.f32.mxu0 0.0
  %1320 = vmatmul.mubr.f32.gmra.mxu0 %v808
  %v1321 = vpop.f32.mrf.mxu0
  %v1322 = vadd.f32 %v708, %v1321
  %v1323 = vpop.f32.mrf.mxu0
  %1324 = vmatprep.mubr.f32.mxu0 0.0
  %1325 = vmatmul.mubr.f32.gmra.mxu0 %v811
  %v1326 = vpop.f32.mrf.mxu0
  %v1327 = vadd.f32 %v708, %v1326
  %v1328 = vpop.f32.mrf.mxu0
  %1329 = vmatprep.mubr.f32.mxu0 0.0
  %1330 = vmatmul.mubr.f32.gmra.mxu0 %v814
  %v1331 = vpop.f32.mrf.mxu0
  %v1332 = vadd.f32 %v708, %v1331
  %v1333 = vpop.f32.mrf.mxu0
  %1334 = vmatprep.mubr.f32.mxu0 0.0
  %1335 = vmatmul.mubr.f32.gmra.mxu0 %v817
  %v1336 = vpop.f32.mrf.mxu0
  %v1337 = vadd.f32 %v708, %v1336
  %v1338 = vpop.f32.mrf.mxu0
  %1339 = vmatprep.mubr.f32.mxu0 0.0
  %1340 = vmatmul.mubr.f32.gmra.mxu0 %v820
  %v1341 = vpop.f32.mrf.mxu0
  %v1342 = vadd.f32 %v708, %v1341
  %v1343 = vpop.f32.mrf.mxu0
  %1344 = vmatprep.mubr.f32.mxu0 0.0
  %1345 = vmatmul.mubr.f32.gmra.mxu0 %v823
  %v1346 = vpop.f32.mrf.mxu0
  %v1347 = vadd.f32 %v708, %v1346
  %v1348 = vpop.f32.mrf.mxu0
  %1349 = vmatprep.mubr.f32.mxu0 0.0
  %1350 = vmatmul.mubr.f32.gmra.mxu0 %v826
  %v1351 = vpop.f32.mrf.mxu0
  %v1352 = vadd.f32 %v708, %v1351
  %v1353 = vpop.f32.mrf.mxu0
  %1354 = vmatprep.mubr.f32.mxu0 0.0
  %1355 = vmatmul.mubr.f32.gmra.mxu0 %v829
  %v1356 = vpop.f32.mrf.mxu0
  %v1357 = vadd.f32 %v708, %v1356
  %v1358 = vpop.f32.mrf.mxu0
  %1359 = vmatprep.mubr.f32.mxu0 0.0
  %1360 = vmatmul.mubr.f32.gmra.mxu0 %v832
  %v1361 = vpop.f32.mrf.mxu0
  %v1362 = vadd.f32 %v708, %v1361
  %v1363 = vpop.f32.mrf.mxu0
  %1364 = vmatprep.mubr.f32.mxu0 0.0
  %1365 = vmatmul.mubr.f32.gmra.mxu0 %v835
  %v1366 = vpop.f32.mrf.mxu0
  %v1367 = vadd.f32 %v708, %v1366
  %v1368 = vpop.f32.mrf.mxu0
  %1369 = vmatprep.mubr.f32.mxu0 0.0
  %1370 = vmatmul.mubr.f32.gmra.mxu0 %v838
  %v1371 = vpop.f32.mrf.mxu0
  %v1372 = vadd.f32 %v708, %v1371
  %v1373 = vpop.f32.mrf.mxu0
  %1374 = vmatprep.mubr.f32.mxu0 0.0
  %1375 = vmatmul.mubr.f32.gmra.mxu0 %v841
  %v1376 = vpop.f32.mrf.mxu0
  %v1377 = vadd.f32 %v708, %v1376
  %v1378 = vpop.f32.mrf.mxu0
  %1379 = vmatprep.mubr.f32.mxu0 0.0
  %1380 = vmatmul.mubr.f32.gmra.mxu0 %v844
  %v1381 = vpop.f32.mrf.mxu0
  %v1382 = vadd.f32 %v708, %v1381
  %v1383 = vpop.f32.mrf.mxu0
  %1384 = vmatprep.mubr.f32.mxu0 0.0
  %1385 = vmatmul.mubr.f32.gmra.mxu0 %v847
  %v1386 = vpop.f32.mrf.mxu0
  %v1387 = vadd.f32 %v708, %v1386
  %v1388 = vpop.f32.mrf.mxu0
  %1389 = vmatprep.mubr.f32.mxu0 0.0
  %1390 = vmatmul.mubr.f32.gmra.mxu0 %v850
  %v1391 = vpop.f32.mrf.mxu0
  %v1392 = vadd.f32 %v708, %v1391
  %v1393 = vpop.f32.mrf.mxu0
  %1394 = vmatprep.mubr.f32.mxu0 0.0
  %1395 = vmatmul.mubr.f32.gmra.mxu0 %v853
  %v1396 = vpop.f32.mrf.mxu0
  %v1397 = vadd.f32 %v708, %v1396
  %v1398 = vpop.f32.mrf.mxu0
  %1399 = vmatprep.mubr.f32.mxu0 0.0
  %1400 = vmatmul.mubr.f32.gmra.mxu0 %v856
  %v1401 = vpop.f32.mrf.mxu0
  %v1402 = vadd.f32 %v708, %v1401
  %v1403 = vpop.f32.mrf.mxu0
  %1404 = vmatprep.mubr.f32.mxu0 0.0
  %1405 = vmatmul.mubr.f32.gmra.mxu0 %v859
  %v1406 = vpop.f32.mrf.mxu0
  %v1407 = vadd.f32 %v708, %v1406
  %v1408 = vpop.f32.mrf.mxu0
  %1409 = vmatprep.mubr.f32.mxu0 0.0
  %1410 = vmatmul.mubr.f32.gmra.mxu0 %v862
  %v1411 = vpop.f32.mrf.mxu0
  %v1412 = vadd.f32 %v708, %v1411
  %v1413 = vpop.f32.mrf.mxu0
  %1414 = vmatprep.mubr.f32.mxu0 0.0
  %1415 = vmatmul.mubr.f32.gmra.mxu0 %v865
  %v1416 = vpop.f32.mrf.mxu0
  %v1417 = vadd.f32 %v708, %v1416
  %v1418 = vpop.f32.mrf.mxu0
  %1419 = vmatprep.mubr.f32.mxu0 0.0
  %1420 = vmatmul.mubr.f32.gmra.mxu0 %v868
  %v1421 = vpop.f32.mrf.mxu0
  %v1422 = vadd.f32 %v708, %v1421
  %v1423 = vpop.f32.mrf.mxu0
  %1424 = vmatprep.mubr.f32.mxu0 0.0
  %1425 = vmatmul.mubr.f32.gmra.mxu0 %v871
  %v1426 = vpop.f32.mrf.mxu0
  %v1427 = vadd.f32 %v708, %v1426
  %v1428 = vpop.f32.mrf.mxu0
  %1429 = vmatprep.mubr.f32.mxu0 0.0
  %1430 = vmatmul.mubr.f32.gmra.mxu0 %v874
  %v1431 = vpop.f32.mrf.mxu0
  %v1432 = vadd.f32 %v708, %v1431
  %v1433 = vpop.f32.mrf.mxu0
  %1434 = vmatprep.mubr.f32.mxu0 0.0
  %1435 = vmatmul.mubr.f32.gmra.mxu0 %v877
  %v1436 = vpop.f32.mrf.mxu0
  %v1437 = vadd.f32 %v708, %v1436
  %v1438 = vpop.f32.mrf.mxu0
  %1439 = vmatprep.mubr.f32.mxu0 0.0
  %1440 = vmatmul.mubr.f32.gmra.mxu0 %v880
  %v1441 = vpop.f32.mrf.mxu0
  %v1442 = vadd.f32 %v708, %v1441
  %v1443 = vpop.f32.mrf.mxu0
  %1444 = vmatprep.mubr.f32.mxu0 0.0
  %1445 = vmatmul.mubr.f32.gmra.mxu0 %v883
  %v1446 = vpop.f32.mrf.mxu0
  %v1447 = vadd.f32 %v708, %v1446
  %v1448 = vpop.f32.mrf.mxu0
  %1449 = vmatprep.mubr.f32.mxu0 0.0
  %1450 = vmatmul.mubr.f32.gmra.mxu0 %v886
  %v1451 = vpop.f32.mrf.mxu0
  %v1452 = vadd.f32 %v708, %v1451
  %v1453 = vpop.f32.mrf.mxu0
  %1454 = vmatprep.mubr.f32.mxu0 0.0
  %1455 = vmatmul.mubr.f32.gmra.mxu0 %v889
  %v1456 = vpop.f32.mrf.mxu0
  %v1457 = vadd.f32 %v708, %v1456
  %v1458 = vpop.f32.mrf.mxu0
  %1459 = vmatprep.mubr.f32.mxu0 0.0
  %1460 = vmatmul.mubr.f32.gmra.mxu0 %v892
  %v1461 = vpop.f32.mrf.mxu0
  %v1462 = vadd.f32 %v708, %v1461
  %v1463 = vpop.f32.mrf.mxu0
  %1464 = vmatprep.mubr.f32.mxu0 0.0
  %1465 = vmatmul.mubr.f32.gmra.mxu0 %v895
  %v1466 = vpop.f32.mrf.mxu0
  %v1467 = vadd.f32 %v708, %v1466
  %v1468 = vpop.f32.mrf.mxu0
  %1469 = vmatprep.mubr.f32.mxu0 0.0
  %1470 = vmatmul.mubr.f32.gmra.mxu0 %v898
  %v1471 = vpop.f32.mrf.mxu0
  %v1472 = vadd.f32 %v708, %v1471
  %v1473 = vpop.f32.mrf.mxu0
  %1474 = vmatprep.mubr.f32.mxu0 0.0
  %1475 = vmatmul.mubr.f32.gmra.mxu0 %v901
  %v1476 = vpop.f32.mrf.mxu0
  %v1477 = vadd.f32 %v708, %v1476
  %v1478 = vpop.f32.mrf.mxu0
  %1479 = vmatprep.mubr.f32.mxu0 0.0
  %1480 = vmatmul.mubr.f32.gmra.mxu0 %v904
  %v1481 = vpop.f32.mrf.mxu0
  %v1482 = vadd.f32 %v708, %v1481
  %v1483 = vpop.f32.mrf.mxu0
  %1484 = vmatprep.mubr.f32.mxu0 0.0
  %1485 = vmatmul.mubr.f32.gmra.mxu0 %v907
  %v1486 = vpop.f32.mrf.mxu0
  %v1487 = vadd.f32 %v708, %v1486
  %v1488 = vpop.f32.mrf.mxu0
  %1489 = vmatprep.mubr.f32.mxu0 0.0
  %1490 = vmatmul.mubr.f32.gmra.mxu0 %v910
  %v1491 = vpop.f32.mrf.mxu0
  %v1492 = vadd.f32 %v708, %v1491
  %v1493 = vpop.f32.mrf.mxu0
  %1494 = vmatprep.mubr.f32.mxu0 0.0
  %1495 = vmatmul.mubr.f32.gmra.mxu0 %v913
  %v1496 = vpop.f32.mrf.mxu0
  %v1497 = vadd.f32 %v708, %v1496
  %v1498 = vpop.f32.mrf.mxu0
  %1499 = vmatprep.mubr.f32.mxu0 0.0
  %1500 = vmatmul.mubr.f32.gmra.mxu0 %v916
  %v1501 = vpop.f32.mrf.mxu0
  %v1502 = vadd.f32 %v708, %v1501
  %v1503 = vpop.f32.mrf.mxu0
  %1504 = vmatprep.mubr.f32.mxu0 0.0
  %1505 = vmatmul.mubr.f32.gmra.mxu0 %v919
  %v1506 = vpop.f32.mrf.mxu0
  %v1507 = vadd.f32 %v708, %v1506
  %v1508 = vpop.f32.mrf.mxu0
  %1509 = vmatprep.mubr.f32.mxu0 0.0
  %1510 = vmatmul.mubr.f32.gmra.mxu0 %v922
  %v1511 = vpop.f32.mrf.mxu0
  %v1512 = vadd.f32 %v708, %v1511
  %v1513 = vpop.f32.mrf.mxu0
  %1514 = vmatprep.mubr.f32.mxu0 0.0
  %1515 = vmatmul.mubr.f32.gmra.mxu0 %v925
  %v1516 = vpop.f32.mrf.mxu0
  %v1517 = vadd.f32 %v708, %v1516
  %v1518 = vpop.f32.mrf.mxu0
  %1519 = vmatprep.mubr.f32.mxu0 0.0
  %1520 = vmatmul.mubr.f32.gmra.mxu0 %v928
  %v1521 = vpop.f32.mrf.mxu0
  %v1522 = vadd.f32 %v708, %v1521
  %v1523 = vpop.f32.mrf.mxu0
  %1524 = vmatprep.mubr.f32.mxu0 0.0
  %1525 = vmatmul.mubr.f32.gmra.mxu0 %v931
  %v1526 = vpop.f32.mrf.mxu0
  %v1527 = vadd.f32 %v708, %v1526
  %v1528 = vpop.f32.mrf.mxu0
  %1529 = vmatprep.mubr.f32.mxu0 0.0
  %1530 = vmatmul.mubr.f32.gmra.mxu0 %v934
  %v1531 = vpop.f32.mrf.mxu0
  %v1532 = vadd.f32 %v708, %v1531
  %v1533 = vpop.f32.mrf.mxu0
  %1534 = vmatprep.mubr.f32.mxu0 0.0
  %1535 = vmatmul.mubr.f32.gmra.mxu0 %v937
  %v1536 = vpop.f32.mrf.mxu0
  %v1537 = vadd.f32 %v708, %v1536
  %v1538 = vpop.f32.mrf.mxu0
  %1539 = vmatprep.mubr.f32.mxu0 0.0
  %1540 = vmatmul.mubr.f32.gmra.mxu0 %v940
  %v1541 = vpop.f32.mrf.mxu0
  %v1542 = vadd.f32 %v708, %v1541
  %v1543 = vpop.f32.mrf.mxu0
  %1544 = vmatprep.mubr.f32.mxu0 0.0
  %1545 = vmatmul.mubr.f32.gmra.mxu0 %v943
  %v1546 = vpop.f32.mrf.mxu0
  %v1547 = vadd.f32 %v708, %v1546
  %v1548 = vpop.f32.mrf.mxu0
  %1549 = vmatprep.mubr.f32.mxu0 0.0
  %1550 = vmatmul.mubr.f32.gmra.mxu0 %v946
  %v1551 = vpop.f32.mrf.mxu0
  %v1552 = vadd.f32 %v708, %v1551
  %v1553 = vpop.f32.mrf.mxu0
  %1554 = vmatprep.mubr.f32.mxu0 0.0
  %1555 = vmatmul.mubr.f32.gmra.mxu0 %v949
  %v1556 = vpop.f32.mrf.mxu0
  %v1557 = vadd.f32 %v708, %v1556
  %v1558 = vpop.f32.mrf.mxu0
  %1559 = vmatprep.mubr.f32.mxu0 0.0
  %1560 = vmatmul.mubr.f32.gmra.mxu0 %v952
  %v1561 = vpop.f32.mrf.mxu0
  %v1562 = vadd.f32 %v708, %v1561
  %v1563 = vpop.f32.mrf.mxu0
  %1564 = vmatprep.mubr.f32.mxu0 0.0
  %1565 = vmatmul.mubr.f32.gmra.mxu0 %v955
  %v1566 = vpop.f32.mrf.mxu0
  %v1567 = vadd.f32 %v708, %v1566
  %v1568 = vpop.f32.mrf.mxu0
  %1569 = vmatprep.mubr.f32.mxu0 0.0
  %1570 = vmatmul.mubr.f32.gmra.mxu0 %v958
  %v1571 = vpop.f32.mrf.mxu0
  %v1572 = vadd.f32 %v708, %v1571
  %v1573 = vpop.f32.mrf.mxu0
  %1574 = vmatprep.mubr.f32.mxu0 0.0
  %1575 = vmatmul.mubr.f32.gmra.mxu0 %v961
  %v1576 = vpop.f32.mrf.mxu0
  %v1577 = vadd.f32 %v708, %v1576
  %v1578 = vpop.f32.mrf.mxu0
  %1579 = vmatprep.mubr.f32.mxu0 0.0
  %1580 = vmatmul.mubr.f32.gmra.mxu0 %v964
  %v1581 = vpop.f32.mrf.mxu0
  %v1582 = vadd.f32 %v708, %v1581
  %v1583 = vpop.f32.mrf.mxu0
  %1584 = vmatprep.mubr.f32.mxu0 0.0
  %1585 = vmatmul.mubr.f32.gmra.mxu0 %v967
  %v1586 = vpop.f32.mrf.mxu0
  %v1587 = vadd.f32 %v708, %v1586
  %v1588 = vpop.f32.mrf.mxu0
  %1589 = vmatprep.mubr.f32.mxu0 0.0
  %1590 = vmatmul.mubr.f32.gmra.mxu0 %v970
  %v1591 = vpop.f32.mrf.mxu0
  %v1592 = vadd.f32 %v708, %v1591
  %v1593 = vpop.f32.mrf.mxu0
  %1594 = vmatprep.mubr.f32.mxu0 0.0
  %1595 = vmatmul.mubr.f32.gmra.mxu0 %v973
  %v1596 = vpop.f32.mrf.mxu0
  %v1597 = vadd.f32 %v708, %v1596
  %v1598 = vpop.f32.mrf.mxu0
  %1599 = vmatprep.mubr.f32.mxu0 0.0
  %1600 = vmatmul.mubr.f32.gmra.mxu0 %v976
  %v1601 = vpop.f32.mrf.mxu0
  %v1602 = vadd.f32 %v708, %v1601
  %v1603 = vpop.f32.mrf.mxu0
  %1604 = vmatprep.mubr.f32.mxu0 0.0
  %1605 = vmatmul.mubr.f32.gmra.mxu0 %v979
  %v1606 = vpop.f32.mrf.mxu0
  %v1607 = vadd.f32 %v708, %v1606
  %v1608 = vpop.f32.mrf.mxu0
  %1609 = vmatprep.mubr.f32.mxu0 0.0
  %1610 = vmatmul.mubr.f32.gmra.mxu0 %v982
  %v1611 = vpop.f32.mrf.mxu0
  %v1612 = vadd.f32 %v708, %v1611
  %v1613 = vpop.f32.mrf.mxu0
  %1614 = vmatprep.mubr.f32.mxu0 0.0
  %1615 = vmatmul.mubr.f32.gmra.mxu0 %v985
  %v1616 = vpop.f32.mrf.mxu0
  %v1617 = vadd.f32 %v708, %v1616
  %v1618 = vpop.f32.mrf.mxu0
  %1619 = vmatprep.mubr.f32.mxu0 0.0
  %1620 = vmatmul.mubr.f32.gmra.mxu0 %v988
  %v1621 = vpop.f32.mrf.mxu0
  %v1622 = vadd.f32 %v708, %v1621
  %v1623 = vpop.f32.mrf.mxu0
  %1624 = vmatprep.mubr.f32.mxu0 0.0
  %1625 = vmatmul.mubr.f32.gmra.mxu0 %v991
  %v1626 = vpop.f32.mrf.mxu0
  %v1627 = vadd.f32 %v708, %v1626
  %v1628 = vpop.f32.mrf.mxu0
  %1629 = vmatprep.mubr.f32.mxu0 0.0
  %1630 = vmatmul.mubr.f32.gmra.mxu0 %v994
  %v1631 = vpop.f32.mrf.mxu0
  %v1632 = vadd.f32 %v708, %v1631
  %v1633 = vpop.f32.mrf.mxu0
  %1634 = vmatprep.mubr.f32.mxu0 0.0
  %1635 = vmatmul.mubr.f32.gmra.mxu0 %v997
  %v1636 = vpop.f32.mrf.mxu0
  %v1637 = vadd.f32 %v708, %v1636
  %v1638 = vpop.f32.mrf.mxu0
  %1639 = vmatprep.mubr.f32.mxu0 0.0
  %1640 = vmatmul.mubr.f32.gmra.mxu0 %v1000
  %v1641 = vpop.f32.mrf.mxu0
  %v1642 = vadd.f32 %v708, %v1641
  %v1643 = vpop.f32.mrf.mxu0
  %1644 = vmatprep.mubr.f32.mxu0 0.0
  %1645 = vmatmul.mubr.f32.gmra.mxu0 %v1003
  %v1646 = vpop.f32.mrf.mxu0
  %v1647 = vadd.f32 %v708, %v1646
  %v1648 = vpop.f32.mrf.mxu0
  %1649 = vmatprep.mubr.f32.mxu0 0.0
  %1650 = vmatmul.mubr.f32.gmra.mxu0 %v1006
  %v1651 = vpop.f32.mrf.mxu0
  %v1652 = vadd.f32 %v708, %v1651
  %v1653 = vpop.f32.mrf.mxu0
  %1654 = vmatprep.mubr.f32.mxu0 0.0
  %1655 = vmatmul.mubr.f32.gmra.mxu0 %v1009
  %v1656 = vpop.f32.mrf.mxu0
  %v1657 = vadd.f32 %v708, %v1656
  %v1658 = vpop.f32.mrf.mxu0
  %1659 = vmatprep.mubr.f32.mxu0 0.0
  %1660 = vmatmul.mubr.f32.gmra.mxu0 %v1012
  %v1661 = vpop.f32.mrf.mxu0
  %v1662 = vadd.f32 %v708, %v1661
  %v1663 = vpop.f32.mrf.mxu0
  %1664 = vmatprep.mubr.f32.mxu0 0.0
  %1665 = vmatmul.mubr.f32.gmra.mxu0 %v1015
  %v1666 = vpop.f32.mrf.mxu0
  %v1667 = vadd.f32 %v708, %v1666
  %v1668 = vpop.f32.mrf.mxu0
  %1669 = vmatprep.mubr.f32.mxu0 0.0
  %1670 = vmatmul.mubr.f32.gmra.mxu0 %v1018
  %v1671 = vpop.f32.mrf.mxu0
  %v1672 = vadd.f32 %v708, %v1671
  %v1673 = vpop.f32.mrf.mxu0
  %1674 = vmatprep.mubr.f32.mxu0 0.0
  %1675 = vmatmul.mubr.f32.gmra.mxu0 %v1021
  %v1676 = vpop.f32.mrf.mxu0
  %v1677 = vadd.f32 %v708, %v1676
  %v1678 = vpop.f32.mrf.mxu0
  %1679 = vmatprep.mubr.f32.mxu0 0.0
  %1680 = vmatmul.mubr.f32.gmra.mxu0 %v1024
  %v1681 = vpop.f32.mrf.mxu0
  %v1682 = vadd.f32 %v708, %v1681
  %v1683 = vpop.f32.mrf.mxu0
  %1684 = vmatprep.mubr.f32.mxu0 0.0
  %1685 = vmatmul.mubr.f32.gmra.mxu0 %v1027
  %v1686 = vpop.f32.mrf.mxu0
  %v1687 = vadd.f32 %v708, %v1686
  %v1688 = vpop.f32.mrf.mxu0
  %1689 = vmatprep.mubr.f32.mxu0 0.0
  %1690 = vmatmul.mubr.f32.gmra.mxu0 %v1030
  %v1691 = vpop.f32.mrf.mxu0
  %v1692 = vadd.f32 %v708, %v1691
  %v1693 = vpop.f32.mrf.mxu0
  %1694 = vmatprep.mubr.f32.mxu0 0.0
  %1695 = vmatmul.mubr.f32.gmra.mxu0 %v1033
  %v1696 = vpop.f32.mrf.mxu0
  %v1697 = vadd.f32 %v708, %v1696
  %v1698 = vpop.f32.mrf.mxu0
  %1699 = vmatprep.mubr.f32.mxu0 0.0
  %1700 = vmatmul.mubr.f32.gmra.mxu0 %v1036
  %v1701 = vpop.f32.mrf.mxu0
  %v1702 = vadd.f32 %v708, %v1701
  %v1703 = vpop.f32.mrf.mxu0
  %1704 = vmatprep.mubr.f32.mxu0 0.0
  %1705 = vmatmul.mubr.f32.gmra.mxu0 %v1039
  %v1706 = vpop.f32.mrf.mxu0
  %v1707 = vadd.f32 %v708, %v1706
  %v1708 = vpop.f32.mrf.mxu0
  %1709 = vmatprep.mubr.f32.mxu0 0.0
  %1710 = vmatmul.mubr.f32.gmra.mxu0 %v1042
  %v1711 = vpop.f32.mrf.mxu0
  %v1712 = vadd.f32 %v708, %v1711
  %v1713 = vpop.f32.mrf.mxu0
  %1714 = vmatprep.mubr.f32.mxu0 0.0
  %1715 = vmatmul.mubr.f32.gmra.mxu0 %v1045
  %v1716 = vpop.f32.mrf.mxu0
  %v1717 = vadd.f32 %v708, %v1716
  %v1718 = vpop.f32.mrf.mxu0
  %1719 = vmatprep.mubr.f32.mxu0 0.0
  %1720 = vmatmul.mubr.f32.gmra.mxu0 %v1048
  %v1721 = vpop.f32.mrf.mxu0
  %v1722 = vadd.f32 %v708, %v1721
  %v1723 = vpop.f32.mrf.mxu0
  %1724 = vmatprep.mubr.f32.mxu0 0.0
  %1725 = vmatmul.mubr.f32.gmra.mxu0 %v1051
  %v1726 = vpop.f32.mrf.mxu0
  %v1727 = vadd.f32 %v708, %v1726
  %v1728 = vpop.f32.mrf.mxu0
  %1729 = vmatprep.mubr.f32.mxu0 0.0
  %1730 = vmatmul.mubr.f32.gmra.mxu0 %v1054
  %v1731 = vpop.f32.mrf.mxu0
  %v1732 = vadd.f32 %v708, %v1731
  %v1733 = vpop.f32.mrf.mxu0
  %1734 = vmatprep.mubr.f32.mxu0 0.0
  %1735 = vmatmul.mubr.f32.gmra.mxu0 %v1057
  %v1736 = vpop.f32.mrf.mxu0
  %v1737 = vadd.f32 %v708, %v1736
  %v1738 = vpop.f32.mrf.mxu0
  %1739 = vmatprep.mubr.f32.mxu0 0.0
  %1740 = vmatmul.mubr.f32.gmra.mxu0 %v1060
  %v1741 = vpop.f32.mrf.mxu0
  %v1742 = vadd.f32 %v708, %v1741
  %v1743 = vpop.f32.mrf.mxu0
  %1744 = vmatprep.mubr.f32.mxu0 0.0
  %1745 = vmatmul.mubr.f32.gmra.mxu0 %v1063
  %v1746 = vpop.f32.mrf.mxu0
  %v1747 = vadd.f32 %v708, %v1746
  %v1748 = vpop.f32.mrf.mxu0
  %1749 = vmatprep.mubr.f32.mxu0 0.0
  %1750 = vmatmul.mubr.f32.gmra.mxu0 %v1066
  %v1751 = vpop.f32.mrf.mxu0
  %v1752 = vadd.f32 %v708, %v1751
  %v1753 = vpop.f32.mrf.mxu0
  %1754 = vmatprep.mubr.f32.mxu0 0.0
  %1755 = vmatmul.mubr.f32.gmra.mxu0 %v1069
  %v1756 = vpop.f32.mrf.mxu0
  %v1757 = vadd.f32 %v708, %v1756
  %v1758 = vpop.f32.mrf.mxu0
  %1759 = vmatprep.mubr.f32.mxu0 0.0
  %1760 = vmatmul.mubr.f32.gmra.mxu0 %v1072
  %v1761 = vpop.f32.mrf.mxu0
  %v1762 = vadd.f32 %v708, %v1761
  %v1763 = vpop.f32.mrf.mxu0
  %1764 = vmatprep.mubr.f32.mxu0 0.0
  %1765 = vmatmul.mubr.f32.gmra.mxu0 %v1075
  %v1766 = vpop.f32.mrf.mxu0
  %v1767 = vadd.f32 %v708, %v1766
  %v1768 = vpop.f32.mrf.mxu0
  %1769 = vmatprep.mubr.f32.mxu0 0.0
  %1770 = vmatmul.mubr.f32.gmra.mxu0 %v1078
  %v1771 = vpop.f32.mrf.mxu0
  %v1772 = vadd.f32 %v708, %v1771
  %v1773 = vpop.f32.mrf.mxu0
  %1774 = vmatprep.mubr.f32.mxu0 0.0
  %1775 = vmatmul.mubr.f32.gmra.mxu0 %v1081
  %v1776 = vpop.f32.mrf.mxu0
  %v1777 = vadd.f32 %v708, %v1776
  %v1778 = vpop.f32.mrf.mxu0
  %1779 = vmatprep.mubr.f32.mxu0 0.0
  %1780 = vmatmul.mubr.f32.gmra.mxu0 %v1084
  %v1781 = vpop.f32.mrf.mxu0
  %v1782 = vadd.f32 %v708, %v1781
  %v1783 = vpop.f32.mrf.mxu0
  %1784 = vmatprep.mubr.f32.mxu0 0.0
  %1785 = vmatmul.mubr.f32.gmra.mxu0 %v1087
  %v1786 = vpop.f32.mrf.mxu0
  %v1787 = vadd.f32 %v708, %v1786
  %v1788 = vpop.f32.mrf.mxu0
  %1789 = vmatprep.mubr.f32.mxu0 0.0
  %1790 = vmatmul.mubr.f32.gmra.mxu0 %v1090
  %v1791 = vpop.f32.mrf.mxu0
  %v1792 = vadd.f32 %v708, %v1791
  %v1793 = vpop.f32.mrf.mxu0
  %1794 = vmatprep.mubr.f32.mxu0 0.0
  %1795 = vmatmul.mubr.f32.gmra.mxu0 %v1093
  %v1796 = vpop.f32.mrf.mxu0
  %v1797 = vadd.f32 %v708, %v1796
  %v1798 = vpop.f32.mrf.mxu0
  %1799 = vdwg.mxu0
  %v1800 = vmax.f32 %v1162, 0.0
  %v1801 = vmax.f32 %v1167, 0.0
  %v1802 = vmax.f32 %v1172, 0.0
  %v1803 = vmax.f32 %v1177, 0.0
  %v1804 = vmax.f32 %v1182, 0.0
  %v1805 = vmax.f32 %v1187, 0.0
  %v1806 = vmax.f32 %v1192, 0.0
  %v1807 = vmax.f32 %v1197, 0.0
  %v1808 = vmax.f32 %v1202, 0.0
  %v1809 = vmax.f32 %v1207, 0.0
  %v1810 = vmax.f32 %v1212, 0.0
  %v1811 = vmax.f32 %v1217, 0.0
  %v1812 = vmax.f32 %v1222, 0.0
  %v1813 = vmax.f32 %v1227, 0.0
  %v1814 = vmax.f32 %v1232, 0.0
  %v1815 = vmax.f32 %v1237, 0.0
  %v1816 = vmax.f32 %v1242, 0.0
  %v1817 = vmax.f32 %v1247, 0.0
  %v1818 = vmax.f32 %v1252, 0.0
  %v1819 = vmax.f32 %v1257, 0.0
  %v1820 = vmax.f32 %v1262, 0.0
  %v1821 = vmax.f32 %v1267, 0.0
  %v1822 = vmax.f32 %v1272, 0.0
  %v1823 = vmax.f32 %v1277, 0.0
  %v1824 = vmax.f32 %v1282, 0.0
  %v1825 = vmax.f32 %v1287, 0.0
  %v1826 = vmax.f32 %v1292, 0.0
  %v1827 = vmax.f32 %v1297, 0.0
  %v1828 = vmax.f32 %v1302, 0.0
  %v1829 = vmax.f32 %v1307, 0.0
  %v1830 = vmax.f32 %v1312, 0.0
  %v1831 = vmax.f32 %v1317, 0.0
  %v1832 = vmax.f32 %v1322, 0.0
  %v1833 = vmax.f32 %v1327, 0.0
  %v1834 = vmax.f32 %v1332, 0.0
  %v1835 = vmax.f32 %v1337, 0.0
  %v1836 = vmax.f32 %v1342, 0.0
  %v1837 = vmax.f32 %v1347, 0.0
  %v1838 = vmax.f32 %v1352, 0.0
  %v1839 = vmax.f32 %v1357, 0.0
  %v1840 = vmax.f32 %v1362, 0.0
  %v1841 = vmax.f32 %v1367, 0.0
  %v1842 = vmax.f32 %v1372, 0.0
  %v1843 = vmax.f32 %v1377, 0.0
  %v1844 = vmax.f32 %v1382, 0.0
  %v1845 = vmax.f32 %v1387, 0.0
  %v1846 = vmax.f32 %v1392, 0.0
  %v1847 = vmax.f32 %v1397, 0.0
  %v1848 = vmax.f32 %v1402, 0.0
  %v1849 = vmax.f32 %v1407, 0.0
  %v1850 = vmax.f32 %v1412, 0.0
  %v1851 = vmax.f32 %v1417, 0.0
  %v1852 = vmax.f32 %v1422, 0.0
  %v1853 = vmax.f32 %v1427, 0.0
  %v1854 = vmax.f32 %v1432, 0.0
  %v1855 = vmax.f32 %v1437, 0.0
  %v1856 = vmax.f32 %v1442, 0.0
  %v1857 = vmax.f32 %v1447, 0.0
  %v1858 = vmax.f32 %v1452, 0.0
  %v1859 = vmax.f32 %v1457, 0.0
  %v1860 = vmax.f32 %v1462, 0.0
  %v1861 = vmax.f32 %v1467, 0.0
  %v1862 = vmax.f32 %v1472, 0.0
  %v1863 = vmax.f32 %v1477, 0.0
  %v1864 = vmax.f32 %v1482, 0.0
  %v1865 = vmax.f32 %v1487, 0.0
  %v1866 = vmax.f32 %v1492, 0.0
  %v1867 = vmax.f32 %v1497, 0.0
  %v1868 = vmax.f32 %v1502, 0.0
  %v1869 = vmax.f32 %v1507, 0.0
  %v1870 = vmax.f32 %v1512, 0.0
  %v1871 = vmax.f32 %v1517, 0.0
  %v1872 = vmax.f32 %v1522, 0.0
  %v1873 = vmax.f32 %v1527, 0.0
  %v1874 = vmax.f32 %v1532, 0.0
  %v1875 = vmax.f32 %v1537, 0.0
  %v1876 = vmax.f32 %v1542, 0.0
  %v1877 = vmax.f32 %v1547, 0.0
  %v1878 = vmax.f32 %v1552, 0.0
  %v1879 = vmax.f32 %v1557, 0.0
  %v1880 = vmax.f32 %v1562, 0.0
  %v1881 = vmax.f32 %v1567, 0.0
  %v1882 = vmax.f32 %v1572, 0.0
  %v1883 = vmax.f32 %v1577, 0.0
  %v1884 = vmax.f32 %v1582, 0.0
  %v1885 = vmax.f32 %v1587, 0.0
  %v1886 = vmax.f32 %v1592, 0.0
  %v1887 = vmax.f32 %v1597, 0.0
  %v1888 = vmax.f32 %v1602, 0.0
  %v1889 = vmax.f32 %v1607, 0.0
  %v1890 = vmax.f32 %v1612, 0.0
  %v1891 = vmax.f32 %v1617, 0.0
  %v1892 = vmax.f32 %v1622, 0.0
  %v1893 = vmax.f32 %v1627, 0.0
  %v1894 = vmax.f32 %v1632, 0.0
  %v1895 = vmax.f32 %v1637, 0.0
  %v1896 = vmax.f32 %v1642, 0.0
  %v1897 = vmax.f32 %v1647, 0.0
  %v1898 = vmax.f32 %v1652, 0.0
  %v1899 = vmax.f32 %v1657, 0.0
  %v1900 = vmax.f32 %v1662, 0.0
  %v1901 = vmax.f32 %v1667, 0.0
  %v1902 = vmax.f32 %v1672, 0.0
  %v1903 = vmax.f32 %v1677, 0.0
  %v1904 = vmax.f32 %v1682, 0.0
  %v1905 = vmax.f32 %v1687, 0.0
  %v1906 = vmax.f32 %v1692, 0.0
  %v1907 = vmax.f32 %v1697, 0.0
  %v1908 = vmax.f32 %v1702, 0.0
  %v1909 = vmax.f32 %v1707, 0.0
  %v1910 = vmax.f32 %v1712, 0.0
  %v1911 = vmax.f32 %v1717, 0.0
  %v1912 = vmax.f32 %v1722, 0.0
  %v1913 = vmax.f32 %v1727, 0.0
  %v1914 = vmax.f32 %v1732, 0.0
  %v1915 = vmax.f32 %v1737, 0.0
  %v1916 = vmax.f32 %v1742, 0.0
  %v1917 = vmax.f32 %v1747, 0.0
  %v1918 = vmax.f32 %v1752, 0.0
  %v1919 = vmax.f32 %v1757, 0.0
  %v1920 = vmax.f32 %v1762, 0.0
  %v1921 = vmax.f32 %v1767, 0.0
  %v1922 = vmax.f32 %v1772, 0.0
  %v1923 = vmax.f32 %v1777, 0.0
  %v1924 = vmax.f32 %v1782, 0.0
  %v1925 = vmax.f32 %v1787, 0.0
  %v1926 = vmax.f32 %v1792, 0.0
  %v1927 = vmax.f32 %v1797, 0.0
  %v1928 = vld [vmem:[%s6] sm:$0xff]
  %v1929 = vld [vmem:[%s7] sm:$0x1]
  %v1931 = vlaneseq
  %v1932 = vshrl.u32 %v1931, 7
  %v1933 = vsub.s32 0, %v1932
  %v1934 = vrot.slane %v1929, %v1933
  %v1937 = vsel %vm710, %v1800, 0
  %v1940 = vsel %vm710, %v1801, 0
  %v1943 = vsel %vm710, %v1802, 0
  %v1946 = vsel %vm710, %v1803, 0
  %v1949 = vsel %vm710, %v1804, 0
  %v1952 = vsel %vm710, %v1805, 0
  %v1955 = vsel %vm710, %v1806, 0
  %v1958 = vsel %vm710, %v1807, 0
  %v1961 = vsel %vm710, %v1808, 0
  %v1964 = vsel %vm710, %v1809, 0
  %v1967 = vsel %vm710, %v1810, 0
  %v1970 = vsel %vm710, %v1811, 0
  %v1973 = vsel %vm710, %v1812, 0
  %v1976 = vsel %vm710, %v1813, 0
  %v1979 = vsel %vm710, %v1814, 0
  %v1982 = vsel %vm710, %v1815, 0
  %v1985 = vsel %vm710, %v1816, 0
  %v1988 = vsel %vm710, %v1817, 0
  %v1991 = vsel %vm710, %v1818, 0
  %v1994 = vsel %vm710, %v1819, 0
  %v1997 = vsel %vm710, %v1820, 0
  %v2000 = vsel %vm710, %v1821, 0
  %v2003 = vsel %vm710, %v1822, 0
  %v2006 = vsel %vm710, %v1823, 0
  %v2009 = vsel %vm710, %v1824, 0
  %v2012 = vsel %vm710, %v1825, 0
  %v2015 = vsel %vm710, %v1826, 0
  %v2018 = vsel %vm710, %v1827, 0
  %v2021 = vsel %vm710, %v1828, 0
  %v2024 = vsel %vm710, %v1829, 0
  %v2027 = vsel %vm710, %v1830, 0
  %v2030 = vsel %vm710, %v1831, 0
  %v2033 = vsel %vm710, %v1832, 0
  %v2036 = vsel %vm710, %v1833, 0
  %v2039 = vsel %vm710, %v1834, 0
  %v2042 = vsel %vm710, %v1835, 0
  %v2045 = vsel %vm710, %v1836, 0
  %v2048 = vsel %vm710, %v1837, 0
  %v2051 = vsel %vm710, %v1838, 0
  %v2054 = vsel %vm710, %v1839, 0
  %v2057 = vsel %vm710, %v1840, 0
  %v2060 = vsel %vm710, %v1841, 0
  %v2063 = vsel %vm710, %v1842, 0
  %v2066 = vsel %vm710, %v1843, 0
  %v2069 = vsel %vm710, %v1844, 0
  %v2072 = vsel %vm710, %v1845, 0
  %v2075 = vsel %vm710, %v1846, 0
  %v2078 = vsel %vm710, %v1847, 0
  %v2081 = vsel %vm710, %v1848, 0
  %v2084 = vsel %vm710, %v1849, 0
  %v2087 = vsel %vm710, %v1850, 0
  %v2090 = vsel %vm710, %v1851, 0
  %v2093 = vsel %vm710, %v1852, 0
  %v2096 = vsel %vm710, %v1853, 0
  %v2099 = vsel %vm710, %v1854, 0
  %v2102 = vsel %vm710, %v1855, 0
  %v2105 = vsel %vm710, %v1856, 0
  %v2108 = vsel %vm710, %v1857, 0
  %v2111 = vsel %vm710, %v1858, 0
  %v2114 = vsel %vm710, %v1859, 0
  %v2117 = vsel %vm710, %v1860, 0
  %v2120 = vsel %vm710, %v1861, 0
  %v2123 = vsel %vm710, %v1862, 0
  %v2126 = vsel %vm710, %v1863, 0
  %v2129 = vsel %vm710, %v1864, 0
  %v2132 = vsel %vm710, %v1865, 0
  %v2135 = vsel %vm710, %v1866, 0
  %v2138 = vsel %vm710, %v1867, 0
  %v2141 = vsel %vm710, %v1868, 0
  %v2144 = vsel %vm710, %v1869, 0
  %v2147 = vsel %vm710, %v1870, 0
  %v2150 = vsel %vm710, %v1871, 0
  %v2153 = vsel %vm710, %v1872, 0
  %v2156 = vsel %vm710, %v1873, 0
  %v2159 = vsel %vm710, %v1874, 0
  %v2162 = vsel %vm710, %v1875, 0
  %v2165 = vsel %vm710, %v1876, 0
  %v2168 = vsel %vm710, %v1877, 0
  %v2171 = vsel %vm710, %v1878, 0
  %v2174 = vsel %vm710, %v1879, 0
  %v2177 = vsel %vm710, %v1880, 0
  %v2180 = vsel %vm710, %v1881, 0
  %v2183 = vsel %vm710, %v1882, 0
  %v2186 = vsel %vm710, %v1883, 0
  %v2189 = vsel %vm710, %v1884, 0
  %v2192 = vsel %vm710, %v1885, 0
  %v2195 = vsel %vm710, %v1886, 0
  %v2198 = vsel %vm710, %v1887, 0
  %v2201 = vsel %vm710, %v1888, 0
  %v2204 = vsel %vm710, %v1889, 0
  %v2207 = vsel %vm710, %v1890, 0
  %v2210 = vsel %vm710, %v1891, 0
  %v2213 = vsel %vm710, %v1892, 0
  %v2216 = vsel %vm710, %v1893, 0
  %v2219 = vsel %vm710, %v1894, 0
  %v2222 = vsel %vm710, %v1895, 0
  %v2225 = vsel %vm710, %v1896, 0
  %v2228 = vsel %vm710, %v1897, 0
  %v2231 = vsel %vm710, %v1898, 0
  %v2234 = vsel %vm710, %v1899, 0
  %v2237 = vsel %vm710, %v1900, 0
  %v2240 = vsel %vm710, %v1901, 0
  %v2243 = vsel %vm710, %v1902, 0
  %v2246 = vsel %vm710, %v1903, 0
  %v2249 = vsel %vm710, %v1904, 0
  %v2252 = vsel %vm710, %v1905, 0
  %v2255 = vsel %vm710, %v1906, 0
  %v2258 = vsel %vm710, %v1907, 0
  %v2261 = vsel %vm710, %v1908, 0
  %v2264 = vsel %vm710, %v1909, 0
  %v2267 = vsel %vm710, %v1910, 0
  %v2270 = vsel %vm710, %v1911, 0
  %v2273 = vsel %vm710, %v1912, 0
  %v2276 = vsel %vm710, %v1913, 0
  %v2279 = vsel %vm710, %v1914, 0
  %v2282 = vsel %vm710, %v1915, 0
  %v2285 = vsel %vm710, %v1916, 0
  %v2288 = vsel %vm710, %v1917, 0
  %v2291 = vsel %vm710, %v1918, 0
  %v2294 = vsel %vm710, %v1919, 0
  %v2297 = vsel %vm710, %v1920, 0
  %v2300 = vsel %vm710, %v1921, 0
  %v2303 = vsel %vm710, %v1922, 0
  %v2306 = vsel %vm710, %v1923, 0
  %v2309 = vsel %vm710, %v1924, 0
  %v2312 = vsel %vm710, %v1925, 0
  %v2315 = vsel %vm710, %v1926, 0
  %v2318 = vsel %vm710, %v1927, 0
  %2320 = vmatprep.subr.mxu0 0.0
  %2321 = vmatpush1.msra.mxu0 0.0
  %2322 = vmatprep.subr.mxu0 0.0
  %2323 = vmatpush1.msra.mxu0 0.0
  %2324 = vmatprep.subr.mxu0 0.0
  %2325 = vmatpush1.msra.mxu0 0.0
  %2326 = vmatprep.subr.mxu0 0.0
  %2327 = vmatpush1.msra.mxu0 0.0
  %2328 = vmatprep.subr.mxu0 0.0
  %2329 = vmatpush1.msra.mxu0 0.0
  %2330 = vmatprep.subr.mxu0 0.0
  %2331 = vmatpush1.msra.mxu0 0.0
  %2332 = vmatprep.subr.mxu0 0.0
  %2333 = vmatpush1.msra.mxu0 0.0
  %2334 = vmatprep.subr.mxu0 0.0
  %2335 = vmatpush1.msra.mxu0 0.0
  %2336 = vmatprep.subr.mxu0 0.0
  %2337 = vmatpush1.msra.mxu0 0.0
  %2338 = vmatprep.subr.mxu0 0.0
  %2339 = vmatpush1.msra.mxu0 0.0
  %2340 = vmatprep.subr.mxu0 0.0
  %2341 = vmatpush1.msra.mxu0 0.0
  %2342 = vmatprep.subr.mxu0 0.0
  %2343 = vmatpush1.msra.mxu0 0.0
  %2344 = vmatprep.subr.mxu0 0.0
  %2345 = vmatpush1.msra.mxu0 0.0
  %2346 = vmatprep.subr.mxu0 0.0
  %2347 = vmatpush1.msra.mxu0 0.0
  %2348 = vmatprep.subr.mxu0 0.0
  %2349 = vmatpush1.msra.mxu0 0.0
  %2350 = vmatprep.subr.mxu0 0.0
  %2351 = vmatpush1.msra.mxu0 %v1928
  %2352 = vmatprep.subr.mxu0 0.0
  %2353 = vmatpush2.msra.mxu0 0.0
  %2354 = vmatprep.subr.mxu0 0.0
  %2355 = vmatpush2.msra.mxu0 0.0
  %2356 = vmatprep.subr.mxu0 0.0
  %2357 = vmatpush2.msra.mxu0 0.0
  %2358 = vmatprep.subr.mxu0 0.0
  %2359 = vmatpush2.msra.mxu0 0.0
  %2360 = vmatprep.subr.mxu0 0.0
  %2361 = vmatpush2.msra.mxu0 0.0
  %2362 = vmatprep.subr.mxu0 0.0
  %2363 = vmatpush2.msra.mxu0 0.0
  %2364 = vmatprep.subr.mxu0 0.0
  %2365 = vmatpush2.msra.mxu0 0.0
  %2366 = vmatprep.subr.mxu0 0.0
  %2367 = vmatpush2.msra.mxu0 0.0
  %2368 = vmatprep.subr.mxu0 0.0
  %2369 = vmatpush2.msra.mxu0 0.0
  %2370 = vmatprep.subr.mxu0 0.0
  %2371 = vmatpush2.msra.mxu0 0.0
  %2372 = vmatprep.subr.mxu0 0.0
  %2373 = vmatpush2.msra.mxu0 0.0
  %2374 = vmatprep.subr.mxu0 0.0
  %2375 = vmatpush2.msra.mxu0 0.0
  %2376 = vmatprep.subr.mxu0 0.0
  %2377 = vmatpush2.msra.mxu0 0.0
  %2378 = vmatprep.subr.mxu0 0.0
  %2379 = vmatpush2.msra.mxu0 0.0
  %2380 = vmatprep.subr.mxu0 0.0
  %2381 = vmatpush2.msra.mxu0 0.0
  %2382 = vmatprep.subr.mxu0 0.0
  %2383 = vmatpush2.msra.mxu0 0.0
  %2384 = vmatprep.mubr.f32.mxu0 0.0
  %2385 = vmatmul.mubr.f32.gmra.mxu0 %v1937
  %v2386 = vpop.f32.mrf.mxu0
  %v2387 = vadd.f32 %v1934, %v2386
  %v2388 = vpop.f32.mrf.mxu0
  %2389 = vmatprep.mubr.f32.mxu0 0.0
  %2390 = vmatmul.mubr.f32.gmra.mxu0 %v1940
  %v2391 = vpop.f32.mrf.mxu0
  %v2392 = vadd.f32 %v1934, %v2391
  %v2393 = vpop.f32.mrf.mxu0
  %2394 = vmatprep.mubr.f32.mxu0 0.0
  %2395 = vmatmul.mubr.f32.gmra.mxu0 %v1943
  %v2396 = vpop.f32.mrf.mxu0
  %v2397 = vadd.f32 %v1934, %v2396
  %v2398 = vpop.f32.mrf.mxu0
  %2399 = vmatprep.mubr.f32.mxu0 0.0
  %2400 = vmatmul.mubr.f32.gmra.mxu0 %v1946
  %v2401 = vpop.f32.mrf.mxu0
  %v2402 = vadd.f32 %v1934, %v2401
  %v2403 = vpop.f32.mrf.mxu0
  %2404 = vmatprep.mubr.f32.mxu0 0.0
  %2405 = vmatmul.mubr.f32.gmra.mxu0 %v1949
  %v2406 = vpop.f32.mrf.mxu0
  %v2407 = vadd.f32 %v1934, %v2406
  %v2408 = vpop.f32.mrf.mxu0
  %2409 = vmatprep.mubr.f32.mxu0 0.0
  %2410 = vmatmul.mubr.f32.gmra.mxu0 %v1952
  %v2411 = vpop.f32.mrf.mxu0
  %v2412 = vadd.f32 %v1934, %v2411
  %v2413 = vpop.f32.mrf.mxu0
  %2414 = vmatprep.mubr.f32.mxu0 0.0
  %2415 = vmatmul.mubr.f32.gmra.mxu0 %v1955
  %v2416 = vpop.f32.mrf.mxu0
  %v2417 = vadd.f32 %v1934, %v2416
  %v2418 = vpop.f32.mrf.mxu0
  %2419 = vmatprep.mubr.f32.mxu0 0.0
  %2420 = vmatmul.mubr.f32.gmra.mxu0 %v1958
  %v2421 = vpop.f32.mrf.mxu0
  %v2422 = vadd.f32 %v1934, %v2421
  %v2423 = vpop.f32.mrf.mxu0
  %2424 = vmatprep.mubr.f32.mxu0 0.0
  %2425 = vmatmul.mubr.f32.gmra.mxu0 %v1961
  %v2426 = vpop.f32.mrf.mxu0
  %v2427 = vadd.f32 %v1934, %v2426
  %v2428 = vpop.f32.mrf.mxu0
  %2429 = vmatprep.mubr.f32.mxu0 0.0
  %2430 = vmatmul.mubr.f32.gmra.mxu0 %v1964
  %v2431 = vpop.f32.mrf.mxu0
  %v2432 = vadd.f32 %v1934, %v2431
  %v2433 = vpop.f32.mrf.mxu0
  %2434 = vmatprep.mubr.f32.mxu0 0.0
  %2435 = vmatmul.mubr.f32.gmra.mxu0 %v1967
  %v2436 = vpop.f32.mrf.mxu0
  %v2437 = vadd.f32 %v1934, %v2436
  %v2438 = vpop.f32.mrf.mxu0
  %2439 = vmatprep.mubr.f32.mxu0 0.0
  %2440 = vmatmul.mubr.f32.gmra.mxu0 %v1970
  %v2441 = vpop.f32.mrf.mxu0
  %v2442 = vadd.f32 %v1934, %v2441
  %v2443 = vpop.f32.mrf.mxu0
  %2444 = vmatprep.mubr.f32.mxu0 0.0
  %2445 = vmatmul.mubr.f32.gmra.mxu0 %v1973
  %v2446 = vpop.f32.mrf.mxu0
  %v2447 = vadd.f32 %v1934, %v2446
  %v2448 = vpop.f32.mrf.mxu0
  %2449 = vmatprep.mubr.f32.mxu0 0.0
  %2450 = vmatmul.mubr.f32.gmra.mxu0 %v1976
  %v2451 = vpop.f32.mrf.mxu0
  %v2452 = vadd.f32 %v1934, %v2451
  %v2453 = vpop.f32.mrf.mxu0
  %2454 = vmatprep.mubr.f32.mxu0 0.0
  %2455 = vmatmul.mubr.f32.gmra.mxu0 %v1979
  %v2456 = vpop.f32.mrf.mxu0
  %v2457 = vadd.f32 %v1934, %v2456
  %v2458 = vpop.f32.mrf.mxu0
  %2459 = vmatprep.mubr.f32.mxu0 0.0
  %2460 = vmatmul.mubr.f32.gmra.mxu0 %v1982
  %v2461 = vpop.f32.mrf.mxu0
  %v2462 = vadd.f32 %v1934, %v2461
  %v2463 = vpop.f32.mrf.mxu0
  %2464 = vmatprep.mubr.f32.mxu0 0.0
  %2465 = vmatmul.mubr.f32.gmra.mxu0 %v1985
  %v2466 = vpop.f32.mrf.mxu0
  %v2467 = vadd.f32 %v1934, %v2466
  %v2468 = vpop.f32.mrf.mxu0
  %2469 = vmatprep.mubr.f32.mxu0 0.0
  %2470 = vmatmul.mubr.f32.gmra.mxu0 %v1988
  %v2471 = vpop.f32.mrf.mxu0
  %v2472 = vadd.f32 %v1934, %v2471
  %v2473 = vpop.f32.mrf.mxu0
  %2474 = vmatprep.mubr.f32.mxu0 0.0
  %2475 = vmatmul.mubr.f32.gmra.mxu0 %v1991
  %v2476 = vpop.f32.mrf.mxu0
  %v2477 = vadd.f32 %v1934, %v2476
  %v2478 = vpop.f32.mrf.mxu0
  %2479 = vmatprep.mubr.f32.mxu0 0.0
  %2480 = vmatmul.mubr.f32.gmra.mxu0 %v1994
  %v2481 = vpop.f32.mrf.mxu0
  %v2482 = vadd.f32 %v1934, %v2481
  %v2483 = vpop.f32.mrf.mxu0
  %2484 = vmatprep.mubr.f32.mxu0 0.0
  %2485 = vmatmul.mubr.f32.gmra.mxu0 %v1997
  %v2486 = vpop.f32.mrf.mxu0
  %v2487 = vadd.f32 %v1934, %v2486
  %v2488 = vpop.f32.mrf.mxu0
  %2489 = vmatprep.mubr.f32.mxu0 0.0
  %2490 = vmatmul.mubr.f32.gmra.mxu0 %v2000
  %v2491 = vpop.f32.mrf.mxu0
  %v2492 = vadd.f32 %v1934, %v2491
  %v2493 = vpop.f32.mrf.mxu0
  %2494 = vmatprep.mubr.f32.mxu0 0.0
  %2495 = vmatmul.mubr.f32.gmra.mxu0 %v2003
  %v2496 = vpop.f32.mrf.mxu0
  %v2497 = vadd.f32 %v1934, %v2496
  %v2498 = vpop.f32.mrf.mxu0
  %2499 = vmatprep.mubr.f32.mxu0 0.0
  %2500 = vmatmul.mubr.f32.gmra.mxu0 %v2006
  %v2501 = vpop.f32.mrf.mxu0
  %v2502 = vadd.f32 %v1934, %v2501
  %v2503 = vpop.f32.mrf.mxu0
  %2504 = vmatprep.mubr.f32.mxu0 0.0
  %2505 = vmatmul.mubr.f32.gmra.mxu0 %v2009
  %v2506 = vpop.f32.mrf.mxu0
  %v2507 = vadd.f32 %v1934, %v2506
  %v2508 = vpop.f32.mrf.mxu0
  %2509 = vmatprep.mubr.f32.mxu0 0.0
  %2510 = vmatmul.mubr.f32.gmra.mxu0 %v2012
  %v2511 = vpop.f32.mrf.mxu0
  %v2512 = vadd.f32 %v1934, %v2511
  %v2513 = vpop.f32.mrf.mxu0
  %2514 = vmatprep.mubr.f32.mxu0 0.0
  %2515 = vmatmul.mubr.f32.gmra.mxu0 %v2015
  %v2516 = vpop.f32.mrf.mxu0
  %v2517 = vadd.f32 %v1934, %v2516
  %v2518 = vpop.f32.mrf.mxu0
  %2519 = vmatprep.mubr.f32.mxu0 0.0
  %2520 = vmatmul.mubr.f32.gmra.mxu0 %v2018
  %v2521 = vpop.f32.mrf.mxu0
  %v2522 = vadd.f32 %v1934, %v2521
  %v2523 = vpop.f32.mrf.mxu0
  %2524 = vmatprep.mubr.f32.mxu0 0.0
  %2525 = vmatmul.mubr.f32.gmra.mxu0 %v2021
  %v2526 = vpop.f32.mrf.mxu0
  %v2527 = vadd.f32 %v1934, %v2526
  %v2528 = vpop.f32.mrf.mxu0
  %2529 = vmatprep.mubr.f32.mxu0 0.0
  %2530 = vmatmul.mubr.f32.gmra.mxu0 %v2024
  %v2531 = vpop.f32.mrf.mxu0
  %v2532 = vadd.f32 %v1934, %v2531
  %v2533 = vpop.f32.mrf.mxu0
  %2534 = vmatprep.mubr.f32.mxu0 0.0
  %2535 = vmatmul.mubr.f32.gmra.mxu0 %v2027
  %v2536 = vpop.f32.mrf.mxu0
  %v2537 = vadd.f32 %v1934, %v2536
  %v2538 = vpop.f32.mrf.mxu0
  %2539 = vmatprep.mubr.f32.mxu0 0.0
  %2540 = vmatmul.mubr.f32.gmra.mxu0 %v2030
  %v2541 = vpop.f32.mrf.mxu0
  %v2542 = vadd.f32 %v1934, %v2541
  %v2543 = vpop.f32.mrf.mxu0
  %2544 = vmatprep.mubr.f32.mxu0 0.0
  %2545 = vmatmul.mubr.f32.gmra.mxu0 %v2033
  %v2546 = vpop.f32.mrf.mxu0
  %v2547 = vadd.f32 %v1934, %v2546
  %v2548 = vpop.f32.mrf.mxu0
  %2549 = vmatprep.mubr.f32.mxu0 0.0
  %2550 = vmatmul.mubr.f32.gmra.mxu0 %v2036
  %v2551 = vpop.f32.mrf.mxu0
  %v2552 = vadd.f32 %v1934, %v2551
  %v2553 = vpop.f32.mrf.mxu0
  %2554 = vmatprep.mubr.f32.mxu0 0.0
  %2555 = vmatmul.mubr.f32.gmra.mxu0 %v2039
  %v2556 = vpop.f32.mrf.mxu0
  %v2557 = vadd.f32 %v1934, %v2556
  %v2558 = vpop.f32.mrf.mxu0
  %2559 = vmatprep.mubr.f32.mxu0 0.0
  %2560 = vmatmul.mubr.f32.gmra.mxu0 %v2042
  %v2561 = vpop.f32.mrf.mxu0
  %v2562 = vadd.f32 %v1934, %v2561
  %v2563 = vpop.f32.mrf.mxu0
  %2564 = vmatprep.mubr.f32.mxu0 0.0
  %2565 = vmatmul.mubr.f32.gmra.mxu0 %v2045
  %v2566 = vpop.f32.mrf.mxu0
  %v2567 = vadd.f32 %v1934, %v2566
  %v2568 = vpop.f32.mrf.mxu0
  %2569 = vmatprep.mubr.f32.mxu0 0.0
  %2570 = vmatmul.mubr.f32.gmra.mxu0 %v2048
  %v2571 = vpop.f32.mrf.mxu0
  %v2572 = vadd.f32 %v1934, %v2571
  %v2573 = vpop.f32.mrf.mxu0
  %2574 = vmatprep.mubr.f32.mxu0 0.0
  %2575 = vmatmul.mubr.f32.gmra.mxu0 %v2051
  %v2576 = vpop.f32.mrf.mxu0
  %v2577 = vadd.f32 %v1934, %v2576
  %v2578 = vpop.f32.mrf.mxu0
  %2579 = vmatprep.mubr.f32.mxu0 0.0
  %2580 = vmatmul.mubr.f32.gmra.mxu0 %v2054
  %v2581 = vpop.f32.mrf.mxu0
  %v2582 = vadd.f32 %v1934, %v2581
  %v2583 = vpop.f32.mrf.mxu0
  %2584 = vmatprep.mubr.f32.mxu0 0.0
  %2585 = vmatmul.mubr.f32.gmra.mxu0 %v2057
  %v2586 = vpop.f32.mrf.mxu0
  %v2587 = vadd.f32 %v1934, %v2586
  %v2588 = vpop.f32.mrf.mxu0
  %2589 = vmatprep.mubr.f32.mxu0 0.0
  %2590 = vmatmul.mubr.f32.gmra.mxu0 %v2060
  %v2591 = vpop.f32.mrf.mxu0
  %v2592 = vadd.f32 %v1934, %v2591
  %v2593 = vpop.f32.mrf.mxu0
  %2594 = vmatprep.mubr.f32.mxu0 0.0
  %2595 = vmatmul.mubr.f32.gmra.mxu0 %v2063
  %v2596 = vpop.f32.mrf.mxu0
  %v2597 = vadd.f32 %v1934, %v2596
  %v2598 = vpop.f32.mrf.mxu0
  %2599 = vmatprep.mubr.f32.mxu0 0.0
  %2600 = vmatmul.mubr.f32.gmra.mxu0 %v2066
  %v2601 = vpop.f32.mrf.mxu0
  %v2602 = vadd.f32 %v1934, %v2601
  %v2603 = vpop.f32.mrf.mxu0
  %2604 = vmatprep.mubr.f32.mxu0 0.0
  %2605 = vmatmul.mubr.f32.gmra.mxu0 %v2069
  %v2606 = vpop.f32.mrf.mxu0
  %v2607 = vadd.f32 %v1934, %v2606
  %v2608 = vpop.f32.mrf.mxu0
  %2609 = vmatprep.mubr.f32.mxu0 0.0
  %2610 = vmatmul.mubr.f32.gmra.mxu0 %v2072
  %v2611 = vpop.f32.mrf.mxu0
  %v2612 = vadd.f32 %v1934, %v2611
  %v2613 = vpop.f32.mrf.mxu0
  %2614 = vmatprep.mubr.f32.mxu0 0.0
  %2615 = vmatmul.mubr.f32.gmra.mxu0 %v2075
  %v2616 = vpop.f32.mrf.mxu0
  %v2617 = vadd.f32 %v1934, %v2616
  %v2618 = vpop.f32.mrf.mxu0
  %2619 = vmatprep.mubr.f32.mxu0 0.0
  %2620 = vmatmul.mubr.f32.gmra.mxu0 %v2078
  %v2621 = vpop.f32.mrf.mxu0
  %v2622 = vadd.f32 %v1934, %v2621
  %v2623 = vpop.f32.mrf.mxu0
  %2624 = vmatprep.mubr.f32.mxu0 0.0
  %2625 = vmatmul.mubr.f32.gmra.mxu0 %v2081
  %v2626 = vpop.f32.mrf.mxu0
  %v2627 = vadd.f32 %v1934, %v2626
  %v2628 = vpop.f32.mrf.mxu0
  %2629 = vmatprep.mubr.f32.mxu0 0.0
  %2630 = vmatmul.mubr.f32.gmra.mxu0 %v2084
  %v2631 = vpop.f32.mrf.mxu0
  %v2632 = vadd.f32 %v1934, %v2631
  %v2633 = vpop.f32.mrf.mxu0
  %2634 = vmatprep.mubr.f32.mxu0 0.0
  %2635 = vmatmul.mubr.f32.gmra.mxu0 %v2087
  %v2636 = vpop.f32.mrf.mxu0
  %v2637 = vadd.f32 %v1934, %v2636
  %v2638 = vpop.f32.mrf.mxu0
  %2639 = vmatprep.mubr.f32.mxu0 0.0
  %2640 = vmatmul.mubr.f32.gmra.mxu0 %v2090
  %v2641 = vpop.f32.mrf.mxu0
  %v2642 = vadd.f32 %v1934, %v2641
  %v2643 = vpop.f32.mrf.mxu0
  %2644 = vmatprep.mubr.f32.mxu0 0.0
  %2645 = vmatmul.mubr.f32.gmra.mxu0 %v2093
  %v2646 = vpop.f32.mrf.mxu0
  %v2647 = vadd.f32 %v1934, %v2646
  %v2648 = vpop.f32.mrf.mxu0
  %2649 = vmatprep.mubr.f32.mxu0 0.0
  %2650 = vmatmul.mubr.f32.gmra.mxu0 %v2096
  %v2651 = vpop.f32.mrf.mxu0
  %v2652 = vadd.f32 %v1934, %v2651
  %v2653 = vpop.f32.mrf.mxu0
  %2654 = vmatprep.mubr.f32.mxu0 0.0
  %2655 = vmatmul.mubr.f32.gmra.mxu0 %v2099
  %v2656 = vpop.f32.mrf.mxu0
  %v2657 = vadd.f32 %v1934, %v2656
  %v2658 = vpop.f32.mrf.mxu0
  %2659 = vmatprep.mubr.f32.mxu0 0.0
  %2660 = vmatmul.mubr.f32.gmra.mxu0 %v2102
  %v2661 = vpop.f32.mrf.mxu0
  %v2662 = vadd.f32 %v1934, %v2661
  %v2663 = vpop.f32.mrf.mxu0
  %2664 = vmatprep.mubr.f32.mxu0 0.0
  %2665 = vmatmul.mubr.f32.gmra.mxu0 %v2105
  %v2666 = vpop.f32.mrf.mxu0
  %v2667 = vadd.f32 %v1934, %v2666
  %v2668 = vpop.f32.mrf.mxu0
  %2669 = vmatprep.mubr.f32.mxu0 0.0
  %2670 = vmatmul.mubr.f32.gmra.mxu0 %v2108
  %v2671 = vpop.f32.mrf.mxu0
  %v2672 = vadd.f32 %v1934, %v2671
  %v2673 = vpop.f32.mrf.mxu0
  %2674 = vmatprep.mubr.f32.mxu0 0.0
  %2675 = vmatmul.mubr.f32.gmra.mxu0 %v2111
  %v2676 = vpop.f32.mrf.mxu0
  %v2677 = vadd.f32 %v1934, %v2676
  %v2678 = vpop.f32.mrf.mxu0
  %2679 = vmatprep.mubr.f32.mxu0 0.0
  %2680 = vmatmul.mubr.f32.gmra.mxu0 %v2114
  %v2681 = vpop.f32.mrf.mxu0
  %v2682 = vadd.f32 %v1934, %v2681
  %v2683 = vpop.f32.mrf.mxu0
  %2684 = vmatprep.mubr.f32.mxu0 0.0
  %2685 = vmatmul.mubr.f32.gmra.mxu0 %v2117
  %v2686 = vpop.f32.mrf.mxu0
  %v2687 = vadd.f32 %v1934, %v2686
  %v2688 = vpop.f32.mrf.mxu0
  %2689 = vmatprep.mubr.f32.mxu0 0.0
  %2690 = vmatmul.mubr.f32.gmra.mxu0 %v2120
  %v2691 = vpop.f32.mrf.mxu0
  %v2692 = vadd.f32 %v1934, %v2691
  %v2693 = vpop.f32.mrf.mxu0
  %2694 = vmatprep.mubr.f32.mxu0 0.0
  %2695 = vmatmul.mubr.f32.gmra.mxu0 %v2123
  %v2696 = vpop.f32.mrf.mxu0
  %v2697 = vadd.f32 %v1934, %v2696
  %v2698 = vpop.f32.mrf.mxu0
  %2699 = vmatprep.mubr.f32.mxu0 0.0
  %2700 = vmatmul.mubr.f32.gmra.mxu0 %v2126
  %v2701 = vpop.f32.mrf.mxu0
  %v2702 = vadd.f32 %v1934, %v2701
  %v2703 = vpop.f32.mrf.mxu0
  %2704 = vmatprep.mubr.f32.mxu0 0.0
  %2705 = vmatmul.mubr.f32.gmra.mxu0 %v2129
  %v2706 = vpop.f32.mrf.mxu0
  %v2707 = vadd.f32 %v1934, %v2706
  %v2708 = vpop.f32.mrf.mxu0
  %2709 = vmatprep.mubr.f32.mxu0 0.0
  %2710 = vmatmul.mubr.f32.gmra.mxu0 %v2132
  %v2711 = vpop.f32.mrf.mxu0
  %v2712 = vadd.f32 %v1934, %v2711
  %v2713 = vpop.f32.mrf.mxu0
  %2714 = vmatprep.mubr.f32.mxu0 0.0
  %2715 = vmatmul.mubr.f32.gmra.mxu0 %v2135
  %v2716 = vpop.f32.mrf.mxu0
  %v2717 = vadd.f32 %v1934, %v2716
  %v2718 = vpop.f32.mrf.mxu0
  %2719 = vmatprep.mubr.f32.mxu0 0.0
  %2720 = vmatmul.mubr.f32.gmra.mxu0 %v2138
  %v2721 = vpop.f32.mrf.mxu0
  %v2722 = vadd.f32 %v1934, %v2721
  %v2723 = vpop.f32.mrf.mxu0
  %2724 = vmatprep.mubr.f32.mxu0 0.0
  %2725 = vmatmul.mubr.f32.gmra.mxu0 %v2141
  %v2726 = vpop.f32.mrf.mxu0
  %v2727 = vadd.f32 %v1934, %v2726
  %v2728 = vpop.f32.mrf.mxu0
  %2729 = vmatprep.mubr.f32.mxu0 0.0
  %2730 = vmatmul.mubr.f32.gmra.mxu0 %v2144
  %v2731 = vpop.f32.mrf.mxu0
  %v2732 = vadd.f32 %v1934, %v2731
  %v2733 = vpop.f32.mrf.mxu0
  %2734 = vmatprep.mubr.f32.mxu0 0.0
  %2735 = vmatmul.mubr.f32.gmra.mxu0 %v2147
  %v2736 = vpop.f32.mrf.mxu0
  %v2737 = vadd.f32 %v1934, %v2736
  %v2738 = vpop.f32.mrf.mxu0
  %2739 = vmatprep.mubr.f32.mxu0 0.0
  %2740 = vmatmul.mubr.f32.gmra.mxu0 %v2150
  %v2741 = vpop.f32.mrf.mxu0
  %v2742 = vadd.f32 %v1934, %v2741
  %v2743 = vpop.f32.mrf.mxu0
  %2744 = vmatprep.mubr.f32.mxu0 0.0
  %2745 = vmatmul.mubr.f32.gmra.mxu0 %v2153
  %v2746 = vpop.f32.mrf.mxu0
  %v2747 = vadd.f32 %v1934, %v2746
  %v2748 = vpop.f32.mrf.mxu0
  %2749 = vmatprep.mubr.f32.mxu0 0.0
  %2750 = vmatmul.mubr.f32.gmra.mxu0 %v2156
  %v2751 = vpop.f32.mrf.mxu0
  %v2752 = vadd.f32 %v1934, %v2751
  %v2753 = vpop.f32.mrf.mxu0
  %2754 = vmatprep.mubr.f32.mxu0 0.0
  %2755 = vmatmul.mubr.f32.gmra.mxu0 %v2159
  %v2756 = vpop.f32.mrf.mxu0
  %v2757 = vadd.f32 %v1934, %v2756
  %v2758 = vpop.f32.mrf.mxu0
  %2759 = vmatprep.mubr.f32.mxu0 0.0
  %2760 = vmatmul.mubr.f32.gmra.mxu0 %v2162
  %v2761 = vpop.f32.mrf.mxu0
  %v2762 = vadd.f32 %v1934, %v2761
  %v2763 = vpop.f32.mrf.mxu0
  %2764 = vmatprep.mubr.f32.mxu0 0.0
  %2765 = vmatmul.mubr.f32.gmra.mxu0 %v2165
  %v2766 = vpop.f32.mrf.mxu0
  %v2767 = vadd.f32 %v1934, %v2766
  %v2768 = vpop.f32.mrf.mxu0
  %2769 = vmatprep.mubr.f32.mxu0 0.0
  %2770 = vmatmul.mubr.f32.gmra.mxu0 %v2168
  %v2771 = vpop.f32.mrf.mxu0
  %v2772 = vadd.f32 %v1934, %v2771
  %v2773 = vpop.f32.mrf.mxu0
  %2774 = vmatprep.mubr.f32.mxu0 0.0
  %2775 = vmatmul.mubr.f32.gmra.mxu0 %v2171
  %v2776 = vpop.f32.mrf.mxu0
  %v2777 = vadd.f32 %v1934, %v2776
  %v2778 = vpop.f32.mrf.mxu0
  %2779 = vmatprep.mubr.f32.mxu0 0.0
  %2780 = vmatmul.mubr.f32.gmra.mxu0 %v2174
  %v2781 = vpop.f32.mrf.mxu0
  %v2782 = vadd.f32 %v1934, %v2781
  %v2783 = vpop.f32.mrf.mxu0
  %2784 = vmatprep.mubr.f32.mxu0 0.0
  %2785 = vmatmul.mubr.f32.gmra.mxu0 %v2177
  %v2786 = vpop.f32.mrf.mxu0
  %v2787 = vadd.f32 %v1934, %v2786
  %v2788 = vpop.f32.mrf.mxu0
  %2789 = vmatprep.mubr.f32.mxu0 0.0
  %2790 = vmatmul.mubr.f32.gmra.mxu0 %v2180
  %v2791 = vpop.f32.mrf.mxu0
  %v2792 = vadd.f32 %v1934, %v2791
  %v2793 = vpop.f32.mrf.mxu0
  %2794 = vmatprep.mubr.f32.mxu0 0.0
  %2795 = vmatmul.mubr.f32.gmra.mxu0 %v2183
  %v2796 = vpop.f32.mrf.mxu0
  %v2797 = vadd.f32 %v1934, %v2796
  %v2798 = vpop.f32.mrf.mxu0
  %2799 = vmatprep.mubr.f32.mxu0 0.0
  %2800 = vmatmul.mubr.f32.gmra.mxu0 %v2186
  %v2801 = vpop.f32.mrf.mxu0
  %v2802 = vadd.f32 %v1934, %v2801
  %v2803 = vpop.f32.mrf.mxu0
  %2804 = vmatprep.mubr.f32.mxu0 0.0
  %2805 = vmatmul.mubr.f32.gmra.mxu0 %v2189
  %v2806 = vpop.f32.mrf.mxu0
  %v2807 = vadd.f32 %v1934, %v2806
  %v2808 = vpop.f32.mrf.mxu0
  %2809 = vmatprep.mubr.f32.mxu0 0.0
  %2810 = vmatmul.mubr.f32.gmra.mxu0 %v2192
  %v2811 = vpop.f32.mrf.mxu0
  %v2812 = vadd.f32 %v1934, %v2811
  %v2813 = vpop.f32.mrf.mxu0
  %2814 = vmatprep.mubr.f32.mxu0 0.0
  %2815 = vmatmul.mubr.f32.gmra.mxu0 %v2195
  %v2816 = vpop.f32.mrf.mxu0
  %v2817 = vadd.f32 %v1934, %v2816
  %v2818 = vpop.f32.mrf.mxu0
  %2819 = vmatprep.mubr.f32.mxu0 0.0
  %2820 = vmatmul.mubr.f32.gmra.mxu0 %v2198
  %v2821 = vpop.f32.mrf.mxu0
  %v2822 = vadd.f32 %v1934, %v2821
  %v2823 = vpop.f32.mrf.mxu0
  %2824 = vmatprep.mubr.f32.mxu0 0.0
  %2825 = vmatmul.mubr.f32.gmra.mxu0 %v2201
  %v2826 = vpop.f32.mrf.mxu0
  %v2827 = vadd.f32 %v1934, %v2826
  %v2828 = vpop.f32.mrf.mxu0
  %2829 = vmatprep.mubr.f32.mxu0 0.0
  %2830 = vmatmul.mubr.f32.gmra.mxu0 %v2204
  %v2831 = vpop.f32.mrf.mxu0
  %v2832 = vadd.f32 %v1934, %v2831
  %v2833 = vpop.f32.mrf.mxu0
  %2834 = vmatprep.mubr.f32.mxu0 0.0
  %2835 = vmatmul.mubr.f32.gmra.mxu0 %v2207
  %v2836 = vpop.f32.mrf.mxu0
  %v2837 = vadd.f32 %v1934, %v2836
  %v2838 = vpop.f32.mrf.mxu0
  %2839 = vmatprep.mubr.f32.mxu0 0.0
  %2840 = vmatmul.mubr.f32.gmra.mxu0 %v2210
  %v2841 = vpop.f32.mrf.mxu0
  %v2842 = vadd.f32 %v1934, %v2841
  %v2843 = vpop.f32.mrf.mxu0
  %2844 = vmatprep.mubr.f32.mxu0 0.0
  %2845 = vmatmul.mubr.f32.gmra.mxu0 %v2213
  %v2846 = vpop.f32.mrf.mxu0
  %v2847 = vadd.f32 %v1934, %v2846
  %v2848 = vpop.f32.mrf.mxu0
  %2849 = vmatprep.mubr.f32.mxu0 0.0
  %2850 = vmatmul.mubr.f32.gmra.mxu0 %v2216
  %v2851 = vpop.f32.mrf.mxu0
  %v2852 = vadd.f32 %v1934, %v2851
  %v2853 = vpop.f32.mrf.mxu0
  %2854 = vmatprep.mubr.f32.mxu0 0.0
  %2855 = vmatmul.mubr.f32.gmra.mxu0 %v2219
  %v2856 = vpop.f32.mrf.mxu0
  %v2857 = vadd.f32 %v1934, %v2856
  %v2858 = vpop.f32.mrf.mxu0
  %2859 = vmatprep.mubr.f32.mxu0 0.0
  %2860 = vmatmul.mubr.f32.gmra.mxu0 %v2222
  %v2861 = vpop.f32.mrf.mxu0
  %v2862 = vadd.f32 %v1934, %v2861
  %v2863 = vpop.f32.mrf.mxu0
  %2864 = vmatprep.mubr.f32.mxu0 0.0
  %2865 = vmatmul.mubr.f32.gmra.mxu0 %v2225
  %v2866 = vpop.f32.mrf.mxu0
  %v2867 = vadd.f32 %v1934, %v2866
  %v2868 = vpop.f32.mrf.mxu0
  %2869 = vmatprep.mubr.f32.mxu0 0.0
  %2870 = vmatmul.mubr.f32.gmra.mxu0 %v2228
  %v2871 = vpop.f32.mrf.mxu0
  %v2872 = vadd.f32 %v1934, %v2871
  %v2873 = vpop.f32.mrf.mxu0
  %2874 = vmatprep.mubr.f32.mxu0 0.0
  %2875 = vmatmul.mubr.f32.gmra.mxu0 %v2231
  %v2876 = vpop.f32.mrf.mxu0
  %v2877 = vadd.f32 %v1934, %v2876
  %v2878 = vpop.f32.mrf.mxu0
  %2879 = vmatprep.mubr.f32.mxu0 0.0
  %2880 = vmatmul.mubr.f32.gmra.mxu0 %v2234
  %v2881 = vpop.f32.mrf.mxu0
  %v2882 = vadd.f32 %v1934, %v2881
  %v2883 = vpop.f32.mrf.mxu0
  %2884 = vmatprep.mubr.f32.mxu0 0.0
  %2885 = vmatmul.mubr.f32.gmra.mxu0 %v2237
  %v2886 = vpop.f32.mrf.mxu0
  %v2887 = vadd.f32 %v1934, %v2886
  %v2888 = vpop.f32.mrf.mxu0
  %2889 = vmatprep.mubr.f32.mxu0 0.0
  %2890 = vmatmul.mubr.f32.gmra.mxu0 %v2240
  %v2891 = vpop.f32.mrf.mxu0
  %v2892 = vadd.f32 %v1934, %v2891
  %v2893 = vpop.f32.mrf.mxu0
  %2894 = vmatprep.mubr.f32.mxu0 0.0
  %2895 = vmatmul.mubr.f32.gmra.mxu0 %v2243
  %v2896 = vpop.f32.mrf.mxu0
  %v2897 = vadd.f32 %v1934, %v2896
  %v2898 = vpop.f32.mrf.mxu0
  %2899 = vmatprep.mubr.f32.mxu0 0.0
  %2900 = vmatmul.mubr.f32.gmra.mxu0 %v2246
  %v2901 = vpop.f32.mrf.mxu0
  %v2902 = vadd.f32 %v1934, %v2901
  %v2903 = vpop.f32.mrf.mxu0
  %2904 = vmatprep.mubr.f32.mxu0 0.0
  %2905 = vmatmul.mubr.f32.gmra.mxu0 %v2249
  %v2906 = vpop.f32.mrf.mxu0
  %v2907 = vadd.f32 %v1934, %v2906
  %v2908 = vpop.f32.mrf.mxu0
  %2909 = vmatprep.mubr.f32.mxu0 0.0
  %2910 = vmatmul.mubr.f32.gmra.mxu0 %v2252
  %v2911 = vpop.f32.mrf.mxu0
  %v2912 = vadd.f32 %v1934, %v2911
  %v2913 = vpop.f32.mrf.mxu0
  %2914 = vmatprep.mubr.f32.mxu0 0.0
  %2915 = vmatmul.mubr.f32.gmra.mxu0 %v2255
  %v2916 = vpop.f32.mrf.mxu0
  %v2917 = vadd.f32 %v1934, %v2916
  %v2918 = vpop.f32.mrf.mxu0
  %2919 = vmatprep.mubr.f32.mxu0 0.0
  %2920 = vmatmul.mubr.f32.gmra.mxu0 %v2258
  %v2921 = vpop.f32.mrf.mxu0
  %v2922 = vadd.f32 %v1934, %v2921
  %v2923 = vpop.f32.mrf.mxu0
  %2924 = vmatprep.mubr.f32.mxu0 0.0
  %2925 = vmatmul.mubr.f32.gmra.mxu0 %v2261
  %v2926 = vpop.f32.mrf.mxu0
  %v2927 = vadd.f32 %v1934, %v2926
  %v2928 = vpop.f32.mrf.mxu0
  %2929 = vmatprep.mubr.f32.mxu0 0.0
  %2930 = vmatmul.mubr.f32.gmra.mxu0 %v2264
  %v2931 = vpop.f32.mrf.mxu0
  %v2932 = vadd.f32 %v1934, %v2931
  %v2933 = vpop.f32.mrf.mxu0
  %2934 = vmatprep.mubr.f32.mxu0 0.0
  %2935 = vmatmul.mubr.f32.gmra.mxu0 %v2267
  %v2936 = vpop.f32.mrf.mxu0
  %v2937 = vadd.f32 %v1934, %v2936
  %v2938 = vpop.f32.mrf.mxu0
  %2939 = vmatprep.mubr.f32.mxu0 0.0
  %2940 = vmatmul.mubr.f32.gmra.mxu0 %v2270
  %v2941 = vpop.f32.mrf.mxu0
  %v2942 = vadd.f32 %v1934, %v2941
  %v2943 = vpop.f32.mrf.mxu0
  %2944 = vmatprep.mubr.f32.mxu0 0.0
  %2945 = vmatmul.mubr.f32.gmra.mxu0 %v2273
  %v2946 = vpop.f32.mrf.mxu0
  %v2947 = vadd.f32 %v1934, %v2946
  %v2948 = vpop.f32.mrf.mxu0
  %2949 = vmatprep.mubr.f32.mxu0 0.0
  %2950 = vmatmul.mubr.f32.gmra.mxu0 %v2276
  %v2951 = vpop.f32.mrf.mxu0
  %v2952 = vadd.f32 %v1934, %v2951
  %v2953 = vpop.f32.mrf.mxu0
  %2954 = vmatprep.mubr.f32.mxu0 0.0
  %2955 = vmatmul.mubr.f32.gmra.mxu0 %v2279
  %v2956 = vpop.f32.mrf.mxu0
  %v2957 = vadd.f32 %v1934, %v2956
  %v2958 = vpop.f32.mrf.mxu0
  %2959 = vmatprep.mubr.f32.mxu0 0.0
  %2960 = vmatmul.mubr.f32.gmra.mxu0 %v2282
  %v2961 = vpop.f32.mrf.mxu0
  %v2962 = vadd.f32 %v1934, %v2961
  %v2963 = vpop.f32.mrf.mxu0
  %2964 = vmatprep.mubr.f32.mxu0 0.0
  %2965 = vmatmul.mubr.f32.gmra.mxu0 %v2285
  %v2966 = vpop.f32.mrf.mxu0
  %v2967 = vadd.f32 %v1934, %v2966
  %v2968 = vpop.f32.mrf.mxu0
  %2969 = vmatprep.mubr.f32.mxu0 0.0
  %2970 = vmatmul.mubr.f32.gmra.mxu0 %v2288
  %v2971 = vpop.f32.mrf.mxu0
  %v2972 = vadd.f32 %v1934, %v2971
  %v2973 = vpop.f32.mrf.mxu0
  %2974 = vmatprep.mubr.f32.mxu0 0.0
  %2975 = vmatmul.mubr.f32.gmra.mxu0 %v2291
  %v2976 = vpop.f32.mrf.mxu0
  %v2977 = vadd.f32 %v1934, %v2976
  %v2978 = vpop.f32.mrf.mxu0
  %2979 = vmatprep.mubr.f32.mxu0 0.0
  %2980 = vmatmul.mubr.f32.gmra.mxu0 %v2294
  %v2981 = vpop.f32.mrf.mxu0
  %v2982 = vadd.f32 %v1934, %v2981
  %v2983 = vpop.f32.mrf.mxu0
  %2984 = vmatprep.mubr.f32.mxu0 0.0
  %2985 = vmatmul.mubr.f32.gmra.mxu0 %v2297
  %v2986 = vpop.f32.mrf.mxu0
  %v2987 = vadd.f32 %v1934, %v2986
  %v2988 = vpop.f32.mrf.mxu0
  %2989 = vmatprep.mubr.f32.mxu0 0.0
  %2990 = vmatmul.mubr.f32.gmra.mxu0 %v2300
  %v2991 = vpop.f32.mrf.mxu0
  %v2992 = vadd.f32 %v1934, %v2991
  %v2993 = vpop.f32.mrf.mxu0
  %2994 = vmatprep.mubr.f32.mxu0 0.0
  %2995 = vmatmul.mubr.f32.gmra.mxu0 %v2303
  %v2996 = vpop.f32.mrf.mxu0
  %v2997 = vadd.f32 %v1934, %v2996
  %v2998 = vpop.f32.mrf.mxu0
  %2999 = vmatprep.mubr.f32.mxu0 0.0
  %3000 = vmatmul.mubr.f32.gmra.mxu0 %v2306
  %v3001 = vpop.f32.mrf.mxu0
  %v3002 = vadd.f32 %v1934, %v3001
  %v3003 = vpop.f32.mrf.mxu0
  %3004 = vmatprep.mubr.f32.mxu0 0.0
  %3005 = vmatmul.mubr.f32.gmra.mxu0 %v2309
  %v3006 = vpop.f32.mrf.mxu0
  %v3007 = vadd.f32 %v1934, %v3006
  %v3008 = vpop.f32.mrf.mxu0
  %3009 = vmatprep.mubr.f32.mxu0 0.0
  %3010 = vmatmul.mubr.f32.gmra.mxu0 %v2312
  %v3011 = vpop.f32.mrf.mxu0
  %v3012 = vadd.f32 %v1934, %v3011
  %v3013 = vpop.f32.mrf.mxu0
  %3014 = vmatprep.mubr.f32.mxu0 0.0
  %3015 = vmatmul.mubr.f32.gmra.mxu0 %v2315
  %v3016 = vpop.f32.mrf.mxu0
  %v3017 = vadd.f32 %v1934, %v3016
  %v3018 = vpop.f32.mrf.mxu0
  %3019 = vmatprep.mubr.f32.mxu0 0.0
  %3020 = vmatmul.mubr.f32.gmra.mxu0 %v2318
  %v3021 = vpop.f32.mrf.mxu0
  %v3022 = vadd.f32 %v1934, %v3021
  %v3023 = vpop.f32.mrf.mxu0
  %3024 = vdwg.mxu0
  %v3025 = vadd.f32 %v190, %v2387
  %v3026 = vadd.f32 %v191, %v2392
  %v3027 = vadd.f32 %v192, %v2397
  %v3028 = vadd.f32 %v193, %v2402
  %v3029 = vadd.f32 %v194, %v2407
  %v3030 = vadd.f32 %v195, %v2412
  %v3031 = vadd.f32 %v196, %v2417
  %v3032 = vadd.f32 %v197, %v2422
  %v3033 = vadd.f32 %v198, %v2427
  %v3034 = vadd.f32 %v199, %v2432
  %v3035 = vadd.f32 %v200, %v2437
  %v3036 = vadd.f32 %v201, %v2442
  %v3037 = vadd.f32 %v202, %v2447
  %v3038 = vadd.f32 %v203, %v2452
  %v3039 = vadd.f32 %v204, %v2457
  %v3040 = vadd.f32 %v205, %v2462
  %v3041 = vadd.f32 %v206, %v2467
  %v3042 = vadd.f32 %v207, %v2472
  %v3043 = vadd.f32 %v208, %v2477
  %v3044 = vadd.f32 %v209, %v2482
  %v3045 = vadd.f32 %v210, %v2487
  %v3046 = vadd.f32 %v211, %v2492
  %v3047 = vadd.f32 %v212, %v2497
  %v3048 = vadd.f32 %v213, %v2502
  %v3049 = vadd.f32 %v214, %v2507
  %v3050 = vadd.f32 %v215, %v2512
  %v3051 = vadd.f32 %v216, %v2517
  %v3052 = vadd.f32 %v217, %v2522
  %v3053 = vadd.f32 %v218, %v2527
  %v3054 = vadd.f32 %v219, %v2532
  %v3055 = vadd.f32 %v220, %v2537
  %v3056 = vadd.f32 %v221, %v2542
  %v3057 = vadd.f32 %v222, %v2547
  %v3058 = vadd.f32 %v223, %v2552
  %v3059 = vadd.f32 %v224, %v2557
  %v3060 = vadd.f32 %v225, %v2562
  %v3061 = vadd.f32 %v226, %v2567
  %v3062 = vadd.f32 %v227, %v2572
  %v3063 = vadd.f32 %v228, %v2577
  %v3064 = vadd.f32 %v229, %v2582
  %v3065 = vadd.f32 %v230, %v2587
  %v3066 = vadd.f32 %v231, %v2592
  %v3067 = vadd.f32 %v232, %v2597
  %v3068 = vadd.f32 %v233, %v2602
  %v3069 = vadd.f32 %v234, %v2607
  %v3070 = vadd.f32 %v235, %v2612
  %v3071 = vadd.f32 %v236, %v2617
  %v3072 = vadd.f32 %v237, %v2622
  %v3073 = vadd.f32 %v238, %v2627
  %v3074 = vadd.f32 %v239, %v2632
  %v3075 = vadd.f32 %v240, %v2637
  %v3076 = vadd.f32 %v241, %v2642
  %v3077 = vadd.f32 %v242, %v2647
  %v3078 = vadd.f32 %v243, %v2652
  %v3079 = vadd.f32 %v244, %v2657
  %v3080 = vadd.f32 %v245, %v2662
  %v3081 = vadd.f32 %v246, %v2667
  %v3082 = vadd.f32 %v247, %v2672
  %v3083 = vadd.f32 %v248, %v2677
  %v3084 = vadd.f32 %v249, %v2682
  %v3085 = vadd.f32 %v250, %v2687
  %v3086 = vadd.f32 %v251, %v2692
  %v3087 = vadd.f32 %v252, %v2697
  %v3088 = vadd.f32 %v253, %v2702
  %v3089 = vadd.f32 %v254, %v2707
  %v3090 = vadd.f32 %v255, %v2712
  %v3091 = vadd.f32 %v256, %v2717
  %v3092 = vadd.f32 %v257, %v2722
  %v3093 = vadd.f32 %v258, %v2727
  %v3094 = vadd.f32 %v259, %v2732
  %v3095 = vadd.f32 %v260, %v2737
  %v3096 = vadd.f32 %v261, %v2742
  %v3097 = vadd.f32 %v262, %v2747
  %v3098 = vadd.f32 %v263, %v2752
  %v3099 = vadd.f32 %v264, %v2757
  %v3100 = vadd.f32 %v265, %v2762
  %v3101 = vadd.f32 %v266, %v2767
  %v3102 = vadd.f32 %v267, %v2772
  %v3103 = vadd.f32 %v268, %v2777
  %v3104 = vadd.f32 %v269, %v2782
  %v3105 = vadd.f32 %v270, %v2787
  %v3106 = vadd.f32 %v271, %v2792
  %v3107 = vadd.f32 %v272, %v2797
  %v3108 = vadd.f32 %v273, %v2802
  %v3109 = vadd.f32 %v274, %v2807
  %v3110 = vadd.f32 %v275, %v2812
  %v3111 = vadd.f32 %v276, %v2817
  %v3112 = vadd.f32 %v277, %v2822
  %v3113 = vadd.f32 %v278, %v2827
  %v3114 = vadd.f32 %v279, %v2832
  %v3115 = vadd.f32 %v280, %v2837
  %v3116 = vadd.f32 %v281, %v2842
  %v3117 = vadd.f32 %v282, %v2847
  %v3118 = vadd.f32 %v283, %v2852
  %v3119 = vadd.f32 %v284, %v2857
  %v3120 = vadd.f32 %v285, %v2862
  %v3121 = vadd.f32 %v286, %v2867
  %v3122 = vadd.f32 %v287, %v2872
  %v3123 = vadd.f32 %v288, %v2877
  %v3124 = vadd.f32 %v289, %v2882
  %v3125 = vadd.f32 %v290, %v2887
  %v3126 = vadd.f32 %v291, %v2892
  %v3127 = vadd.f32 %v292, %v2897
  %v3128 = vadd.f32 %v293, %v2902
  %v3129 = vadd.f32 %v294, %v2907
  %v3130 = vadd.f32 %v295, %v2912
  %v3131 = vadd.f32 %v296, %v2917
  %v3132 = vadd.f32 %v297, %v2922
  %v3133 = vadd.f32 %v298, %v2927
  %v3134 = vadd.f32 %v299, %v2932
  %v3135 = vadd.f32 %v300, %v2937
  %v3136 = vadd.f32 %v301, %v2942
  %v3137 = vadd.f32 %v302, %v2947
  %v3138 = vadd.f32 %v303, %v2952
  %v3139 = vadd.f32 %v304, %v2957
  %v3140 = vadd.f32 %v305, %v2962
  %v3141 = vadd.f32 %v306, %v2967
  %v3142 = vadd.f32 %v307, %v2972
  %v3143 = vadd.f32 %v308, %v2977
  %v3144 = vadd.f32 %v309, %v2982
  %v3145 = vadd.f32 %v310, %v2987
  %v3146 = vadd.f32 %v311, %v2992
  %v3147 = vadd.f32 %v312, %v2997
  %v3148 = vadd.f32 %v313, %v3002
  %v3149 = vadd.f32 %v314, %v3007
  %v3150 = vadd.f32 %v315, %v3012
  %v3151 = vadd.f32 %v316, %v3017
  %v3152 = vadd.f32 %v317, %v3022
  %v3153 = vld [vmem:[%s8] sm:$0x1]
  %v3155 = vlaneseq
  %v3156 = vshrl.u32 %v3155, 7
  %v3157 = vsub.s32 0, %v3156
  %v3158 = vrot.slane %v3153, %v3157
  %v3160 = vmul.f32 %v3025, %v3158
  %v3161 = vmul.f32 %v3026, %v3158
  %v3162 = vmul.f32 %v3027, %v3158
  %v3163 = vmul.f32 %v3028, %v3158
  %v3164 = vmul.f32 %v3029, %v3158
  %v3165 = vmul.f32 %v3030, %v3158
  %v3166 = vmul.f32 %v3031, %v3158
  %v3167 = vmul.f32 %v3032, %v3158
  %v3168 = vmul.f32 %v3033, %v3158
  %v3169 = vmul.f32 %v3034, %v3158
  %v3170 = vmul.f32 %v3035, %v3158
  %v3171 = vmul.f32 %v3036, %v3158
  %v3172 = vmul.f32 %v3037, %v3158
  %v3173 = vmul.f32 %v3038, %v3158
  %v3174 = vmul.f32 %v3039, %v3158
  %v3175 = vmul.f32 %v3040, %v3158
  %v3176 = vmul.f32 %v3041, %v3158
  %v3177 = vmul.f32 %v3042, %v3158
  %v3178 = vmul.f32 %v3043, %v3158
  %v3179 = vmul.f32 %v3044, %v3158
  %v3180 = vmul.f32 %v3045, %v3158
  %v3181 = vmul.f32 %v3046, %v3158
  %v3182 = vmul.f32 %v3047, %v3158
  %v3183 = vmul.f32 %v3048, %v3158
  %v3184 = vmul.f32 %v3049, %v3158
  %v3185 = vmul.f32 %v3050, %v3158
  %v3186 = vmul.f32 %v3051, %v3158
  %v3187 = vmul.f32 %v3052, %v3158
  %v3188 = vmul.f32 %v3053, %v3158
  %v3189 = vmul.f32 %v3054, %v3158
  %v3190 = vmul.f32 %v3055, %v3158
  %v3191 = vmul.f32 %v3056, %v3158
  %v3192 = vmul.f32 %v3057, %v3158
  %v3193 = vmul.f32 %v3058, %v3158
  %v3194 = vmul.f32 %v3059, %v3158
  %v3195 = vmul.f32 %v3060, %v3158
  %v3196 = vmul.f32 %v3061, %v3158
  %v3197 = vmul.f32 %v3062, %v3158
  %v3198 = vmul.f32 %v3063, %v3158
  %v3199 = vmul.f32 %v3064, %v3158
  %v3200 = vmul.f32 %v3065, %v3158
  %v3201 = vmul.f32 %v3066, %v3158
  %v3202 = vmul.f32 %v3067, %v3158
  %v3203 = vmul.f32 %v3068, %v3158
  %v3204 = vmul.f32 %v3069, %v3158
  %v3205 = vmul.f32 %v3070, %v3158
  %v3206 = vmul.f32 %v3071, %v3158
  %v3207 = vmul.f32 %v3072, %v3158
  %v3208 = vmul.f32 %v3073, %v3158
  %v3209 = vmul.f32 %v3074, %v3158
  %v3210 = vmul.f32 %v3075, %v3158
  %v3211 = vmul.f32 %v3076, %v3158
  %v3212 = vmul.f32 %v3077, %v3158
  %v3213 = vmul.f32 %v3078, %v3158
  %v3214 = vmul.f32 %v3079, %v3158
  %v3215 = vmul.f32 %v3080, %v3158
  %v3216 = vmul.f32 %v3081, %v3158
  %v3217 = vmul.f32 %v3082, %v3158
  %v3218 = vmul.f32 %v3083, %v3158
  %v3219 = vmul.f32 %v3084, %v3158
  %v3220 = vmul.f32 %v3085, %v3158
  %v3221 = vmul.f32 %v3086, %v3158
  %v3222 = vmul.f32 %v3087, %v3158
  %v3223 = vmul.f32 %v3088, %v3158
  %v3224 = vmul.f32 %v3089, %v3158
  %v3225 = vmul.f32 %v3090, %v3158
  %v3226 = vmul.f32 %v3091, %v3158
  %v3227 = vmul.f32 %v3092, %v3158
  %v3228 = vmul.f32 %v3093, %v3158
  %v3229 = vmul.f32 %v3094, %v3158
  %v3230 = vmul.f32 %v3095, %v3158
  %v3231 = vmul.f32 %v3096, %v3158
  %v3232 = vmul.f32 %v3097, %v3158
  %v3233 = vmul.f32 %v3098, %v3158
  %v3234 = vmul.f32 %v3099, %v3158
  %v3235 = vmul.f32 %v3100, %v3158
  %v3236 = vmul.f32 %v3101, %v3158
  %v3237 = vmul.f32 %v3102, %v3158
  %v3238 = vmul.f32 %v3103, %v3158
  %v3239 = vmul.f32 %v3104, %v3158
  %v3240 = vmul.f32 %v3105, %v3158
  %v3241 = vmul.f32 %v3106, %v3158
  %v3242 = vmul.f32 %v3107, %v3158
  %v3243 = vmul.f32 %v3108, %v3158
  %v3244 = vmul.f32 %v3109, %v3158
  %v3245 = vmul.f32 %v3110, %v3158
  %v3246 = vmul.f32 %v3111, %v3158
  %v3247 = vmul.f32 %v3112, %v3158
  %v3248 = vmul.f32 %v3113, %v3158
  %v3249 = vmul.f32 %v3114, %v3158
  %v3250 = vmul.f32 %v3115, %v3158
  %v3251 = vmul.f32 %v3116, %v3158
  %v3252 = vmul.f32 %v3117, %v3158
  %v3253 = vmul.f32 %v3118, %v3158
  %v3254 = vmul.f32 %v3119, %v3158
  %v3255 = vmul.f32 %v3120, %v3158
  %v3256 = vmul.f32 %v3121, %v3158
  %v3257 = vmul.f32 %v3122, %v3158
  %v3258 = vmul.f32 %v3123, %v3158
  %v3259 = vmul.f32 %v3124, %v3158
  %v3260 = vmul.f32 %v3125, %v3158
  %v3261 = vmul.f32 %v3126, %v3158
  %v3262 = vmul.f32 %v3127, %v3158
  %v3263 = vmul.f32 %v3128, %v3158
  %v3264 = vmul.f32 %v3129, %v3158
  %v3265 = vmul.f32 %v3130, %v3158
  %v3266 = vmul.f32 %v3131, %v3158
  %v3267 = vmul.f32 %v3132, %v3158
  %v3268 = vmul.f32 %v3133, %v3158
  %v3269 = vmul.f32 %v3134, %v3158
  %v3270 = vmul.f32 %v3135, %v3158
  %v3271 = vmul.f32 %v3136, %v3158
  %v3272 = vmul.f32 %v3137, %v3158
  %v3273 = vmul.f32 %v3138, %v3158
  %v3274 = vmul.f32 %v3139, %v3158
  %v3275 = vmul.f32 %v3140, %v3158
  %v3276 = vmul.f32 %v3141, %v3158
  %v3277 = vmul.f32 %v3142, %v3158
  %v3278 = vmul.f32 %v3143, %v3158
  %v3279 = vmul.f32 %v3144, %v3158
  %v3280 = vmul.f32 %v3145, %v3158
  %v3281 = vmul.f32 %v3146, %v3158
  %v3282 = vmul.f32 %v3147, %v3158
  %v3283 = vmul.f32 %v3148, %v3158
  %v3284 = vmul.f32 %v3149, %v3158
  %v3285 = vmul.f32 %v3150, %v3158
  %v3286 = vmul.f32 %v3151, %v3158
  %v3287 = vmul.f32 %v3152, %v3158
  %v3288 = vld [vmem:[%s9] sm:$0x1]
  %v3290 = vlaneseq
  %v3291 = vshrl.u32 %v3290, 7
  %v3292 = vsub.s32 0, %v3291
  %v3293 = vrot.slane %v3288, %v3292
  %v3295 = vadd.f32 %v3160, %v3293
  %v3296 = vadd.f32 %v3161, %v3293
  %v3297 = vadd.f32 %v3162, %v3293
  %v3298 = vadd.f32 %v3163, %v3293
  %v3299 = vadd.f32 %v3164, %v3293
  %v3300 = vadd.f32 %v3165, %v3293
  %v3301 = vadd.f32 %v3166, %v3293
  %v3302 = vadd.f32 %v3167, %v3293
  %v3303 = vadd.f32 %v3168, %v3293
  %v3304 = vadd.f32 %v3169, %v3293
  %v3305 = vadd.f32 %v3170, %v3293
  %v3306 = vadd.f32 %v3171, %v3293
  %v3307 = vadd.f32 %v3172, %v3293
  %v3308 = vadd.f32 %v3173, %v3293
  %v3309 = vadd.f32 %v3174, %v3293
  %v3310 = vadd.f32 %v3175, %v3293
  %v3311 = vadd.f32 %v3176, %v3293
  %v3312 = vadd.f32 %v3177, %v3293
  %v3313 = vadd.f32 %v3178, %v3293
  %v3314 = vadd.f32 %v3179, %v3293
  %v3315 = vadd.f32 %v3180, %v3293
  %v3316 = vadd.f32 %v3181, %v3293
  %v3317 = vadd.f32 %v3182, %v3293
  %v3318 = vadd.f32 %v3183, %v3293
  %v3319 = vadd.f32 %v3184, %v3293
  %v3320 = vadd.f32 %v3185, %v3293
  %v3321 = vadd.f32 %v3186, %v3293
  %v3322 = vadd.f32 %v3187, %v3293
  %v3323 = vadd.f32 %v3188, %v3293
  %v3324 = vadd.f32 %v3189, %v3293
  %v3325 = vadd.f32 %v3190, %v3293
  %v3326 = vadd.f32 %v3191, %v3293
  %v3327 = vadd.f32 %v3192, %v3293
  %v3328 = vadd.f32 %v3193, %v3293
  %v3329 = vadd.f32 %v3194, %v3293
  %v3330 = vadd.f32 %v3195, %v3293
  %v3331 = vadd.f32 %v3196, %v3293
  %v3332 = vadd.f32 %v3197, %v3293
  %v3333 = vadd.f32 %v3198, %v3293
  %v3334 = vadd.f32 %v3199, %v3293
  %v3335 = vadd.f32 %v3200, %v3293
  %v3336 = vadd.f32 %v3201, %v3293
  %v3337 = vadd.f32 %v3202, %v3293
  %v3338 = vadd.f32 %v3203, %v3293
  %v3339 = vadd.f32 %v3204, %v3293
  %v3340 = vadd.f32 %v3205, %v3293
  %v3341 = vadd.f32 %v3206, %v3293
  %v3342 = vadd.f32 %v3207, %v3293
  %v3343 = vadd.f32 %v3208, %v3293
  %v3344 = vadd.f32 %v3209, %v3293
  %v3345 = vadd.f32 %v3210, %v3293
  %v3346 = vadd.f32 %v3211, %v3293
  %v3347 = vadd.f32 %v3212, %v3293
  %v3348 = vadd.f32 %v3213, %v3293
  %v3349 = vadd.f32 %v3214, %v3293
  %v3350 = vadd.f32 %v3215, %v3293
  %v3351 = vadd.f32 %v3216, %v3293
  %v3352 = vadd.f32 %v3217, %v3293
  %v3353 = vadd.f32 %v3218, %v3293
  %v3354 = vadd.f32 %v3219, %v3293
  %v3355 = vadd.f32 %v3220, %v3293
  %v3356 = vadd.f32 %v3221, %v3293
  %v3357 = vadd.f32 %v3222, %v3293
  %v3358 = vadd.f32 %v3223, %v3293
  %v3359 = vadd.f32 %v3224, %v3293
  %v3360 = vadd.f32 %v3225, %v3293
  %v3361 = vadd.f32 %v3226, %v3293
  %v3362 = vadd.f32 %v3227, %v3293
  %v3363 = vadd.f32 %v3228, %v3293
  %v3364 = vadd.f32 %v3229, %v3293
  %v3365 = vadd.f32 %v3230, %v3293
  %v3366 = vadd.f32 %v3231, %v3293
  %v3367 = vadd.f32 %v3232, %v3293
  %v3368 = vadd.f32 %v3233, %v3293
  %v3369 = vadd.f32 %v3234, %v3293
  %v3370 = vadd.f32 %v3235, %v3293
  %v3371 = vadd.f32 %v3236, %v3293
  %v3372 = vadd.f32 %v3237, %v3293
  %v3373 = vadd.f32 %v3238, %v3293
  %v3374 = vadd.f32 %v3239, %v3293
  %v3375 = vadd.f32 %v3240, %v3293
  %v3376 = vadd.f32 %v3241, %v3293
  %v3377 = vadd.f32 %v3242, %v3293
  %v3378 = vadd.f32 %v3243, %v3293
  %v3379 = vadd.f32 %v3244, %v3293
  %v3380 = vadd.f32 %v3245, %v3293
  %v3381 = vadd.f32 %v3246, %v3293
  %v3382 = vadd.f32 %v3247, %v3293
  %v3383 = vadd.f32 %v3248, %v3293
  %v3384 = vadd.f32 %v3249, %v3293
  %v3385 = vadd.f32 %v3250, %v3293
  %v3386 = vadd.f32 %v3251, %v3293
  %v3387 = vadd.f32 %v3252, %v3293
  %v3388 = vadd.f32 %v3253, %v3293
  %v3389 = vadd.f32 %v3254, %v3293
  %v3390 = vadd.f32 %v3255, %v3293
  %v3391 = vadd.f32 %v3256, %v3293
  %v3392 = vadd.f32 %v3257, %v3293
  %v3393 = vadd.f32 %v3258, %v3293
  %v3394 = vadd.f32 %v3259, %v3293
  %v3395 = vadd.f32 %v3260, %v3293
  %v3396 = vadd.f32 %v3261, %v3293
  %v3397 = vadd.f32 %v3262, %v3293
  %v3398 = vadd.f32 %v3263, %v3293
  %v3399 = vadd.f32 %v3264, %v3293
  %v3400 = vadd.f32 %v3265, %v3293
  %v3401 = vadd.f32 %v3266, %v3293
  %v3402 = vadd.f32 %v3267, %v3293
  %v3403 = vadd.f32 %v3268, %v3293
  %v3404 = vadd.f32 %v3269, %v3293
  %v3405 = vadd.f32 %v3270, %v3293
  %v3406 = vadd.f32 %v3271, %v3293
  %v3407 = vadd.f32 %v3272, %v3293
  %v3408 = vadd.f32 %v3273, %v3293
  %v3409 = vadd.f32 %v3274, %v3293
  %v3410 = vadd.f32 %v3275, %v3293
  %v3411 = vadd.f32 %v3276, %v3293
  %v3412 = vadd.f32 %v3277, %v3293
  %v3413 = vadd.f32 %v3278, %v3293
  %v3414 = vadd.f32 %v3279, %v3293
  %v3415 = vadd.f32 %v3280, %v3293
  %v3416 = vadd.f32 %v3281, %v3293
  %v3417 = vadd.f32 %v3282, %v3293
  %v3418 = vadd.f32 %v3283, %v3293
  %v3419 = vadd.f32 %v3284, %v3293
  %v3420 = vadd.f32 %v3285, %v3293
  %v3421 = vadd.f32 %v3286, %v3293
  %v3422 = vadd.f32 %v3287, %v3293
  %v3423 = vmax.f32 %v3295, 0.0
  %v3424 = vmax.f32 %v3296, 0.0
  %v3425 = vmax.f32 %v3297, 0.0
  %v3426 = vmax.f32 %v3298, 0.0
  %v3427 = vmax.f32 %v3299, 0.0
  %v3428 = vmax.f32 %v3300, 0.0
  %v3429 = vmax.f32 %v3301, 0.0
  %v3430 = vmax.f32 %v3302, 0.0
  %v3431 = vmax.f32 %v3303, 0.0
  %v3432 = vmax.f32 %v3304, 0.0
  %v3433 = vmax.f32 %v3305, 0.0
  %v3434 = vmax.f32 %v3306, 0.0
  %v3435 = vmax.f32 %v3307, 0.0
  %v3436 = vmax.f32 %v3308, 0.0
  %v3437 = vmax.f32 %v3309, 0.0
  %v3438 = vmax.f32 %v3310, 0.0
  %v3439 = vmax.f32 %v3311, 0.0
  %v3440 = vmax.f32 %v3312, 0.0
  %v3441 = vmax.f32 %v3313, 0.0
  %v3442 = vmax.f32 %v3314, 0.0
  %v3443 = vmax.f32 %v3315, 0.0
  %v3444 = vmax.f32 %v3316, 0.0
  %v3445 = vmax.f32 %v3317, 0.0
  %v3446 = vmax.f32 %v3318, 0.0
  %v3447 = vmax.f32 %v3319, 0.0
  %v3448 = vmax.f32 %v3320, 0.0
  %v3449 = vmax.f32 %v3321, 0.0
  %v3450 = vmax.f32 %v3322, 0.0
  %v3451 = vmax.f32 %v3323, 0.0
  %v3452 = vmax.f32 %v3324, 0.0
  %v3453 = vmax.f32 %v3325, 0.0
  %v3454 = vmax.f32 %v3326, 0.0
  %v3455 = vmax.f32 %v3327, 0.0
  %v3456 = vmax.f32 %v3328, 0.0
  %v3457 = vmax.f32 %v3329, 0.0
  %v3458 = vmax.f32 %v3330, 0.0
  %v3459 = vmax.f32 %v3331, 0.0
  %v3460 = vmax.f32 %v3332, 0.0
  %v3461 = vmax.f32 %v3333, 0.0
  %v3462 = vmax.f32 %v3334, 0.0
  %v3463 = vmax.f32 %v3335, 0.0
  %v3464 = vmax.f32 %v3336, 0.0
  %v3465 = vmax.f32 %v3337, 0.0
  %v3466 = vmax.f32 %v3338, 0.0
  %v3467 = vmax.f32 %v3339, 0.0
  %v3468 = vmax.f32 %v3340, 0.0
  %v3469 = vmax.f32 %v3341, 0.0
  %v3470 = vmax.f32 %v3342, 0.0
  %v3471 = vmax.f32 %v3343, 0.0
  %v3472 = vmax.f32 %v3344, 0.0
  %v3473 = vmax.f32 %v3345, 0.0
  %v3474 = vmax.f32 %v3346, 0.0
  %v3475 = vmax.f32 %v3347, 0.0
  %v3476 = vmax.f32 %v3348, 0.0
  %v3477 = vmax.f32 %v3349, 0.0
  %v3478 = vmax.f32 %v3350, 0.0
  %v3479 = vmax.f32 %v3351, 0.0
  %v3480 = vmax.f32 %v3352, 0.0
  %v3481 = vmax.f32 %v3353, 0.0
  %v3482 = vmax.f32 %v3354, 0.0
  %v3483 = vmax.f32 %v3355, 0.0
  %v3484 = vmax.f32 %v3356, 0.0
  %v3485 = vmax.f32 %v3357, 0.0
  %v3486 = vmax.f32 %v3358, 0.0
  %v3487 = vmax.f32 %v3359, 0.0
  %v3488 = vmax.f32 %v3360, 0.0
  %v3489 = vmax.f32 %v3361, 0.0
  %v3490 = vmax.f32 %v3362, 0.0
  %v3491 = vmax.f32 %v3363, 0.0
  %v3492 = vmax.f32 %v3364, 0.0
  %v3493 = vmax.f32 %v3365, 0.0
  %v3494 = vmax.f32 %v3366, 0.0
  %v3495 = vmax.f32 %v3367, 0.0
  %v3496 = vmax.f32 %v3368, 0.0
  %v3497 = vmax.f32 %v3369, 0.0
  %v3498 = vmax.f32 %v3370, 0.0
  %v3499 = vmax.f32 %v3371, 0.0
  %v3500 = vmax.f32 %v3372, 0.0
  %v3501 = vmax.f32 %v3373, 0.0
  %v3502 = vmax.f32 %v3374, 0.0
  %v3503 = vmax.f32 %v3375, 0.0
  %v3504 = vmax.f32 %v3376, 0.0
  %v3505 = vmax.f32 %v3377, 0.0
  %v3506 = vmax.f32 %v3378, 0.0
  %v3507 = vmax.f32 %v3379, 0.0
  %v3508 = vmax.f32 %v3380, 0.0
  %v3509 = vmax.f32 %v3381, 0.0
  %v3510 = vmax.f32 %v3382, 0.0
  %v3511 = vmax.f32 %v3383, 0.0
  %v3512 = vmax.f32 %v3384, 0.0
  %v3513 = vmax.f32 %v3385, 0.0
  %v3514 = vmax.f32 %v3386, 0.0
  %v3515 = vmax.f32 %v3387, 0.0
  %v3516 = vmax.f32 %v3388, 0.0
  %v3517 = vmax.f32 %v3389, 0.0
  %v3518 = vmax.f32 %v3390, 0.0
  %v3519 = vmax.f32 %v3391, 0.0
  %v3520 = vmax.f32 %v3392, 0.0
  %v3521 = vmax.f32 %v3393, 0.0
  %v3522 = vmax.f32 %v3394, 0.0
  %v3523 = vmax.f32 %v3395, 0.0
  %v3524 = vmax.f32 %v3396, 0.0
  %v3525 = vmax.f32 %v3397, 0.0
  %v3526 = vmax.f32 %v3398, 0.0
  %v3527 = vmax.f32 %v3399, 0.0
  %v3528 = vmax.f32 %v3400, 0.0
  %v3529 = vmax.f32 %v3401, 0.0
  %v3530 = vmax.f32 %v3402, 0.0
  %v3531 = vmax.f32 %v3403, 0.0
  %v3532 = vmax.f32 %v3404, 0.0
  %v3533 = vmax.f32 %v3405, 0.0
  %v3534 = vmax.f32 %v3406, 0.0
  %v3535 = vmax.f32 %v3407, 0.0
  %v3536 = vmax.f32 %v3408, 0.0
  %v3537 = vmax.f32 %v3409, 0.0
  %v3538 = vmax.f32 %v3410, 0.0
  %v3539 = vmax.f32 %v3411, 0.0
  %v3540 = vmax.f32 %v3412, 0.0
  %v3541 = vmax.f32 %v3413, 0.0
  %v3542 = vmax.f32 %v3414, 0.0
  %v3543 = vmax.f32 %v3415, 0.0
  %v3544 = vmax.f32 %v3416, 0.0
  %v3545 = vmax.f32 %v3417, 0.0
  %v3546 = vmax.f32 %v3418, 0.0
  %v3547 = vmax.f32 %v3419, 0.0
  %v3548 = vmax.f32 %v3420, 0.0
  %v3549 = vmax.f32 %v3421, 0.0
  %v3550 = vmax.f32 %v3422, 0.0
  %v3551 = vld [vmem:[%s10] sm:$0xff]
  %v3552 = vld [vmem:[%s10 + $0x8] sm:$0xff]
  %v3553 = vld [vmem:[%s10 + $0x10] sm:$0xff]
  %v3554 = vld [vmem:[%s10 + $0x18] sm:$0xff]
  %v3555 = vld [vmem:[%s10 + $0x20] sm:$0xff]
  %v3556 = vld [vmem:[%s10 + $0x28] sm:$0xff]
  %v3557 = vld [vmem:[%s10 + $0x30] sm:$0xff]
  %v3558 = vld [vmem:[%s10 + $0x38] sm:$0xff]
  %v3559 = vld [vmem:[%s10 + $0x40] sm:$0xff]
  %v3560 = vld [vmem:[%s10 + $0x48] sm:$0xff]
  %v3561 = vld [vmem:[%s10 + $0x50] sm:$0xff]
  %v3562 = vld [vmem:[%s10 + $0x58] sm:$0xff]
  %v3563 = vld [vmem:[%s10 + $0x60] sm:$0xff]
  %v3564 = vld [vmem:[%s10 + $0x68] sm:$0xff]
  %v3565 = vld [vmem:[%s10 + $0x70] sm:$0xff]
  %v3566 = vld [vmem:[%s10 + $0x78] sm:$0xff]
  %v3567 = vld [vmem:[%s11] sm:$0x1]
  %v3569 = vlaneseq
  %v3570 = vshrl.u32 %v3569, 7
  %v3571 = vsub.s32 0, %v3570
  %v3572 = vrot.slane %v3567, %v3571
  %3574 = vmatprep.subr.mxu0 0.0
  %3575 = vmatpush1.msra.mxu0 %v3566
  %3576 = vmatprep.subr.mxu0 0.0
  %3577 = vmatpush1.msra.mxu0 %v3565
  %3578 = vmatprep.subr.mxu0 0.0
  %3579 = vmatpush1.msra.mxu0 %v3564
  %3580 = vmatprep.subr.mxu0 0.0
  %3581 = vmatpush1.msra.mxu0 %v3563
  %3582 = vmatprep.subr.mxu0 0.0
  %3583 = vmatpush1.msra.mxu0 %v3562
  %3584 = vmatprep.subr.mxu0 0.0
  %3585 = vmatpush1.msra.mxu0 %v3561
  %3586 = vmatprep.subr.mxu0 0.0
  %3587 = vmatpush1.msra.mxu0 %v3560
  %3588 = vmatprep.subr.mxu0 0.0
  %3589 = vmatpush1.msra.mxu0 %v3559
  %3590 = vmatprep.subr.mxu0 0.0
  %3591 = vmatpush1.msra.mxu0 %v3558
  %3592 = vmatprep.subr.mxu0 0.0
  %3593 = vmatpush1.msra.mxu0 %v3557
  %3594 = vmatprep.subr.mxu0 0.0
  %3595 = vmatpush1.msra.mxu0 %v3556
  %3596 = vmatprep.subr.mxu0 0.0
  %3597 = vmatpush1.msra.mxu0 %v3555
  %3598 = vmatprep.subr.mxu0 0.0
  %3599 = vmatpush1.msra.mxu0 %v3554
  %3600 = vmatprep.subr.mxu0 0.0
  %3601 = vmatpush1.msra.mxu0 %v3553
  %3602 = vmatprep.subr.mxu0 0.0
  %3603 = vmatpush1.msra.mxu0 %v3552
  %3604 = vmatprep.subr.mxu0 0.0
  %3605 = vmatpush1.msra.mxu0 %v3551
  %3606 = vmatprep.subr.mxu0 0.0
  %3607 = vmatpush2.msra.mxu0 0.0
  %3608 = vmatprep.subr.mxu0 0.0
  %3609 = vmatpush2.msra.mxu0 0.0
  %3610 = vmatprep.subr.mxu0 0.0
  %3611 = vmatpush2.msra.mxu0 0.0
  %3612 = vmatprep.subr.mxu0 0.0
  %3613 = vmatpush2.msra.mxu0 0.0
  %3614 = vmatprep.subr.mxu0 0.0
  %3615 = vmatpush2.msra.mxu0 0.0
  %3616 = vmatprep.subr.mxu0 0.0
  %3617 = vmatpush2.msra.mxu0 0.0
  %3618 = vmatprep.subr.mxu0 0.0
  %3619 = vmatpush2.msra.mxu0 0.0
  %3620 = vmatprep.subr.mxu0 0.0
  %3621 = vmatpush2.msra.mxu0 0.0
  %3622 = vmatprep.subr.mxu0 0.0
  %3623 = vmatpush2.msra.mxu0 0.0
  %3624 = vmatprep.subr.mxu0 0.0
  %3625 = vmatpush2.msra.mxu0 0.0
  %3626 = vmatprep.subr.mxu0 0.0
  %3627 = vmatpush2.msra.mxu0 0.0
  %3628 = vmatprep.subr.mxu0 0.0
  %3629 = vmatpush2.msra.mxu0 0.0
  %3630 = vmatprep.subr.mxu0 0.0
  %3631 = vmatpush2.msra.mxu0 0.0
  %3632 = vmatprep.subr.mxu0 0.0
  %3633 = vmatpush2.msra.mxu0 0.0
  %3634 = vmatprep.subr.mxu0 0.0
  %3635 = vmatpush2.msra.mxu0 0.0
  %3636 = vmatprep.subr.mxu0 0.0
  %3637 = vmatpush2.msra.mxu0 0.0
  %3638 = vmatprep.mubr.f32.mxu0 0.0
  %3639 = vmatmul.mubr.f32.gmra.mxu0 %v3423
  %v3640 = vpop.f32.mrf.mxu0
  %v3641 = vadd.f32 %v3572, %v3640
  %v3642 = vpop.f32.mrf.mxu0
  %3643 = vmatprep.mubr.f32.mxu0 0.0
  %3644 = vmatmul.mubr.f32.gmra.mxu0 %v3424
  %v3645 = vpop.f32.mrf.mxu0
  %v3646 = vadd.f32 %v3572, %v3645
  %v3647 = vpop.f32.mrf.mxu0
  %3648 = vmatprep.mubr.f32.mxu0 0.0
  %3649 = vmatmul.mubr.f32.gmra.mxu0 %v3425
  %v3650 = vpop.f32.mrf.mxu0
  %v3651 = vadd.f32 %v3572, %v3650
  %v3652 = vpop.f32.mrf.mxu0
  %3653 = vmatprep.mubr.f32.mxu0 0.0
  %3654 = vmatmul.mubr.f32.gmra.mxu0 %v3426
  %v3655 = vpop.f32.mrf.mxu0
  %v3656 = vadd.f32 %v3572, %v3655
  %v3657 = vpop.f32.mrf.mxu0
  %3658 = vmatprep.mubr.f32.mxu0 0.0
  %3659 = vmatmul.mubr.f32.gmra.mxu0 %v3427
  %v3660 = vpop.f32.mrf.mxu0
  %v3661 = vadd.f32 %v3572, %v3660
  %v3662 = vpop.f32.mrf.mxu0
  %3663 = vmatprep.mubr.f32.mxu0 0.0
  %3664 = vmatmul.mubr.f32.gmra.mxu0 %v3428
  %v3665 = vpop.f32.mrf.mxu0
  %v3666 = vadd.f32 %v3572, %v3665
  %v3667 = vpop.f32.mrf.mxu0
  %3668 = vmatprep.mubr.f32.mxu0 0.0
  %3669 = vmatmul.mubr.f32.gmra.mxu0 %v3429
  %v3670 = vpop.f32.mrf.mxu0
  %v3671 = vadd.f32 %v3572, %v3670
  %v3672 = vpop.f32.mrf.mxu0
  %3673 = vmatprep.mubr.f32.mxu0 0.0
  %3674 = vmatmul.mubr.f32.gmra.mxu0 %v3430
  %v3675 = vpop.f32.mrf.mxu0
  %v3676 = vadd.f32 %v3572, %v3675
  %v3677 = vpop.f32.mrf.mxu0
  %3678 = vmatprep.mubr.f32.mxu0 0.0
  %3679 = vmatmul.mubr.f32.gmra.mxu0 %v3431
  %v3680 = vpop.f32.mrf.mxu0
  %v3681 = vadd.f32 %v3572, %v3680
  %v3682 = vpop.f32.mrf.mxu0
  %3683 = vmatprep.mubr.f32.mxu0 0.0
  %3684 = vmatmul.mubr.f32.gmra.mxu0 %v3432
  %v3685 = vpop.f32.mrf.mxu0
  %v3686 = vadd.f32 %v3572, %v3685
  %v3687 = vpop.f32.mrf.mxu0
  %3688 = vmatprep.mubr.f32.mxu0 0.0
  %3689 = vmatmul.mubr.f32.gmra.mxu0 %v3433
  %v3690 = vpop.f32.mrf.mxu0
  %v3691 = vadd.f32 %v3572, %v3690
  %v3692 = vpop.f32.mrf.mxu0
  %3693 = vmatprep.mubr.f32.mxu0 0.0
  %3694 = vmatmul.mubr.f32.gmra.mxu0 %v3434
  %v3695 = vpop.f32.mrf.mxu0
  %v3696 = vadd.f32 %v3572, %v3695
  %v3697 = vpop.f32.mrf.mxu0
  %3698 = vmatprep.mubr.f32.mxu0 0.0
  %3699 = vmatmul.mubr.f32.gmra.mxu0 %v3435
  %v3700 = vpop.f32.mrf.mxu0
  %v3701 = vadd.f32 %v3572, %v3700
  %v3702 = vpop.f32.mrf.mxu0
  %3703 = vmatprep.mubr.f32.mxu0 0.0
  %3704 = vmatmul.mubr.f32.gmra.mxu0 %v3436
  %v3705 = vpop.f32.mrf.mxu0
  %v3706 = vadd.f32 %v3572, %v3705
  %v3707 = vpop.f32.mrf.mxu0
  %3708 = vmatprep.mubr.f32.mxu0 0.0
  %3709 = vmatmul.mubr.f32.gmra.mxu0 %v3437
  %v3710 = vpop.f32.mrf.mxu0
  %v3711 = vadd.f32 %v3572, %v3710
  %v3712 = vpop.f32.mrf.mxu0
  %3713 = vmatprep.mubr.f32.mxu0 0.0
  %3714 = vmatmul.mubr.f32.gmra.mxu0 %v3438
  %v3715 = vpop.f32.mrf.mxu0
  %v3716 = vadd.f32 %v3572, %v3715
  %v3717 = vpop.f32.mrf.mxu0
  %3718 = vmatprep.mubr.f32.mxu0 0.0
  %3719 = vmatmul.mubr.f32.gmra.mxu0 %v3439
  %v3720 = vpop.f32.mrf.mxu0
  %v3721 = vadd.f32 %v3572, %v3720
  %v3722 = vpop.f32.mrf.mxu0
  %3723 = vmatprep.mubr.f32.mxu0 0.0
  %3724 = vmatmul.mubr.f32.gmra.mxu0 %v3440
  %v3725 = vpop.f32.mrf.mxu0
  %v3726 = vadd.f32 %v3572, %v3725
  %v3727 = vpop.f32.mrf.mxu0
  %3728 = vmatprep.mubr.f32.mxu0 0.0
  %3729 = vmatmul.mubr.f32.gmra.mxu0 %v3441
  %v3730 = vpop.f32.mrf.mxu0
  %v3731 = vadd.f32 %v3572, %v3730
  %v3732 = vpop.f32.mrf.mxu0
  %3733 = vmatprep.mubr.f32.mxu0 0.0
  %3734 = vmatmul.mubr.f32.gmra.mxu0 %v3442
  %v3735 = vpop.f32.mrf.mxu0
  %v3736 = vadd.f32 %v3572, %v3735
  %v3737 = vpop.f32.mrf.mxu0
  %3738 = vmatprep.mubr.f32.mxu0 0.0
  %3739 = vmatmul.mubr.f32.gmra.mxu0 %v3443
  %v3740 = vpop.f32.mrf.mxu0
  %v3741 = vadd.f32 %v3572, %v3740
  %v3742 = vpop.f32.mrf.mxu0
  %3743 = vmatprep.mubr.f32.mxu0 0.0
  %3744 = vmatmul.mubr.f32.gmra.mxu0 %v3444
  %v3745 = vpop.f32.mrf.mxu0
  %v3746 = vadd.f32 %v3572, %v3745
  %v3747 = vpop.f32.mrf.mxu0
  %3748 = vmatprep.mubr.f32.mxu0 0.0
  %3749 = vmatmul.mubr.f32.gmra.mxu0 %v3445
  %v3750 = vpop.f32.mrf.mxu0
  %v3751 = vadd.f32 %v3572, %v3750
  %v3752 = vpop.f32.mrf.mxu0
  %3753 = vmatprep.mubr.f32.mxu0 0.0
  %3754 = vmatmul.mubr.f32.gmra.mxu0 %v3446
  %v3755 = vpop.f32.mrf.mxu0
  %v3756 = vadd.f32 %v3572, %v3755
  %v3757 = vpop.f32.mrf.mxu0
  %3758 = vmatprep.mubr.f32.mxu0 0.0
  %3759 = vmatmul.mubr.f32.gmra.mxu0 %v3447
  %v3760 = vpop.f32.mrf.mxu0
  %v3761 = vadd.f32 %v3572, %v3760
  %v3762 = vpop.f32.mrf.mxu0
  %3763 = vmatprep.mubr.f32.mxu0 0.0
  %3764 = vmatmul.mubr.f32.gmra.mxu0 %v3448
  %v3765 = vpop.f32.mrf.mxu0
  %v3766 = vadd.f32 %v3572, %v3765
  %v3767 = vpop.f32.mrf.mxu0
  %3768 = vmatprep.mubr.f32.mxu0 0.0
  %3769 = vmatmul.mubr.f32.gmra.mxu0 %v3449
  %v3770 = vpop.f32.mrf.mxu0
  %v3771 = vadd.f32 %v3572, %v3770
  %v3772 = vpop.f32.mrf.mxu0
  %3773 = vmatprep.mubr.f32.mxu0 0.0
  %3774 = vmatmul.mubr.f32.gmra.mxu0 %v3450
  %v3775 = vpop.f32.mrf.mxu0
  %v3776 = vadd.f32 %v3572, %v3775
  %v3777 = vpop.f32.mrf.mxu0
  %3778 = vmatprep.mubr.f32.mxu0 0.0
  %3779 = vmatmul.mubr.f32.gmra.mxu0 %v3451
  %v3780 = vpop.f32.mrf.mxu0
  %v3781 = vadd.f32 %v3572, %v3780
  %v3782 = vpop.f32.mrf.mxu0
  %3783 = vmatprep.mubr.f32.mxu0 0.0
  %3784 = vmatmul.mubr.f32.gmra.mxu0 %v3452
  %v3785 = vpop.f32.mrf.mxu0
  %v3786 = vadd.f32 %v3572, %v3785
  %v3787 = vpop.f32.mrf.mxu0
  %3788 = vmatprep.mubr.f32.mxu0 0.0
  %3789 = vmatmul.mubr.f32.gmra.mxu0 %v3453
  %v3790 = vpop.f32.mrf.mxu0
  %v3791 = vadd.f32 %v3572, %v3790
  %v3792 = vpop.f32.mrf.mxu0
  %3793 = vmatprep.mubr.f32.mxu0 0.0
  %3794 = vmatmul.mubr.f32.gmra.mxu0 %v3454
  %v3795 = vpop.f32.mrf.mxu0
  %v3796 = vadd.f32 %v3572, %v3795
  %v3797 = vpop.f32.mrf.mxu0
  %3798 = vmatprep.mubr.f32.mxu0 0.0
  %3799 = vmatmul.mubr.f32.gmra.mxu0 %v3455
  %v3800 = vpop.f32.mrf.mxu0
  %v3801 = vadd.f32 %v3572, %v3800
  %v3802 = vpop.f32.mrf.mxu0
  %3803 = vmatprep.mubr.f32.mxu0 0.0
  %3804 = vmatmul.mubr.f32.gmra.mxu0 %v3456
  %v3805 = vpop.f32.mrf.mxu0
  %v3806 = vadd.f32 %v3572, %v3805
  %v3807 = vpop.f32.mrf.mxu0
  %3808 = vmatprep.mubr.f32.mxu0 0.0
  %3809 = vmatmul.mubr.f32.gmra.mxu0 %v3457
  %v3810 = vpop.f32.mrf.mxu0
  %v3811 = vadd.f32 %v3572, %v3810
  %v3812 = vpop.f32.mrf.mxu0
  %3813 = vmatprep.mubr.f32.mxu0 0.0
  %3814 = vmatmul.mubr.f32.gmra.mxu0 %v3458
  %v3815 = vpop.f32.mrf.mxu0
  %v3816 = vadd.f32 %v3572, %v3815
  %v3817 = vpop.f32.mrf.mxu0
  %3818 = vmatprep.mubr.f32.mxu0 0.0
  %3819 = vmatmul.mubr.f32.gmra.mxu0 %v3459
  %v3820 = vpop.f32.mrf.mxu0
  %v3821 = vadd.f32 %v3572, %v3820
  %v3822 = vpop.f32.mrf.mxu0
  %3823 = vmatprep.mubr.f32.mxu0 0.0
  %3824 = vmatmul.mubr.f32.gmra.mxu0 %v3460
  %v3825 = vpop.f32.mrf.mxu0
  %v3826 = vadd.f32 %v3572, %v3825
  %v3827 = vpop.f32.mrf.mxu0
  %3828 = vmatprep.mubr.f32.mxu0 0.0
  %3829 = vmatmul.mubr.f32.gmra.mxu0 %v3461
  %v3830 = vpop.f32.mrf.mxu0
  %v3831 = vadd.f32 %v3572, %v3830
  %v3832 = vpop.f32.mrf.mxu0
  %3833 = vmatprep.mubr.f32.mxu0 0.0
  %3834 = vmatmul.mubr.f32.gmra.mxu0 %v3462
  %v3835 = vpop.f32.mrf.mxu0
  %v3836 = vadd.f32 %v3572, %v3835
  %v3837 = vpop.f32.mrf.mxu0
  %3838 = vmatprep.mubr.f32.mxu0 0.0
  %3839 = vmatmul.mubr.f32.gmra.mxu0 %v3463
  %v3840 = vpop.f32.mrf.mxu0
  %v3841 = vadd.f32 %v3572, %v3840
  %v3842 = vpop.f32.mrf.mxu0
  %3843 = vmatprep.mubr.f32.mxu0 0.0
  %3844 = vmatmul.mubr.f32.gmra.mxu0 %v3464
  %v3845 = vpop.f32.mrf.mxu0
  %v3846 = vadd.f32 %v3572, %v3845
  %v3847 = vpop.f32.mrf.mxu0
  %3848 = vmatprep.mubr.f32.mxu0 0.0
  %3849 = vmatmul.mubr.f32.gmra.mxu0 %v3465
  %v3850 = vpop.f32.mrf.mxu0
  %v3851 = vadd.f32 %v3572, %v3850
  %v3852 = vpop.f32.mrf.mxu0
  %3853 = vmatprep.mubr.f32.mxu0 0.0
  %3854 = vmatmul.mubr.f32.gmra.mxu0 %v3466
  %v3855 = vpop.f32.mrf.mxu0
  %v3856 = vadd.f32 %v3572, %v3855
  %v3857 = vpop.f32.mrf.mxu0
  %3858 = vmatprep.mubr.f32.mxu0 0.0
  %3859 = vmatmul.mubr.f32.gmra.mxu0 %v3467
  %v3860 = vpop.f32.mrf.mxu0
  %v3861 = vadd.f32 %v3572, %v3860
  %v3862 = vpop.f32.mrf.mxu0
  %3863 = vmatprep.mubr.f32.mxu0 0.0
  %3864 = vmatmul.mubr.f32.gmra.mxu0 %v3468
  %v3865 = vpop.f32.mrf.mxu0
  %v3866 = vadd.f32 %v3572, %v3865
  %v3867 = vpop.f32.mrf.mxu0
  %3868 = vmatprep.mubr.f32.mxu0 0.0
  %3869 = vmatmul.mubr.f32.gmra.mxu0 %v3469
  %v3870 = vpop.f32.mrf.mxu0
  %v3871 = vadd.f32 %v3572, %v3870
  %v3872 = vpop.f32.mrf.mxu0
  %3873 = vmatprep.mubr.f32.mxu0 0.0
  %3874 = vmatmul.mubr.f32.gmra.mxu0 %v3470
  %v3875 = vpop.f32.mrf.mxu0
  %v3876 = vadd.f32 %v3572, %v3875
  %v3877 = vpop.f32.mrf.mxu0
  %3878 = vmatprep.mubr.f32.mxu0 0.0
  %3879 = vmatmul.mubr.f32.gmra.mxu0 %v3471
  %v3880 = vpop.f32.mrf.mxu0
  %v3881 = vadd.f32 %v3572, %v3880
  %v3882 = vpop.f32.mrf.mxu0
  %3883 = vmatprep.mubr.f32.mxu0 0.0
  %3884 = vmatmul.mubr.f32.gmra.mxu0 %v3472
  %v3885 = vpop.f32.mrf.mxu0
  %v3886 = vadd.f32 %v3572, %v3885
  %v3887 = vpop.f32.mrf.mxu0
  %3888 = vmatprep.mubr.f32.mxu0 0.0
  %3889 = vmatmul.mubr.f32.gmra.mxu0 %v3473
  %v3890 = vpop.f32.mrf.mxu0
  %v3891 = vadd.f32 %v3572, %v3890
  %v3892 = vpop.f32.mrf.mxu0
  %3893 = vmatprep.mubr.f32.mxu0 0.0
  %3894 = vmatmul.mubr.f32.gmra.mxu0 %v3474
  %v3895 = vpop.f32.mrf.mxu0
  %v3896 = vadd.f32 %v3572, %v3895
  %v3897 = vpop.f32.mrf.mxu0
  %3898 = vmatprep.mubr.f32.mxu0 0.0
  %3899 = vmatmul.mubr.f32.gmra.mxu0 %v3475
  %v3900 = vpop.f32.mrf.mxu0
  %v3901 = vadd.f32 %v3572, %v3900
  %v3902 = vpop.f32.mrf.mxu0
  %3903 = vmatprep.mubr.f32.mxu0 0.0
  %3904 = vmatmul.mubr.f32.gmra.mxu0 %v3476
  %v3905 = vpop.f32.mrf.mxu0
  %v3906 = vadd.f32 %v3572, %v3905
  %v3907 = vpop.f32.mrf.mxu0
  %3908 = vmatprep.mubr.f32.mxu0 0.0
  %3909 = vmatmul.mubr.f32.gmra.mxu0 %v3477
  %v3910 = vpop.f32.mrf.mxu0
  %v3911 = vadd.f32 %v3572, %v3910
  %v3912 = vpop.f32.mrf.mxu0
  %3913 = vmatprep.mubr.f32.mxu0 0.0
  %3914 = vmatmul.mubr.f32.gmra.mxu0 %v3478
  %v3915 = vpop.f32.mrf.mxu0
  %v3916 = vadd.f32 %v3572, %v3915
  %v3917 = vpop.f32.mrf.mxu0
  %3918 = vmatprep.mubr.f32.mxu0 0.0
  %3919 = vmatmul.mubr.f32.gmra.mxu0 %v3479
  %v3920 = vpop.f32.mrf.mxu0
  %v3921 = vadd.f32 %v3572, %v3920
  %v3922 = vpop.f32.mrf.mxu0
  %3923 = vmatprep.mubr.f32.mxu0 0.0
  %3924 = vmatmul.mubr.f32.gmra.mxu0 %v3480
  %v3925 = vpop.f32.mrf.mxu0
  %v3926 = vadd.f32 %v3572, %v3925
  %v3927 = vpop.f32.mrf.mxu0
  %3928 = vmatprep.mubr.f32.mxu0 0.0
  %3929 = vmatmul.mubr.f32.gmra.mxu0 %v3481
  %v3930 = vpop.f32.mrf.mxu0
  %v3931 = vadd.f32 %v3572, %v3930
  %v3932 = vpop.f32.mrf.mxu0
  %3933 = vmatprep.mubr.f32.mxu0 0.0
  %3934 = vmatmul.mubr.f32.gmra.mxu0 %v3482
  %v3935 = vpop.f32.mrf.mxu0
  %v3936 = vadd.f32 %v3572, %v3935
  %v3937 = vpop.f32.mrf.mxu0
  %3938 = vmatprep.mubr.f32.mxu0 0.0
  %3939 = vmatmul.mubr.f32.gmra.mxu0 %v3483
  %v3940 = vpop.f32.mrf.mxu0
  %v3941 = vadd.f32 %v3572, %v3940
  %v3942 = vpop.f32.mrf.mxu0
  %3943 = vmatprep.mubr.f32.mxu0 0.0
  %3944 = vmatmul.mubr.f32.gmra.mxu0 %v3484
  %v3945 = vpop.f32.mrf.mxu0
  %v3946 = vadd.f32 %v3572, %v3945
  %v3947 = vpop.f32.mrf.mxu0
  %3948 = vmatprep.mubr.f32.mxu0 0.0
  %3949 = vmatmul.mubr.f32.gmra.mxu0 %v3485
  %v3950 = vpop.f32.mrf.mxu0
  %v3951 = vadd.f32 %v3572, %v3950
  %v3952 = vpop.f32.mrf.mxu0
  %3953 = vmatprep.mubr.f32.mxu0 0.0
  %3954 = vmatmul.mubr.f32.gmra.mxu0 %v3486
  %v3955 = vpop.f32.mrf.mxu0
  %v3956 = vadd.f32 %v3572, %v3955
  %v3957 = vpop.f32.mrf.mxu0
  %3958 = vmatprep.mubr.f32.mxu0 0.0
  %3959 = vmatmul.mubr.f32.gmra.mxu0 %v3487
  %v3960 = vpop.f32.mrf.mxu0
  %v3961 = vadd.f32 %v3572, %v3960
  %v3962 = vpop.f32.mrf.mxu0
  %3963 = vmatprep.mubr.f32.mxu0 0.0
  %3964 = vmatmul.mubr.f32.gmra.mxu0 %v3488
  %v3965 = vpop.f32.mrf.mxu0
  %v3966 = vadd.f32 %v3572, %v3965
  %v3967 = vpop.f32.mrf.mxu0
  %3968 = vmatprep.mubr.f32.mxu0 0.0
  %3969 = vmatmul.mubr.f32.gmra.mxu0 %v3489
  %v3970 = vpop.f32.mrf.mxu0
  %v3971 = vadd.f32 %v3572, %v3970
  %v3972 = vpop.f32.mrf.mxu0
  %3973 = vmatprep.mubr.f32.mxu0 0.0
  %3974 = vmatmul.mubr.f32.gmra.mxu0 %v3490
  %v3975 = vpop.f32.mrf.mxu0
  %v3976 = vadd.f32 %v3572, %v3975
  %v3977 = vpop.f32.mrf.mxu0
  %3978 = vmatprep.mubr.f32.mxu0 0.0
  %3979 = vmatmul.mubr.f32.gmra.mxu0 %v3491
  %v3980 = vpop.f32.mrf.mxu0
  %v3981 = vadd.f32 %v3572, %v3980
  %v3982 = vpop.f32.mrf.mxu0
  %3983 = vmatprep.mubr.f32.mxu0 0.0
  %3984 = vmatmul.mubr.f32.gmra.mxu0 %v3492
  %v3985 = vpop.f32.mrf.mxu0
  %v3986 = vadd.f32 %v3572, %v3985
  %v3987 = vpop.f32.mrf.mxu0
  %3988 = vmatprep.mubr.f32.mxu0 0.0
  %3989 = vmatmul.mubr.f32.gmra.mxu0 %v3493
  %v3990 = vpop.f32.mrf.mxu0
  %v3991 = vadd.f32 %v3572, %v3990
  %v3992 = vpop.f32.mrf.mxu0
  %3993 = vmatprep.mubr.f32.mxu0 0.0
  %3994 = vmatmul.mubr.f32.gmra.mxu0 %v3494
  %v3995 = vpop.f32.mrf.mxu0
  %v3996 = vadd.f32 %v3572, %v3995
  %v3997 = vpop.f32.mrf.mxu0
  %3998 = vmatprep.mubr.f32.mxu0 0.0
  %3999 = vmatmul.mubr.f32.gmra.mxu0 %v3495
  %v4000 = vpop.f32.mrf.mxu0
  %v4001 = vadd.f32 %v3572, %v4000
  %v4002 = vpop.f32.mrf.mxu0
  %4003 = vmatprep.mubr.f32.mxu0 0.0
  %4004 = vmatmul.mubr.f32.gmra.mxu0 %v3496
  %v4005 = vpop.f32.mrf.mxu0
  %v4006 = vadd.f32 %v3572, %v4005
  %v4007 = vpop.f32.mrf.mxu0
  %4008 = vmatprep.mubr.f32.mxu0 0.0
  %4009 = vmatmul.mubr.f32.gmra.mxu0 %v3497
  %v4010 = vpop.f32.mrf.mxu0
  %v4011 = vadd.f32 %v3572, %v4010
  %v4012 = vpop.f32.mrf.mxu0
  %4013 = vmatprep.mubr.f32.mxu0 0.0
  %4014 = vmatmul.mubr.f32.gmra.mxu0 %v3498
  %v4015 = vpop.f32.mrf.mxu0
  %v4016 = vadd.f32 %v3572, %v4015
  %v4017 = vpop.f32.mrf.mxu0
  %4018 = vmatprep.mubr.f32.mxu0 0.0
  %4019 = vmatmul.mubr.f32.gmra.mxu0 %v3499
  %v4020 = vpop.f32.mrf.mxu0
  %v4021 = vadd.f32 %v3572, %v4020
  %v4022 = vpop.f32.mrf.mxu0
  %4023 = vmatprep.mubr.f32.mxu0 0.0
  %4024 = vmatmul.mubr.f32.gmra.mxu0 %v3500
  %v4025 = vpop.f32.mrf.mxu0
  %v4026 = vadd.f32 %v3572, %v4025
  %v4027 = vpop.f32.mrf.mxu0
  %4028 = vmatprep.mubr.f32.mxu0 0.0
  %4029 = vmatmul.mubr.f32.gmra.mxu0 %v3501
  %v4030 = vpop.f32.mrf.mxu0
  %v4031 = vadd.f32 %v3572, %v4030
  %v4032 = vpop.f32.mrf.mxu0
  %4033 = vmatprep.mubr.f32.mxu0 0.0
  %4034 = vmatmul.mubr.f32.gmra.mxu0 %v3502
  %v4035 = vpop.f32.mrf.mxu0
  %v4036 = vadd.f32 %v3572, %v4035
  %v4037 = vpop.f32.mrf.mxu0
  %4038 = vmatprep.mubr.f32.mxu0 0.0
  %4039 = vmatmul.mubr.f32.gmra.mxu0 %v3503
  %v4040 = vpop.f32.mrf.mxu0
  %v4041 = vadd.f32 %v3572, %v4040
  %v4042 = vpop.f32.mrf.mxu0
  %4043 = vmatprep.mubr.f32.mxu0 0.0
  %4044 = vmatmul.mubr.f32.gmra.mxu0 %v3504
  %v4045 = vpop.f32.mrf.mxu0
  %v4046 = vadd.f32 %v3572, %v4045
  %v4047 = vpop.f32.mrf.mxu0
  %4048 = vmatprep.mubr.f32.mxu0 0.0
  %4049 = vmatmul.mubr.f32.gmra.mxu0 %v3505
  %v4050 = vpop.f32.mrf.mxu0
  %v4051 = vadd.f32 %v3572, %v4050
  %v4052 = vpop.f32.mrf.mxu0
  %4053 = vmatprep.mubr.f32.mxu0 0.0
  %4054 = vmatmul.mubr.f32.gmra.mxu0 %v3506
  %v4055 = vpop.f32.mrf.mxu0
  %v4056 = vadd.f32 %v3572, %v4055
  %v4057 = vpop.f32.mrf.mxu0
  %4058 = vmatprep.mubr.f32.mxu0 0.0
  %4059 = vmatmul.mubr.f32.gmra.mxu0 %v3507
  %v4060 = vpop.f32.mrf.mxu0
  %v4061 = vadd.f32 %v3572, %v4060
  %v4062 = vpop.f32.mrf.mxu0
  %4063 = vmatprep.mubr.f32.mxu0 0.0
  %4064 = vmatmul.mubr.f32.gmra.mxu0 %v3508
  %v4065 = vpop.f32.mrf.mxu0
  %v4066 = vadd.f32 %v3572, %v4065
  %v4067 = vpop.f32.mrf.mxu0
  %4068 = vmatprep.mubr.f32.mxu0 0.0
  %4069 = vmatmul.mubr.f32.gmra.mxu0 %v3509
  %v4070 = vpop.f32.mrf.mxu0
  %v4071 = vadd.f32 %v3572, %v4070
  %v4072 = vpop.f32.mrf.mxu0
  %4073 = vmatprep.mubr.f32.mxu0 0.0
  %4074 = vmatmul.mubr.f32.gmra.mxu0 %v3510
  %v4075 = vpop.f32.mrf.mxu0
  %v4076 = vadd.f32 %v3572, %v4075
  %v4077 = vpop.f32.mrf.mxu0
  %4078 = vmatprep.mubr.f32.mxu0 0.0
  %4079 = vmatmul.mubr.f32.gmra.mxu0 %v3511
  %v4080 = vpop.f32.mrf.mxu0
  %v4081 = vadd.f32 %v3572, %v4080
  %v4082 = vpop.f32.mrf.mxu0
  %4083 = vmatprep.mubr.f32.mxu0 0.0
  %4084 = vmatmul.mubr.f32.gmra.mxu0 %v3512
  %v4085 = vpop.f32.mrf.mxu0
  %v4086 = vadd.f32 %v3572, %v4085
  %v4087 = vpop.f32.mrf.mxu0
  %4088 = vmatprep.mubr.f32.mxu0 0.0
  %4089 = vmatmul.mubr.f32.gmra.mxu0 %v3513
  %v4090 = vpop.f32.mrf.mxu0
  %v4091 = vadd.f32 %v3572, %v4090
  %v4092 = vpop.f32.mrf.mxu0
  %4093 = vmatprep.mubr.f32.mxu0 0.0
  %4094 = vmatmul.mubr.f32.gmra.mxu0 %v3514
  %v4095 = vpop.f32.mrf.mxu0
  %v4096 = vadd.f32 %v3572, %v4095
  %v4097 = vpop.f32.mrf.mxu0
  %4098 = vmatprep.mubr.f32.mxu0 0.0
  %4099 = vmatmul.mubr.f32.gmra.mxu0 %v3515
  %v4100 = vpop.f32.mrf.mxu0
  %v4101 = vadd.f32 %v3572, %v4100
  %v4102 = vpop.f32.mrf.mxu0
  %4103 = vmatprep.mubr.f32.mxu0 0.0
  %4104 = vmatmul.mubr.f32.gmra.mxu0 %v3516
  %v4105 = vpop.f32.mrf.mxu0
  %v4106 = vadd.f32 %v3572, %v4105
  %v4107 = vpop.f32.mrf.mxu0
  %4108 = vmatprep.mubr.f32.mxu0 0.0
  %4109 = vmatmul.mubr.f32.gmra.mxu0 %v3517
  %v4110 = vpop.f32.mrf.mxu0
  %v4111 = vadd.f32 %v3572, %v4110
  %v4112 = vpop.f32.mrf.mxu0
  %4113 = vmatprep.mubr.f32.mxu0 0.0
  %4114 = vmatmul.mubr.f32.gmra.mxu0 %v3518
  %v4115 = vpop.f32.mrf.mxu0
  %v4116 = vadd.f32 %v3572, %v4115
  %v4117 = vpop.f32.mrf.mxu0
  %4118 = vmatprep.mubr.f32.mxu0 0.0
  %4119 = vmatmul.mubr.f32.gmra.mxu0 %v3519
  %v4120 = vpop.f32.mrf.mxu0
  %v4121 = vadd.f32 %v3572, %v4120
  %v4122 = vpop.f32.mrf.mxu0
  %4123 = vmatprep.mubr.f32.mxu0 0.0
  %4124 = vmatmul.mubr.f32.gmra.mxu0 %v3520
  %v4125 = vpop.f32.mrf.mxu0
  %v4126 = vadd.f32 %v3572, %v4125
  %v4127 = vpop.f32.mrf.mxu0
  %4128 = vmatprep.mubr.f32.mxu0 0.0
  %4129 = vmatmul.mubr.f32.gmra.mxu0 %v3521
  %v4130 = vpop.f32.mrf.mxu0
  %v4131 = vadd.f32 %v3572, %v4130
  %v4132 = vpop.f32.mrf.mxu0
  %4133 = vmatprep.mubr.f32.mxu0 0.0
  %4134 = vmatmul.mubr.f32.gmra.mxu0 %v3522
  %v4135 = vpop.f32.mrf.mxu0
  %v4136 = vadd.f32 %v3572, %v4135
  %v4137 = vpop.f32.mrf.mxu0
  %4138 = vmatprep.mubr.f32.mxu0 0.0
  %4139 = vmatmul.mubr.f32.gmra.mxu0 %v3523
  %v4140 = vpop.f32.mrf.mxu0
  %v4141 = vadd.f32 %v3572, %v4140
  %v4142 = vpop.f32.mrf.mxu0
  %4143 = vmatprep.mubr.f32.mxu0 0.0
  %4144 = vmatmul.mubr.f32.gmra.mxu0 %v3524
  %v4145 = vpop.f32.mrf.mxu0
  %v4146 = vadd.f32 %v3572, %v4145
  %v4147 = vpop.f32.mrf.mxu0
  %4148 = vmatprep.mubr.f32.mxu0 0.0
  %4149 = vmatmul.mubr.f32.gmra.mxu0 %v3525
  %v4150 = vpop.f32.mrf.mxu0
  %v4151 = vadd.f32 %v3572, %v4150
  %v4152 = vpop.f32.mrf.mxu0
  %4153 = vmatprep.mubr.f32.mxu0 0.0
  %4154 = vmatmul.mubr.f32.gmra.mxu0 %v3526
  %v4155 = vpop.f32.mrf.mxu0
  %v4156 = vadd.f32 %v3572, %v4155
  %v4157 = vpop.f32.mrf.mxu0
  %4158 = vmatprep.mubr.f32.mxu0 0.0
  %4159 = vmatmul.mubr.f32.gmra.mxu0 %v3527
  %v4160 = vpop.f32.mrf.mxu0
  %v4161 = vadd.f32 %v3572, %v4160
  %v4162 = vpop.f32.mrf.mxu0
  %4163 = vmatprep.mubr.f32.mxu0 0.0
  %4164 = vmatmul.mubr.f32.gmra.mxu0 %v3528
  %v4165 = vpop.f32.mrf.mxu0
  %v4166 = vadd.f32 %v3572, %v4165
  %v4167 = vpop.f32.mrf.mxu0
  %4168 = vmatprep.mubr.f32.mxu0 0.0
  %4169 = vmatmul.mubr.f32.gmra.mxu0 %v3529
  %v4170 = vpop.f32.mrf.mxu0
  %v4171 = vadd.f32 %v3572, %v4170
  %v4172 = vpop.f32.mrf.mxu0
  %4173 = vmatprep.mubr.f32.mxu0 0.0
  %4174 = vmatmul.mubr.f32.gmra.mxu0 %v3530
  %v4175 = vpop.f32.mrf.mxu0
  %v4176 = vadd.f32 %v3572, %v4175
  %v4177 = vpop.f32.mrf.mxu0
  %4178 = vmatprep.mubr.f32.mxu0 0.0
  %4179 = vmatmul.mubr.f32.gmra.mxu0 %v3531
  %v4180 = vpop.f32.mrf.mxu0
  %v4181 = vadd.f32 %v3572, %v4180
  %v4182 = vpop.f32.mrf.mxu0
  %4183 = vmatprep.mubr.f32.mxu0 0.0
  %4184 = vmatmul.mubr.f32.gmra.mxu0 %v3532
  %v4185 = vpop.f32.mrf.mxu0
  %v4186 = vadd.f32 %v3572, %v4185
  %v4187 = vpop.f32.mrf.mxu0
  %4188 = vmatprep.mubr.f32.mxu0 0.0
  %4189 = vmatmul.mubr.f32.gmra.mxu0 %v3533
  %v4190 = vpop.f32.mrf.mxu0
  %v4191 = vadd.f32 %v3572, %v4190
  %v4192 = vpop.f32.mrf.mxu0
  %4193 = vmatprep.mubr.f32.mxu0 0.0
  %4194 = vmatmul.mubr.f32.gmra.mxu0 %v3534
  %v4195 = vpop.f32.mrf.mxu0
  %v4196 = vadd.f32 %v3572, %v4195
  %v4197 = vpop.f32.mrf.mxu0
  %4198 = vmatprep.mubr.f32.mxu0 0.0
  %4199 = vmatmul.mubr.f32.gmra.mxu0 %v3535
  %v4200 = vpop.f32.mrf.mxu0
  %v4201 = vadd.f32 %v3572, %v4200
  %v4202 = vpop.f32.mrf.mxu0
  %4203 = vmatprep.mubr.f32.mxu0 0.0
  %4204 = vmatmul.mubr.f32.gmra.mxu0 %v3536
  %v4205 = vpop.f32.mrf.mxu0
  %v4206 = vadd.f32 %v3572, %v4205
  %v4207 = vpop.f32.mrf.mxu0
  %4208 = vmatprep.mubr.f32.mxu0 0.0
  %4209 = vmatmul.mubr.f32.gmra.mxu0 %v3537
  %v4210 = vpop.f32.mrf.mxu0
  %v4211 = vadd.f32 %v3572, %v4210
  %v4212 = vpop.f32.mrf.mxu0
  %4213 = vmatprep.mubr.f32.mxu0 0.0
  %4214 = vmatmul.mubr.f32.gmra.mxu0 %v3538
  %v4215 = vpop.f32.mrf.mxu0
  %v4216 = vadd.f32 %v3572, %v4215
  %v4217 = vpop.f32.mrf.mxu0
  %4218 = vmatprep.mubr.f32.mxu0 0.0
  %4219 = vmatmul.mubr.f32.gmra.mxu0 %v3539
  %v4220 = vpop.f32.mrf.mxu0
  %v4221 = vadd.f32 %v3572, %v4220
  %v4222 = vpop.f32.mrf.mxu0
  %4223 = vmatprep.mubr.f32.mxu0 0.0
  %4224 = vmatmul.mubr.f32.gmra.mxu0 %v3540
  %v4225 = vpop.f32.mrf.mxu0
  %v4226 = vadd.f32 %v3572, %v4225
  %v4227 = vpop.f32.mrf.mxu0
  %4228 = vmatprep.mubr.f32.mxu0 0.0
  %4229 = vmatmul.mubr.f32.gmra.mxu0 %v3541
  %v4230 = vpop.f32.mrf.mxu0
  %v4231 = vadd.f32 %v3572, %v4230
  %v4232 = vpop.f32.mrf.mxu0
  %4233 = vmatprep.mubr.f32.mxu0 0.0
  %4234 = vmatmul.mubr.f32.gmra.mxu0 %v3542
  %v4235 = vpop.f32.mrf.mxu0
  %v4236 = vadd.f32 %v3572, %v4235
  %v4237 = vpop.f32.mrf.mxu0
  %4238 = vmatprep.mubr.f32.mxu0 0.0
  %4239 = vmatmul.mubr.f32.gmra.mxu0 %v3543
  %v4240 = vpop.f32.mrf.mxu0
  %v4241 = vadd.f32 %v3572, %v4240
  %v4242 = vpop.f32.mrf.mxu0
  %4243 = vmatprep.mubr.f32.mxu0 0.0
  %4244 = vmatmul.mubr.f32.gmra.mxu0 %v3544
  %v4245 = vpop.f32.mrf.mxu0
  %v4246 = vadd.f32 %v3572, %v4245
  %v4247 = vpop.f32.mrf.mxu0
  %4248 = vmatprep.mubr.f32.mxu0 0.0
  %4249 = vmatmul.mubr.f32.gmra.mxu0 %v3545
  %v4250 = vpop.f32.mrf.mxu0
  %v4251 = vadd.f32 %v3572, %v4250
  %v4252 = vpop.f32.mrf.mxu0
  %4253 = vmatprep.mubr.f32.mxu0 0.0
  %4254 = vmatmul.mubr.f32.gmra.mxu0 %v3546
  %v4255 = vpop.f32.mrf.mxu0
  %v4256 = vadd.f32 %v3572, %v4255
  %v4257 = vpop.f32.mrf.mxu0
  %4258 = vmatprep.mubr.f32.mxu0 0.0
  %4259 = vmatmul.mubr.f32.gmra.mxu0 %v3547
  %v4260 = vpop.f32.mrf.mxu0
  %v4261 = vadd.f32 %v3572, %v4260
  %v4262 = vpop.f32.mrf.mxu0
  %4263 = vmatprep.mubr.f32.mxu0 0.0
  %4264 = vmatmul.mubr.f32.gmra.mxu0 %v3548
  %v4265 = vpop.f32.mrf.mxu0
  %v4266 = vadd.f32 %v3572, %v4265
  %v4267 = vpop.f32.mrf.mxu0
  %4268 = vmatprep.mubr.f32.mxu0 0.0
  %4269 = vmatmul.mubr.f32.gmra.mxu0 %v3549
  %v4270 = vpop.f32.mrf.mxu0
  %v4271 = vadd.f32 %v3572, %v4270
  %v4272 = vpop.f32.mrf.mxu0
  %4273 = vmatprep.mubr.f32.mxu0 0.0
  %4274 = vmatmul.mubr.f32.gmra.mxu0 %v3550
  %v4275 = vpop.f32.mrf.mxu0
  %v4276 = vadd.f32 %v3572, %v4275
  %v4277 = vpop.f32.mrf.mxu0
  %4278 = vdwg.mxu0
  %v4279 = vmax.f32 %v3641, 0.0
  %v4280 = vmax.f32 %v3646, 0.0
  %v4281 = vmax.f32 %v3651, 0.0
  %v4282 = vmax.f32 %v3656, 0.0
  %v4283 = vmax.f32 %v3661, 0.0
  %v4284 = vmax.f32 %v3666, 0.0
  %v4285 = vmax.f32 %v3671, 0.0
  %v4286 = vmax.f32 %v3676, 0.0
  %v4287 = vmax.f32 %v3681, 0.0
  %v4288 = vmax.f32 %v3686, 0.0
  %v4289 = vmax.f32 %v3691, 0.0
  %v4290 = vmax.f32 %v3696, 0.0
  %v4291 = vmax.f32 %v3701, 0.0
  %v4292 = vmax.f32 %v3706, 0.0
  %v4293 = vmax.f32 %v3711, 0.0
  %v4294 = vmax.f32 %v3716, 0.0
  %v4295 = vmax.f32 %v3721, 0.0
  %v4296 = vmax.f32 %v3726, 0.0
  %v4297 = vmax.f32 %v3731, 0.0
  %v4298 = vmax.f32 %v3736, 0.0
  %v4299 = vmax.f32 %v3741, 0.0
  %v4300 = vmax.f32 %v3746, 0.0
  %v4301 = vmax.f32 %v3751, 0.0
  %v4302 = vmax.f32 %v3756, 0.0
  %v4303 = vmax.f32 %v3761, 0.0
  %v4304 = vmax.f32 %v3766, 0.0
  %v4305 = vmax.f32 %v3771, 0.0
  %v4306 = vmax.f32 %v3776, 0.0
  %v4307 = vmax.f32 %v3781, 0.0
  %v4308 = vmax.f32 %v3786, 0.0
  %v4309 = vmax.f32 %v3791, 0.0
  %v4310 = vmax.f32 %v3796, 0.0
  %v4311 = vmax.f32 %v3801, 0.0
  %v4312 = vmax.f32 %v3806, 0.0
  %v4313 = vmax.f32 %v3811, 0.0
  %v4314 = vmax.f32 %v3816, 0.0
  %v4315 = vmax.f32 %v3821, 0.0
  %v4316 = vmax.f32 %v3826, 0.0
  %v4317 = vmax.f32 %v3831, 0.0
  %v4318 = vmax.f32 %v3836, 0.0
  %v4319 = vmax.f32 %v3841, 0.0
  %v4320 = vmax.f32 %v3846, 0.0
  %v4321 = vmax.f32 %v3851, 0.0
  %v4322 = vmax.f32 %v3856, 0.0
  %v4323 = vmax.f32 %v3861, 0.0
  %v4324 = vmax.f32 %v3866, 0.0
  %v4325 = vmax.f32 %v3871, 0.0
  %v4326 = vmax.f32 %v3876, 0.0
  %v4327 = vmax.f32 %v3881, 0.0
  %v4328 = vmax.f32 %v3886, 0.0
  %v4329 = vmax.f32 %v3891, 0.0
  %v4330 = vmax.f32 %v3896, 0.0
  %v4331 = vmax.f32 %v3901, 0.0
  %v4332 = vmax.f32 %v3906, 0.0
  %v4333 = vmax.f32 %v3911, 0.0
  %v4334 = vmax.f32 %v3916, 0.0
  %v4335 = vmax.f32 %v3921, 0.0
  %v4336 = vmax.f32 %v3926, 0.0
  %v4337 = vmax.f32 %v3931, 0.0
  %v4338 = vmax.f32 %v3936, 0.0
  %v4339 = vmax.f32 %v3941, 0.0
  %v4340 = vmax.f32 %v3946, 0.0
  %v4341 = vmax.f32 %v3951, 0.0
  %v4342 = vmax.f32 %v3956, 0.0
  %v4343 = vmax.f32 %v3961, 0.0
  %v4344 = vmax.f32 %v3966, 0.0
  %v4345 = vmax.f32 %v3971, 0.0
  %v4346 = vmax.f32 %v3976, 0.0
  %v4347 = vmax.f32 %v3981, 0.0
  %v4348 = vmax.f32 %v3986, 0.0
  %v4349 = vmax.f32 %v3991, 0.0
  %v4350 = vmax.f32 %v3996, 0.0
  %v4351 = vmax.f32 %v4001, 0.0
  %v4352 = vmax.f32 %v4006, 0.0
  %v4353 = vmax.f32 %v4011, 0.0
  %v4354 = vmax.f32 %v4016, 0.0
  %v4355 = vmax.f32 %v4021, 0.0
  %v4356 = vmax.f32 %v4026, 0.0
  %v4357 = vmax.f32 %v4031, 0.0
  %v4358 = vmax.f32 %v4036, 0.0
  %v4359 = vmax.f32 %v4041, 0.0
  %v4360 = vmax.f32 %v4046, 0.0
  %v4361 = vmax.f32 %v4051, 0.0
  %v4362 = vmax.f32 %v4056, 0.0
  %v4363 = vmax.f32 %v4061, 0.0
  %v4364 = vmax.f32 %v4066, 0.0
  %v4365 = vmax.f32 %v4071, 0.0
  %v4366 = vmax.f32 %v4076, 0.0
  %v4367 = vmax.f32 %v4081, 0.0
  %v4368 = vmax.f32 %v4086, 0.0
  %v4369 = vmax.f32 %v4091, 0.0
  %v4370 = vmax.f32 %v4096, 0.0
  %v4371 = vmax.f32 %v4101, 0.0
  %v4372 = vmax.f32 %v4106, 0.0
  %v4373 = vmax.f32 %v4111, 0.0
  %v4374 = vmax.f32 %v4116, 0.0
  %v4375 = vmax.f32 %v4121, 0.0
  %v4376 = vmax.f32 %v4126, 0.0
  %v4377 = vmax.f32 %v4131, 0.0
  %v4378 = vmax.f32 %v4136, 0.0
  %v4379 = vmax.f32 %v4141, 0.0
  %v4380 = vmax.f32 %v4146, 0.0
  %v4381 = vmax.f32 %v4151, 0.0
  %v4382 = vmax.f32 %v4156, 0.0
  %v4383 = vmax.f32 %v4161, 0.0
  %v4384 = vmax.f32 %v4166, 0.0
  %v4385 = vmax.f32 %v4171, 0.0
  %v4386 = vmax.f32 %v4176, 0.0
  %v4387 = vmax.f32 %v4181, 0.0
  %v4388 = vmax.f32 %v4186, 0.0
  %v4389 = vmax.f32 %v4191, 0.0
  %v4390 = vmax.f32 %v4196, 0.0
  %v4391 = vmax.f32 %v4201, 0.0
  %v4392 = vmax.f32 %v4206, 0.0
  %v4393 = vmax.f32 %v4211, 0.0
  %v4394 = vmax.f32 %v4216, 0.0
  %v4395 = vmax.f32 %v4221, 0.0
  %v4396 = vmax.f32 %v4226, 0.0
  %v4397 = vmax.f32 %v4231, 0.0
  %v4398 = vmax.f32 %v4236, 0.0
  %v4399 = vmax.f32 %v4241, 0.0
  %v4400 = vmax.f32 %v4246, 0.0
  %v4401 = vmax.f32 %v4251, 0.0
  %v4402 = vmax.f32 %v4256, 0.0
  %v4403 = vmax.f32 %v4261, 0.0
  %v4404 = vmax.f32 %v4266, 0.0
  %v4405 = vmax.f32 %v4271, 0.0
  %v4406 = vmax.f32 %v4276, 0.0
  %v4407 = vld [vmem:[%s12] sm:$0xf]
  %v4408 = vld [vmem:[%s13] sm:$0x1]
  %v4410 = vlaneseq
  %v4411 = vshrl.u32 %v4410, 7
  %v4412 = vsub.s32 0, %v4411
  %v4413 = vrot.slane %v4408, %v4412
  %vm4415 = vcmask 31744
  %v4417 = vsel %vm4415, %v4279, 0
  %v4420 = vsel %vm4415, %v4280, 0
  %v4423 = vsel %vm4415, %v4281, 0
  %v4426 = vsel %vm4415, %v4282, 0
  %v4429 = vsel %vm4415, %v4283, 0
  %v4432 = vsel %vm4415, %v4284, 0
  %v4435 = vsel %vm4415, %v4285, 0
  %v4438 = vsel %vm4415, %v4286, 0
  %v4441 = vsel %vm4415, %v4287, 0
  %v4444 = vsel %vm4415, %v4288, 0
  %v4447 = vsel %vm4415, %v4289, 0
  %v4450 = vsel %vm4415, %v4290, 0
  %v4453 = vsel %vm4415, %v4291, 0
  %v4456 = vsel %vm4415, %v4292, 0
  %v4459 = vsel %vm4415, %v4293, 0
  %v4462 = vsel %vm4415, %v4294, 0
  %v4465 = vsel %vm4415, %v4295, 0
  %v4468 = vsel %vm4415, %v4296, 0
  %v4471 = vsel %vm4415, %v4297, 0
  %v4474 = vsel %vm4415, %v4298, 0
  %v4477 = vsel %vm4415, %v4299, 0
  %v4480 = vsel %vm4415, %v4300, 0
  %v4483 = vsel %vm4415, %v4301, 0
  %v4486 = vsel %vm4415, %v4302, 0
  %v4489 = vsel %vm4415, %v4303, 0
  %v4492 = vsel %vm4415, %v4304, 0
  %v4495 = vsel %vm4415, %v4305, 0
  %v4498 = vsel %vm4415, %v4306, 0
  %v4501 = vsel %vm4415, %v4307, 0
  %v4504 = vsel %vm4415, %v4308, 0
  %v4507 = vsel %vm4415, %v4309, 0
  %v4510 = vsel %vm4415, %v4310, 0
  %v4513 = vsel %vm4415, %v4311, 0
  %v4516 = vsel %vm4415, %v4312, 0
  %v4519 = vsel %vm4415, %v4313, 0
  %v4522 = vsel %vm4415, %v4314, 0
  %v4525 = vsel %vm4415, %v4315, 0
  %v4528 = vsel %vm4415, %v4316, 0
  %v4531 = vsel %vm4415, %v4317, 0
  %v4534 = vsel %vm4415, %v4318, 0
  %v4537 = vsel %vm4415, %v4319, 0
  %v4540 = vsel %vm4415, %v4320, 0
  %v4543 = vsel %vm4415, %v4321, 0
  %v4546 = vsel %vm4415, %v4322, 0
  %v4549 = vsel %vm4415, %v4323, 0
  %v4552 = vsel %vm4415, %v4324, 0
  %v4555 = vsel %vm4415, %v4325, 0
  %v4558 = vsel %vm4415, %v4326, 0
  %v4561 = vsel %vm4415, %v4327, 0
  %v4564 = vsel %vm4415, %v4328, 0
  %v4567 = vsel %vm4415, %v4329, 0
  %v4570 = vsel %vm4415, %v4330, 0
  %v4573 = vsel %vm4415, %v4331, 0
  %v4576 = vsel %vm4415, %v4332, 0
  %v4579 = vsel %vm4415, %v4333, 0
  %v4582 = vsel %vm4415, %v4334, 0
  %v4585 = vsel %vm4415, %v4335, 0
  %v4588 = vsel %vm4415, %v4336, 0
  %v4591 = vsel %vm4415, %v4337, 0
  %v4594 = vsel %vm4415, %v4338, 0
  %v4597 = vsel %vm4415, %v4339, 0
  %v4600 = vsel %vm4415, %v4340, 0
  %v4603 = vsel %vm4415, %v4341, 0
  %v4606 = vsel %vm4415, %v4342, 0
  %v4609 = vsel %vm4415, %v4343, 0
  %v4612 = vsel %vm4415, %v4344, 0
  %v4615 = vsel %vm4415, %v4345, 0
  %v4618 = vsel %vm4415, %v4346, 0
  %v4621 = vsel %vm4415, %v4347, 0
  %v4624 = vsel %vm4415, %v4348, 0
  %v4627 = vsel %vm4415, %v4349, 0
  %v4630 = vsel %vm4415, %v4350, 0
  %v4633 = vsel %vm4415, %v4351, 0
  %v4636 = vsel %vm4415, %v4352, 0
  %v4639 = vsel %vm4415, %v4353, 0
  %v4642 = vsel %vm4415, %v4354, 0
  %v4645 = vsel %vm4415, %v4355, 0
  %v4648 = vsel %vm4415, %v4356, 0
  %v4651 = vsel %vm4415, %v4357, 0
  %v4654 = vsel %vm4415, %v4358, 0
  %v4657 = vsel %vm4415, %v4359, 0
  %v4660 = vsel %vm4415, %v4360, 0
  %v4663 = vsel %vm4415, %v4361, 0
  %v4666 = vsel %vm4415, %v4362, 0
  %v4669 = vsel %vm4415, %v4363, 0
  %v4672 = vsel %vm4415, %v4364, 0
  %v4675 = vsel %vm4415, %v4365, 0
  %v4678 = vsel %vm4415, %v4366, 0
  %v4681 = vsel %vm4415, %v4367, 0
  %v4684 = vsel %vm4415, %v4368, 0
  %v4687 = vsel %vm4415, %v4369, 0
  %v4690 = vsel %vm4415, %v4370, 0
  %v4693 = vsel %vm4415, %v4371, 0
  %v4696 = vsel %vm4415, %v4372, 0
  %v4699 = vsel %vm4415, %v4373, 0
  %v4702 = vsel %vm4415, %v4374, 0
  %v4705 = vsel %vm4415, %v4375, 0
  %v4708 = vsel %vm4415, %v4376, 0
  %v4711 = vsel %vm4415, %v4377, 0
  %v4714 = vsel %vm4415, %v4378, 0
  %v4717 = vsel %vm4415, %v4379, 0
  %v4720 = vsel %vm4415, %v4380, 0
  %v4723 = vsel %vm4415, %v4381, 0
  %v4726 = vsel %vm4415, %v4382, 0
  %v4729 = vsel %vm4415, %v4383, 0
  %v4732 = vsel %vm4415, %v4384, 0
  %v4735 = vsel %vm4415, %v4385, 0
  %v4738 = vsel %vm4415, %v4386, 0
  %v4741 = vsel %vm4415, %v4387, 0
  %v4744 = vsel %vm4415, %v4388, 0
  %v4747 = vsel %vm4415, %v4389, 0
  %v4750 = vsel %vm4415, %v4390, 0
  %v4753 = vsel %vm4415, %v4391, 0
  %v4756 = vsel %vm4415, %v4392, 0
  %v4759 = vsel %vm4415, %v4393, 0
  %v4762 = vsel %vm4415, %v4394, 0
  %v4765 = vsel %vm4415, %v4395, 0
  %v4768 = vsel %vm4415, %v4396, 0
  %v4771 = vsel %vm4415, %v4397, 0
  %v4774 = vsel %vm4415, %v4398, 0
  %v4777 = vsel %vm4415, %v4399, 0
  %v4780 = vsel %vm4415, %v4400, 0
  %v4783 = vsel %vm4415, %v4401, 0
  %v4786 = vsel %vm4415, %v4402, 0
  %v4789 = vsel %vm4415, %v4403, 0
  %v4792 = vsel %vm4415, %v4404, 0
  %v4795 = vsel %vm4415, %v4405, 0
  %v4798 = vsel %vm4415, %v4406, 0
  %vm4800 = vcmask 1043456
  %v4802 = vsel %vm4800, %v4407, 0
  %4804 = vmatprep.subr.mxu0 0.0
  %4805 = vmatpush1.msra.mxu0 0.0
  %4806 = vmatprep.subr.mxu0 0.0
  %4807 = vmatpush1.msra.mxu0 0.0
  %4808 = vmatprep.subr.mxu0 0.0
  %4809 = vmatpush1.msra.mxu0 0.0
  %4810 = vmatprep.subr.mxu0 0.0
  %4811 = vmatpush1.msra.mxu0 0.0
  %4812 = vmatprep.subr.mxu0 0.0
  %4813 = vmatpush1.msra.mxu0 0.0
  %4814 = vmatprep.subr.mxu0 0.0
  %4815 = vmatpush1.msra.mxu0 0.0
  %4816 = vmatprep.subr.mxu0 0.0
  %4817 = vmatpush1.msra.mxu0 0.0
  %4818 = vmatprep.subr.mxu0 0.0
  %4819 = vmatpush1.msra.mxu0 0.0
  %4820 = vmatprep.subr.mxu0 0.0
  %4821 = vmatpush1.msra.mxu0 0.0
  %4822 = vmatprep.subr.mxu0 0.0
  %4823 = vmatpush1.msra.mxu0 0.0
  %4824 = vmatprep.subr.mxu0 0.0
  %4825 = vmatpush1.msra.mxu0 0.0
  %4826 = vmatprep.subr.mxu0 0.0
  %4827 = vmatpush1.msra.mxu0 0.0
  %4828 = vmatprep.subr.mxu0 0.0
  %4829 = vmatpush1.msra.mxu0 0.0
  %4830 = vmatprep.subr.mxu0 0.0
  %4831 = vmatpush1.msra.mxu0 0.0
  %4832 = vmatprep.subr.mxu0 0.0
  %4833 = vmatpush1.msra.mxu0 0.0
  %4834 = vmatprep.subr.mxu0 0.0
  %4835 = vmatpush1.msra.mxu0 %v4802
  %4836 = vmatprep.subr.mxu0 0.0
  %4837 = vmatpush2.msra.mxu0 0.0
  %4838 = vmatprep.subr.mxu0 0.0
  %4839 = vmatpush2.msra.mxu0 0.0
  %4840 = vmatprep.subr.mxu0 0.0
  %4841 = vmatpush2.msra.mxu0 0.0
  %4842 = vmatprep.subr.mxu0 0.0
  %4843 = vmatpush2.msra.mxu0 0.0
  %4844 = vmatprep.subr.mxu0 0.0
  %4845 = vmatpush2.msra.mxu0 0.0
  %4846 = vmatprep.subr.mxu0 0.0
  %4847 = vmatpush2.msra.mxu0 0.0
  %4848 = vmatprep.subr.mxu0 0.0
  %4849 = vmatpush2.msra.mxu0 0.0
  %4850 = vmatprep.subr.mxu0 0.0
  %4851 = vmatpush2.msra.mxu0 0.0
  %4852 = vmatprep.subr.mxu0 0.0
  %4853 = vmatpush2.msra.mxu0 0.0
  %4854 = vmatprep.subr.mxu0 0.0
  %4855 = vmatpush2.msra.mxu0 0.0
  %4856 = vmatprep.subr.mxu0 0.0
  %4857 = vmatpush2.msra.mxu0 0.0
  %4858 = vmatprep.subr.mxu0 0.0
  %4859 = vmatpush2.msra.mxu0 0.0
  %4860 = vmatprep.subr.mxu0 0.0
  %4861 = vmatpush2.msra.mxu0 0.0
  %4862 = vmatprep.subr.mxu0 0.0
  %4863 = vmatpush2.msra.mxu0 0.0
  %4864 = vmatprep.subr.mxu0 0.0
  %4865 = vmatpush2.msra.mxu0 0.0
  %4866 = vmatprep.subr.mxu0 0.0
  %4867 = vmatpush2.msra.mxu0 0.0
  %4868 = vmatprep.mubr.f32.mxu0 0.0
  %4869 = vmatmul.mubr.f32.gmra.mxu0 %v4417
  %v4870 = vpop.f32.mrf.mxu0
  %v4871 = vadd.f32 %v4413, %v4870
  %v4872 = vpop.f32.mrf.mxu0
  %4873 = vmatprep.mubr.f32.mxu0 0.0
  %4874 = vmatmul.mubr.f32.gmra.mxu0 %v4420
  %v4875 = vpop.f32.mrf.mxu0
  %v4876 = vadd.f32 %v4413, %v4875
  %v4877 = vpop.f32.mrf.mxu0
  %4878 = vmatprep.mubr.f32.mxu0 0.0
  %4879 = vmatmul.mubr.f32.gmra.mxu0 %v4423
  %v4880 = vpop.f32.mrf.mxu0
  %v4881 = vadd.f32 %v4413, %v4880
  %v4882 = vpop.f32.mrf.mxu0
  %4883 = vmatprep.mubr.f32.mxu0 0.0
  %4884 = vmatmul.mubr.f32.gmra.mxu0 %v4426
  %v4885 = vpop.f32.mrf.mxu0
  %v4886 = vadd.f32 %v4413, %v4885
  %v4887 = vpop.f32.mrf.mxu0
  %4888 = vmatprep.mubr.f32.mxu0 0.0
  %4889 = vmatmul.mubr.f32.gmra.mxu0 %v4429
  %v4890 = vpop.f32.mrf.mxu0
  %v4891 = vadd.f32 %v4413, %v4890
  %v4892 = vpop.f32.mrf.mxu0
  %4893 = vmatprep.mubr.f32.mxu0 0.0
  %4894 = vmatmul.mubr.f32.gmra.mxu0 %v4432
  %v4895 = vpop.f32.mrf.mxu0
  %v4896 = vadd.f32 %v4413, %v4895
  %v4897 = vpop.f32.mrf.mxu0
  %4898 = vmatprep.mubr.f32.mxu0 0.0
  %4899 = vmatmul.mubr.f32.gmra.mxu0 %v4435
  %v4900 = vpop.f32.mrf.mxu0
  %v4901 = vadd.f32 %v4413, %v4900
  %v4902 = vpop.f32.mrf.mxu0
  %4903 = vmatprep.mubr.f32.mxu0 0.0
  %4904 = vmatmul.mubr.f32.gmra.mxu0 %v4438
  %v4905 = vpop.f32.mrf.mxu0
  %v4906 = vadd.f32 %v4413, %v4905
  %v4907 = vpop.f32.mrf.mxu0
  %4908 = vmatprep.mubr.f32.mxu0 0.0
  %4909 = vmatmul.mubr.f32.gmra.mxu0 %v4441
  %v4910 = vpop.f32.mrf.mxu0
  %v4911 = vadd.f32 %v4413, %v4910
  %v4912 = vpop.f32.mrf.mxu0
  %4913 = vmatprep.mubr.f32.mxu0 0.0
  %4914 = vmatmul.mubr.f32.gmra.mxu0 %v4444
  %v4915 = vpop.f32.mrf.mxu0
  %v4916 = vadd.f32 %v4413, %v4915
  %v4917 = vpop.f32.mrf.mxu0
  %4918 = vmatprep.mubr.f32.mxu0 0.0
  %4919 = vmatmul.mubr.f32.gmra.mxu0 %v4447
  %v4920 = vpop.f32.mrf.mxu0
  %v4921 = vadd.f32 %v4413, %v4920
  %v4922 = vpop.f32.mrf.mxu0
  %4923 = vmatprep.mubr.f32.mxu0 0.0
  %4924 = vmatmul.mubr.f32.gmra.mxu0 %v4450
  %v4925 = vpop.f32.mrf.mxu0
  %v4926 = vadd.f32 %v4413, %v4925
  %v4927 = vpop.f32.mrf.mxu0
  %4928 = vmatprep.mubr.f32.mxu0 0.0
  %4929 = vmatmul.mubr.f32.gmra.mxu0 %v4453
  %v4930 = vpop.f32.mrf.mxu0
  %v4931 = vadd.f32 %v4413, %v4930
  %v4932 = vpop.f32.mrf.mxu0
  %4933 = vmatprep.mubr.f32.mxu0 0.0
  %4934 = vmatmul.mubr.f32.gmra.mxu0 %v4456
  %v4935 = vpop.f32.mrf.mxu0
  %v4936 = vadd.f32 %v4413, %v4935
  %v4937 = vpop.f32.mrf.mxu0
  %4938 = vmatprep.mubr.f32.mxu0 0.0
  %4939 = vmatmul.mubr.f32.gmra.mxu0 %v4459
  %v4940 = vpop.f32.mrf.mxu0
  %v4941 = vadd.f32 %v4413, %v4940
  %v4942 = vpop.f32.mrf.mxu0
  %4943 = vmatprep.mubr.f32.mxu0 0.0
  %4944 = vmatmul.mubr.f32.gmra.mxu0 %v4462
  %v4945 = vpop.f32.mrf.mxu0
  %v4946 = vadd.f32 %v4413, %v4945
  %v4947 = vpop.f32.mrf.mxu0
  %4948 = vmatprep.mubr.f32.mxu0 0.0
  %4949 = vmatmul.mubr.f32.gmra.mxu0 %v4465
  %v4950 = vpop.f32.mrf.mxu0
  %v4951 = vadd.f32 %v4413, %v4950
  %v4952 = vpop.f32.mrf.mxu0
  %4953 = vmatprep.mubr.f32.mxu0 0.0
  %4954 = vmatmul.mubr.f32.gmra.mxu0 %v4468
  %v4955 = vpop.f32.mrf.mxu0
  %v4956 = vadd.f32 %v4413, %v4955
  %v4957 = vpop.f32.mrf.mxu0
  %4958 = vmatprep.mubr.f32.mxu0 0.0
  %4959 = vmatmul.mubr.f32.gmra.mxu0 %v4471
  %v4960 = vpop.f32.mrf.mxu0
  %v4961 = vadd.f32 %v4413, %v4960
  %v4962 = vpop.f32.mrf.mxu0
  %4963 = vmatprep.mubr.f32.mxu0 0.0
  %4964 = vmatmul.mubr.f32.gmra.mxu0 %v4474
  %v4965 = vpop.f32.mrf.mxu0
  %v4966 = vadd.f32 %v4413, %v4965
  %v4967 = vpop.f32.mrf.mxu0
  %4968 = vmatprep.mubr.f32.mxu0 0.0
  %4969 = vmatmul.mubr.f32.gmra.mxu0 %v4477
  %v4970 = vpop.f32.mrf.mxu0
  %v4971 = vadd.f32 %v4413, %v4970
  %v4972 = vpop.f32.mrf.mxu0
  %4973 = vmatprep.mubr.f32.mxu0 0.0
  %4974 = vmatmul.mubr.f32.gmra.mxu0 %v4480
  %v4975 = vpop.f32.mrf.mxu0
  %v4976 = vadd.f32 %v4413, %v4975
  %v4977 = vpop.f32.mrf.mxu0
  %4978 = vmatprep.mubr.f32.mxu0 0.0
  %4979 = vmatmul.mubr.f32.gmra.mxu0 %v4483
  %v4980 = vpop.f32.mrf.mxu0
  %v4981 = vadd.f32 %v4413, %v4980
  %v4982 = vpop.f32.mrf.mxu0
  %4983 = vmatprep.mubr.f32.mxu0 0.0
  %4984 = vmatmul.mubr.f32.gmra.mxu0 %v4486
  %v4985 = vpop.f32.mrf.mxu0
  %v4986 = vadd.f32 %v4413, %v4985
  %v4987 = vpop.f32.mrf.mxu0
  %4988 = vmatprep.mubr.f32.mxu0 0.0
  %4989 = vmatmul.mubr.f32.gmra.mxu0 %v4489
  %v4990 = vpop.f32.mrf.mxu0
  %v4991 = vadd.f32 %v4413, %v4990
  %v4992 = vpop.f32.mrf.mxu0
  %4993 = vmatprep.mubr.f32.mxu0 0.0
  %4994 = vmatmul.mubr.f32.gmra.mxu0 %v4492
  %v4995 = vpop.f32.mrf.mxu0
  %v4996 = vadd.f32 %v4413, %v4995
  %v4997 = vpop.f32.mrf.mxu0
  %4998 = vmatprep.mubr.f32.mxu0 0.0
  %4999 = vmatmul.mubr.f32.gmra.mxu0 %v4495
  %v5000 = vpop.f32.mrf.mxu0
  %v5001 = vadd.f32 %v4413, %v5000
  %v5002 = vpop.f32.mrf.mxu0
  %5003 = vmatprep.mubr.f32.mxu0 0.0
  %5004 = vmatmul.mubr.f32.gmra.mxu0 %v4498
  %v5005 = vpop.f32.mrf.mxu0
  %v5006 = vadd.f32 %v4413, %v5005
  %v5007 = vpop.f32.mrf.mxu0
  %5008 = vmatprep.mubr.f32.mxu0 0.0
  %5009 = vmatmul.mubr.f32.gmra.mxu0 %v4501
  %v5010 = vpop.f32.mrf.mxu0
  %v5011 = vadd.f32 %v4413, %v5010
  %v5012 = vpop.f32.mrf.mxu0
  %5013 = vmatprep.mubr.f32.mxu0 0.0
  %5014 = vmatmul.mubr.f32.gmra.mxu0 %v4504
  %v5015 = vpop.f32.mrf.mxu0
  %v5016 = vadd.f32 %v4413, %v5015
  %v5017 = vpop.f32.mrf.mxu0
  %5018 = vmatprep.mubr.f32.mxu0 0.0
  %5019 = vmatmul.mubr.f32.gmra.mxu0 %v4507
  %v5020 = vpop.f32.mrf.mxu0
  %v5021 = vadd.f32 %v4413, %v5020
  %v5022 = vpop.f32.mrf.mxu0
  %5023 = vmatprep.mubr.f32.mxu0 0.0
  %5024 = vmatmul.mubr.f32.gmra.mxu0 %v4510
  %v5025 = vpop.f32.mrf.mxu0
  %v5026 = vadd.f32 %v4413, %v5025
  %v5027 = vpop.f32.mrf.mxu0
  %5028 = vmatprep.mubr.f32.mxu0 0.0
  %5029 = vmatmul.mubr.f32.gmra.mxu0 %v4513
  %v5030 = vpop.f32.mrf.mxu0
  %v5031 = vadd.f32 %v4413, %v5030
  %v5032 = vpop.f32.mrf.mxu0
  %5033 = vmatprep.mubr.f32.mxu0 0.0
  %5034 = vmatmul.mubr.f32.gmra.mxu0 %v4516
  %v5035 = vpop.f32.mrf.mxu0
  %v5036 = vadd.f32 %v4413, %v5035
  %v5037 = vpop.f32.mrf.mxu0
  %5038 = vmatprep.mubr.f32.mxu0 0.0
  %5039 = vmatmul.mubr.f32.gmra.mxu0 %v4519
  %v5040 = vpop.f32.mrf.mxu0
  %v5041 = vadd.f32 %v4413, %v5040
  %v5042 = vpop.f32.mrf.mxu0
  %5043 = vmatprep.mubr.f32.mxu0 0.0
  %5044 = vmatmul.mubr.f32.gmra.mxu0 %v4522
  %v5045 = vpop.f32.mrf.mxu0
  %v5046 = vadd.f32 %v4413, %v5045
  %v5047 = vpop.f32.mrf.mxu0
  %5048 = vmatprep.mubr.f32.mxu0 0.0
  %5049 = vmatmul.mubr.f32.gmra.mxu0 %v4525
  %v5050 = vpop.f32.mrf.mxu0
  %v5051 = vadd.f32 %v4413, %v5050
  %v5052 = vpop.f32.mrf.mxu0
  %5053 = vmatprep.mubr.f32.mxu0 0.0
  %5054 = vmatmul.mubr.f32.gmra.mxu0 %v4528
  %v5055 = vpop.f32.mrf.mxu0
  %v5056 = vadd.f32 %v4413, %v5055
  %v5057 = vpop.f32.mrf.mxu0
  %5058 = vmatprep.mubr.f32.mxu0 0.0
  %5059 = vmatmul.mubr.f32.gmra.mxu0 %v4531
  %v5060 = vpop.f32.mrf.mxu0
  %v5061 = vadd.f32 %v4413, %v5060
  %v5062 = vpop.f32.mrf.mxu0
  %5063 = vmatprep.mubr.f32.mxu0 0.0
  %5064 = vmatmul.mubr.f32.gmra.mxu0 %v4534
  %v5065 = vpop.f32.mrf.mxu0
  %v5066 = vadd.f32 %v4413, %v5065
  %v5067 = vpop.f32.mrf.mxu0
  %5068 = vmatprep.mubr.f32.mxu0 0.0
  %5069 = vmatmul.mubr.f32.gmra.mxu0 %v4537
  %v5070 = vpop.f32.mrf.mxu0
  %v5071 = vadd.f32 %v4413, %v5070
  %v5072 = vpop.f32.mrf.mxu0
  %5073 = vmatprep.mubr.f32.mxu0 0.0
  %5074 = vmatmul.mubr.f32.gmra.mxu0 %v4540
  %v5075 = vpop.f32.mrf.mxu0
  %v5076 = vadd.f32 %v4413, %v5075
  %v5077 = vpop.f32.mrf.mxu0
  %5078 = vmatprep.mubr.f32.mxu0 0.0
  %5079 = vmatmul.mubr.f32.gmra.mxu0 %v4543
  %v5080 = vpop.f32.mrf.mxu0
  %v5081 = vadd.f32 %v4413, %v5080
  %v5082 = vpop.f32.mrf.mxu0
  %5083 = vmatprep.mubr.f32.mxu0 0.0
  %5084 = vmatmul.mubr.f32.gmra.mxu0 %v4546
  %v5085 = vpop.f32.mrf.mxu0
  %v5086 = vadd.f32 %v4413, %v5085
  %v5087 = vpop.f32.mrf.mxu0
  %5088 = vmatprep.mubr.f32.mxu0 0.0
  %5089 = vmatmul.mubr.f32.gmra.mxu0 %v4549
  %v5090 = vpop.f32.mrf.mxu0
  %v5091 = vadd.f32 %v4413, %v5090
  %v5092 = vpop.f32.mrf.mxu0
  %5093 = vmatprep.mubr.f32.mxu0 0.0
  %5094 = vmatmul.mubr.f32.gmra.mxu0 %v4552
  %v5095 = vpop.f32.mrf.mxu0
  %v5096 = vadd.f32 %v4413, %v5095
  %v5097 = vpop.f32.mrf.mxu0
  %5098 = vmatprep.mubr.f32.mxu0 0.0
  %5099 = vmatmul.mubr.f32.gmra.mxu0 %v4555
  %v5100 = vpop.f32.mrf.mxu0
  %v5101 = vadd.f32 %v4413, %v5100
  %v5102 = vpop.f32.mrf.mxu0
  %5103 = vmatprep.mubr.f32.mxu0 0.0
  %5104 = vmatmul.mubr.f32.gmra.mxu0 %v4558
  %v5105 = vpop.f32.mrf.mxu0
  %v5106 = vadd.f32 %v4413, %v5105
  %v5107 = vpop.f32.mrf.mxu0
  %5108 = vmatprep.mubr.f32.mxu0 0.0
  %5109 = vmatmul.mubr.f32.gmra.mxu0 %v4561
  %v5110 = vpop.f32.mrf.mxu0
  %v5111 = vadd.f32 %v4413, %v5110
  %v5112 = vpop.f32.mrf.mxu0
  %5113 = vmatprep.mubr.f32.mxu0 0.0
  %5114 = vmatmul.mubr.f32.gmra.mxu0 %v4564
  %v5115 = vpop.f32.mrf.mxu0
  %v5116 = vadd.f32 %v4413, %v5115
  %v5117 = vpop.f32.mrf.mxu0
  %5118 = vmatprep.mubr.f32.mxu0 0.0
  %5119 = vmatmul.mubr.f32.gmra.mxu0 %v4567
  %v5120 = vpop.f32.mrf.mxu0
  %v5121 = vadd.f32 %v4413, %v5120
  %v5122 = vpop.f32.mrf.mxu0
  %5123 = vmatprep.mubr.f32.mxu0 0.0
  %5124 = vmatmul.mubr.f32.gmra.mxu0 %v4570
  %v5125 = vpop.f32.mrf.mxu0
  %v5126 = vadd.f32 %v4413, %v5125
  %v5127 = vpop.f32.mrf.mxu0
  %5128 = vmatprep.mubr.f32.mxu0 0.0
  %5129 = vmatmul.mubr.f32.gmra.mxu0 %v4573
  %v5130 = vpop.f32.mrf.mxu0
  %v5131 = vadd.f32 %v4413, %v5130
  %v5132 = vpop.f32.mrf.mxu0
  %5133 = vmatprep.mubr.f32.mxu0 0.0
  %5134 = vmatmul.mubr.f32.gmra.mxu0 %v4576
  %v5135 = vpop.f32.mrf.mxu0
  %v5136 = vadd.f32 %v4413, %v5135
  %v5137 = vpop.f32.mrf.mxu0
  %5138 = vmatprep.mubr.f32.mxu0 0.0
  %5139 = vmatmul.mubr.f32.gmra.mxu0 %v4579
  %v5140 = vpop.f32.mrf.mxu0
  %v5141 = vadd.f32 %v4413, %v5140
  %v5142 = vpop.f32.mrf.mxu0
  %5143 = vmatprep.mubr.f32.mxu0 0.0
  %5144 = vmatmul.mubr.f32.gmra.mxu0 %v4582
  %v5145 = vpop.f32.mrf.mxu0
  %v5146 = vadd.f32 %v4413, %v5145
  %v5147 = vpop.f32.mrf.mxu0
  %5148 = vmatprep.mubr.f32.mxu0 0.0
  %5149 = vmatmul.mubr.f32.gmra.mxu0 %v4585
  %v5150 = vpop.f32.mrf.mxu0
  %v5151 = vadd.f32 %v4413, %v5150
  %v5152 = vpop.f32.mrf.mxu0
  %5153 = vmatprep.mubr.f32.mxu0 0.0
  %5154 = vmatmul.mubr.f32.gmra.mxu0 %v4588
  %v5155 = vpop.f32.mrf.mxu0
  %v5156 = vadd.f32 %v4413, %v5155
  %v5157 = vpop.f32.mrf.mxu0
  %5158 = vmatprep.mubr.f32.mxu0 0.0
  %5159 = vmatmul.mubr.f32.gmra.mxu0 %v4591
  %v5160 = vpop.f32.mrf.mxu0
  %v5161 = vadd.f32 %v4413, %v5160
  %v5162 = vpop.f32.mrf.mxu0
  %5163 = vmatprep.mubr.f32.mxu0 0.0
  %5164 = vmatmul.mubr.f32.gmra.mxu0 %v4594
  %v5165 = vpop.f32.mrf.mxu0
  %v5166 = vadd.f32 %v4413, %v5165
  %v5167 = vpop.f32.mrf.mxu0
  %5168 = vmatprep.mubr.f32.mxu0 0.0
  %5169 = vmatmul.mubr.f32.gmra.mxu0 %v4597
  %v5170 = vpop.f32.mrf.mxu0
  %v5171 = vadd.f32 %v4413, %v5170
  %v5172 = vpop.f32.mrf.mxu0
  %5173 = vmatprep.mubr.f32.mxu0 0.0
  %5174 = vmatmul.mubr.f32.gmra.mxu0 %v4600
  %v5175 = vpop.f32.mrf.mxu0
  %v5176 = vadd.f32 %v4413, %v5175
  %v5177 = vpop.f32.mrf.mxu0
  %5178 = vmatprep.mubr.f32.mxu0 0.0
  %5179 = vmatmul.mubr.f32.gmra.mxu0 %v4603
  %v5180 = vpop.f32.mrf.mxu0
  %v5181 = vadd.f32 %v4413, %v5180
  %v5182 = vpop.f32.mrf.mxu0
  %5183 = vmatprep.mubr.f32.mxu0 0.0
  %5184 = vmatmul.mubr.f32.gmra.mxu0 %v4606
  %v5185 = vpop.f32.mrf.mxu0
  %v5186 = vadd.f32 %v4413, %v5185
  %v5187 = vpop.f32.mrf.mxu0
  %5188 = vmatprep.mubr.f32.mxu0 0.0
  %5189 = vmatmul.mubr.f32.gmra.mxu0 %v4609
  %v5190 = vpop.f32.mrf.mxu0
  %v5191 = vadd.f32 %v4413, %v5190
  %v5192 = vpop.f32.mrf.mxu0
  %5193 = vmatprep.mubr.f32.mxu0 0.0
  %5194 = vmatmul.mubr.f32.gmra.mxu0 %v4612
  %v5195 = vpop.f32.mrf.mxu0
  %v5196 = vadd.f32 %v4413, %v5195
  %v5197 = vpop.f32.mrf.mxu0
  %5198 = vmatprep.mubr.f32.mxu0 0.0
  %5199 = vmatmul.mubr.f32.gmra.mxu0 %v4615
  %v5200 = vpop.f32.mrf.mxu0
  %v5201 = vadd.f32 %v4413, %v5200
  %v5202 = vpop.f32.mrf.mxu0
  %5203 = vmatprep.mubr.f32.mxu0 0.0
  %5204 = vmatmul.mubr.f32.gmra.mxu0 %v4618
  %v5205 = vpop.f32.mrf.mxu0
  %v5206 = vadd.f32 %v4413, %v5205
  %v5207 = vpop.f32.mrf.mxu0
  %5208 = vmatprep.mubr.f32.mxu0 0.0
  %5209 = vmatmul.mubr.f32.gmra.mxu0 %v4621
  %v5210 = vpop.f32.mrf.mxu0
  %v5211 = vadd.f32 %v4413, %v5210
  %v5212 = vpop.f32.mrf.mxu0
  %5213 = vmatprep.mubr.f32.mxu0 0.0
  %5214 = vmatmul.mubr.f32.gmra.mxu0 %v4624
  %v5215 = vpop.f32.mrf.mxu0
  %v5216 = vadd.f32 %v4413, %v5215
  %v5217 = vpop.f32.mrf.mxu0
  %5218 = vmatprep.mubr.f32.mxu0 0.0
  %5219 = vmatmul.mubr.f32.gmra.mxu0 %v4627
  %v5220 = vpop.f32.mrf.mxu0
  %v5221 = vadd.f32 %v4413, %v5220
  %v5222 = vpop.f32.mrf.mxu0
  %5223 = vmatprep.mubr.f32.mxu0 0.0
  %5224 = vmatmul.mubr.f32.gmra.mxu0 %v4630
  %v5225 = vpop.f32.mrf.mxu0
  %v5226 = vadd.f32 %v4413, %v5225
  %v5227 = vpop.f32.mrf.mxu0
  %5228 = vmatprep.mubr.f32.mxu0 0.0
  %5229 = vmatmul.mubr.f32.gmra.mxu0 %v4633
  %v5230 = vpop.f32.mrf.mxu0
  %v5231 = vadd.f32 %v4413, %v5230
  %v5232 = vpop.f32.mrf.mxu0
  %5233 = vmatprep.mubr.f32.mxu0 0.0
  %5234 = vmatmul.mubr.f32.gmra.mxu0 %v4636
  %v5235 = vpop.f32.mrf.mxu0
  %v5236 = vadd.f32 %v4413, %v5235
  %v5237 = vpop.f32.mrf.mxu0
  %5238 = vmatprep.mubr.f32.mxu0 0.0
  %5239 = vmatmul.mubr.f32.gmra.mxu0 %v4639
  %v5240 = vpop.f32.mrf.mxu0
  %v5241 = vadd.f32 %v4413, %v5240
  %v5242 = vpop.f32.mrf.mxu0
  %5243 = vmatprep.mubr.f32.mxu0 0.0
  %5244 = vmatmul.mubr.f32.gmra.mxu0 %v4642
  %v5245 = vpop.f32.mrf.mxu0
  %v5246 = vadd.f32 %v4413, %v5245
  %v5247 = vpop.f32.mrf.mxu0
  %5248 = vmatprep.mubr.f32.mxu0 0.0
  %5249 = vmatmul.mubr.f32.gmra.mxu0 %v4645
  %v5250 = vpop.f32.mrf.mxu0
  %v5251 = vadd.f32 %v4413, %v5250
  %v5252 = vpop.f32.mrf.mxu0
  %5253 = vmatprep.mubr.f32.mxu0 0.0
  %5254 = vmatmul.mubr.f32.gmra.mxu0 %v4648
  %v5255 = vpop.f32.mrf.mxu0
  %v5256 = vadd.f32 %v4413, %v5255
  %v5257 = vpop.f32.mrf.mxu0
  %5258 = vmatprep.mubr.f32.mxu0 0.0
  %5259 = vmatmul.mubr.f32.gmra.mxu0 %v4651
  %v5260 = vpop.f32.mrf.mxu0
  %v5261 = vadd.f32 %v4413, %v5260
  %v5262 = vpop.f32.mrf.mxu0
  %5263 = vmatprep.mubr.f32.mxu0 0.0
  %5264 = vmatmul.mubr.f32.gmra.mxu0 %v4654
  %v5265 = vpop.f32.mrf.mxu0
  %v5266 = vadd.f32 %v4413, %v5265
  %v5267 = vpop.f32.mrf.mxu0
  %5268 = vmatprep.mubr.f32.mxu0 0.0
  %5269 = vmatmul.mubr.f32.gmra.mxu0 %v4657
  %v5270 = vpop.f32.mrf.mxu0
  %v5271 = vadd.f32 %v4413, %v5270
  %v5272 = vpop.f32.mrf.mxu0
  %5273 = vmatprep.mubr.f32.mxu0 0.0
  %5274 = vmatmul.mubr.f32.gmra.mxu0 %v4660
  %v5275 = vpop.f32.mrf.mxu0
  %v5276 = vadd.f32 %v4413, %v5275
  %v5277 = vpop.f32.mrf.mxu0
  %5278 = vmatprep.mubr.f32.mxu0 0.0
  %5279 = vmatmul.mubr.f32.gmra.mxu0 %v4663
  %v5280 = vpop.f32.mrf.mxu0
  %v5281 = vadd.f32 %v4413, %v5280
  %v5282 = vpop.f32.mrf.mxu0
  %5283 = vmatprep.mubr.f32.mxu0 0.0
  %5284 = vmatmul.mubr.f32.gmra.mxu0 %v4666
  %v5285 = vpop.f32.mrf.mxu0
  %v5286 = vadd.f32 %v4413, %v5285
  %v5287 = vpop.f32.mrf.mxu0
  %5288 = vmatprep.mubr.f32.mxu0 0.0
  %5289 = vmatmul.mubr.f32.gmra.mxu0 %v4669
  %v5290 = vpop.f32.mrf.mxu0
  %v5291 = vadd.f32 %v4413, %v5290
  %v5292 = vpop.f32.mrf.mxu0
  %5293 = vmatprep.mubr.f32.mxu0 0.0
  %5294 = vmatmul.mubr.f32.gmra.mxu0 %v4672
  %v5295 = vpop.f32.mrf.mxu0
  %v5296 = vadd.f32 %v4413, %v5295
  %v5297 = vpop.f32.mrf.mxu0
  %5298 = vmatprep.mubr.f32.mxu0 0.0
  %5299 = vmatmul.mubr.f32.gmra.mxu0 %v4675
  %v5300 = vpop.f32.mrf.mxu0
  %v5301 = vadd.f32 %v4413, %v5300
  %v5302 = vpop.f32.mrf.mxu0
  %5303 = vmatprep.mubr.f32.mxu0 0.0
  %5304 = vmatmul.mubr.f32.gmra.mxu0 %v4678
  %v5305 = vpop.f32.mrf.mxu0
  %v5306 = vadd.f32 %v4413, %v5305
  %v5307 = vpop.f32.mrf.mxu0
  %5308 = vmatprep.mubr.f32.mxu0 0.0
  %5309 = vmatmul.mubr.f32.gmra.mxu0 %v4681
  %v5310 = vpop.f32.mrf.mxu0
  %v5311 = vadd.f32 %v4413, %v5310
  %v5312 = vpop.f32.mrf.mxu0
  %5313 = vmatprep.mubr.f32.mxu0 0.0
  %5314 = vmatmul.mubr.f32.gmra.mxu0 %v4684
  %v5315 = vpop.f32.mrf.mxu0
  %v5316 = vadd.f32 %v4413, %v5315
  %v5317 = vpop.f32.mrf.mxu0
  %5318 = vmatprep.mubr.f32.mxu0 0.0
  %5319 = vmatmul.mubr.f32.gmra.mxu0 %v4687
  %v5320 = vpop.f32.mrf.mxu0
  %v5321 = vadd.f32 %v4413, %v5320
  %v5322 = vpop.f32.mrf.mxu0
  %5323 = vmatprep.mubr.f32.mxu0 0.0
  %5324 = vmatmul.mubr.f32.gmra.mxu0 %v4690
  %v5325 = vpop.f32.mrf.mxu0
  %v5326 = vadd.f32 %v4413, %v5325
  %v5327 = vpop.f32.mrf.mxu0
  %5328 = vmatprep.mubr.f32.mxu0 0.0
  %5329 = vmatmul.mubr.f32.gmra.mxu0 %v4693
  %v5330 = vpop.f32.mrf.mxu0
  %v5331 = vadd.f32 %v4413, %v5330
  %v5332 = vpop.f32.mrf.mxu0
  %5333 = vmatprep.mubr.f32.mxu0 0.0
  %5334 = vmatmul.mubr.f32.gmra.mxu0 %v4696
  %v5335 = vpop.f32.mrf.mxu0
  %v5336 = vadd.f32 %v4413, %v5335
  %v5337 = vpop.f32.mrf.mxu0
  %5338 = vmatprep.mubr.f32.mxu0 0.0
  %5339 = vmatmul.mubr.f32.gmra.mxu0 %v4699
  %v5340 = vpop.f32.mrf.mxu0
  %v5341 = vadd.f32 %v4413, %v5340
  %v5342 = vpop.f32.mrf.mxu0
  %5343 = vmatprep.mubr.f32.mxu0 0.0
  %5344 = vmatmul.mubr.f32.gmra.mxu0 %v4702
  %v5345 = vpop.f32.mrf.mxu0
  %v5346 = vadd.f32 %v4413, %v5345
  %v5347 = vpop.f32.mrf.mxu0
  %5348 = vmatprep.mubr.f32.mxu0 0.0
  %5349 = vmatmul.mubr.f32.gmra.mxu0 %v4705
  %v5350 = vpop.f32.mrf.mxu0
  %v5351 = vadd.f32 %v4413, %v5350
  %v5352 = vpop.f32.mrf.mxu0
  %5353 = vmatprep.mubr.f32.mxu0 0.0
  %5354 = vmatmul.mubr.f32.gmra.mxu0 %v4708
  %v5355 = vpop.f32.mrf.mxu0
  %v5356 = vadd.f32 %v4413, %v5355
  %v5357 = vpop.f32.mrf.mxu0
  %5358 = vmatprep.mubr.f32.mxu0 0.0
  %5359 = vmatmul.mubr.f32.gmra.mxu0 %v4711
  %v5360 = vpop.f32.mrf.mxu0
  %v5361 = vadd.f32 %v4413, %v5360
  %v5362 = vpop.f32.mrf.mxu0
  %5363 = vmatprep.mubr.f32.mxu0 0.0
  %5364 = vmatmul.mubr.f32.gmra.mxu0 %v4714
  %v5365 = vpop.f32.mrf.mxu0
  %v5366 = vadd.f32 %v4413, %v5365
  %v5367 = vpop.f32.mrf.mxu0
  %5368 = vmatprep.mubr.f32.mxu0 0.0
  %5369 = vmatmul.mubr.f32.gmra.mxu0 %v4717
  %v5370 = vpop.f32.mrf.mxu0
  %v5371 = vadd.f32 %v4413, %v5370
  %v5372 = vpop.f32.mrf.mxu0
  %5373 = vmatprep.mubr.f32.mxu0 0.0
  %5374 = vmatmul.mubr.f32.gmra.mxu0 %v4720
  %v5375 = vpop.f32.mrf.mxu0
  %v5376 = vadd.f32 %v4413, %v5375
  %v5377 = vpop.f32.mrf.mxu0
  %5378 = vmatprep.mubr.f32.mxu0 0.0
  %5379 = vmatmul.mubr.f32.gmra.mxu0 %v4723
  %v5380 = vpop.f32.mrf.mxu0
  %v5381 = vadd.f32 %v4413, %v5380
  %v5382 = vpop.f32.mrf.mxu0
  %5383 = vmatprep.mubr.f32.mxu0 0.0
  %5384 = vmatmul.mubr.f32.gmra.mxu0 %v4726
  %v5385 = vpop.f32.mrf.mxu0
  %v5386 = vadd.f32 %v4413, %v5385
  %v5387 = vpop.f32.mrf.mxu0
  %5388 = vmatprep.mubr.f32.mxu0 0.0
  %5389 = vmatmul.mubr.f32.gmra.mxu0 %v4729
  %v5390 = vpop.f32.mrf.mxu0
  %v5391 = vadd.f32 %v4413, %v5390
  %v5392 = vpop.f32.mrf.mxu0
  %5393 = vmatprep.mubr.f32.mxu0 0.0
  %5394 = vmatmul.mubr.f32.gmra.mxu0 %v4732
  %v5395 = vpop.f32.mrf.mxu0
  %v5396 = vadd.f32 %v4413, %v5395
  %v5397 = vpop.f32.mrf.mxu0
  %5398 = vmatprep.mubr.f32.mxu0 0.0
  %5399 = vmatmul.mubr.f32.gmra.mxu0 %v4735
  %v5400 = vpop.f32.mrf.mxu0
  %v5401 = vadd.f32 %v4413, %v5400
  %v5402 = vpop.f32.mrf.mxu0
  %5403 = vmatprep.mubr.f32.mxu0 0.0
  %5404 = vmatmul.mubr.f32.gmra.mxu0 %v4738
  %v5405 = vpop.f32.mrf.mxu0
  %v5406 = vadd.f32 %v4413, %v5405
  %v5407 = vpop.f32.mrf.mxu0
  %5408 = vmatprep.mubr.f32.mxu0 0.0
  %5409 = vmatmul.mubr.f32.gmra.mxu0 %v4741
  %v5410 = vpop.f32.mrf.mxu0
  %v5411 = vadd.f32 %v4413, %v5410
  %v5412 = vpop.f32.mrf.mxu0
  %5413 = vmatprep.mubr.f32.mxu0 0.0
  %5414 = vmatmul.mubr.f32.gmra.mxu0 %v4744
  %v5415 = vpop.f32.mrf.mxu0
  %v5416 = vadd.f32 %v4413, %v5415
  %v5417 = vpop.f32.mrf.mxu0
  %5418 = vmatprep.mubr.f32.mxu0 0.0
  %5419 = vmatmul.mubr.f32.gmra.mxu0 %v4747
  %v5420 = vpop.f32.mrf.mxu0
  %v5421 = vadd.f32 %v4413, %v5420
  %v5422 = vpop.f32.mrf.mxu0
  %5423 = vmatprep.mubr.f32.mxu0 0.0
  %5424 = vmatmul.mubr.f32.gmra.mxu0 %v4750
  %v5425 = vpop.f32.mrf.mxu0
  %v5426 = vadd.f32 %v4413, %v5425
  %v5427 = vpop.f32.mrf.mxu0
  %5428 = vmatprep.mubr.f32.mxu0 0.0
  %5429 = vmatmul.mubr.f32.gmra.mxu0 %v4753
  %v5430 = vpop.f32.mrf.mxu0
  %v5431 = vadd.f32 %v4413, %v5430
  %v5432 = vpop.f32.mrf.mxu0
  %5433 = vmatprep.mubr.f32.mxu0 0.0
  %5434 = vmatmul.mubr.f32.gmra.mxu0 %v4756
  %v5435 = vpop.f32.mrf.mxu0
  %v5436 = vadd.f32 %v4413, %v5435
  %v5437 = vpop.f32.mrf.mxu0
  %5438 = vmatprep.mubr.f32.mxu0 0.0
  %5439 = vmatmul.mubr.f32.gmra.mxu0 %v4759
  %v5440 = vpop.f32.mrf.mxu0
  %v5441 = vadd.f32 %v4413, %v5440
  %v5442 = vpop.f32.mrf.mxu0
  %5443 = vmatprep.mubr.f32.mxu0 0.0
  %5444 = vmatmul.mubr.f32.gmra.mxu0 %v4762
  %v5445 = vpop.f32.mrf.mxu0
  %v5446 = vadd.f32 %v4413, %v5445
  %v5447 = vpop.f32.mrf.mxu0
  %5448 = vmatprep.mubr.f32.mxu0 0.0
  %5449 = vmatmul.mubr.f32.gmra.mxu0 %v4765
  %v5450 = vpop.f32.mrf.mxu0
  %v5451 = vadd.f32 %v4413, %v5450
  %v5452 = vpop.f32.mrf.mxu0
  %5453 = vmatprep.mubr.f32.mxu0 0.0
  %5454 = vmatmul.mubr.f32.gmra.mxu0 %v4768
  %v5455 = vpop.f32.mrf.mxu0
  %v5456 = vadd.f32 %v4413, %v5455
  %v5457 = vpop.f32.mrf.mxu0
  %5458 = vmatprep.mubr.f32.mxu0 0.0
  %5459 = vmatmul.mubr.f32.gmra.mxu0 %v4771
  %v5460 = vpop.f32.mrf.mxu0
  %v5461 = vadd.f32 %v4413, %v5460
  %v5462 = vpop.f32.mrf.mxu0
  %5463 = vmatprep.mubr.f32.mxu0 0.0
  %5464 = vmatmul.mubr.f32.gmra.mxu0 %v4774
  %v5465 = vpop.f32.mrf.mxu0
  %v5466 = vadd.f32 %v4413, %v5465
  %v5467 = vpop.f32.mrf.mxu0
  %5468 = vmatprep.mubr.f32.mxu0 0.0
  %5469 = vmatmul.mubr.f32.gmra.mxu0 %v4777
  %v5470 = vpop.f32.mrf.mxu0
  %v5471 = vadd.f32 %v4413, %v5470
  %v5472 = vpop.f32.mrf.mxu0
  %5473 = vmatprep.mubr.f32.mxu0 0.0
  %5474 = vmatmul.mubr.f32.gmra.mxu0 %v4780
  %v5475 = vpop.f32.mrf.mxu0
  %v5476 = vadd.f32 %v4413, %v5475
  %v5477 = vpop.f32.mrf.mxu0
  %5478 = vmatprep.mubr.f32.mxu0 0.0
  %5479 = vmatmul.mubr.f32.gmra.mxu0 %v4783
  %v5480 = vpop.f32.mrf.mxu0
  %v5481 = vadd.f32 %v4413, %v5480
  %v5482 = vpop.f32.mrf.mxu0
  %5483 = vmatprep.mubr.f32.mxu0 0.0
  %5484 = vmatmul.mubr.f32.gmra.mxu0 %v4786
  %v5485 = vpop.f32.mrf.mxu0
  %v5486 = vadd.f32 %v4413, %v5485
  %v5487 = vpop.f32.mrf.mxu0
  %5488 = vmatprep.mubr.f32.mxu0 0.0
  %5489 = vmatmul.mubr.f32.gmra.mxu0 %v4789
  %v5490 = vpop.f32.mrf.mxu0
  %v5491 = vadd.f32 %v4413, %v5490
  %v5492 = vpop.f32.mrf.mxu0
  %5493 = vmatprep.mubr.f32.mxu0 0.0
  %5494 = vmatmul.mubr.f32.gmra.mxu0 %v4792
  %v5495 = vpop.f32.mrf.mxu0
  %v5496 = vadd.f32 %v4413, %v5495
  %v5497 = vpop.f32.mrf.mxu0
  %5498 = vmatprep.mubr.f32.mxu0 0.0
  %5499 = vmatmul.mubr.f32.gmra.mxu0 %v4795
  %v5500 = vpop.f32.mrf.mxu0
  %v5501 = vadd.f32 %v4413, %v5500
  %v5502 = vpop.f32.mrf.mxu0
  %5503 = vmatprep.mubr.f32.mxu0 0.0
  %5504 = vmatmul.mubr.f32.gmra.mxu0 %v4798
  %v5505 = vpop.f32.mrf.mxu0
  %v5506 = vadd.f32 %v4413, %v5505
  %v5507 = vpop.f32.mrf.mxu0
  %5508 = vdwg.mxu0
  %v5509 = vsel %vm4415, %v4871, -inf
  %v5510 = vsel %vm4415, %v4876, -inf
  %v5511 = vmax.f32 %v5509, %v5510
  %v5512 = vrot.slane %v5511, 4
  %v5513 = vmax.f32 %v5511, %v5512
  %v5514 = vrot.slane %v5513, 2
  %v5515 = vmax.f32 %v5513, %v5514
  %v5516 = vrot.slane %v5515, 1
  %v5517 = vmax.f32 %v5515, %v5516
  %v5518 = vsel %vm4415, %v4881, -inf
  %v5519 = vsel %vm4415, %v4886, -inf
  %v5520 = vmax.f32 %v5518, %v5519
  %v5521 = vrot.slane %v5520, 4
  %v5522 = vmax.f32 %v5520, %v5521
  %v5523 = vrot.slane %v5522, 2
  %v5524 = vmax.f32 %v5522, %v5523
  %v5525 = vrot.slane %v5524, 1
  %v5526 = vmax.f32 %v5524, %v5525
  %v5527 = vsel %vm4415, %v4891, -inf
  %v5528 = vsel %vm4415, %v4896, -inf
  %v5529 = vmax.f32 %v5527, %v5528
  %v5530 = vrot.slane %v5529, 4
  %v5531 = vmax.f32 %v5529, %v5530
  %v5532 = vrot.slane %v5531, 2
  %v5533 = vmax.f32 %v5531, %v5532
  %v5534 = vrot.slane %v5533, 1
  %v5535 = vmax.f32 %v5533, %v5534
  %v5536 = vsel %vm4415, %v4901, -inf
  %v5537 = vsel %vm4415, %v4906, -inf
  %v5538 = vmax.f32 %v5536, %v5537
  %v5539 = vrot.slane %v5538, 4
  %v5540 = vmax.f32 %v5538, %v5539
  %v5541 = vrot.slane %v5540, 2
  %v5542 = vmax.f32 %v5540, %v5541
  %v5543 = vrot.slane %v5542, 1
  %v5544 = vmax.f32 %v5542, %v5543
  %v5545 = vsel %vm4415, %v4911, -inf
  %v5546 = vsel %vm4415, %v4916, -inf
  %v5547 = vmax.f32 %v5545, %v5546
  %v5548 = vrot.slane %v5547, 4
  %v5549 = vmax.f32 %v5547, %v5548
  %v5550 = vrot.slane %v5549, 2
  %v5551 = vmax.f32 %v5549, %v5550
  %v5552 = vrot.slane %v5551, 1
  %v5553 = vmax.f32 %v5551, %v5552
  %v5554 = vsel %vm4415, %v4921, -inf
  %v5555 = vsel %vm4415, %v4926, -inf
  %v5556 = vmax.f32 %v5554, %v5555
  %v5557 = vrot.slane %v5556, 4
  %v5558 = vmax.f32 %v5556, %v5557
  %v5559 = vrot.slane %v5558, 2
  %v5560 = vmax.f32 %v5558, %v5559
  %v5561 = vrot.slane %v5560, 1
  %v5562 = vmax.f32 %v5560, %v5561
  %v5563 = vsel %vm4415, %v4931, -inf
  %v5564 = vsel %vm4415, %v4936, -inf
  %v5565 = vmax.f32 %v5563, %v5564
  %v5566 = vrot.slane %v5565, 4
  %v5567 = vmax.f32 %v5565, %v5566
  %v5568 = vrot.slane %v5567, 2
  %v5569 = vmax.f32 %v5567, %v5568
  %v5570 = vrot.slane %v5569, 1
  %v5571 = vmax.f32 %v5569, %v5570
  %v5572 = vsel %vm4415, %v4941, -inf
  %v5573 = vsel %vm4415, %v4946, -inf
  %v5574 = vmax.f32 %v5572, %v5573
  %v5575 = vrot.slane %v5574, 4
  %v5576 = vmax.f32 %v5574, %v5575
  %v5577 = vrot.slane %v5576, 2
  %v5578 = vmax.f32 %v5576, %v5577
  %v5579 = vrot.slane %v5578, 1
  %v5580 = vmax.f32 %v5578, %v5579
  %v5581 = vsel %vm4415, %v4951, -inf
  %v5582 = vsel %vm4415, %v4956, -inf
  %v5583 = vmax.f32 %v5581, %v5582
  %v5584 = vrot.slane %v5583, 4
  %v5585 = vmax.f32 %v5583, %v5584
  %v5586 = vrot.slane %v5585, 2
  %v5587 = vmax.f32 %v5585, %v5586
  %v5588 = vrot.slane %v5587, 1
  %v5589 = vmax.f32 %v5587, %v5588
  %v5590 = vsel %vm4415, %v4961, -inf
  %v5591 = vsel %vm4415, %v4966, -inf
  %v5592 = vmax.f32 %v5590, %v5591
  %v5593 = vrot.slane %v5592, 4
  %v5594 = vmax.f32 %v5592, %v5593
  %v5595 = vrot.slane %v5594, 2
  %v5596 = vmax.f32 %v5594, %v5595
  %v5597 = vrot.slane %v5596, 1
  %v5598 = vmax.f32 %v5596, %v5597
  %v5599 = vsel %vm4415, %v4971, -inf
  %v5600 = vsel %vm4415, %v4976, -inf
  %v5601 = vmax.f32 %v5599, %v5600
  %v5602 = vrot.slane %v5601, 4
  %v5603 = vmax.f32 %v5601, %v5602
  %v5604 = vrot.slane %v5603, 2
  %v5605 = vmax.f32 %v5603, %v5604
  %v5606 = vrot.slane %v5605, 1
  %v5607 = vmax.f32 %v5605, %v5606
  %v5608 = vsel %vm4415, %v4981, -inf
  %v5609 = vsel %vm4415, %v4986, -inf
  %v5610 = vmax.f32 %v5608, %v5609
  %v5611 = vrot.slane %v5610, 4
  %v5612 = vmax.f32 %v5610, %v5611
  %v5613 = vrot.slane %v5612, 2
  %v5614 = vmax.f32 %v5612, %v5613
  %v5615 = vrot.slane %v5614, 1
  %v5616 = vmax.f32 %v5614, %v5615
  %v5617 = vsel %vm4415, %v4991, -inf
  %v5618 = vsel %vm4415, %v4996, -inf
  %v5619 = vmax.f32 %v5617, %v5618
  %v5620 = vrot.slane %v5619, 4
  %v5621 = vmax.f32 %v5619, %v5620
  %v5622 = vrot.slane %v5621, 2
  %v5623 = vmax.f32 %v5621, %v5622
  %v5624 = vrot.slane %v5623, 1
  %v5625 = vmax.f32 %v5623, %v5624
  %v5626 = vsel %vm4415, %v5001, -inf
  %v5627 = vsel %vm4415, %v5006, -inf
  %v5628 = vmax.f32 %v5626, %v5627
  %v5629 = vrot.slane %v5628, 4
  %v5630 = vmax.f32 %v5628, %v5629
  %v5631 = vrot.slane %v5630, 2
  %v5632 = vmax.f32 %v5630, %v5631
  %v5633 = vrot.slane %v5632, 1
  %v5634 = vmax.f32 %v5632, %v5633
  %v5635 = vsel %vm4415, %v5011, -inf
  %v5636 = vsel %vm4415, %v5016, -inf
  %v5637 = vmax.f32 %v5635, %v5636
  %v5638 = vrot.slane %v5637, 4
  %v5639 = vmax.f32 %v5637, %v5638
  %v5640 = vrot.slane %v5639, 2
  %v5641 = vmax.f32 %v5639, %v5640
  %v5642 = vrot.slane %v5641, 1
  %v5643 = vmax.f32 %v5641, %v5642
  %v5644 = vsel %vm4415, %v5021, -inf
  %v5645 = vsel %vm4415, %v5026, -inf
  %v5646 = vmax.f32 %v5644, %v5645
  %v5647 = vrot.slane %v5646, 4
  %v5648 = vmax.f32 %v5646, %v5647
  %v5649 = vrot.slane %v5648, 2
  %v5650 = vmax.f32 %v5648, %v5649
  %v5651 = vrot.slane %v5650, 1
  %v5652 = vmax.f32 %v5650, %v5651
  %v5653 = vsel %vm4415, %v5031, -inf
  %v5654 = vsel %vm4415, %v5036, -inf
  %v5655 = vmax.f32 %v5653, %v5654
  %v5656 = vrot.slane %v5655, 4
  %v5657 = vmax.f32 %v5655, %v5656
  %v5658 = vrot.slane %v5657, 2
  %v5659 = vmax.f32 %v5657, %v5658
  %v5660 = vrot.slane %v5659, 1
  %v5661 = vmax.f32 %v5659, %v5660
  %v5662 = vsel %vm4415, %v5041, -inf
  %v5663 = vsel %vm4415, %v5046, -inf
  %v5664 = vmax.f32 %v5662, %v5663
  %v5665 = vrot.slane %v5664, 4
  %v5666 = vmax.f32 %v5664, %v5665
  %v5667 = vrot.slane %v5666, 2
  %v5668 = vmax.f32 %v5666, %v5667
  %v5669 = vrot.slane %v5668, 1
  %v5670 = vmax.f32 %v5668, %v5669
  %v5671 = vsel %vm4415, %v5051, -inf
  %v5672 = vsel %vm4415, %v5056, -inf
  %v5673 = vmax.f32 %v5671, %v5672
  %v5674 = vrot.slane %v5673, 4
  %v5675 = vmax.f32 %v5673, %v5674
  %v5676 = vrot.slane %v5675, 2
  %v5677 = vmax.f32 %v5675, %v5676
  %v5678 = vrot.slane %v5677, 1
  %v5679 = vmax.f32 %v5677, %v5678
  %v5680 = vsel %vm4415, %v5061, -inf
  %v5681 = vsel %vm4415, %v5066, -inf
  %v5682 = vmax.f32 %v5680, %v5681
  %v5683 = vrot.slane %v5682, 4
  %v5684 = vmax.f32 %v5682, %v5683
  %v5685 = vrot.slane %v5684, 2
  %v5686 = vmax.f32 %v5684, %v5685
  %v5687 = vrot.slane %v5686, 1
  %v5688 = vmax.f32 %v5686, %v5687
  %v5689 = vsel %vm4415, %v5071, -inf
  %v5690 = vsel %vm4415, %v5076, -inf
  %v5691 = vmax.f32 %v5689, %v5690
  %v5692 = vrot.slane %v5691, 4
  %v5693 = vmax.f32 %v5691, %v5692
  %v5694 = vrot.slane %v5693, 2
  %v5695 = vmax.f32 %v5693, %v5694
  %v5696 = vrot.slane %v5695, 1
  %v5697 = vmax.f32 %v5695, %v5696
  %v5698 = vsel %vm4415, %v5081, -inf
  %v5699 = vsel %vm4415, %v5086, -inf
  %v5700 = vmax.f32 %v5698, %v5699
  %v5701 = vrot.slane %v5700, 4
  %v5702 = vmax.f32 %v5700, %v5701
  %v5703 = vrot.slane %v5702, 2
  %v5704 = vmax.f32 %v5702, %v5703
  %v5705 = vrot.slane %v5704, 1
  %v5706 = vmax.f32 %v5704, %v5705
  %v5707 = vsel %vm4415, %v5091, -inf
  %v5708 = vsel %vm4415, %v5096, -inf
  %v5709 = vmax.f32 %v5707, %v5708
  %v5710 = vrot.slane %v5709, 4
  %v5711 = vmax.f32 %v5709, %v5710
  %v5712 = vrot.slane %v5711, 2
  %v5713 = vmax.f32 %v5711, %v5712
  %v5714 = vrot.slane %v5713, 1
  %v5715 = vmax.f32 %v5713, %v5714
  %v5716 = vsel %vm4415, %v5101, -inf
  %v5717 = vsel %vm4415, %v5106, -inf
  %v5718 = vmax.f32 %v5716, %v5717
  %v5719 = vrot.slane %v5718, 4
  %v5720 = vmax.f32 %v5718, %v5719
  %v5721 = vrot.slane %v5720, 2
  %v5722 = vmax.f32 %v5720, %v5721
  %v5723 = vrot.slane %v5722, 1
  %v5724 = vmax.f32 %v5722, %v5723
  %v5725 = vsel %vm4415, %v5111, -inf
  %v5726 = vsel %vm4415, %v5116, -inf
  %v5727 = vmax.f32 %v5725, %v5726
  %v5728 = vrot.slane %v5727, 4
  %v5729 = vmax.f32 %v5727, %v5728
  %v5730 = vrot.slane %v5729, 2
  %v5731 = vmax.f32 %v5729, %v5730
  %v5732 = vrot.slane %v5731, 1
  %v5733 = vmax.f32 %v5731, %v5732
  %v5734 = vsel %vm4415, %v5121, -inf
  %v5735 = vsel %vm4415, %v5126, -inf
  %v5736 = vmax.f32 %v5734, %v5735
  %v5737 = vrot.slane %v5736, 4
  %v5738 = vmax.f32 %v5736, %v5737
  %v5739 = vrot.slane %v5738, 2
  %v5740 = vmax.f32 %v5738, %v5739
  %v5741 = vrot.slane %v5740, 1
  %v5742 = vmax.f32 %v5740, %v5741
  %v5743 = vsel %vm4415, %v5131, -inf
  %v5744 = vsel %vm4415, %v5136, -inf
  %v5745 = vmax.f32 %v5743, %v5744
  %v5746 = vrot.slane %v5745, 4
  %v5747 = vmax.f32 %v5745, %v5746
  %v5748 = vrot.slane %v5747, 2
  %v5749 = vmax.f32 %v5747, %v5748
  %v5750 = vrot.slane %v5749, 1
  %v5751 = vmax.f32 %v5749, %v5750
  %v5752 = vsel %vm4415, %v5141, -inf
  %v5753 = vsel %vm4415, %v5146, -inf
  %v5754 = vmax.f32 %v5752, %v5753
  %v5755 = vrot.slane %v5754, 4
  %v5756 = vmax.f32 %v5754, %v5755
  %v5757 = vrot.slane %v5756, 2
  %v5758 = vmax.f32 %v5756, %v5757
  %v5759 = vrot.slane %v5758, 1
  %v5760 = vmax.f32 %v5758, %v5759
  %v5761 = vsel %vm4415, %v5151, -inf
  %v5762 = vsel %vm4415, %v5156, -inf
  %v5763 = vmax.f32 %v5761, %v5762
  %v5764 = vrot.slane %v5763, 4
  %v5765 = vmax.f32 %v5763, %v5764
  %v5766 = vrot.slane %v5765, 2
  %v5767 = vmax.f32 %v5765, %v5766
  %v5768 = vrot.slane %v5767, 1
  %v5769 = vmax.f32 %v5767, %v5768
  %v5770 = vsel %vm4415, %v5161, -inf
  %v5771 = vsel %vm4415, %v5166, -inf
  %v5772 = vmax.f32 %v5770, %v5771
  %v5773 = vrot.slane %v5772, 4
  %v5774 = vmax.f32 %v5772, %v5773
  %v5775 = vrot.slane %v5774, 2
  %v5776 = vmax.f32 %v5774, %v5775
  %v5777 = vrot.slane %v5776, 1
  %v5778 = vmax.f32 %v5776, %v5777
  %v5779 = vsel %vm4415, %v5171, -inf
  %v5780 = vsel %vm4415, %v5176, -inf
  %v5781 = vmax.f32 %v5779, %v5780
  %v5782 = vrot.slane %v5781, 4
  %v5783 = vmax.f32 %v5781, %v5782
  %v5784 = vrot.slane %v5783, 2
  %v5785 = vmax.f32 %v5783, %v5784
  %v5786 = vrot.slane %v5785, 1
  %v5787 = vmax.f32 %v5785, %v5786
  %v5788 = vsel %vm4415, %v5181, -inf
  %v5789 = vsel %vm4415, %v5186, -inf
  %v5790 = vmax.f32 %v5788, %v5789
  %v5791 = vrot.slane %v5790, 4
  %v5792 = vmax.f32 %v5790, %v5791
  %v5793 = vrot.slane %v5792, 2
  %v5794 = vmax.f32 %v5792, %v5793
  %v5795 = vrot.slane %v5794, 1
  %v5796 = vmax.f32 %v5794, %v5795
  %v5797 = vsel %vm4415, %v5191, -inf
  %v5798 = vsel %vm4415, %v5196, -inf
  %v5799 = vmax.f32 %v5797, %v5798
  %v5800 = vrot.slane %v5799, 4
  %v5801 = vmax.f32 %v5799, %v5800
  %v5802 = vrot.slane %v5801, 2
  %v5803 = vmax.f32 %v5801, %v5802
  %v5804 = vrot.slane %v5803, 1
  %v5805 = vmax.f32 %v5803, %v5804
  %v5806 = vsel %vm4415, %v5201, -inf
  %v5807 = vsel %vm4415, %v5206, -inf
  %v5808 = vmax.f32 %v5806, %v5807
  %v5809 = vrot.slane %v5808, 4
  %v5810 = vmax.f32 %v5808, %v5809
  %v5811 = vrot.slane %v5810, 2
  %v5812 = vmax.f32 %v5810, %v5811
  %v5813 = vrot.slane %v5812, 1
  %v5814 = vmax.f32 %v5812, %v5813
  %v5815 = vsel %vm4415, %v5211, -inf
  %v5816 = vsel %vm4415, %v5216, -inf
  %v5817 = vmax.f32 %v5815, %v5816
  %v5818 = vrot.slane %v5817, 4
  %v5819 = vmax.f32 %v5817, %v5818
  %v5820 = vrot.slane %v5819, 2
  %v5821 = vmax.f32 %v5819, %v5820
  %v5822 = vrot.slane %v5821, 1
  %v5823 = vmax.f32 %v5821, %v5822
  %v5824 = vsel %vm4415, %v5221, -inf
  %v5825 = vsel %vm4415, %v5226, -inf
  %v5826 = vmax.f32 %v5824, %v5825
  %v5827 = vrot.slane %v5826, 4
  %v5828 = vmax.f32 %v5826, %v5827
  %v5829 = vrot.slane %v5828, 2
  %v5830 = vmax.f32 %v5828, %v5829
  %v5831 = vrot.slane %v5830, 1
  %v5832 = vmax.f32 %v5830, %v5831
  %v5833 = vsel %vm4415, %v5231, -inf
  %v5834 = vsel %vm4415, %v5236, -inf
  %v5835 = vmax.f32 %v5833, %v5834
  %v5836 = vrot.slane %v5835, 4
  %v5837 = vmax.f32 %v5835, %v5836
  %v5838 = vrot.slane %v5837, 2
  %v5839 = vmax.f32 %v5837, %v5838
  %v5840 = vrot.slane %v5839, 1
  %v5841 = vmax.f32 %v5839, %v5840
  %v5842 = vsel %vm4415, %v5241, -inf
  %v5843 = vsel %vm4415, %v5246, -inf
  %v5844 = vmax.f32 %v5842, %v5843
  %v5845 = vrot.slane %v5844, 4
  %v5846 = vmax.f32 %v5844, %v5845
  %v5847 = vrot.slane %v5846, 2
  %v5848 = vmax.f32 %v5846, %v5847
  %v5849 = vrot.slane %v5848, 1
  %v5850 = vmax.f32 %v5848, %v5849
  %v5851 = vsel %vm4415, %v5251, -inf
  %v5852 = vsel %vm4415, %v5256, -inf
  %v5853 = vmax.f32 %v5851, %v5852
  %v5854 = vrot.slane %v5853, 4
  %v5855 = vmax.f32 %v5853, %v5854
  %v5856 = vrot.slane %v5855, 2
  %v5857 = vmax.f32 %v5855, %v5856
  %v5858 = vrot.slane %v5857, 1
  %v5859 = vmax.f32 %v5857, %v5858
  %v5860 = vsel %vm4415, %v5261, -inf
  %v5861 = vsel %vm4415, %v5266, -inf
  %v5862 = vmax.f32 %v5860, %v5861
  %v5863 = vrot.slane %v5862, 4
  %v5864 = vmax.f32 %v5862, %v5863
  %v5865 = vrot.slane %v5864, 2
  %v5866 = vmax.f32 %v5864, %v5865
  %v5867 = vrot.slane %v5866, 1
  %v5868 = vmax.f32 %v5866, %v5867
  %v5869 = vsel %vm4415, %v5271, -inf
  %v5870 = vsel %vm4415, %v5276, -inf
  %v5871 = vmax.f32 %v5869, %v5870
  %v5872 = vrot.slane %v5871, 4
  %v5873 = vmax.f32 %v5871, %v5872
  %v5874 = vrot.slane %v5873, 2
  %v5875 = vmax.f32 %v5873, %v5874
  %v5876 = vrot.slane %v5875, 1
  %v5877 = vmax.f32 %v5875, %v5876
  %v5878 = vsel %vm4415, %v5281, -inf
  %v5879 = vsel %vm4415, %v5286, -inf
  %v5880 = vmax.f32 %v5878, %v5879
  %v5881 = vrot.slane %v5880, 4
  %v5882 = vmax.f32 %v5880, %v5881
  %v5883 = vrot.slane %v5882, 2
  %v5884 = vmax.f32 %v5882, %v5883
  %v5885 = vrot.slane %v5884, 1
  %v5886 = vmax.f32 %v5884, %v5885
  %v5887 = vsel %vm4415, %v5291, -inf
  %v5888 = vsel %vm4415, %v5296, -inf
  %v5889 = vmax.f32 %v5887, %v5888
  %v5890 = vrot.slane %v5889, 4
  %v5891 = vmax.f32 %v5889, %v5890
  %v5892 = vrot.slane %v5891, 2
  %v5893 = vmax.f32 %v5891, %v5892
  %v5894 = vrot.slane %v5893, 1
  %v5895 = vmax.f32 %v5893, %v5894
  %v5896 = vsel %vm4415, %v5301, -inf
  %v5897 = vsel %vm4415, %v5306, -inf
  %v5898 = vmax.f32 %v5896, %v5897
  %v5899 = vrot.slane %v5898, 4
  %v5900 = vmax.f32 %v5898, %v5899
  %v5901 = vrot.slane %v5900, 2
  %v5902 = vmax.f32 %v5900, %v5901
  %v5903 = vrot.slane %v5902, 1
  %v5904 = vmax.f32 %v5902, %v5903
  %v5905 = vsel %vm4415, %v5311, -inf
  %v5906 = vsel %vm4415, %v5316, -inf
  %v5907 = vmax.f32 %v5905, %v5906
  %v5908 = vrot.slane %v5907, 4
  %v5909 = vmax.f32 %v5907, %v5908
  %v5910 = vrot.slane %v5909, 2
  %v5911 = vmax.f32 %v5909, %v5910
  %v5912 = vrot.slane %v5911, 1
  %v5913 = vmax.f32 %v5911, %v5912
  %v5914 = vsel %vm4415, %v5321, -inf
  %v5915 = vsel %vm4415, %v5326, -inf
  %v5916 = vmax.f32 %v5914, %v5915
  %v5917 = vrot.slane %v5916, 4
  %v5918 = vmax.f32 %v5916, %v5917
  %v5919 = vrot.slane %v5918, 2
  %v5920 = vmax.f32 %v5918, %v5919
  %v5921 = vrot.slane %v5920, 1
  %v5922 = vmax.f32 %v5920, %v5921
  %v5923 = vsel %vm4415, %v5331, -inf
  %v5924 = vsel %vm4415, %v5336, -inf
  %v5925 = vmax.f32 %v5923, %v5924
  %v5926 = vrot.slane %v5925, 4
  %v5927 = vmax.f32 %v5925, %v5926
  %v5928 = vrot.slane %v5927, 2
  %v5929 = vmax.f32 %v5927, %v5928
  %v5930 = vrot.slane %v5929, 1
  %v5931 = vmax.f32 %v5929, %v5930
  %v5932 = vsel %vm4415, %v5341, -inf
  %v5933 = vsel %vm4415, %v5346, -inf
  %v5934 = vmax.f32 %v5932, %v5933
  %v5935 = vrot.slane %v5934, 4
  %v5936 = vmax.f32 %v5934, %v5935
  %v5937 = vrot.slane %v5936, 2
  %v5938 = vmax.f32 %v5936, %v5937
  %v5939 = vrot.slane %v5938, 1
  %v5940 = vmax.f32 %v5938, %v5939
  %v5941 = vsel %vm4415, %v5351, -inf
  %v5942 = vsel %vm4415, %v5356, -inf
  %v5943 = vmax.f32 %v5941, %v5942
  %v5944 = vrot.slane %v5943, 4
  %v5945 = vmax.f32 %v5943, %v5944
  %v5946 = vrot.slane %v5945, 2
  %v5947 = vmax.f32 %v5945, %v5946
  %v5948 = vrot.slane %v5947, 1
  %v5949 = vmax.f32 %v5947, %v5948
  %v5950 = vsel %vm4415, %v5361, -inf
  %v5951 = vsel %vm4415, %v5366, -inf
  %v5952 = vmax.f32 %v5950, %v5951
  %v5953 = vrot.slane %v5952, 4
  %v5954 = vmax.f32 %v5952, %v5953
  %v5955 = vrot.slane %v5954, 2
  %v5956 = vmax.f32 %v5954, %v5955
  %v5957 = vrot.slane %v5956, 1
  %v5958 = vmax.f32 %v5956, %v5957
  %v5959 = vsel %vm4415, %v5371, -inf
  %v5960 = vsel %vm4415, %v5376, -inf
  %v5961 = vmax.f32 %v5959, %v5960
  %v5962 = vrot.slane %v5961, 4
  %v5963 = vmax.f32 %v5961, %v5962
  %v5964 = vrot.slane %v5963, 2
  %v5965 = vmax.f32 %v5963, %v5964
  %v5966 = vrot.slane %v5965, 1
  %v5967 = vmax.f32 %v5965, %v5966
  %v5968 = vsel %vm4415, %v5381, -inf
  %v5969 = vsel %vm4415, %v5386, -inf
  %v5970 = vmax.f32 %v5968, %v5969
  %v5971 = vrot.slane %v5970, 4
  %v5972 = vmax.f32 %v5970, %v5971
  %v5973 = vrot.slane %v5972, 2
  %v5974 = vmax.f32 %v5972, %v5973
  %v5975 = vrot.slane %v5974, 1
  %v5976 = vmax.f32 %v5974, %v5975
  %v5977 = vsel %vm4415, %v5391, -inf
  %v5978 = vsel %vm4415, %v5396, -inf
  %v5979 = vmax.f32 %v5977, %v5978
  %v5980 = vrot.slane %v5979, 4
  %v5981 = vmax.f32 %v5979, %v5980
  %v5982 = vrot.slane %v5981, 2
  %v5983 = vmax.f32 %v5981, %v5982
  %v5984 = vrot.slane %v5983, 1
  %v5985 = vmax.f32 %v5983, %v5984
  %v5986 = vsel %vm4415, %v5401, -inf
  %v5987 = vsel %vm4415, %v5406, -inf
  %v5988 = vmax.f32 %v5986, %v5987
  %v5989 = vrot.slane %v5988, 4
  %v5990 = vmax.f32 %v5988, %v5989
  %v5991 = vrot.slane %v5990, 2
  %v5992 = vmax.f32 %v5990, %v5991
  %v5993 = vrot.slane %v5992, 1
  %v5994 = vmax.f32 %v5992, %v5993
  %v5995 = vsel %vm4415, %v5411, -inf
  %v5996 = vsel %vm4415, %v5416, -inf
  %v5997 = vmax.f32 %v5995, %v5996
  %v5998 = vrot.slane %v5997, 4
  %v5999 = vmax.f32 %v5997, %v5998
  %v6000 = vrot.slane %v5999, 2
  %v6001 = vmax.f32 %v5999, %v6000
  %v6002 = vrot.slane %v6001, 1
  %v6003 = vmax.f32 %v6001, %v6002
  %v6004 = vsel %vm4415, %v5421, -inf
  %v6005 = vsel %vm4415, %v5426, -inf
  %v6006 = vmax.f32 %v6004, %v6005
  %v6007 = vrot.slane %v6006, 4
  %v6008 = vmax.f32 %v6006, %v6007
  %v6009 = vrot.slane %v6008, 2
  %v6010 = vmax.f32 %v6008, %v6009
  %v6011 = vrot.slane %v6010, 1
  %v6012 = vmax.f32 %v6010, %v6011
  %v6013 = vsel %vm4415, %v5431, -inf
  %v6014 = vsel %vm4415, %v5436, -inf
  %v6015 = vmax.f32 %v6013, %v6014
  %v6016 = vrot.slane %v6015, 4
  %v6017 = vmax.f32 %v6015, %v6016
  %v6018 = vrot.slane %v6017, 2
  %v6019 = vmax.f32 %v6017, %v6018
  %v6020 = vrot.slane %v6019, 1
  %v6021 = vmax.f32 %v6019, %v6020
  %v6022 = vsel %vm4415, %v5441, -inf
  %v6023 = vsel %vm4415, %v5446, -inf
  %v6024 = vmax.f32 %v6022, %v6023
  %v6025 = vrot.slane %v6024, 4
  %v6026 = vmax.f32 %v6024, %v6025
  %v6027 = vrot.slane %v6026, 2
  %v6028 = vmax.f32 %v6026, %v6027
  %v6029 = vrot.slane %v6028, 1
  %v6030 = vmax.f32 %v6028, %v6029
  %v6031 = vsel %vm4415, %v5451, -inf
  %v6032 = vsel %vm4415, %v5456, -inf
  %v6033 = vmax.f32 %v6031, %v6032
  %v6034 = vrot.slane %v6033, 4
  %v6035 = vmax.f32 %v6033, %v6034
  %v6036 = vrot.slane %v6035, 2
  %v6037 = vmax.f32 %v6035, %v6036
  %v6038 = vrot.slane %v6037, 1
  %v6039 = vmax.f32 %v6037, %v6038
  %v6040 = vsel %vm4415, %v5461, -inf
  %v6041 = vsel %vm4415, %v5466, -inf
  %v6042 = vmax.f32 %v6040, %v6041
  %v6043 = vrot.slane %v6042, 4
  %v6044 = vmax.f32 %v6042, %v6043
  %v6045 = vrot.slane %v6044, 2
  %v6046 = vmax.f32 %v6044, %v6045
  %v6047 = vrot.slane %v6046, 1
  %v6048 = vmax.f32 %v6046, %v6047
  %v6049 = vsel %vm4415, %v5471, -inf
  %v6050 = vsel %vm4415, %v5476, -inf
  %v6051 = vmax.f32 %v6049, %v6050
  %v6052 = vrot.slane %v6051, 4
  %v6053 = vmax.f32 %v6051, %v6052
  %v6054 = vrot.slane %v6053, 2
  %v6055 = vmax.f32 %v6053, %v6054
  %v6056 = vrot.slane %v6055, 1
  %v6057 = vmax.f32 %v6055, %v6056
  %v6058 = vsel %vm4415, %v5481, -inf
  %v6059 = vsel %vm4415, %v5486, -inf
  %v6060 = vmax.f32 %v6058, %v6059
  %v6061 = vrot.slane %v6060, 4
  %v6062 = vmax.f32 %v6060, %v6061
  %v6063 = vrot.slane %v6062, 2
  %v6064 = vmax.f32 %v6062, %v6063
  %v6065 = vrot.slane %v6064, 1
  %v6066 = vmax.f32 %v6064, %v6065
  %v6067 = vsel %vm4415, %v5491, -inf
  %v6068 = vsel %vm4415, %v5496, -inf
  %v6069 = vmax.f32 %v6067, %v6068
  %v6070 = vrot.slane %v6069, 4
  %v6071 = vmax.f32 %v6069, %v6070
  %v6072 = vrot.slane %v6071, 2
  %v6073 = vmax.f32 %v6071, %v6072
  %v6074 = vrot.slane %v6073, 1
  %v6075 = vmax.f32 %v6073, %v6074
  %v6076 = vsel %vm4415, %v5501, -inf
  %v6077 = vsel %vm4415, %v5506, -inf
  %v6078 = vmax.f32 %v6076, %v6077
  %v6079 = vrot.slane %v6078, 4
  %v6080 = vmax.f32 %v6078, %v6079
  %v6081 = vrot.slane %v6080, 2
  %v6082 = vmax.f32 %v6080, %v6081
  %v6083 = vrot.slane %v6082, 1
  %v6084 = vmax.f32 %v6082, %v6083
  %v6085 = vsub.f32 %v4871, %v5517
  %v6086 = vsub.f32 %v4876, %v5517
  %v6087 = vsub.f32 %v4881, %v5526
  %v6088 = vsub.f32 %v4886, %v5526
  %v6089 = vsub.f32 %v4891, %v5535
  %v6090 = vsub.f32 %v4896, %v5535
  %v6091 = vsub.f32 %v4901, %v5544
  %v6092 = vsub.f32 %v4906, %v5544
  %v6093 = vsub.f32 %v4911, %v5553
  %v6094 = vsub.f32 %v4916, %v5553
  %v6095 = vsub.f32 %v4921, %v5562
  %v6096 = vsub.f32 %v4926, %v5562
  %v6097 = vsub.f32 %v4931, %v5571
  %v6098 = vsub.f32 %v4936, %v5571
  %v6099 = vsub.f32 %v4941, %v5580
  %v6100 = vsub.f32 %v4946, %v5580
  %v6101 = vsub.f32 %v4951, %v5589
  %v6102 = vsub.f32 %v4956, %v5589
  %v6103 = vsub.f32 %v4961, %v5598
  %v6104 = vsub.f32 %v4966, %v5598
  %v6105 = vsub.f32 %v4971, %v5607
  %v6106 = vsub.f32 %v4976, %v5607
  %v6107 = vsub.f32 %v4981, %v5616
  %v6108 = vsub.f32 %v4986, %v5616
  %v6109 = vsub.f32 %v4991, %v5625
  %v6110 = vsub.f32 %v4996, %v5625
  %v6111 = vsub.f32 %v5001, %v5634
  %v6112 = vsub.f32 %v5006, %v5634
  %v6113 = vsub.f32 %v5011, %v5643
  %v6114 = vsub.f32 %v5016, %v5643
  %v6115 = vsub.f32 %v5021, %v5652
  %v6116 = vsub.f32 %v5026, %v5652
  %v6117 = vsub.f32 %v5031, %v5661
  %v6118 = vsub.f32 %v5036, %v5661
  %v6119 = vsub.f32 %v5041, %v5670
  %v6120 = vsub.f32 %v5046, %v5670
  %v6121 = vsub.f32 %v5051, %v5679
  %v6122 = vsub.f32 %v5056, %v5679
  %v6123 = vsub.f32 %v5061, %v5688
  %v6124 = vsub.f32 %v5066, %v5688
  %v6125 = vsub.f32 %v5071, %v5697
  %v6126 = vsub.f32 %v5076, %v5697
  %v6127 = vsub.f32 %v5081, %v5706
  %v6128 = vsub.f32 %v5086, %v5706
  %v6129 = vsub.f32 %v5091, %v5715
  %v6130 = vsub.f32 %v5096, %v5715
  %v6131 = vsub.f32 %v5101, %v5724
  %v6132 = vsub.f32 %v5106, %v5724
  %v6133 = vsub.f32 %v5111, %v5733
  %v6134 = vsub.f32 %v5116, %v5733
  %v6135 = vsub.f32 %v5121, %v5742
  %v6136 = vsub.f32 %v5126, %v5742
  %v6137 = vsub.f32 %v5131, %v5751
  %v6138 = vsub.f32 %v5136, %v5751
  %v6139 = vsub.f32 %v5141, %v5760
  %v6140 = vsub.f32 %v5146, %v5760
  %v6141 = vsub.f32 %v5151, %v5769
  %v6142 = vsub.f32 %v5156, %v5769
  %v6143 = vsub.f32 %v5161, %v5778
  %v6144 = vsub.f32 %v5166, %v5778
  %v6145 = vsub.f32 %v5171, %v5787
  %v6146 = vsub.f32 %v5176, %v5787
  %v6147 = vsub.f32 %v5181, %v5796
  %v6148 = vsub.f32 %v5186, %v5796
  %v6149 = vsub.f32 %v5191, %v5805
  %v6150 = vsub.f32 %v5196, %v5805
  %v6151 = vsub.f32 %v5201, %v5814
  %v6152 = vsub.f32 %v5206, %v5814
  %v6153 = vsub.f32 %v5211, %v5823
  %v6154 = vsub.f32 %v5216, %v5823
  %v6155 = vsub.f32 %v5221, %v5832
  %v6156 = vsub.f32 %v5226, %v5832
  %v6157 = vsub.f32 %v5231, %v5841
  %v6158 = vsub.f32 %v5236, %v5841
  %v6159 = vsub.f32 %v5241, %v5850
  %v6160 = vsub.f32 %v5246, %v5850
  %v6161 = vsub.f32 %v5251, %v5859
  %v6162 = vsub.f32 %v5256, %v5859
  %v6163 = vsub.f32 %v5261, %v5868
  %v6164 = vsub.f32 %v5266, %v5868
  %v6165 = vsub.f32 %v5271, %v5877
  %v6166 = vsub.f32 %v5276, %v5877
  %v6167 = vsub.f32 %v5281, %v5886
  %v6168 = vsub.f32 %v5286, %v5886
  %v6169 = vsub.f32 %v5291, %v5895
  %v6170 = vsub.f32 %v5296, %v5895
  %v6171 = vsub.f32 %v5301, %v5904
  %v6172 = vsub.f32 %v5306, %v5904
  %v6173 = vsub.f32 %v5311, %v5913
  %v6174 = vsub.f32 %v5316, %v5913
  %v6175 = vsub.f32 %v5321, %v5922
  %v6176 = vsub.f32 %v5326, %v5922
  %v6177 = vsub.f32 %v5331, %v5931
  %v6178 = vsub.f32 %v5336, %v5931
  %v6179 = vsub.f32 %v5341, %v5940
  %v6180 = vsub.f32 %v5346, %v5940
  %v6181 = vsub.f32 %v5351, %v5949
  %v6182 = vsub.f32 %v5356, %v5949
  %v6183 = vsub.f32 %v5361, %v5958
  %v6184 = vsub.f32 %v5366, %v5958
  %v6185 = vsub.f32 %v5371, %v5967
  %v6186 = vsub.f32 %v5376, %v5967
  %v6187 = vsub.f32 %v5381, %v5976
  %v6188 = vsub.f32 %v5386, %v5976
  %v6189 = vsub.f32 %v5391, %v5985
  %v6190 = vsub.f32 %v5396, %v5985
  %v6191 = vsub.f32 %v5401, %v5994
  %v6192 = vsub.f32 %v5406, %v5994
  %v6193 = vsub.f32 %v5411, %v6003
  %v6194 = vsub.f32 %v5416, %v6003
  %v6195 = vsub.f32 %v5421, %v6012
  %v6196 = vsub.f32 %v5426, %v6012
  %v6197 = vsub.f32 %v5431, %v6021
  %v6198 = vsub.f32 %v5436, %v6021
  %v6199 = vsub.f32 %v5441, %v6030
  %v6200 = vsub.f32 %v5446, %v6030
  %v6201 = vsub.f32 %v5451, %v6039
  %v6202 = vsub.f32 %v5456, %v6039
  %v6203 = vsub.f32 %v5461, %v6048
  %v6204 = vsub.f32 %v5466, %v6048
  %v6205 = vsub.f32 %v5471, %v6057
  %v6206 = vsub.f32 %v5476, %v6057
  %v6207 = vsub.f32 %v5481, %v6066
  %v6208 = vsub.f32 %v5486, %v6066
  %v6209 = vsub.f32 %v5491, %v6075
  %v6210 = vsub.f32 %v5496, %v6075
  %v6211 = vsub.f32 %v5501, %v6084
  %v6212 = vsub.f32 %v5506, %v6084
  %v6213 = vmul.f32 %v6085, 1.442695
  %v6214 = vpow.pop %v6213
  %v6215 = vmul.f32 %v6086, 1.442695
  %v6216 = vpow.pop %v6215
  %v6217 = vmul.f32 %v6087, 1.442695
  %v6218 = vpow.pop %v6217
  %v6219 = vmul.f32 %v6088, 1.442695
  %v6220 = vpow.pop %v6219
  %v6221 = vmul.f32 %v6089, 1.442695
  %v6222 = vpow.pop %v6221
  %v6223 = vmul.f32 %v6090, 1.442695
  %v6224 = vpow.pop %v6223
  %v6225 = vmul.f32 %v6091, 1.442695
  %v6226 = vpow.pop %v6225
  %v6227 = vmul.f32 %v6092, 1.442695
  %v6228 = vpow.pop %v6227
  %v6229 = vmul.f32 %v6093, 1.442695
  %v6230 = vpow.pop %v6229
  %v6231 = vmul.f32 %v6094, 1.442695
  %v6232 = vpow.pop %v6231
  %v6233 = vmul.f32 %v6095, 1.442695
  %v6234 = vpow.pop %v6233
  %v6235 = vmul.f32 %v6096, 1.442695
  %v6236 = vpow.pop %v6235
  %v6237 = vmul.f32 %v6097, 1.442695
  %v6238 = vpow.pop %v6237
  %v6239 = vmul.f32 %v6098, 1.442695
  %v6240 = vpow.pop %v6239
  %v6241 = vmul.f32 %v6099, 1.442695
  %v6242 = vpow.pop %v6241
  %v6243 = vmul.f32 %v6100, 1.442695
  %v6244 = vpow.pop %v6243
  %v6245 = vmul.f32 %v6101, 1.442695
  %v6246 = vpow.pop %v6245
  %v6247 = vmul.f32 %v6102, 1.442695
  %v6248 = vpow.pop %v6247
  %v6249 = vmul.f32 %v6103, 1.442695
  %v6250 = vpow.pop %v6249
  %v6251 = vmul.f32 %v6104, 1.442695
  %v6252 = vpow.pop %v6251
  %v6253 = vmul.f32 %v6105, 1.442695
  %v6254 = vpow.pop %v6253
  %v6255 = vmul.f32 %v6106, 1.442695
  %v6256 = vpow.pop %v6255
  %v6257 = vmul.f32 %v6107, 1.442695
  %v6258 = vpow.pop %v6257
  %v6259 = vmul.f32 %v6108, 1.442695
  %v6260 = vpow.pop %v6259
  %v6261 = vmul.f32 %v6109, 1.442695
  %v6262 = vpow.pop %v6261
  %v6263 = vmul.f32 %v6110, 1.442695
  %v6264 = vpow.pop %v6263
  %v6265 = vmul.f32 %v6111, 1.442695
  %v6266 = vpow.pop %v6265
  %v6267 = vmul.f32 %v6112, 1.442695
  %v6268 = vpow.pop %v6267
  %v6269 = vmul.f32 %v6113, 1.442695
  %v6270 = vpow.pop %v6269
  %v6271 = vmul.f32 %v6114, 1.442695
  %v6272 = vpow.pop %v6271
  %v6273 = vmul.f32 %v6115, 1.442695
  %v6274 = vpow.pop %v6273
  %v6275 = vmul.f32 %v6116, 1.442695
  %v6276 = vpow.pop %v6275
  %v6277 = vmul.f32 %v6117, 1.442695
  %v6278 = vpow.pop %v6277
  %v6279 = vmul.f32 %v6118, 1.442695
  %v6280 = vpow.pop %v6279
  %v6281 = vmul.f32 %v6119, 1.442695
  %v6282 = vpow.pop %v6281
  %v6283 = vmul.f32 %v6120, 1.442695
  %v6284 = vpow.pop %v6283
  %v6285 = vmul.f32 %v6121, 1.442695
  %v6286 = vpow.pop %v6285
  %v6287 = vmul.f32 %v6122, 1.442695
  %v6288 = vpow.pop %v6287
  %v6289 = vmul.f32 %v6123, 1.442695
  %v6290 = vpow.pop %v6289
  %v6291 = vmul.f32 %v6124, 1.442695
  %v6292 = vpow.pop %v6291
  %v6293 = vmul.f32 %v6125, 1.442695
  %v6294 = vpow.pop %v6293
  %v6295 = vmul.f32 %v6126, 1.442695
  %v6296 = vpow.pop %v6295
  %v6297 = vmul.f32 %v6127, 1.442695
  %v6298 = vpow.pop %v6297
  %v6299 = vmul.f32 %v6128, 1.442695
  %v6300 = vpow.pop %v6299
  %v6301 = vmul.f32 %v6129, 1.442695
  %v6302 = vpow.pop %v6301
  %v6303 = vmul.f32 %v6130, 1.442695
  %v6304 = vpow.pop %v6303
  %v6305 = vmul.f32 %v6131, 1.442695
  %v6306 = vpow.pop %v6305
  %v6307 = vmul.f32 %v6132, 1.442695
  %v6308 = vpow.pop %v6307
  %v6309 = vmul.f32 %v6133, 1.442695
  %v6310 = vpow.pop %v6309
  %v6311 = vmul.f32 %v6134, 1.442695
  %v6312 = vpow.pop %v6311
  %v6313 = vmul.f32 %v6135, 1.442695
  %v6314 = vpow.pop %v6313
  %v6315 = vmul.f32 %v6136, 1.442695
  %v6316 = vpow.pop %v6315
  %v6317 = vmul.f32 %v6137, 1.442695
  %v6318 = vpow.pop %v6317
  %v6319 = vmul.f32 %v6138, 1.442695
  %v6320 = vpow.pop %v6319
  %v6321 = vmul.f32 %v6139, 1.442695
  %v6322 = vpow.pop %v6321
  %v6323 = vmul.f32 %v6140, 1.442695
  %v6324 = vpow.pop %v6323
  %v6325 = vmul.f32 %v6141, 1.442695
  %v6326 = vpow.pop %v6325
  %v6327 = vmul.f32 %v6142, 1.442695
  %v6328 = vpow.pop %v6327
  %v6329 = vmul.f32 %v6143, 1.442695
  %v6330 = vpow.pop %v6329
  %v6331 = vmul.f32 %v6144, 1.442695
  %v6332 = vpow.pop %v6331
  %v6333 = vmul.f32 %v6145, 1.442695
  %v6334 = vpow.pop %v6333
  %v6335 = vmul.f32 %v6146, 1.442695
  %v6336 = vpow.pop %v6335
  %v6337 = vmul.f32 %v6147, 1.442695
  %v6338 = vpow.pop %v6337
  %v6339 = vmul.f32 %v6148, 1.442695
  %v6340 = vpow.pop %v6339
  %v6341 = vmul.f32 %v6149, 1.442695
  %v6342 = vpow.pop %v6341
  %v6343 = vmul.f32 %v6150, 1.442695
  %v6344 = vpow.pop %v6343
  %v6345 = vmul.f32 %v6151, 1.442695
  %v6346 = vpow.pop %v6345
  %v6347 = vmul.f32 %v6152, 1.442695
  %v6348 = vpow.pop %v6347
  %v6349 = vmul.f32 %v6153, 1.442695
  %v6350 = vpow.pop %v6349
  %v6351 = vmul.f32 %v6154, 1.442695
  %v6352 = vpow.pop %v6351
  %v6353 = vmul.f32 %v6155, 1.442695
  %v6354 = vpow.pop %v6353
  %v6355 = vmul.f32 %v6156, 1.442695
  %v6356 = vpow.pop %v6355
  %v6357 = vmul.f32 %v6157, 1.442695
  %v6358 = vpow.pop %v6357
  %v6359 = vmul.f32 %v6158, 1.442695
  %v6360 = vpow.pop %v6359
  %v6361 = vmul.f32 %v6159, 1.442695
  %v6362 = vpow.pop %v6361
  %v6363 = vmul.f32 %v6160, 1.442695
  %v6364 = vpow.pop %v6363
  %v6365 = vmul.f32 %v6161, 1.442695
  %v6366 = vpow.pop %v6365
  %v6367 = vmul.f32 %v6162, 1.442695
  %v6368 = vpow.pop %v6367
  %v6369 = vmul.f32 %v6163, 1.442695
  %v6370 = vpow.pop %v6369
  %v6371 = vmul.f32 %v6164, 1.442695
  %v6372 = vpow.pop %v6371
  %v6373 = vmul.f32 %v6165, 1.442695
  %v6374 = vpow.pop %v6373
  %v6375 = vmul.f32 %v6166, 1.442695
  %v6376 = vpow.pop %v6375
  %v6377 = vmul.f32 %v6167, 1.442695
  %v6378 = vpow.pop %v6377
  %v6379 = vmul.f32 %v6168, 1.442695
  %v6380 = vpow.pop %v6379
  %v6381 = vmul.f32 %v6169, 1.442695
  %v6382 = vpow.pop %v6381
  %v6383 = vmul.f32 %v6170, 1.442695
  %v6384 = vpow.pop %v6383
  %v6385 = vmul.f32 %v6171, 1.442695
  %v6386 = vpow.pop %v6385
  %v6387 = vmul.f32 %v6172, 1.442695
  %v6388 = vpow.pop %v6387
  %v6389 = vmul.f32 %v6173, 1.442695
  %v6390 = vpow.pop %v6389
  %v6391 = vmul.f32 %v6174, 1.442695
  %v6392 = vpow.pop %v6391
  %v6393 = vmul.f32 %v6175, 1.442695
  %v6394 = vpow.pop %v6393
  %v6395 = vmul.f32 %v6176, 1.442695
  %v6396 = vpow.pop %v6395
  %v6397 = vmul.f32 %v6177, 1.442695
  %v6398 = vpow.pop %v6397
  %v6399 = vmul.f32 %v6178, 1.442695
  %v6400 = vpow.pop %v6399
  %v6401 = vmul.f32 %v6179, 1.442695
  %v6402 = vpow.pop %v6401
  %v6403 = vmul.f32 %v6180, 1.442695
  %v6404 = vpow.pop %v6403
  %v6405 = vmul.f32 %v6181, 1.442695
  %v6406 = vpow.pop %v6405
  %v6407 = vmul.f32 %v6182, 1.442695
  %v6408 = vpow.pop %v6407
  %v6409 = vmul.f32 %v6183, 1.442695
  %v6410 = vpow.pop %v6409
  %v6411 = vmul.f32 %v6184, 1.442695
  %v6412 = vpow.pop %v6411
  %v6413 = vmul.f32 %v6185, 1.442695
  %v6414 = vpow.pop %v6413
  %v6415 = vmul.f32 %v6186, 1.442695
  %v6416 = vpow.pop %v6415
  %v6417 = vmul.f32 %v6187, 1.442695
  %v6418 = vpow.pop %v6417
  %v6419 = vmul.f32 %v6188, 1.442695
  %v6420 = vpow.pop %v6419
  %v6421 = vmul.f32 %v6189, 1.442695
  %v6422 = vpow.pop %v6421
  %v6423 = vmul.f32 %v6190, 1.442695
  %v6424 = vpow.pop %v6423
  %v6425 = vmul.f32 %v6191, 1.442695
  %v6426 = vpow.pop %v6425
  %v6427 = vmul.f32 %v6192, 1.442695
  %v6428 = vpow.pop %v6427
  %v6429 = vmul.f32 %v6193, 1.442695
  %v6430 = vpow.pop %v6429
  %v6431 = vmul.f32 %v6194, 1.442695
  %v6432 = vpow.pop %v6431
  %v6433 = vmul.f32 %v6195, 1.442695
  %v6434 = vpow.pop %v6433
  %v6435 = vmul.f32 %v6196, 1.442695
  %v6436 = vpow.pop %v6435
  %v6437 = vmul.f32 %v6197, 1.442695
  %v6438 = vpow.pop %v6437
  %v6439 = vmul.f32 %v6198, 1.442695
  %v6440 = vpow.pop %v6439
  %v6441 = vmul.f32 %v6199, 1.442695
  %v6442 = vpow.pop %v6441
  %v6443 = vmul.f32 %v6200, 1.442695
  %v6444 = vpow.pop %v6443
  %v6445 = vmul.f32 %v6201, 1.442695
  %v6446 = vpow.pop %v6445
  %v6447 = vmul.f32 %v6202, 1.442695
  %v6448 = vpow.pop %v6447
  %v6449 = vmul.f32 %v6203, 1.442695
  %v6450 = vpow.pop %v6449
  %v6451 = vmul.f32 %v6204, 1.442695
  %v6452 = vpow.pop %v6451
  %v6453 = vmul.f32 %v6205, 1.442695
  %v6454 = vpow.pop %v6453
  %v6455 = vmul.f32 %v6206, 1.442695
  %v6456 = vpow.pop %v6455
  %v6457 = vmul.f32 %v6207, 1.442695
  %v6458 = vpow.pop %v6457
  %v6459 = vmul.f32 %v6208, 1.442695
  %v6460 = vpow.pop %v6459
  %v6461 = vmul.f32 %v6209, 1.442695
  %v6462 = vpow.pop %v6461
  %v6463 = vmul.f32 %v6210, 1.442695
  %v6464 = vpow.pop %v6463
  %v6465 = vmul.f32 %v6211, 1.442695
  %v6466 = vpow.pop %v6465
  %v6467 = vmul.f32 %v6212, 1.442695
  %v6468 = vpow.pop %v6467
  %v6469 = vsel %vm4415, %v6214, 0.0
  %v6470 = vsel %vm4415, %v6216, 0.0
  %v6471 = vadd.f32 %v6469, %v6470
  %v6472 = vrot.slane %v6471, 4
  %v6473 = vadd.f32 %v6471, %v6472
  %v6474 = vrot.slane %v6473, 2
  %v6475 = vadd.f32 %v6473, %v6474
  %v6476 = vrot.slane %v6475, 1
  %v6477 = vadd.f32 %v6475, %v6476
  %v6478 = vsel %vm4415, %v6218, 0.0
  %v6479 = vsel %vm4415, %v6220, 0.0
  %v6480 = vadd.f32 %v6478, %v6479
  %v6481 = vrot.slane %v6480, 4
  %v6482 = vadd.f32 %v6480, %v6481
  %v6483 = vrot.slane %v6482, 2
  %v6484 = vadd.f32 %v6482, %v6483
  %v6485 = vrot.slane %v6484, 1
  %v6486 = vadd.f32 %v6484, %v6485
  %v6487 = vsel %vm4415, %v6222, 0.0
  %v6488 = vsel %vm4415, %v6224, 0.0
  %v6489 = vadd.f32 %v6487, %v6488
  %v6490 = vrot.slane %v6489, 4
  %v6491 = vadd.f32 %v6489, %v6490
  %v6492 = vrot.slane %v6491, 2
  %v6493 = vadd.f32 %v6491, %v6492
  %v6494 = vrot.slane %v6493, 1
  %v6495 = vadd.f32 %v6493, %v6494
  %v6496 = vsel %vm4415, %v6226, 0.0
  %v6497 = vsel %vm4415, %v6228, 0.0
  %v6498 = vadd.f32 %v6496, %v6497
  %v6499 = vrot.slane %v6498, 4
  %v6500 = vadd.f32 %v6498, %v6499
  %v6501 = vrot.slane %v6500, 2
  %v6502 = vadd.f32 %v6500, %v6501
  %v6503 = vrot.slane %v6502, 1
  %v6504 = vadd.f32 %v6502, %v6503
  %v6505 = vsel %vm4415, %v6230, 0.0
  %v6506 = vsel %vm4415, %v6232, 0.0
  %v6507 = vadd.f32 %v6505, %v6506
  %v6508 = vrot.slane %v6507, 4
  %v6509 = vadd.f32 %v6507, %v6508
  %v6510 = vrot.slane %v6509, 2
  %v6511 = vadd.f32 %v6509, %v6510
  %v6512 = vrot.slane %v6511, 1
  %v6513 = vadd.f32 %v6511, %v6512
  %v6514 = vsel %vm4415, %v6234, 0.0
  %v6515 = vsel %vm4415, %v6236, 0.0
  %v6516 = vadd.f32 %v6514, %v6515
  %v6517 = vrot.slane %v6516, 4
  %v6518 = vadd.f32 %v6516, %v6517
  %v6519 = vrot.slane %v6518, 2
  %v6520 = vadd.f32 %v6518, %v6519
  %v6521 = vrot.slane %v6520, 1
  %v6522 = vadd.f32 %v6520, %v6521
  %v6523 = vsel %vm4415, %v6238, 0.0
  %v6524 = vsel %vm4415, %v6240, 0.0
  %v6525 = vadd.f32 %v6523, %v6524
  %v6526 = vrot.slane %v6525, 4
  %v6527 = vadd.f32 %v6525, %v6526
  %v6528 = vrot.slane %v6527, 2
  %v6529 = vadd.f32 %v6527, %v6528
  %v6530 = vrot.slane %v6529, 1
  %v6531 = vadd.f32 %v6529, %v6530
  %v6532 = vsel %vm4415, %v6242, 0.0
  %v6533 = vsel %vm4415, %v6244, 0.0
  %v6534 = vadd.f32 %v6532, %v6533
  %v6535 = vrot.slane %v6534, 4
  %v6536 = vadd.f32 %v6534, %v6535
  %v6537 = vrot.slane %v6536, 2
  %v6538 = vadd.f32 %v6536, %v6537
  %v6539 = vrot.slane %v6538, 1
  %v6540 = vadd.f32 %v6538, %v6539
  %v6541 = vsel %vm4415, %v6246, 0.0
  %v6542 = vsel %vm4415, %v6248, 0.0
  %v6543 = vadd.f32 %v6541, %v6542
  %v6544 = vrot.slane %v6543, 4
  %v6545 = vadd.f32 %v6543, %v6544
  %v6546 = vrot.slane %v6545, 2
  %v6547 = vadd.f32 %v6545, %v6546
  %v6548 = vrot.slane %v6547, 1
  %v6549 = vadd.f32 %v6547, %v6548
  %v6550 = vsel %vm4415, %v6250, 0.0
  %v6551 = vsel %vm4415, %v6252, 0.0
  %v6552 = vadd.f32 %v6550, %v6551
  %v6553 = vrot.slane %v6552, 4
  %v6554 = vadd.f32 %v6552, %v6553
  %v6555 = vrot.slane %v6554, 2
  %v6556 = vadd.f32 %v6554, %v6555
  %v6557 = vrot.slane %v6556, 1
  %v6558 = vadd.f32 %v6556, %v6557
  %v6559 = vsel %vm4415, %v6254, 0.0
  %v6560 = vsel %vm4415, %v6256, 0.0
  %v6561 = vadd.f32 %v6559, %v6560
  %v6562 = vrot.slane %v6561, 4
  %v6563 = vadd.f32 %v6561, %v6562
  %v6564 = vrot.slane %v6563, 2
  %v6565 = vadd.f32 %v6563, %v6564
  %v6566 = vrot.slane %v6565, 1
  %v6567 = vadd.f32 %v6565, %v6566
  %v6568 = vsel %vm4415, %v6258, 0.0
  %v6569 = vsel %vm4415, %v6260, 0.0
  %v6570 = vadd.f32 %v6568, %v6569
  %v6571 = vrot.slane %v6570, 4
  %v6572 = vadd.f32 %v6570, %v6571
  %v6573 = vrot.slane %v6572, 2
  %v6574 = vadd.f32 %v6572, %v6573
  %v6575 = vrot.slane %v6574, 1
  %v6576 = vadd.f32 %v6574, %v6575
  %v6577 = vsel %vm4415, %v6262, 0.0
  %v6578 = vsel %vm4415, %v6264, 0.0
  %v6579 = vadd.f32 %v6577, %v6578
  %v6580 = vrot.slane %v6579, 4
  %v6581 = vadd.f32 %v6579, %v6580
  %v6582 = vrot.slane %v6581, 2
  %v6583 = vadd.f32 %v6581, %v6582
  %v6584 = vrot.slane %v6583, 1
  %v6585 = vadd.f32 %v6583, %v6584
  %v6586 = vsel %vm4415, %v6266, 0.0
  %v6587 = vsel %vm4415, %v6268, 0.0
  %v6588 = vadd.f32 %v6586, %v6587
  %v6589 = vrot.slane %v6588, 4
  %v6590 = vadd.f32 %v6588, %v6589
  %v6591 = vrot.slane %v6590, 2
  %v6592 = vadd.f32 %v6590, %v6591
  %v6593 = vrot.slane %v6592, 1
  %v6594 = vadd.f32 %v6592, %v6593
  %v6595 = vsel %vm4415, %v6270, 0.0
  %v6596 = vsel %vm4415, %v6272, 0.0
  %v6597 = vadd.f32 %v6595, %v6596
  %v6598 = vrot.slane %v6597, 4
  %v6599 = vadd.f32 %v6597, %v6598
  %v6600 = vrot.slane %v6599, 2
  %v6601 = vadd.f32 %v6599, %v6600
  %v6602 = vrot.slane %v6601, 1
  %v6603 = vadd.f32 %v6601, %v6602
  %v6604 = vsel %vm4415, %v6274, 0.0
  %v6605 = vsel %vm4415, %v6276, 0.0
  %v6606 = vadd.f32 %v6604, %v6605
  %v6607 = vrot.slane %v6606, 4
  %v6608 = vadd.f32 %v6606, %v6607
  %v6609 = vrot.slane %v6608, 2
  %v6610 = vadd.f32 %v6608, %v6609
  %v6611 = vrot.slane %v6610, 1
  %v6612 = vadd.f32 %v6610, %v6611
  %v6613 = vsel %vm4415, %v6278, 0.0
  %v6614 = vsel %vm4415, %v6280, 0.0
  %v6615 = vadd.f32 %v6613, %v6614
  %v6616 = vrot.slane %v6615, 4
  %v6617 = vadd.f32 %v6615, %v6616
  %v6618 = vrot.slane %v6617, 2
  %v6619 = vadd.f32 %v6617, %v6618
  %v6620 = vrot.slane %v6619, 1
  %v6621 = vadd.f32 %v6619, %v6620
  %v6622 = vsel %vm4415, %v6282, 0.0
  %v6623 = vsel %vm4415, %v6284, 0.0
  %v6624 = vadd.f32 %v6622, %v6623
  %v6625 = vrot.slane %v6624, 4
  %v6626 = vadd.f32 %v6624, %v6625
  %v6627 = vrot.slane %v6626, 2
  %v6628 = vadd.f32 %v6626, %v6627
  %v6629 = vrot.slane %v6628, 1
  %v6630 = vadd.f32 %v6628, %v6629
  %v6631 = vsel %vm4415, %v6286, 0.0
  %v6632 = vsel %vm4415, %v6288, 0.0
  %v6633 = vadd.f32 %v6631, %v6632
  %v6634 = vrot.slane %v6633, 4
  %v6635 = vadd.f32 %v6633, %v6634
  %v6636 = vrot.slane %v6635, 2
  %v6637 = vadd.f32 %v6635, %v6636
  %v6638 = vrot.slane %v6637, 1
  %v6639 = vadd.f32 %v6637, %v6638
  %v6640 = vsel %vm4415, %v6290, 0.0
  %v6641 = vsel %vm4415, %v6292, 0.0
  %v6642 = vadd.f32 %v6640, %v6641
  %v6643 = vrot.slane %v6642, 4
  %v6644 = vadd.f32 %v6642, %v6643
  %v6645 = vrot.slane %v6644, 2
  %v6646 = vadd.f32 %v6644, %v6645
  %v6647 = vrot.slane %v6646, 1
  %v6648 = vadd.f32 %v6646, %v6647
  %v6649 = vsel %vm4415, %v6294, 0.0
  %v6650 = vsel %vm4415, %v6296, 0.0
  %v6651 = vadd.f32 %v6649, %v6650
  %v6652 = vrot.slane %v6651, 4
  %v6653 = vadd.f32 %v6651, %v6652
  %v6654 = vrot.slane %v6653, 2
  %v6655 = vadd.f32 %v6653, %v6654
  %v6656 = vrot.slane %v6655, 1
  %v6657 = vadd.f32 %v6655, %v6656
  %v6658 = vsel %vm4415, %v6298, 0.0
  %v6659 = vsel %vm4415, %v6300, 0.0
  %v6660 = vadd.f32 %v6658, %v6659
  %v6661 = vrot.slane %v6660, 4
  %v6662 = vadd.f32 %v6660, %v6661
  %v6663 = vrot.slane %v6662, 2
  %v6664 = vadd.f32 %v6662, %v6663
  %v6665 = vrot.slane %v6664, 1
  %v6666 = vadd.f32 %v6664, %v6665
  %v6667 = vsel %vm4415, %v6302, 0.0
  %v6668 = vsel %vm4415, %v6304, 0.0
  %v6669 = vadd.f32 %v6667, %v6668
  %v6670 = vrot.slane %v6669, 4
  %v6671 = vadd.f32 %v6669, %v6670
  %v6672 = vrot.slane %v6671, 2
  %v6673 = vadd.f32 %v6671, %v6672
  %v6674 = vrot.slane %v6673, 1
  %v6675 = vadd.f32 %v6673, %v6674
  %v6676 = vsel %vm4415, %v6306, 0.0
  %v6677 = vsel %vm4415, %v6308, 0.0
  %v6678 = vadd.f32 %v6676, %v6677
  %v6679 = vrot.slane %v6678, 4
  %v6680 = vadd.f32 %v6678, %v6679
  %v6681 = vrot.slane %v6680, 2
  %v6682 = vadd.f32 %v6680, %v6681
  %v6683 = vrot.slane %v6682, 1
  %v6684 = vadd.f32 %v6682, %v6683
  %v6685 = vsel %vm4415, %v6310, 0.0
  %v6686 = vsel %vm4415, %v6312, 0.0
  %v6687 = vadd.f32 %v6685, %v6686
  %v6688 = vrot.slane %v6687, 4
  %v6689 = vadd.f32 %v6687, %v6688
  %v6690 = vrot.slane %v6689, 2
  %v6691 = vadd.f32 %v6689, %v6690
  %v6692 = vrot.slane %v6691, 1
  %v6693 = vadd.f32 %v6691, %v6692
  %v6694 = vsel %vm4415, %v6314, 0.0
  %v6695 = vsel %vm4415, %v6316, 0.0
  %v6696 = vadd.f32 %v6694, %v6695
  %v6697 = vrot.slane %v6696, 4
  %v6698 = vadd.f32 %v6696, %v6697
  %v6699 = vrot.slane %v6698, 2
  %v6700 = vadd.f32 %v6698, %v6699
  %v6701 = vrot.slane %v6700, 1
  %v6702 = vadd.f32 %v6700, %v6701
  %v6703 = vsel %vm4415, %v6318, 0.0
  %v6704 = vsel %vm4415, %v6320, 0.0
  %v6705 = vadd.f32 %v6703, %v6704
  %v6706 = vrot.slane %v6705, 4
  %v6707 = vadd.f32 %v6705, %v6706
  %v6708 = vrot.slane %v6707, 2
  %v6709 = vadd.f32 %v6707, %v6708
  %v6710 = vrot.slane %v6709, 1
  %v6711 = vadd.f32 %v6709, %v6710
  %v6712 = vsel %vm4415, %v6322, 0.0
  %v6713 = vsel %vm4415, %v6324, 0.0
  %v6714 = vadd.f32 %v6712, %v6713
  %v6715 = vrot.slane %v6714, 4
  %v6716 = vadd.f32 %v6714, %v6715
  %v6717 = vrot.slane %v6716, 2
  %v6718 = vadd.f32 %v6716, %v6717
  %v6719 = vrot.slane %v6718, 1
  %v6720 = vadd.f32 %v6718, %v6719
  %v6721 = vsel %vm4415, %v6326, 0.0
  %v6722 = vsel %vm4415, %v6328, 0.0
  %v6723 = vadd.f32 %v6721, %v6722
  %v6724 = vrot.slane %v6723, 4
  %v6725 = vadd.f32 %v6723, %v6724
  %v6726 = vrot.slane %v6725, 2
  %v6727 = vadd.f32 %v6725, %v6726
  %v6728 = vrot.slane %v6727, 1
  %v6729 = vadd.f32 %v6727, %v6728
  %v6730 = vsel %vm4415, %v6330, 0.0
  %v6731 = vsel %vm4415, %v6332, 0.0
  %v6732 = vadd.f32 %v6730, %v6731
  %v6733 = vrot.slane %v6732, 4
  %v6734 = vadd.f32 %v6732, %v6733
  %v6735 = vrot.slane %v6734, 2
  %v6736 = vadd.f32 %v6734, %v6735
  %v6737 = vrot.slane %v6736, 1
  %v6738 = vadd.f32 %v6736, %v6737
  %v6739 = vsel %vm4415, %v6334, 0.0
  %v6740 = vsel %vm4415, %v6336, 0.0
  %v6741 = vadd.f32 %v6739, %v6740
  %v6742 = vrot.slane %v6741, 4
  %v6743 = vadd.f32 %v6741, %v6742
  %v6744 = vrot.slane %v6743, 2
  %v6745 = vadd.f32 %v6743, %v6744
  %v6746 = vrot.slane %v6745, 1
  %v6747 = vadd.f32 %v6745, %v6746
  %v6748 = vsel %vm4415, %v6338, 0.0
  %v6749 = vsel %vm4415, %v6340, 0.0
  %v6750 = vadd.f32 %v6748, %v6749
  %v6751 = vrot.slane %v6750, 4
  %v6752 = vadd.f32 %v6750, %v6751
  %v6753 = vrot.slane %v6752, 2
  %v6754 = vadd.f32 %v6752, %v6753
  %v6755 = vrot.slane %v6754, 1
  %v6756 = vadd.f32 %v6754, %v6755
  %v6757 = vsel %vm4415, %v6342, 0.0
  %v6758 = vsel %vm4415, %v6344, 0.0
  %v6759 = vadd.f32 %v6757, %v6758
  %v6760 = vrot.slane %v6759, 4
  %v6761 = vadd.f32 %v6759, %v6760
  %v6762 = vrot.slane %v6761, 2
  %v6763 = vadd.f32 %v6761, %v6762
  %v6764 = vrot.slane %v6763, 1
  %v6765 = vadd.f32 %v6763, %v6764
  %v6766 = vsel %vm4415, %v6346, 0.0
  %v6767 = vsel %vm4415, %v6348, 0.0
  %v6768 = vadd.f32 %v6766, %v6767
  %v6769 = vrot.slane %v6768, 4
  %v6770 = vadd.f32 %v6768, %v6769
  %v6771 = vrot.slane %v6770, 2
  %v6772 = vadd.f32 %v6770, %v6771
  %v6773 = vrot.slane %v6772, 1
  %v6774 = vadd.f32 %v6772, %v6773
  %v6775 = vsel %vm4415, %v6350, 0.0
  %v6776 = vsel %vm4415, %v6352, 0.0
  %v6777 = vadd.f32 %v6775, %v6776
  %v6778 = vrot.slane %v6777, 4
  %v6779 = vadd.f32 %v6777, %v6778
  %v6780 = vrot.slane %v6779, 2
  %v6781 = vadd.f32 %v6779, %v6780
  %v6782 = vrot.slane %v6781, 1
  %v6783 = vadd.f32 %v6781, %v6782
  %v6784 = vsel %vm4415, %v6354, 0.0
  %v6785 = vsel %vm4415, %v6356, 0.0
  %v6786 = vadd.f32 %v6784, %v6785
  %v6787 = vrot.slane %v6786, 4
  %v6788 = vadd.f32 %v6786, %v6787
  %v6789 = vrot.slane %v6788, 2
  %v6790 = vadd.f32 %v6788, %v6789
  %v6791 = vrot.slane %v6790, 1
  %v6792 = vadd.f32 %v6790, %v6791
  %v6793 = vsel %vm4415, %v6358, 0.0
  %v6794 = vsel %vm4415, %v6360, 0.0
  %v6795 = vadd.f32 %v6793, %v6794
  %v6796 = vrot.slane %v6795, 4
  %v6797 = vadd.f32 %v6795, %v6796
  %v6798 = vrot.slane %v6797, 2
  %v6799 = vadd.f32 %v6797, %v6798
  %v6800 = vrot.slane %v6799, 1
  %v6801 = vadd.f32 %v6799, %v6800
  %v6802 = vsel %vm4415, %v6362, 0.0
  %v6803 = vsel %vm4415, %v6364, 0.0
  %v6804 = vadd.f32 %v6802, %v6803
  %v6805 = vrot.slane %v6804, 4
  %v6806 = vadd.f32 %v6804, %v6805
  %v6807 = vrot.slane %v6806, 2
  %v6808 = vadd.f32 %v6806, %v6807
  %v6809 = vrot.slane %v6808, 1
  %v6810 = vadd.f32 %v6808, %v6809
  %v6811 = vsel %vm4415, %v6366, 0.0
  %v6812 = vsel %vm4415, %v6368, 0.0
  %v6813 = vadd.f32 %v6811, %v6812
  %v6814 = vrot.slane %v6813, 4
  %v6815 = vadd.f32 %v6813, %v6814
  %v6816 = vrot.slane %v6815, 2
  %v6817 = vadd.f32 %v6815, %v6816
  %v6818 = vrot.slane %v6817, 1
  %v6819 = vadd.f32 %v6817, %v6818
  %v6820 = vsel %vm4415, %v6370, 0.0
  %v6821 = vsel %vm4415, %v6372, 0.0
  %v6822 = vadd.f32 %v6820, %v6821
  %v6823 = vrot.slane %v6822, 4
  %v6824 = vadd.f32 %v6822, %v6823
  %v6825 = vrot.slane %v6824, 2
  %v6826 = vadd.f32 %v6824, %v6825
  %v6827 = vrot.slane %v6826, 1
  %v6828 = vadd.f32 %v6826, %v6827
  %v6829 = vsel %vm4415, %v6374, 0.0
  %v6830 = vsel %vm4415, %v6376, 0.0
  %v6831 = vadd.f32 %v6829, %v6830
  %v6832 = vrot.slane %v6831, 4
  %v6833 = vadd.f32 %v6831, %v6832
  %v6834 = vrot.slane %v6833, 2
  %v6835 = vadd.f32 %v6833, %v6834
  %v6836 = vrot.slane %v6835, 1
  %v6837 = vadd.f32 %v6835, %v6836
  %v6838 = vsel %vm4415, %v6378, 0.0
  %v6839 = vsel %vm4415, %v6380, 0.0
  %v6840 = vadd.f32 %v6838, %v6839
  %v6841 = vrot.slane %v6840, 4
  %v6842 = vadd.f32 %v6840, %v6841
  %v6843 = vrot.slane %v6842, 2
  %v6844 = vadd.f32 %v6842, %v6843
  %v6845 = vrot.slane %v6844, 1
  %v6846 = vadd.f32 %v6844, %v6845
  %v6847 = vsel %vm4415, %v6382, 0.0
  %v6848 = vsel %vm4415, %v6384, 0.0
  %v6849 = vadd.f32 %v6847, %v6848
  %v6850 = vrot.slane %v6849, 4
  %v6851 = vadd.f32 %v6849, %v6850
  %v6852 = vrot.slane %v6851, 2
  %v6853 = vadd.f32 %v6851, %v6852
  %v6854 = vrot.slane %v6853, 1
  %v6855 = vadd.f32 %v6853, %v6854
  %v6856 = vsel %vm4415, %v6386, 0.0
  %v6857 = vsel %vm4415, %v6388, 0.0
  %v6858 = vadd.f32 %v6856, %v6857
  %v6859 = vrot.slane %v6858, 4
  %v6860 = vadd.f32 %v6858, %v6859
  %v6861 = vrot.slane %v6860, 2
  %v6862 = vadd.f32 %v6860, %v6861
  %v6863 = vrot.slane %v6862, 1
  %v6864 = vadd.f32 %v6862, %v6863
  %v6865 = vsel %vm4415, %v6390, 0.0
  %v6866 = vsel %vm4415, %v6392, 0.0
  %v6867 = vadd.f32 %v6865, %v6866
  %v6868 = vrot.slane %v6867, 4
  %v6869 = vadd.f32 %v6867, %v6868
  %v6870 = vrot.slane %v6869, 2
  %v6871 = vadd.f32 %v6869, %v6870
  %v6872 = vrot.slane %v6871, 1
  %v6873 = vadd.f32 %v6871, %v6872
  %v6874 = vsel %vm4415, %v6394, 0.0
  %v6875 = vsel %vm4415, %v6396, 0.0
  %v6876 = vadd.f32 %v6874, %v6875
  %v6877 = vrot.slane %v6876, 4
  %v6878 = vadd.f32 %v6876, %v6877
  %v6879 = vrot.slane %v6878, 2
  %v6880 = vadd.f32 %v6878, %v6879
  %v6881 = vrot.slane %v6880, 1
  %v6882 = vadd.f32 %v6880, %v6881
  %v6883 = vsel %vm4415, %v6398, 0.0
  %v6884 = vsel %vm4415, %v6400, 0.0
  %v6885 = vadd.f32 %v6883, %v6884
  %v6886 = vrot.slane %v6885, 4
  %v6887 = vadd.f32 %v6885, %v6886
  %v6888 = vrot.slane %v6887, 2
  %v6889 = vadd.f32 %v6887, %v6888
  %v6890 = vrot.slane %v6889, 1
  %v6891 = vadd.f32 %v6889, %v6890
  %v6892 = vsel %vm4415, %v6402, 0.0
  %v6893 = vsel %vm4415, %v6404, 0.0
  %v6894 = vadd.f32 %v6892, %v6893
  %v6895 = vrot.slane %v6894, 4
  %v6896 = vadd.f32 %v6894, %v6895
  %v6897 = vrot.slane %v6896, 2
  %v6898 = vadd.f32 %v6896, %v6897
  %v6899 = vrot.slane %v6898, 1
  %v6900 = vadd.f32 %v6898, %v6899
  %v6901 = vsel %vm4415, %v6406, 0.0
  %v6902 = vsel %vm4415, %v6408, 0.0
  %v6903 = vadd.f32 %v6901, %v6902
  %v6904 = vrot.slane %v6903, 4
  %v6905 = vadd.f32 %v6903, %v6904
  %v6906 = vrot.slane %v6905, 2
  %v6907 = vadd.f32 %v6905, %v6906
  %v6908 = vrot.slane %v6907, 1
  %v6909 = vadd.f32 %v6907, %v6908
  %v6910 = vsel %vm4415, %v6410, 0.0
  %v6911 = vsel %vm4415, %v6412, 0.0
  %v6912 = vadd.f32 %v6910, %v6911
  %v6913 = vrot.slane %v6912, 4
  %v6914 = vadd.f32 %v6912, %v6913
  %v6915 = vrot.slane %v6914, 2
  %v6916 = vadd.f32 %v6914, %v6915
  %v6917 = vrot.slane %v6916, 1
  %v6918 = vadd.f32 %v6916, %v6917
  %v6919 = vsel %vm4415, %v6414, 0.0
  %v6920 = vsel %vm4415, %v6416, 0.0
  %v6921 = vadd.f32 %v6919, %v6920
  %v6922 = vrot.slane %v6921, 4
  %v6923 = vadd.f32 %v6921, %v6922
  %v6924 = vrot.slane %v6923, 2
  %v6925 = vadd.f32 %v6923, %v6924
  %v6926 = vrot.slane %v6925, 1
  %v6927 = vadd.f32 %v6925, %v6926
  %v6928 = vsel %vm4415, %v6418, 0.0
  %v6929 = vsel %vm4415, %v6420, 0.0
  %v6930 = vadd.f32 %v6928, %v6929
  %v6931 = vrot.slane %v6930, 4
  %v6932 = vadd.f32 %v6930, %v6931
  %v6933 = vrot.slane %v6932, 2
  %v6934 = vadd.f32 %v6932, %v6933
  %v6935 = vrot.slane %v6934, 1
  %v6936 = vadd.f32 %v6934, %v6935
  %v6937 = vsel %vm4415, %v6422, 0.0
  %v6938 = vsel %vm4415, %v6424, 0.0
  %v6939 = vadd.f32 %v6937, %v6938
  %v6940 = vrot.slane %v6939, 4
  %v6941 = vadd.f32 %v6939, %v6940
  %v6942 = vrot.slane %v6941, 2
  %v6943 = vadd.f32 %v6941, %v6942
  %v6944 = vrot.slane %v6943, 1
  %v6945 = vadd.f32 %v6943, %v6944
  %v6946 = vsel %vm4415, %v6426, 0.0
  %v6947 = vsel %vm4415, %v6428, 0.0
  %v6948 = vadd.f32 %v6946, %v6947
  %v6949 = vrot.slane %v6948, 4
  %v6950 = vadd.f32 %v6948, %v6949
  %v6951 = vrot.slane %v6950, 2
  %v6952 = vadd.f32 %v6950, %v6951
  %v6953 = vrot.slane %v6952, 1
  %v6954 = vadd.f32 %v6952, %v6953
  %v6955 = vsel %vm4415, %v6430, 0.0
  %v6956 = vsel %vm4415, %v6432, 0.0
  %v6957 = vadd.f32 %v6955, %v6956
  %v6958 = vrot.slane %v6957, 4
  %v6959 = vadd.f32 %v6957, %v6958
  %v6960 = vrot.slane %v6959, 2
  %v6961 = vadd.f32 %v6959, %v6960
  %v6962 = vrot.slane %v6961, 1
  %v6963 = vadd.f32 %v6961, %v6962
  %v6964 = vsel %vm4415, %v6434, 0.0
  %v6965 = vsel %vm4415, %v6436, 0.0
  %v6966 = vadd.f32 %v6964, %v6965
  %v6967 = vrot.slane %v6966, 4
  %v6968 = vadd.f32 %v6966, %v6967
  %v6969 = vrot.slane %v6968, 2
  %v6970 = vadd.f32 %v6968, %v6969
  %v6971 = vrot.slane %v6970, 1
  %v6972 = vadd.f32 %v6970, %v6971
  %v6973 = vsel %vm4415, %v6438, 0.0
  %v6974 = vsel %vm4415, %v6440, 0.0
  %v6975 = vadd.f32 %v6973, %v6974
  %v6976 = vrot.slane %v6975, 4
  %v6977 = vadd.f32 %v6975, %v6976
  %v6978 = vrot.slane %v6977, 2
  %v6979 = vadd.f32 %v6977, %v6978
  %v6980 = vrot.slane %v6979, 1
  %v6981 = vadd.f32 %v6979, %v6980
  %v6982 = vsel %vm4415, %v6442, 0.0
  %v6983 = vsel %vm4415, %v6444, 0.0
  %v6984 = vadd.f32 %v6982, %v6983
  %v6985 = vrot.slane %v6984, 4
  %v6986 = vadd.f32 %v6984, %v6985
  %v6987 = vrot.slane %v6986, 2
  %v6988 = vadd.f32 %v6986, %v6987
  %v6989 = vrot.slane %v6988, 1
  %v6990 = vadd.f32 %v6988, %v6989
  %v6991 = vsel %vm4415, %v6446, 0.0
  %v6992 = vsel %vm4415, %v6448, 0.0
  %v6993 = vadd.f32 %v6991, %v6992
  %v6994 = vrot.slane %v6993, 4
  %v6995 = vadd.f32 %v6993, %v6994
  %v6996 = vrot.slane %v6995, 2
  %v6997 = vadd.f32 %v6995, %v6996
  %v6998 = vrot.slane %v6997, 1
  %v6999 = vadd.f32 %v6997, %v6998
  %v7000 = vsel %vm4415, %v6450, 0.0
  %v7001 = vsel %vm4415, %v6452, 0.0
  %v7002 = vadd.f32 %v7000, %v7001
  %v7003 = vrot.slane %v7002, 4
  %v7004 = vadd.f32 %v7002, %v7003
  %v7005 = vrot.slane %v7004, 2
  %v7006 = vadd.f32 %v7004, %v7005
  %v7007 = vrot.slane %v7006, 1
  %v7008 = vadd.f32 %v7006, %v7007
  %v7009 = vsel %vm4415, %v6454, 0.0
  %v7010 = vsel %vm4415, %v6456, 0.0
  %v7011 = vadd.f32 %v7009, %v7010
  %v7012 = vrot.slane %v7011, 4
  %v7013 = vadd.f32 %v7011, %v7012
  %v7014 = vrot.slane %v7013, 2
  %v7015 = vadd.f32 %v7013, %v7014
  %v7016 = vrot.slane %v7015, 1
  %v7017 = vadd.f32 %v7015, %v7016
  %v7018 = vsel %vm4415, %v6458, 0.0
  %v7019 = vsel %vm4415, %v6460, 0.0
  %v7020 = vadd.f32 %v7018, %v7019
  %v7021 = vrot.slane %v7020, 4
  %v7022 = vadd.f32 %v7020, %v7021
  %v7023 = vrot.slane %v7022, 2
  %v7024 = vadd.f32 %v7022, %v7023
  %v7025 = vrot.slane %v7024, 1
  %v7026 = vadd.f32 %v7024, %v7025
  %v7027 = vsel %vm4415, %v6462, 0.0
  %v7028 = vsel %vm4415, %v6464, 0.0
  %v7029 = vadd.f32 %v7027, %v7028
  %v7030 = vrot.slane %v7029, 4
  %v7031 = vadd.f32 %v7029, %v7030
  %v7032 = vrot.slane %v7031, 2
  %v7033 = vadd.f32 %v7031, %v7032
  %v7034 = vrot.slane %v7033, 1
  %v7035 = vadd.f32 %v7033, %v7034
  %v7036 = vsel %vm4415, %v6466, 0.0
  %v7037 = vsel %vm4415, %v6468, 0.0
  %v7038 = vadd.f32 %v7036, %v7037
  %v7039 = vrot.slane %v7038, 4
  %v7040 = vadd.f32 %v7038, %v7039
  %v7041 = vrot.slane %v7040, 2
  %v7042 = vadd.f32 %v7040, %v7041
  %v7043 = vrot.slane %v7042, 1
  %v7044 = vadd.f32 %v7042, %v7043
  %v7045 = vrcp.pop %v6477
  %v7046 = vrcp.pop %v6486
  %v7047 = vrcp.pop %v6495
  %v7048 = vrcp.pop %v6504
  %v7049 = vrcp.pop %v6513
  %v7050 = vrcp.pop %v6522
  %v7051 = vrcp.pop %v6531
  %v7052 = vrcp.pop %v6540
  %v7053 = vrcp.pop %v6549
  %v7054 = vrcp.pop %v6558
  %v7055 = vrcp.pop %v6567
  %v7056 = vrcp.pop %v6576
  %v7057 = vrcp.pop %v6585
  %v7058 = vrcp.pop %v6594
  %v7059 = vrcp.pop %v6603
  %v7060 = vrcp.pop %v6612
  %v7061 = vrcp.pop %v6621
  %v7062 = vrcp.pop %v6630
  %v7063 = vrcp.pop %v6639
  %v7064 = vrcp.pop %v6648
  %v7065 = vrcp.pop %v6657
  %v7066 = vrcp.pop %v6666
  %v7067 = vrcp.pop %v6675
  %v7068 = vrcp.pop %v6684
  %v7069 = vrcp.pop %v6693
  %v7070 = vrcp.pop %v6702
  %v7071 = vrcp.pop %v6711
  %v7072 = vrcp.pop %v6720
  %v7073 = vrcp.pop %v6729
  %v7074 = vrcp.pop %v6738
  %v7075 = vrcp.pop %v6747
  %v7076 = vrcp.pop %v6756
  %v7077 = vrcp.pop %v6765
  %v7078 = vrcp.pop %v6774
  %v7079 = vrcp.pop %v6783
  %v7080 = vrcp.pop %v6792
  %v7081 = vrcp.pop %v6801
  %v7082 = vrcp.pop %v6810
  %v7083 = vrcp.pop %v6819
  %v7084 = vrcp.pop %v6828
  %v7085 = vrcp.pop %v6837
  %v7086 = vrcp.pop %v6846
  %v7087 = vrcp.pop %v6855
  %v7088 = vrcp.pop %v6864
  %v7089 = vrcp.pop %v6873
  %v7090 = vrcp.pop %v6882
  %v7091 = vrcp.pop %v6891
  %v7092 = vrcp.pop %v6900
  %v7093 = vrcp.pop %v6909
  %v7094 = vrcp.pop %v6918
  %v7095 = vrcp.pop %v6927
  %v7096 = vrcp.pop %v6936
  %v7097 = vrcp.pop %v6945
  %v7098 = vrcp.pop %v6954
  %v7099 = vrcp.pop %v6963
  %v7100 = vrcp.pop %v6972
  %v7101 = vrcp.pop %v6981
  %v7102 = vrcp.pop %v6990
  %v7103 = vrcp.pop %v6999
  %v7104 = vrcp.pop %v7008
  %v7105 = vrcp.pop %v7017
  %v7106 = vrcp.pop %v7026
  %v7107 = vrcp.pop %v7035
  %v7108 = vrcp.pop %v7044
  %v7109 = vmul.f32 %v6214, %v7045
  %v7110 = vmul.f32 %v6216, %v7045
  %v7111 = vmul.f32 %v6218, %v7046
  %v7112 = vmul.f32 %v6220, %v7046
  %v7113 = vmul.f32 %v6222, %v7047
  %v7114 = vmul.f32 %v6224, %v7047
  %v7115 = vmul.f32 %v6226, %v7048
  %v7116 = vmul.f32 %v6228, %v7048
  %v7117 = vmul.f32 %v6230, %v7049
  %v7118 = vmul.f32 %v6232, %v7049
  %v7119 = vmul.f32 %v6234, %v7050
  %v7120 = vmul.f32 %v6236, %v7050
  %v7121 = vmul.f32 %v6238, %v7051
  %v7122 = vmul.f32 %v6240, %v7051
  %v7123 = vmul.f32 %v6242, %v7052
  %v7124 = vmul.f32 %v6244, %v7052
  %v7125 = vmul.f32 %v6246, %v7053
  %v7126 = vmul.f32 %v6248, %v7053
  %v7127 = vmul.f32 %v6250, %v7054
  %v7128 = vmul.f32 %v6252, %v7054
  %v7129 = vmul.f32 %v6254, %v7055
  %v7130 = vmul.f32 %v6256, %v7055
  %v7131 = vmul.f32 %v6258, %v7056
  %v7132 = vmul.f32 %v6260, %v7056
  %v7133 = vmul.f32 %v6262, %v7057
  %v7134 = vmul.f32 %v6264, %v7057
  %v7135 = vmul.f32 %v6266, %v7058
  %v7136 = vmul.f32 %v6268, %v7058
  %v7137 = vmul.f32 %v6270, %v7059
  %v7138 = vmul.f32 %v6272, %v7059
  %v7139 = vmul.f32 %v6274, %v7060
  %v7140 = vmul.f32 %v6276, %v7060
  %v7141 = vmul.f32 %v6278, %v7061
  %v7142 = vmul.f32 %v6280, %v7061
  %v7143 = vmul.f32 %v6282, %v7062
  %v7144 = vmul.f32 %v6284, %v7062
  %v7145 = vmul.f32 %v6286, %v7063
  %v7146 = vmul.f32 %v6288, %v7063
  %v7147 = vmul.f32 %v6290, %v7064
  %v7148 = vmul.f32 %v6292, %v7064
  %v7149 = vmul.f32 %v6294, %v7065
  %v7150 = vmul.f32 %v6296, %v7065
  %v7151 = vmul.f32 %v6298, %v7066
  %v7152 = vmul.f32 %v6300, %v7066
  %v7153 = vmul.f32 %v6302, %v7067
  %v7154 = vmul.f32 %v6304, %v7067
  %v7155 = vmul.f32 %v6306, %v7068
  %v7156 = vmul.f32 %v6308, %v7068
  %v7157 = vmul.f32 %v6310, %v7069
  %v7158 = vmul.f32 %v6312, %v7069
  %v7159 = vmul.f32 %v6314, %v7070
  %v7160 = vmul.f32 %v6316, %v7070
  %v7161 = vmul.f32 %v6318, %v7071
  %v7162 = vmul.f32 %v6320, %v7071
  %v7163 = vmul.f32 %v6322, %v7072
  %v7164 = vmul.f32 %v6324, %v7072
  %v7165 = vmul.f32 %v6326, %v7073
  %v7166 = vmul.f32 %v6328, %v7073
  %v7167 = vmul.f32 %v6330, %v7074
  %v7168 = vmul.f32 %v6332, %v7074
  %v7169 = vmul.f32 %v6334, %v7075
  %v7170 = vmul.f32 %v6336, %v7075
  %v7171 = vmul.f32 %v6338, %v7076
  %v7172 = vmul.f32 %v6340, %v7076
  %v7173 = vmul.f32 %v6342, %v7077
  %v7174 = vmul.f32 %v6344, %v7077
  %v7175 = vmul.f32 %v6346, %v7078
  %v7176 = vmul.f32 %v6348, %v7078
  %v7177 = vmul.f32 %v6350, %v7079
  %v7178 = vmul.f32 %v6352, %v7079
  %v7179 = vmul.f32 %v6354, %v7080
  %v7180 = vmul.f32 %v6356, %v7080
  %v7181 = vmul.f32 %v6358, %v7081
  %v7182 = vmul.f32 %v6360, %v7081
  %v7183 = vmul.f32 %v6362, %v7082
  %v7184 = vmul.f32 %v6364, %v7082
  %v7185 = vmul.f32 %v6366, %v7083
  %v7186 = vmul.f32 %v6368, %v7083
  %v7187 = vmul.f32 %v6370, %v7084
  %v7188 = vmul.f32 %v6372, %v7084
  %v7189 = vmul.f32 %v6374, %v7085
  %v7190 = vmul.f32 %v6376, %v7085
  %v7191 = vmul.f32 %v6378, %v7086
  %v7192 = vmul.f32 %v6380, %v7086
  %v7193 = vmul.f32 %v6382, %v7087
  %v7194 = vmul.f32 %v6384, %v7087
  %v7195 = vmul.f32 %v6386, %v7088
  %v7196 = vmul.f32 %v6388, %v7088
  %v7197 = vmul.f32 %v6390, %v7089
  %v7198 = vmul.f32 %v6392, %v7089
  %v7199 = vmul.f32 %v6394, %v7090
  %v7200 = vmul.f32 %v6396, %v7090
  %v7201 = vmul.f32 %v6398, %v7091
  %v7202 = vmul.f32 %v6400, %v7091
  %v7203 = vmul.f32 %v6402, %v7092
  %v7204 = vmul.f32 %v6404, %v7092
  %v7205 = vmul.f32 %v6406, %v7093
  %v7206 = vmul.f32 %v6408, %v7093
  %v7207 = vmul.f32 %v6410, %v7094
  %v7208 = vmul.f32 %v6412, %v7094
  %v7209 = vmul.f32 %v6414, %v7095
  %v7210 = vmul.f32 %v6416, %v7095
  %v7211 = vmul.f32 %v6418, %v7096
  %v7212 = vmul.f32 %v6420, %v7096
  %v7213 = vmul.f32 %v6422, %v7097
  %v7214 = vmul.f32 %v6424, %v7097
  %v7215 = vmul.f32 %v6426, %v7098
  %v7216 = vmul.f32 %v6428, %v7098
  %v7217 = vmul.f32 %v6430, %v7099
  %v7218 = vmul.f32 %v6432, %v7099
  %v7219 = vmul.f32 %v6434, %v7100
  %v7220 = vmul.f32 %v6436, %v7100
  %v7221 = vmul.f32 %v6438, %v7101
  %v7222 = vmul.f32 %v6440, %v7101
  %v7223 = vmul.f32 %v6442, %v7102
  %v7224 = vmul.f32 %v6444, %v7102
  %v7225 = vmul.f32 %v6446, %v7103
  %v7226 = vmul.f32 %v6448, %v7103
  %v7227 = vmul.f32 %v6450, %v7104
  %v7228 = vmul.f32 %v6452, %v7104
  %v7229 = vmul.f32 %v6454, %v7105
  %v7230 = vmul.f32 %v6456, %v7105
  %v7231 = vmul.f32 %v6458, %v7106
  %v7232 = vmul.f32 %v6460, %v7106
  %v7233 = vmul.f32 %v6462, %v7107
  %v7234 = vmul.f32 %v6464, %v7107
  %v7235 = vmul.f32 %v6466, %v7108
  %v7236 = vmul.f32 %v6468, %v7108
  %v7237 = vld [vmem:[%s14] sm:$0xf]
  %v7239 = vsel %vm4415, %v7109, 0
  %v7242 = vsel %vm4415, %v7110, 0
  %v7245 = vsel %vm4415, %v7111, 0
  %v7248 = vsel %vm4415, %v7112, 0
  %v7251 = vsel %vm4415, %v7113, 0
  %v7254 = vsel %vm4415, %v7114, 0
  %v7257 = vsel %vm4415, %v7115, 0
  %v7260 = vsel %vm4415, %v7116, 0
  %v7263 = vsel %vm4415, %v7117, 0
  %v7266 = vsel %vm4415, %v7118, 0
  %v7269 = vsel %vm4415, %v7119, 0
  %v7272 = vsel %vm4415, %v7120, 0
  %v7275 = vsel %vm4415, %v7121, 0
  %v7278 = vsel %vm4415, %v7122, 0
  %v7281 = vsel %vm4415, %v7123, 0
  %v7284 = vsel %vm4415, %v7124, 0
  %v7287 = vsel %vm4415, %v7125, 0
  %v7290 = vsel %vm4415, %v7126, 0
  %v7293 = vsel %vm4415, %v7127, 0
  %v7296 = vsel %vm4415, %v7128, 0
  %v7299 = vsel %vm4415, %v7129, 0
  %v7302 = vsel %vm4415, %v7130, 0
  %v7305 = vsel %vm4415, %v7131, 0
  %v7308 = vsel %vm4415, %v7132, 0
  %v7311 = vsel %vm4415, %v7133, 0
  %v7314 = vsel %vm4415, %v7134, 0
  %v7317 = vsel %vm4415, %v7135, 0
  %v7320 = vsel %vm4415, %v7136, 0
  %v7323 = vsel %vm4415, %v7137, 0
  %v7326 = vsel %vm4415, %v7138, 0
  %v7329 = vsel %vm4415, %v7139, 0
  %v7332 = vsel %vm4415, %v7140, 0
  %v7335 = vsel %vm4415, %v7141, 0
  %v7338 = vsel %vm4415, %v7142, 0
  %v7341 = vsel %vm4415, %v7143, 0
  %v7344 = vsel %vm4415, %v7144, 0
  %v7347 = vsel %vm4415, %v7145, 0
  %v7350 = vsel %vm4415, %v7146, 0
  %v7353 = vsel %vm4415, %v7147, 0
  %v7356 = vsel %vm4415, %v7148, 0
  %v7359 = vsel %vm4415, %v7149, 0
  %v7362 = vsel %vm4415, %v7150, 0
  %v7365 = vsel %vm4415, %v7151, 0
  %v7368 = vsel %vm4415, %v7152, 0
  %v7371 = vsel %vm4415, %v7153, 0
  %v7374 = vsel %vm4415, %v7154, 0
  %v7377 = vsel %vm4415, %v7155, 0
  %v7380 = vsel %vm4415, %v7156, 0
  %v7383 = vsel %vm4415, %v7157, 0
  %v7386 = vsel %vm4415, %v7158, 0
  %v7389 = vsel %vm4415, %v7159, 0
  %v7392 = vsel %vm4415, %v7160, 0
  %v7395 = vsel %vm4415, %v7161, 0
  %v7398 = vsel %vm4415, %v7162, 0
  %v7401 = vsel %vm4415, %v7163, 0
  %v7404 = vsel %vm4415, %v7164, 0
  %v7407 = vsel %vm4415, %v7165, 0
  %v7410 = vsel %vm4415, %v7166, 0
  %v7413 = vsel %vm4415, %v7167, 0
  %v7416 = vsel %vm4415, %v7168, 0
  %v7419 = vsel %vm4415, %v7169, 0
  %v7422 = vsel %vm4415, %v7170, 0
  %v7425 = vsel %vm4415, %v7171, 0
  %v7428 = vsel %vm4415, %v7172, 0
  %v7431 = vsel %vm4415, %v7173, 0
  %v7434 = vsel %vm4415, %v7174, 0
  %v7437 = vsel %vm4415, %v7175, 0
  %v7440 = vsel %vm4415, %v7176, 0
  %v7443 = vsel %vm4415, %v7177, 0
  %v7446 = vsel %vm4415, %v7178, 0
  %v7449 = vsel %vm4415, %v7179, 0
  %v7452 = vsel %vm4415, %v7180, 0
  %v7455 = vsel %vm4415, %v7181, 0
  %v7458 = vsel %vm4415, %v7182, 0
  %v7461 = vsel %vm4415, %v7183, 0
  %v7464 = vsel %vm4415, %v7184, 0
  %v7467 = vsel %vm4415, %v7185, 0
  %v7470 = vsel %vm4415, %v7186, 0
  %v7473 = vsel %vm4415, %v7187, 0
  %v7476 = vsel %vm4415, %v7188, 0
  %v7479 = vsel %vm4415, %v7189, 0
  %v7482 = vsel %vm4415, %v7190, 0
  %v7485 = vsel %vm4415, %v7191, 0
  %v7488 = vsel %vm4415, %v7192, 0
  %v7491 = vsel %vm4415, %v7193, 0
  %v7494 = vsel %vm4415, %v7194, 0
  %v7497 = vsel %vm4415, %v7195, 0
  %v7500 = vsel %vm4415, %v7196, 0
  %v7503 = vsel %vm4415, %v7197, 0
  %v7506 = vsel %vm4415, %v7198, 0
  %v7509 = vsel %vm4415, %v7199, 0
  %v7512 = vsel %vm4415, %v7200, 0
  %v7515 = vsel %vm4415, %v7201, 0
  %v7518 = vsel %vm4415, %v7202, 0
  %v7521 = vsel %vm4415, %v7203, 0
  %v7524 = vsel %vm4415, %v7204, 0
  %v7527 = vsel %vm4415, %v7205, 0
  %v7530 = vsel %vm4415, %v7206, 0
  %v7533 = vsel %vm4415, %v7207, 0
  %v7536 = vsel %vm4415, %v7208, 0
  %v7539 = vsel %vm4415, %v7209, 0
  %v7542 = vsel %vm4415, %v7210, 0
  %v7545 = vsel %vm4415, %v7211, 0
  %v7548 = vsel %vm4415, %v7212, 0
  %v7551 = vsel %vm4415, %v7213, 0
  %v7554 = vsel %vm4415, %v7214, 0
  %v7557 = vsel %vm4415, %v7215, 0
  %v7560 = vsel %vm4415, %v7216, 0
  %v7563 = vsel %vm4415, %v7217, 0
  %v7566 = vsel %vm4415, %v7218, 0
  %v7569 = vsel %vm4415, %v7219, 0
  %v7572 = vsel %vm4415, %v7220, 0
  %v7575 = vsel %vm4415, %v7221, 0
  %v7578 = vsel %vm4415, %v7222, 0
  %v7581 = vsel %vm4415, %v7223, 0
  %v7584 = vsel %vm4415, %v7224, 0
  %v7587 = vsel %vm4415, %v7225, 0
  %v7590 = vsel %vm4415, %v7226, 0
  %v7593 = vsel %vm4415, %v7227, 0
  %v7596 = vsel %vm4415, %v7228, 0
  %v7599 = vsel %vm4415, %v7229, 0
  %v7602 = vsel %vm4415, %v7230, 0
  %v7605 = vsel %vm4415, %v7231, 0
  %v7608 = vsel %vm4415, %v7232, 0
  %v7611 = vsel %vm4415, %v7233, 0
  %v7614 = vsel %vm4415, %v7234, 0
  %v7617 = vsel %vm4415, %v7235, 0
  %v7620 = vsel %vm4415, %v7236, 0
  %v7623 = vsel %vm4800, %v7237, 0
  %7625 = vmatprep.subr.mxu0 0.0
  %7626 = vmatpush1.msra.mxu0 0.0
  %7627 = vmatprep.subr.mxu0 0.0
  %7628 = vmatpush1.msra.mxu0 0.0
  %7629 = vmatprep.subr.mxu0 0.0
  %7630 = vmatpush1.msra.mxu0 0.0
  %7631 = vmatprep.subr.mxu0 0.0
  %7632 = vmatpush1.msra.mxu0 0.0
  %7633 = vmatprep.subr.mxu0 0.0
  %7634 = vmatpush1.msra.mxu0 0.0
  %7635 = vmatprep.subr.mxu0 0.0
  %7636 = vmatpush1.msra.mxu0 0.0
  %7637 = vmatprep.subr.mxu0 0.0
  %7638 = vmatpush1.msra.mxu0 0.0
  %7639 = vmatprep.subr.mxu0 0.0
  %7640 = vmatpush1.msra.mxu0 0.0
  %7641 = vmatprep.subr.mxu0 0.0
  %7642 = vmatpush1.msra.mxu0 0.0
  %7643 = vmatprep.subr.mxu0 0.0
  %7644 = vmatpush1.msra.mxu0 0.0
  %7645 = vmatprep.subr.mxu0 0.0
  %7646 = vmatpush1.msra.mxu0 0.0
  %7647 = vmatprep.subr.mxu0 0.0
  %7648 = vmatpush1.msra.mxu0 0.0
  %7649 = vmatprep.subr.mxu0 0.0
  %7650 = vmatpush1.msra.mxu0 0.0
  %7651 = vmatprep.subr.mxu0 0.0
  %7652 = vmatpush1.msra.mxu0 0.0
  %7653 = vmatprep.subr.mxu0 0.0
  %7654 = vmatpush1.msra.mxu0 0.0
  %7655 = vmatprep.subr.mxu0 0.0
  %7656 = vmatpush1.msra.mxu0 %v7623
  %7657 = vmatprep.subr.mxu0 0.0
  %7658 = vmatpush2.msra.mxu0 0.0
  %7659 = vmatprep.subr.mxu0 0.0
  %7660 = vmatpush2.msra.mxu0 0.0
  %7661 = vmatprep.subr.mxu0 0.0
  %7662 = vmatpush2.msra.mxu0 0.0
  %7663 = vmatprep.subr.mxu0 0.0
  %7664 = vmatpush2.msra.mxu0 0.0
  %7665 = vmatprep.subr.mxu0 0.0
  %7666 = vmatpush2.msra.mxu0 0.0
  %7667 = vmatprep.subr.mxu0 0.0
  %7668 = vmatpush2.msra.mxu0 0.0
  %7669 = vmatprep.subr.mxu0 0.0
  %7670 = vmatpush2.msra.mxu0 0.0
  %7671 = vmatprep.subr.mxu0 0.0
  %7672 = vmatpush2.msra.mxu0 0.0
  %7673 = vmatprep.subr.mxu0 0.0
  %7674 = vmatpush2.msra.mxu0 0.0
  %7675 = vmatprep.subr.mxu0 0.0
  %7676 = vmatpush2.msra.mxu0 0.0
  %7677 = vmatprep.subr.mxu0 0.0
  %7678 = vmatpush2.msra.mxu0 0.0
  %7679 = vmatprep.subr.mxu0 0.0
  %7680 = vmatpush2.msra.mxu0 0.0
  %7681 = vmatprep.subr.mxu0 0.0
  %7682 = vmatpush2.msra.mxu0 0.0
  %7683 = vmatprep.subr.mxu0 0.0
  %7684 = vmatpush2.msra.mxu0 0.0
  %7685 = vmatprep.subr.mxu0 0.0
  %7686 = vmatpush2.msra.mxu0 0.0
  %7687 = vmatprep.subr.mxu0 0.0
  %7688 = vmatpush2.msra.mxu0 0.0
  %7689 = vmatprep.mubr.f32.mxu0 0.0
  %7690 = vmatmul.mubr.f32.gmra.mxu0 %v7239
  %v7691 = vpop.f32.mrf.mxu0
  %v7692 = vadd.f32 0.0, %v7691
  %v7693 = vpop.f32.mrf.mxu0
  %7694 = vmatprep.mubr.f32.mxu0 0.0
  %7695 = vmatmul.mubr.f32.gmra.mxu0 %v7242
  %v7696 = vpop.f32.mrf.mxu0
  %v7697 = vadd.f32 0.0, %v7696
  %v7698 = vpop.f32.mrf.mxu0
  %7699 = vmatprep.mubr.f32.mxu0 0.0
  %7700 = vmatmul.mubr.f32.gmra.mxu0 %v7245
  %v7701 = vpop.f32.mrf.mxu0
  %v7702 = vadd.f32 0.0, %v7701
  %v7703 = vpop.f32.mrf.mxu0
  %7704 = vmatprep.mubr.f32.mxu0 0.0
  %7705 = vmatmul.mubr.f32.gmra.mxu0 %v7248
  %v7706 = vpop.f32.mrf.mxu0
  %v7707 = vadd.f32 0.0, %v7706
  %v7708 = vpop.f32.mrf.mxu0
  %7709 = vmatprep.mubr.f32.mxu0 0.0
  %7710 = vmatmul.mubr.f32.gmra.mxu0 %v7251
  %v7711 = vpop.f32.mrf.mxu0
  %v7712 = vadd.f32 0.0, %v7711
  %v7713 = vpop.f32.mrf.mxu0
  %7714 = vmatprep.mubr.f32.mxu0 0.0
  %7715 = vmatmul.mubr.f32.gmra.mxu0 %v7254
  %v7716 = vpop.f32.mrf.mxu0
  %v7717 = vadd.f32 0.0, %v7716
  %v7718 = vpop.f32.mrf.mxu0
  %7719 = vmatprep.mubr.f32.mxu0 0.0
  %7720 = vmatmul.mubr.f32.gmra.mxu0 %v7257
  %v7721 = vpop.f32.mrf.mxu0
  %v7722 = vadd.f32 0.0, %v7721
  %v7723 = vpop.f32.mrf.mxu0
  %7724 = vmatprep.mubr.f32.mxu0 0.0
  %7725 = vmatmul.mubr.f32.gmra.mxu0 %v7260
  %v7726 = vpop.f32.mrf.mxu0
  %v7727 = vadd.f32 0.0, %v7726
  %v7728 = vpop.f32.mrf.mxu0
  %7729 = vmatprep.mubr.f32.mxu0 0.0
  %7730 = vmatmul.mubr.f32.gmra.mxu0 %v7263
  %v7731 = vpop.f32.mrf.mxu0
  %v7732 = vadd.f32 0.0, %v7731
  %v7733 = vpop.f32.mrf.mxu0
  %7734 = vmatprep.mubr.f32.mxu0 0.0
  %7735 = vmatmul.mubr.f32.gmra.mxu0 %v7266
  %v7736 = vpop.f32.mrf.mxu0
  %v7737 = vadd.f32 0.0, %v7736
  %v7738 = vpop.f32.mrf.mxu0
  %7739 = vmatprep.mubr.f32.mxu0 0.0
  %7740 = vmatmul.mubr.f32.gmra.mxu0 %v7269
  %v7741 = vpop.f32.mrf.mxu0
  %v7742 = vadd.f32 0.0, %v7741
  %v7743 = vpop.f32.mrf.mxu0
  %7744 = vmatprep.mubr.f32.mxu0 0.0
  %7745 = vmatmul.mubr.f32.gmra.mxu0 %v7272
  %v7746 = vpop.f32.mrf.mxu0
  %v7747 = vadd.f32 0.0, %v7746
  %v7748 = vpop.f32.mrf.mxu0
  %7749 = vmatprep.mubr.f32.mxu0 0.0
  %7750 = vmatmul.mubr.f32.gmra.mxu0 %v7275
  %v7751 = vpop.f32.mrf.mxu0
  %v7752 = vadd.f32 0.0, %v7751
  %v7753 = vpop.f32.mrf.mxu0
  %7754 = vmatprep.mubr.f32.mxu0 0.0
  %7755 = vmatmul.mubr.f32.gmra.mxu0 %v7278
  %v7756 = vpop.f32.mrf.mxu0
  %v7757 = vadd.f32 0.0, %v7756
  %v7758 = vpop.f32.mrf.mxu0
  %7759 = vmatprep.mubr.f32.mxu0 0.0
  %7760 = vmatmul.mubr.f32.gmra.mxu0 %v7281
  %v7761 = vpop.f32.mrf.mxu0
  %v7762 = vadd.f32 0.0, %v7761
  %v7763 = vpop.f32.mrf.mxu0
  %7764 = vmatprep.mubr.f32.mxu0 0.0
  %7765 = vmatmul.mubr.f32.gmra.mxu0 %v7284
  %v7766 = vpop.f32.mrf.mxu0
  %v7767 = vadd.f32 0.0, %v7766
  %v7768 = vpop.f32.mrf.mxu0
  %7769 = vmatprep.mubr.f32.mxu0 0.0
  %7770 = vmatmul.mubr.f32.gmra.mxu0 %v7287
  %v7771 = vpop.f32.mrf.mxu0
  %v7772 = vadd.f32 0.0, %v7771
  %v7773 = vpop.f32.mrf.mxu0
  %7774 = vmatprep.mubr.f32.mxu0 0.0
  %7775 = vmatmul.mubr.f32.gmra.mxu0 %v7290
  %v7776 = vpop.f32.mrf.mxu0
  %v7777 = vadd.f32 0.0, %v7776
  %v7778 = vpop.f32.mrf.mxu0
  %7779 = vmatprep.mubr.f32.mxu0 0.0
  %7780 = vmatmul.mubr.f32.gmra.mxu0 %v7293
  %v7781 = vpop.f32.mrf.mxu0
  %v7782 = vadd.f32 0.0, %v7781
  %v7783 = vpop.f32.mrf.mxu0
  %7784 = vmatprep.mubr.f32.mxu0 0.0
  %7785 = vmatmul.mubr.f32.gmra.mxu0 %v7296
  %v7786 = vpop.f32.mrf.mxu0
  %v7787 = vadd.f32 0.0, %v7786
  %v7788 = vpop.f32.mrf.mxu0
  %7789 = vmatprep.mubr.f32.mxu0 0.0
  %7790 = vmatmul.mubr.f32.gmra.mxu0 %v7299
  %v7791 = vpop.f32.mrf.mxu0
  %v7792 = vadd.f32 0.0, %v7791
  %v7793 = vpop.f32.mrf.mxu0
  %7794 = vmatprep.mubr.f32.mxu0 0.0
  %7795 = vmatmul.mubr.f32.gmra.mxu0 %v7302
  %v7796 = vpop.f32.mrf.mxu0
  %v7797 = vadd.f32 0.0, %v7796
  %v7798 = vpop.f32.mrf.mxu0
  %7799 = vmatprep.mubr.f32.mxu0 0.0
  %7800 = vmatmul.mubr.f32.gmra.mxu0 %v7305
  %v7801 = vpop.f32.mrf.mxu0
  %v7802 = vadd.f32 0.0, %v7801
  %v7803 = vpop.f32.mrf.mxu0
  %7804 = vmatprep.mubr.f32.mxu0 0.0
  %7805 = vmatmul.mubr.f32.gmra.mxu0 %v7308
  %v7806 = vpop.f32.mrf.mxu0
  %v7807 = vadd.f32 0.0, %v7806
  %v7808 = vpop.f32.mrf.mxu0
  %7809 = vmatprep.mubr.f32.mxu0 0.0
  %7810 = vmatmul.mubr.f32.gmra.mxu0 %v7311
  %v7811 = vpop.f32.mrf.mxu0
  %v7812 = vadd.f32 0.0, %v7811
  %v7813 = vpop.f32.mrf.mxu0
  %7814 = vmatprep.mubr.f32.mxu0 0.0
  %7815 = vmatmul.mubr.f32.gmra.mxu0 %v7314
  %v7816 = vpop.f32.mrf.mxu0
  %v7817 = vadd.f32 0.0, %v7816
  %v7818 = vpop.f32.mrf.mxu0
  %7819 = vmatprep.mubr.f32.mxu0 0.0
  %7820 = vmatmul.mubr.f32.gmra.mxu0 %v7317
  %v7821 = vpop.f32.mrf.mxu0
  %v7822 = vadd.f32 0.0, %v7821
  %v7823 = vpop.f32.mrf.mxu0
  %7824 = vmatprep.mubr.f32.mxu0 0.0
  %7825 = vmatmul.mubr.f32.gmra.mxu0 %v7320
  %v7826 = vpop.f32.mrf.mxu0
  %v7827 = vadd.f32 0.0, %v7826
  %v7828 = vpop.f32.mrf.mxu0
  %7829 = vmatprep.mubr.f32.mxu0 0.0
  %7830 = vmatmul.mubr.f32.gmra.mxu0 %v7323
  %v7831 = vpop.f32.mrf.mxu0
  %v7832 = vadd.f32 0.0, %v7831
  %v7833 = vpop.f32.mrf.mxu0
  %7834 = vmatprep.mubr.f32.mxu0 0.0
  %7835 = vmatmul.mubr.f32.gmra.mxu0 %v7326
  %v7836 = vpop.f32.mrf.mxu0
  %v7837 = vadd.f32 0.0, %v7836
  %v7838 = vpop.f32.mrf.mxu0
  %7839 = vmatprep.mubr.f32.mxu0 0.0
  %7840 = vmatmul.mubr.f32.gmra.mxu0 %v7329
  %v7841 = vpop.f32.mrf.mxu0
  %v7842 = vadd.f32 0.0, %v7841
  %v7843 = vpop.f32.mrf.mxu0
  %7844 = vmatprep.mubr.f32.mxu0 0.0
  %7845 = vmatmul.mubr.f32.gmra.mxu0 %v7332
  %v7846 = vpop.f32.mrf.mxu0
  %v7847 = vadd.f32 0.0, %v7846
  %v7848 = vpop.f32.mrf.mxu0
  %7849 = vmatprep.mubr.f32.mxu0 0.0
  %7850 = vmatmul.mubr.f32.gmra.mxu0 %v7335
  %v7851 = vpop.f32.mrf.mxu0
  %v7852 = vadd.f32 0.0, %v7851
  %v7853 = vpop.f32.mrf.mxu0
  %7854 = vmatprep.mubr.f32.mxu0 0.0
  %7855 = vmatmul.mubr.f32.gmra.mxu0 %v7338
  %v7856 = vpop.f32.mrf.mxu0
  %v7857 = vadd.f32 0.0, %v7856
  %v7858 = vpop.f32.mrf.mxu0
  %7859 = vmatprep.mubr.f32.mxu0 0.0
  %7860 = vmatmul.mubr.f32.gmra.mxu0 %v7341
  %v7861 = vpop.f32.mrf.mxu0
  %v7862 = vadd.f32 0.0, %v7861
  %v7863 = vpop.f32.mrf.mxu0
  %7864 = vmatprep.mubr.f32.mxu0 0.0
  %7865 = vmatmul.mubr.f32.gmra.mxu0 %v7344
  %v7866 = vpop.f32.mrf.mxu0
  %v7867 = vadd.f32 0.0, %v7866
  %v7868 = vpop.f32.mrf.mxu0
  %7869 = vmatprep.mubr.f32.mxu0 0.0
  %7870 = vmatmul.mubr.f32.gmra.mxu0 %v7347
  %v7871 = vpop.f32.mrf.mxu0
  %v7872 = vadd.f32 0.0, %v7871
  %v7873 = vpop.f32.mrf.mxu0
  %7874 = vmatprep.mubr.f32.mxu0 0.0
  %7875 = vmatmul.mubr.f32.gmra.mxu0 %v7350
  %v7876 = vpop.f32.mrf.mxu0
  %v7877 = vadd.f32 0.0, %v7876
  %v7878 = vpop.f32.mrf.mxu0
  %7879 = vmatprep.mubr.f32.mxu0 0.0
  %7880 = vmatmul.mubr.f32.gmra.mxu0 %v7353
  %v7881 = vpop.f32.mrf.mxu0
  %v7882 = vadd.f32 0.0, %v7881
  %v7883 = vpop.f32.mrf.mxu0
  %7884 = vmatprep.mubr.f32.mxu0 0.0
  %7885 = vmatmul.mubr.f32.gmra.mxu0 %v7356
  %v7886 = vpop.f32.mrf.mxu0
  %v7887 = vadd.f32 0.0, %v7886
  %v7888 = vpop.f32.mrf.mxu0
  %7889 = vmatprep.mubr.f32.mxu0 0.0
  %7890 = vmatmul.mubr.f32.gmra.mxu0 %v7359
  %v7891 = vpop.f32.mrf.mxu0
  %v7892 = vadd.f32 0.0, %v7891
  %v7893 = vpop.f32.mrf.mxu0
  %7894 = vmatprep.mubr.f32.mxu0 0.0
  %7895 = vmatmul.mubr.f32.gmra.mxu0 %v7362
  %v7896 = vpop.f32.mrf.mxu0
  %v7897 = vadd.f32 0.0, %v7896
  %v7898 = vpop.f32.mrf.mxu0
  %7899 = vmatprep.mubr.f32.mxu0 0.0
  %7900 = vmatmul.mubr.f32.gmra.mxu0 %v7365
  %v7901 = vpop.f32.mrf.mxu0
  %v7902 = vadd.f32 0.0, %v7901
  %v7903 = vpop.f32.mrf.mxu0
  %7904 = vmatprep.mubr.f32.mxu0 0.0
  %7905 = vmatmul.mubr.f32.gmra.mxu0 %v7368
  %v7906 = vpop.f32.mrf.mxu0
  %v7907 = vadd.f32 0.0, %v7906
  %v7908 = vpop.f32.mrf.mxu0
  %7909 = vmatprep.mubr.f32.mxu0 0.0
  %7910 = vmatmul.mubr.f32.gmra.mxu0 %v7371
  %v7911 = vpop.f32.mrf.mxu0
  %v7912 = vadd.f32 0.0, %v7911
  %v7913 = vpop.f32.mrf.mxu0
  %7914 = vmatprep.mubr.f32.mxu0 0.0
  %7915 = vmatmul.mubr.f32.gmra.mxu0 %v7374
  %v7916 = vpop.f32.mrf.mxu0
  %v7917 = vadd.f32 0.0, %v7916
  %v7918 = vpop.f32.mrf.mxu0
  %7919 = vmatprep.mubr.f32.mxu0 0.0
  %7920 = vmatmul.mubr.f32.gmra.mxu0 %v7377
  %v7921 = vpop.f32.mrf.mxu0
  %v7922 = vadd.f32 0.0, %v7921
  %v7923 = vpop.f32.mrf.mxu0
  %7924 = vmatprep.mubr.f32.mxu0 0.0
  %7925 = vmatmul.mubr.f32.gmra.mxu0 %v7380
  %v7926 = vpop.f32.mrf.mxu0
  %v7927 = vadd.f32 0.0, %v7926
  %v7928 = vpop.f32.mrf.mxu0
  %7929 = vmatprep.mubr.f32.mxu0 0.0
  %7930 = vmatmul.mubr.f32.gmra.mxu0 %v7383
  %v7931 = vpop.f32.mrf.mxu0
  %v7932 = vadd.f32 0.0, %v7931
  %v7933 = vpop.f32.mrf.mxu0
  %7934 = vmatprep.mubr.f32.mxu0 0.0
  %7935 = vmatmul.mubr.f32.gmra.mxu0 %v7386
  %v7936 = vpop.f32.mrf.mxu0
  %v7937 = vadd.f32 0.0, %v7936
  %v7938 = vpop.f32.mrf.mxu0
  %7939 = vmatprep.mubr.f32.mxu0 0.0
  %7940 = vmatmul.mubr.f32.gmra.mxu0 %v7389
  %v7941 = vpop.f32.mrf.mxu0
  %v7942 = vadd.f32 0.0, %v7941
  %v7943 = vpop.f32.mrf.mxu0
  %7944 = vmatprep.mubr.f32.mxu0 0.0
  %7945 = vmatmul.mubr.f32.gmra.mxu0 %v7392
  %v7946 = vpop.f32.mrf.mxu0
  %v7947 = vadd.f32 0.0, %v7946
  %v7948 = vpop.f32.mrf.mxu0
  %7949 = vmatprep.mubr.f32.mxu0 0.0
  %7950 = vmatmul.mubr.f32.gmra.mxu0 %v7395
  %v7951 = vpop.f32.mrf.mxu0
  %v7952 = vadd.f32 0.0, %v7951
  %v7953 = vpop.f32.mrf.mxu0
  %7954 = vmatprep.mubr.f32.mxu0 0.0
  %7955 = vmatmul.mubr.f32.gmra.mxu0 %v7398
  %v7956 = vpop.f32.mrf.mxu0
  %v7957 = vadd.f32 0.0, %v7956
  %v7958 = vpop.f32.mrf.mxu0
  %7959 = vmatprep.mubr.f32.mxu0 0.0
  %7960 = vmatmul.mubr.f32.gmra.mxu0 %v7401
  %v7961 = vpop.f32.mrf.mxu0
  %v7962 = vadd.f32 0.0, %v7961
  %v7963 = vpop.f32.mrf.mxu0
  %7964 = vmatprep.mubr.f32.mxu0 0.0
  %7965 = vmatmul.mubr.f32.gmra.mxu0 %v7404
  %v7966 = vpop.f32.mrf.mxu0
  %v7967 = vadd.f32 0.0, %v7966
  %v7968 = vpop.f32.mrf.mxu0
  %7969 = vmatprep.mubr.f32.mxu0 0.0
  %7970 = vmatmul.mubr.f32.gmra.mxu0 %v7407
  %v7971 = vpop.f32.mrf.mxu0
  %v7972 = vadd.f32 0.0, %v7971
  %v7973 = vpop.f32.mrf.mxu0
  %7974 = vmatprep.mubr.f32.mxu0 0.0
  %7975 = vmatmul.mubr.f32.gmra.mxu0 %v7410
  %v7976 = vpop.f32.mrf.mxu0
  %v7977 = vadd.f32 0.0, %v7976
  %v7978 = vpop.f32.mrf.mxu0
  %7979 = vmatprep.mubr.f32.mxu0 0.0
  %7980 = vmatmul.mubr.f32.gmra.mxu0 %v7413
  %v7981 = vpop.f32.mrf.mxu0
  %v7982 = vadd.f32 0.0, %v7981
  %v7983 = vpop.f32.mrf.mxu0
  %7984 = vmatprep.mubr.f32.mxu0 0.0
  %7985 = vmatmul.mubr.f32.gmra.mxu0 %v7416
  %v7986 = vpop.f32.mrf.mxu0
  %v7987 = vadd.f32 0.0, %v7986
  %v7988 = vpop.f32.mrf.mxu0
  %7989 = vmatprep.mubr.f32.mxu0 0.0
  %7990 = vmatmul.mubr.f32.gmra.mxu0 %v7419
  %v7991 = vpop.f32.mrf.mxu0
  %v7992 = vadd.f32 0.0, %v7991
  %v7993 = vpop.f32.mrf.mxu0
  %7994 = vmatprep.mubr.f32.mxu0 0.0
  %7995 = vmatmul.mubr.f32.gmra.mxu0 %v7422
  %v7996 = vpop.f32.mrf.mxu0
  %v7997 = vadd.f32 0.0, %v7996
  %v7998 = vpop.f32.mrf.mxu0
  %7999 = vmatprep.mubr.f32.mxu0 0.0
  %8000 = vmatmul.mubr.f32.gmra.mxu0 %v7425
  %v8001 = vpop.f32.mrf.mxu0
  %v8002 = vadd.f32 0.0, %v8001
  %v8003 = vpop.f32.mrf.mxu0
  %8004 = vmatprep.mubr.f32.mxu0 0.0
  %8005 = vmatmul.mubr.f32.gmra.mxu0 %v7428
  %v8006 = vpop.f32.mrf.mxu0
  %v8007 = vadd.f32 0.0, %v8006
  %v8008 = vpop.f32.mrf.mxu0
  %8009 = vmatprep.mubr.f32.mxu0 0.0
  %8010 = vmatmul.mubr.f32.gmra.mxu0 %v7431
  %v8011 = vpop.f32.mrf.mxu0
  %v8012 = vadd.f32 0.0, %v8011
  %v8013 = vpop.f32.mrf.mxu0
  %8014 = vmatprep.mubr.f32.mxu0 0.0
  %8015 = vmatmul.mubr.f32.gmra.mxu0 %v7434
  %v8016 = vpop.f32.mrf.mxu0
  %v8017 = vadd.f32 0.0, %v8016
  %v8018 = vpop.f32.mrf.mxu0
  %8019 = vmatprep.mubr.f32.mxu0 0.0
  %8020 = vmatmul.mubr.f32.gmra.mxu0 %v7437
  %v8021 = vpop.f32.mrf.mxu0
  %v8022 = vadd.f32 0.0, %v8021
  %v8023 = vpop.f32.mrf.mxu0
  %8024 = vmatprep.mubr.f32.mxu0 0.0
  %8025 = vmatmul.mubr.f32.gmra.mxu0 %v7440
  %v8026 = vpop.f32.mrf.mxu0
  %v8027 = vadd.f32 0.0, %v8026
  %v8028 = vpop.f32.mrf.mxu0
  %8029 = vmatprep.mubr.f32.mxu0 0.0
  %8030 = vmatmul.mubr.f32.gmra.mxu0 %v7443
  %v8031 = vpop.f32.mrf.mxu0
  %v8032 = vadd.f32 0.0, %v8031
  %v8033 = vpop.f32.mrf.mxu0
  %8034 = vmatprep.mubr.f32.mxu0 0.0
  %8035 = vmatmul.mubr.f32.gmra.mxu0 %v7446
  %v8036 = vpop.f32.mrf.mxu0
  %v8037 = vadd.f32 0.0, %v8036
  %v8038 = vpop.f32.mrf.mxu0
  %8039 = vmatprep.mubr.f32.mxu0 0.0
  %8040 = vmatmul.mubr.f32.gmra.mxu0 %v7449
  %v8041 = vpop.f32.mrf.mxu0
  %v8042 = vadd.f32 0.0, %v8041
  %v8043 = vpop.f32.mrf.mxu0
  %8044 = vmatprep.mubr.f32.mxu0 0.0
  %8045 = vmatmul.mubr.f32.gmra.mxu0 %v7452
  %v8046 = vpop.f32.mrf.mxu0
  %v8047 = vadd.f32 0.0, %v8046
  %v8048 = vpop.f32.mrf.mxu0
  %8049 = vmatprep.mubr.f32.mxu0 0.0
  %8050 = vmatmul.mubr.f32.gmra.mxu0 %v7455
  %v8051 = vpop.f32.mrf.mxu0
  %v8052 = vadd.f32 0.0, %v8051
  %v8053 = vpop.f32.mrf.mxu0
  %8054 = vmatprep.mubr.f32.mxu0 0.0
  %8055 = vmatmul.mubr.f32.gmra.mxu0 %v7458
  %v8056 = vpop.f32.mrf.mxu0
  %v8057 = vadd.f32 0.0, %v8056
  %v8058 = vpop.f32.mrf.mxu0
  %8059 = vmatprep.mubr.f32.mxu0 0.0
  %8060 = vmatmul.mubr.f32.gmra.mxu0 %v7461
  %v8061 = vpop.f32.mrf.mxu0
  %v8062 = vadd.f32 0.0, %v8061
  %v8063 = vpop.f32.mrf.mxu0
  %8064 = vmatprep.mubr.f32.mxu0 0.0
  %8065 = vmatmul.mubr.f32.gmra.mxu0 %v7464
  %v8066 = vpop.f32.mrf.mxu0
  %v8067 = vadd.f32 0.0, %v8066
  %v8068 = vpop.f32.mrf.mxu0
  %8069 = vmatprep.mubr.f32.mxu0 0.0
  %8070 = vmatmul.mubr.f32.gmra.mxu0 %v7467
  %v8071 = vpop.f32.mrf.mxu0
  %v8072 = vadd.f32 0.0, %v8071
  %v8073 = vpop.f32.mrf.mxu0
  %8074 = vmatprep.mubr.f32.mxu0 0.0
  %8075 = vmatmul.mubr.f32.gmra.mxu0 %v7470
  %v8076 = vpop.f32.mrf.mxu0
  %v8077 = vadd.f32 0.0, %v8076
  %v8078 = vpop.f32.mrf.mxu0
  %8079 = vmatprep.mubr.f32.mxu0 0.0
  %8080 = vmatmul.mubr.f32.gmra.mxu0 %v7473
  %v8081 = vpop.f32.mrf.mxu0
  %v8082 = vadd.f32 0.0, %v8081
  %v8083 = vpop.f32.mrf.mxu0
  %8084 = vmatprep.mubr.f32.mxu0 0.0
  %8085 = vmatmul.mubr.f32.gmra.mxu0 %v7476
  %v8086 = vpop.f32.mrf.mxu0
  %v8087 = vadd.f32 0.0, %v8086
  %v8088 = vpop.f32.mrf.mxu0
  %8089 = vmatprep.mubr.f32.mxu0 0.0
  %8090 = vmatmul.mubr.f32.gmra.mxu0 %v7479
  %v8091 = vpop.f32.mrf.mxu0
  %v8092 = vadd.f32 0.0, %v8091
  %v8093 = vpop.f32.mrf.mxu0
  %8094 = vmatprep.mubr.f32.mxu0 0.0
  %8095 = vmatmul.mubr.f32.gmra.mxu0 %v7482
  %v8096 = vpop.f32.mrf.mxu0
  %v8097 = vadd.f32 0.0, %v8096
  %v8098 = vpop.f32.mrf.mxu0
  %8099 = vmatprep.mubr.f32.mxu0 0.0
  %8100 = vmatmul.mubr.f32.gmra.mxu0 %v7485
  %v8101 = vpop.f32.mrf.mxu0
  %v8102 = vadd.f32 0.0, %v8101
  %v8103 = vpop.f32.mrf.mxu0
  %8104 = vmatprep.mubr.f32.mxu0 0.0
  %8105 = vmatmul.mubr.f32.gmra.mxu0 %v7488
  %v8106 = vpop.f32.mrf.mxu0
  %v8107 = vadd.f32 0.0, %v8106
  %v8108 = vpop.f32.mrf.mxu0
  %8109 = vmatprep.mubr.f32.mxu0 0.0
  %8110 = vmatmul.mubr.f32.gmra.mxu0 %v7491
  %v8111 = vpop.f32.mrf.mxu0
  %v8112 = vadd.f32 0.0, %v8111
  %v8113 = vpop.f32.mrf.mxu0
  %8114 = vmatprep.mubr.f32.mxu0 0.0
  %8115 = vmatmul.mubr.f32.gmra.mxu0 %v7494
  %v8116 = vpop.f32.mrf.mxu0
  %v8117 = vadd.f32 0.0, %v8116
  %v8118 = vpop.f32.mrf.mxu0
  %8119 = vmatprep.mubr.f32.mxu0 0.0
  %8120 = vmatmul.mubr.f32.gmra.mxu0 %v7497
  %v8121 = vpop.f32.mrf.mxu0
  %v8122 = vadd.f32 0.0, %v8121
  %v8123 = vpop.f32.mrf.mxu0
  %8124 = vmatprep.mubr.f32.mxu0 0.0
  %8125 = vmatmul.mubr.f32.gmra.mxu0 %v7500
  %v8126 = vpop.f32.mrf.mxu0
  %v8127 = vadd.f32 0.0, %v8126
  %v8128 = vpop.f32.mrf.mxu0
  %8129 = vmatprep.mubr.f32.mxu0 0.0
  %8130 = vmatmul.mubr.f32.gmra.mxu0 %v7503
  %v8131 = vpop.f32.mrf.mxu0
  %v8132 = vadd.f32 0.0, %v8131
  %v8133 = vpop.f32.mrf.mxu0
  %8134 = vmatprep.mubr.f32.mxu0 0.0
  %8135 = vmatmul.mubr.f32.gmra.mxu0 %v7506
  %v8136 = vpop.f32.mrf.mxu0
  %v8137 = vadd.f32 0.0, %v8136
  %v8138 = vpop.f32.mrf.mxu0
  %8139 = vmatprep.mubr.f32.mxu0 0.0
  %8140 = vmatmul.mubr.f32.gmra.mxu0 %v7509
  %v8141 = vpop.f32.mrf.mxu0
  %v8142 = vadd.f32 0.0, %v8141
  %v8143 = vpop.f32.mrf.mxu0
  %8144 = vmatprep.mubr.f32.mxu0 0.0
  %8145 = vmatmul.mubr.f32.gmra.mxu0 %v7512
  %v8146 = vpop.f32.mrf.mxu0
  %v8147 = vadd.f32 0.0, %v8146
  %v8148 = vpop.f32.mrf.mxu0
  %8149 = vmatprep.mubr.f32.mxu0 0.0
  %8150 = vmatmul.mubr.f32.gmra.mxu0 %v7515
  %v8151 = vpop.f32.mrf.mxu0
  %v8152 = vadd.f32 0.0, %v8151
  %v8153 = vpop.f32.mrf.mxu0
  %8154 = vmatprep.mubr.f32.mxu0 0.0
  %8155 = vmatmul.mubr.f32.gmra.mxu0 %v7518
  %v8156 = vpop.f32.mrf.mxu0
  %v8157 = vadd.f32 0.0, %v8156
  %v8158 = vpop.f32.mrf.mxu0
  %8159 = vmatprep.mubr.f32.mxu0 0.0
  %8160 = vmatmul.mubr.f32.gmra.mxu0 %v7521
  %v8161 = vpop.f32.mrf.mxu0
  %v8162 = vadd.f32 0.0, %v8161
  %v8163 = vpop.f32.mrf.mxu0
  %8164 = vmatprep.mubr.f32.mxu0 0.0
  %8165 = vmatmul.mubr.f32.gmra.mxu0 %v7524
  %v8166 = vpop.f32.mrf.mxu0
  %v8167 = vadd.f32 0.0, %v8166
  %v8168 = vpop.f32.mrf.mxu0
  %8169 = vmatprep.mubr.f32.mxu0 0.0
  %8170 = vmatmul.mubr.f32.gmra.mxu0 %v7527
  %v8171 = vpop.f32.mrf.mxu0
  %v8172 = vadd.f32 0.0, %v8171
  %v8173 = vpop.f32.mrf.mxu0
  %8174 = vmatprep.mubr.f32.mxu0 0.0
  %8175 = vmatmul.mubr.f32.gmra.mxu0 %v7530
  %v8176 = vpop.f32.mrf.mxu0
  %v8177 = vadd.f32 0.0, %v8176
  %v8178 = vpop.f32.mrf.mxu0
  %8179 = vmatprep.mubr.f32.mxu0 0.0
  %8180 = vmatmul.mubr.f32.gmra.mxu0 %v7533
  %v8181 = vpop.f32.mrf.mxu0
  %v8182 = vadd.f32 0.0, %v8181
  %v8183 = vpop.f32.mrf.mxu0
  %8184 = vmatprep.mubr.f32.mxu0 0.0
  %8185 = vmatmul.mubr.f32.gmra.mxu0 %v7536
  %v8186 = vpop.f32.mrf.mxu0
  %v8187 = vadd.f32 0.0, %v8186
  %v8188 = vpop.f32.mrf.mxu0
  %8189 = vmatprep.mubr.f32.mxu0 0.0
  %8190 = vmatmul.mubr.f32.gmra.mxu0 %v7539
  %v8191 = vpop.f32.mrf.mxu0
  %v8192 = vadd.f32 0.0, %v8191
  %v8193 = vpop.f32.mrf.mxu0
  %8194 = vmatprep.mubr.f32.mxu0 0.0
  %8195 = vmatmul.mubr.f32.gmra.mxu0 %v7542
  %v8196 = vpop.f32.mrf.mxu0
  %v8197 = vadd.f32 0.0, %v8196
  %v8198 = vpop.f32.mrf.mxu0
  %8199 = vmatprep.mubr.f32.mxu0 0.0
  %8200 = vmatmul.mubr.f32.gmra.mxu0 %v7545
  %v8201 = vpop.f32.mrf.mxu0
  %v8202 = vadd.f32 0.0, %v8201
  %v8203 = vpop.f32.mrf.mxu0
  %8204 = vmatprep.mubr.f32.mxu0 0.0
  %8205 = vmatmul.mubr.f32.gmra.mxu0 %v7548
  %v8206 = vpop.f32.mrf.mxu0
  %v8207 = vadd.f32 0.0, %v8206
  %v8208 = vpop.f32.mrf.mxu0
  %8209 = vmatprep.mubr.f32.mxu0 0.0
  %8210 = vmatmul.mubr.f32.gmra.mxu0 %v7551
  %v8211 = vpop.f32.mrf.mxu0
  %v8212 = vadd.f32 0.0, %v8211
  %v8213 = vpop.f32.mrf.mxu0
  %8214 = vmatprep.mubr.f32.mxu0 0.0
  %8215 = vmatmul.mubr.f32.gmra.mxu0 %v7554
  %v8216 = vpop.f32.mrf.mxu0
  %v8217 = vadd.f32 0.0, %v8216
  %v8218 = vpop.f32.mrf.mxu0
  %8219 = vmatprep.mubr.f32.mxu0 0.0
  %8220 = vmatmul.mubr.f32.gmra.mxu0 %v7557
  %v8221 = vpop.f32.mrf.mxu0
  %v8222 = vadd.f32 0.0, %v8221
  %v8223 = vpop.f32.mrf.mxu0
  %8224 = vmatprep.mubr.f32.mxu0 0.0
  %8225 = vmatmul.mubr.f32.gmra.mxu0 %v7560
  %v8226 = vpop.f32.mrf.mxu0
  %v8227 = vadd.f32 0.0, %v8226
  %v8228 = vpop.f32.mrf.mxu0
  %8229 = vmatprep.mubr.f32.mxu0 0.0
  %8230 = vmatmul.mubr.f32.gmra.mxu0 %v7563
  %v8231 = vpop.f32.mrf.mxu0
  %v8232 = vadd.f32 0.0, %v8231
  %v8233 = vpop.f32.mrf.mxu0
  %8234 = vmatprep.mubr.f32.mxu0 0.0
  %8235 = vmatmul.mubr.f32.gmra.mxu0 %v7566
  %v8236 = vpop.f32.mrf.mxu0
  %v8237 = vadd.f32 0.0, %v8236
  %v8238 = vpop.f32.mrf.mxu0
  %8239 = vmatprep.mubr.f32.mxu0 0.0
  %8240 = vmatmul.mubr.f32.gmra.mxu0 %v7569
  %v8241 = vpop.f32.mrf.mxu0
  %v8242 = vadd.f32 0.0, %v8241
  %v8243 = vpop.f32.mrf.mxu0
  %8244 = vmatprep.mubr.f32.mxu0 0.0
  %8245 = vmatmul.mubr.f32.gmra.mxu0 %v7572
  %v8246 = vpop.f32.mrf.mxu0
  %v8247 = vadd.f32 0.0, %v8246
  %v8248 = vpop.f32.mrf.mxu0
  %8249 = vmatprep.mubr.f32.mxu0 0.0
  %8250 = vmatmul.mubr.f32.gmra.mxu0 %v7575
  %v8251 = vpop.f32.mrf.mxu0
  %v8252 = vadd.f32 0.0, %v8251
  %v8253 = vpop.f32.mrf.mxu0
  %8254 = vmatprep.mubr.f32.mxu0 0.0
  %8255 = vmatmul.mubr.f32.gmra.mxu0 %v7578
  %v8256 = vpop.f32.mrf.mxu0
  %v8257 = vadd.f32 0.0, %v8256
  %v8258 = vpop.f32.mrf.mxu0
  %8259 = vmatprep.mubr.f32.mxu0 0.0
  %8260 = vmatmul.mubr.f32.gmra.mxu0 %v7581
  %v8261 = vpop.f32.mrf.mxu0
  %v8262 = vadd.f32 0.0, %v8261
  %v8263 = vpop.f32.mrf.mxu0
  %8264 = vmatprep.mubr.f32.mxu0 0.0
  %8265 = vmatmul.mubr.f32.gmra.mxu0 %v7584
  %v8266 = vpop.f32.mrf.mxu0
  %v8267 = vadd.f32 0.0, %v8266
  %v8268 = vpop.f32.mrf.mxu0
  %8269 = vmatprep.mubr.f32.mxu0 0.0
  %8270 = vmatmul.mubr.f32.gmra.mxu0 %v7587
  %v8271 = vpop.f32.mrf.mxu0
  %v8272 = vadd.f32 0.0, %v8271
  %v8273 = vpop.f32.mrf.mxu0
  %8274 = vmatprep.mubr.f32.mxu0 0.0
  %8275 = vmatmul.mubr.f32.gmra.mxu0 %v7590
  %v8276 = vpop.f32.mrf.mxu0
  %v8277 = vadd.f32 0.0, %v8276
  %v8278 = vpop.f32.mrf.mxu0
  %8279 = vmatprep.mubr.f32.mxu0 0.0
  %8280 = vmatmul.mubr.f32.gmra.mxu0 %v7593
  %v8281 = vpop.f32.mrf.mxu0
  %v8282 = vadd.f32 0.0, %v8281
  %v8283 = vpop.f32.mrf.mxu0
  %8284 = vmatprep.mubr.f32.mxu0 0.0
  %8285 = vmatmul.mubr.f32.gmra.mxu0 %v7596
  %v8286 = vpop.f32.mrf.mxu0
  %v8287 = vadd.f32 0.0, %v8286
  %v8288 = vpop.f32.mrf.mxu0
  %8289 = vmatprep.mubr.f32.mxu0 0.0
  %8290 = vmatmul.mubr.f32.gmra.mxu0 %v7599
  %v8291 = vpop.f32.mrf.mxu0
  %v8292 = vadd.f32 0.0, %v8291
  %v8293 = vpop.f32.mrf.mxu0
  %8294 = vmatprep.mubr.f32.mxu0 0.0
  %8295 = vmatmul.mubr.f32.gmra.mxu0 %v7602
  %v8296 = vpop.f32.mrf.mxu0
  %v8297 = vadd.f32 0.0, %v8296
  %v8298 = vpop.f32.mrf.mxu0
  %8299 = vmatprep.mubr.f32.mxu0 0.0
  %8300 = vmatmul.mubr.f32.gmra.mxu0 %v7605
  %v8301 = vpop.f32.mrf.mxu0
  %v8302 = vadd.f32 0.0, %v8301
  %v8303 = vpop.f32.mrf.mxu0
  %8304 = vmatprep.mubr.f32.mxu0 0.0
  %8305 = vmatmul.mubr.f32.gmra.mxu0 %v7608
  %v8306 = vpop.f32.mrf.mxu0
  %v8307 = vadd.f32 0.0, %v8306
  %v8308 = vpop.f32.mrf.mxu0
  %8309 = vmatprep.mubr.f32.mxu0 0.0
  %8310 = vmatmul.mubr.f32.gmra.mxu0 %v7611
  %v8311 = vpop.f32.mrf.mxu0
  %v8312 = vadd.f32 0.0, %v8311
  %v8313 = vpop.f32.mrf.mxu0
  %8314 = vmatprep.mubr.f32.mxu0 0.0
  %8315 = vmatmul.mubr.f32.gmra.mxu0 %v7614
  %v8316 = vpop.f32.mrf.mxu0
  %v8317 = vadd.f32 0.0, %v8316
  %v8318 = vpop.f32.mrf.mxu0
  %8319 = vmatprep.mubr.f32.mxu0 0.0
  %8320 = vmatmul.mubr.f32.gmra.mxu0 %v7617
  %v8321 = vpop.f32.mrf.mxu0
  %v8322 = vadd.f32 0.0, %v8321
  %v8323 = vpop.f32.mrf.mxu0
  %8324 = vmatprep.mubr.f32.mxu0 0.0
  %8325 = vmatmul.mubr.f32.gmra.mxu0 %v7620
  %v8326 = vpop.f32.mrf.mxu0
  %v8327 = vadd.f32 0.0, %v8326
  %v8328 = vpop.f32.mrf.mxu0
  %8329 = vdwg.mxu0
  %v8330 = vadd.f32 %v446, %v2387
  %v8331 = vadd.f32 %v447, %v2392
  %v8332 = vadd.f32 %v448, %v2397
  %v8333 = vadd.f32 %v449, %v2402
  %v8334 = vadd.f32 %v450, %v2407
  %v8335 = vadd.f32 %v451, %v2412
  %v8336 = vadd.f32 %v452, %v2417
  %v8337 = vadd.f32 %v453, %v2422
  %v8338 = vadd.f32 %v454, %v2427
  %v8339 = vadd.f32 %v455, %v2432
  %v8340 = vadd.f32 %v456, %v2437
  %v8341 = vadd.f32 %v457, %v2442
  %v8342 = vadd.f32 %v458, %v2447
  %v8343 = vadd.f32 %v459, %v2452
  %v8344 = vadd.f32 %v460, %v2457
  %v8345 = vadd.f32 %v461, %v2462
  %v8346 = vadd.f32 %v462, %v2467
  %v8347 = vadd.f32 %v463, %v2472
  %v8348 = vadd.f32 %v464, %v2477
  %v8349 = vadd.f32 %v465, %v2482
  %v8350 = vadd.f32 %v466, %v2487
  %v8351 = vadd.f32 %v467, %v2492
  %v8352 = vadd.f32 %v468, %v2497
  %v8353 = vadd.f32 %v469, %v2502
  %v8354 = vadd.f32 %v470, %v2507
  %v8355 = vadd.f32 %v471, %v2512
  %v8356 = vadd.f32 %v472, %v2517
  %v8357 = vadd.f32 %v473, %v2522
  %v8358 = vadd.f32 %v474, %v2527
  %v8359 = vadd.f32 %v475, %v2532
  %v8360 = vadd.f32 %v476, %v2537
  %v8361 = vadd.f32 %v477, %v2542
  %v8362 = vadd.f32 %v478, %v2547
  %v8363 = vadd.f32 %v479, %v2552
  %v8364 = vadd.f32 %v480, %v2557
  %v8365 = vadd.f32 %v481, %v2562
  %v8366 = vadd.f32 %v482, %v2567
  %v8367 = vadd.f32 %v483, %v2572
  %v8368 = vadd.f32 %v484, %v2577
  %v8369 = vadd.f32 %v485, %v2582
  %v8370 = vadd.f32 %v486, %v2587
  %v8371 = vadd.f32 %v487, %v2592
  %v8372 = vadd.f32 %v488, %v2597
  %v8373 = vadd.f32 %v489, %v2602
  %v8374 = vadd.f32 %v490, %v2607
  %v8375 = vadd.f32 %v491, %v2612
  %v8376 = vadd.f32 %v492, %v2617
  %v8377 = vadd.f32 %v493, %v2622
  %v8378 = vadd.f32 %v494, %v2627
  %v8379 = vadd.f32 %v495, %v2632
  %v8380 = vadd.f32 %v496, %v2637
  %v8381 = vadd.f32 %v497, %v2642
  %v8382 = vadd.f32 %v498, %v2647
  %v8383 = vadd.f32 %v499, %v2652
  %v8384 = vadd.f32 %v500, %v2657
  %v8385 = vadd.f32 %v501, %v2662
  %v8386 = vadd.f32 %v502, %v2667
  %v8387 = vadd.f32 %v503, %v2672
  %v8388 = vadd.f32 %v504, %v2677
  %v8389 = vadd.f32 %v505, %v2682
  %v8390 = vadd.f32 %v506, %v2687
  %v8391 = vadd.f32 %v507, %v2692
  %v8392 = vadd.f32 %v508, %v2697
  %v8393 = vadd.f32 %v509, %v2702
  %v8394 = vadd.f32 %v510, %v2707
  %v8395 = vadd.f32 %v511, %v2712
  %v8396 = vadd.f32 %v512, %v2717
  %v8397 = vadd.f32 %v513, %v2722
  %v8398 = vadd.f32 %v514, %v2727
  %v8399 = vadd.f32 %v515, %v2732
  %v8400 = vadd.f32 %v516, %v2737
  %v8401 = vadd.f32 %v517, %v2742
  %v8402 = vadd.f32 %v518, %v2747
  %v8403 = vadd.f32 %v519, %v2752
  %v8404 = vadd.f32 %v520, %v2757
  %v8405 = vadd.f32 %v521, %v2762
  %v8406 = vadd.f32 %v522, %v2767
  %v8407 = vadd.f32 %v523, %v2772
  %v8408 = vadd.f32 %v524, %v2777
  %v8409 = vadd.f32 %v525, %v2782
  %v8410 = vadd.f32 %v526, %v2787
  %v8411 = vadd.f32 %v527, %v2792
  %v8412 = vadd.f32 %v528, %v2797
  %v8413 = vadd.f32 %v529, %v2802
  %v8414 = vadd.f32 %v530, %v2807
  %v8415 = vadd.f32 %v531, %v2812
  %v8416 = vadd.f32 %v532, %v2817
  %v8417 = vadd.f32 %v533, %v2822
  %v8418 = vadd.f32 %v534, %v2827
  %v8419 = vadd.f32 %v535, %v2832
  %v8420 = vadd.f32 %v536, %v2837
  %v8421 = vadd.f32 %v537, %v2842
  %v8422 = vadd.f32 %v538, %v2847
  %v8423 = vadd.f32 %v539, %v2852
  %v8424 = vadd.f32 %v540, %v2857
  %v8425 = vadd.f32 %v541, %v2862
  %v8426 = vadd.f32 %v542, %v2867
  %v8427 = vadd.f32 %v543, %v2872
  %v8428 = vadd.f32 %v544, %v2877
  %v8429 = vadd.f32 %v545, %v2882
  %v8430 = vadd.f32 %v546, %v2887
  %v8431 = vadd.f32 %v547, %v2892
  %v8432 = vadd.f32 %v548, %v2897
  %v8433 = vadd.f32 %v549, %v2902
  %v8434 = vadd.f32 %v550, %v2907
  %v8435 = vadd.f32 %v551, %v2912
  %v8436 = vadd.f32 %v552, %v2917
  %v8437 = vadd.f32 %v553, %v2922
  %v8438 = vadd.f32 %v554, %v2927
  %v8439 = vadd.f32 %v555, %v2932
  %v8440 = vadd.f32 %v556, %v2937
  %v8441 = vadd.f32 %v557, %v2942
  %v8442 = vadd.f32 %v558, %v2947
  %v8443 = vadd.f32 %v559, %v2952
  %v8444 = vadd.f32 %v560, %v2957
  %v8445 = vadd.f32 %v561, %v2962
  %v8446 = vadd.f32 %v562, %v2967
  %v8447 = vadd.f32 %v563, %v2972
  %v8448 = vadd.f32 %v564, %v2977
  %v8449 = vadd.f32 %v565, %v2982
  %v8450 = vadd.f32 %v566, %v2987
  %v8451 = vadd.f32 %v567, %v2992
  %v8452 = vadd.f32 %v568, %v2997
  %v8453 = vadd.f32 %v569, %v3002
  %v8454 = vadd.f32 %v570, %v3007
  %v8455 = vadd.f32 %v571, %v3012
  %v8456 = vadd.f32 %v572, %v3017
  %v8457 = vadd.f32 %v573, %v3022
  %v8458 = vmul.f32 %v8330, %v7692
  %v8459 = vmul.f32 %v8331, %v7697
  %v8460 = vmul.f32 %v8332, %v7702
  %v8461 = vmul.f32 %v8333, %v7707
  %v8462 = vmul.f32 %v8334, %v7712
  %v8463 = vmul.f32 %v8335, %v7717
  %v8464 = vmul.f32 %v8336, %v7722
  %v8465 = vmul.f32 %v8337, %v7727
  %v8466 = vmul.f32 %v8338, %v7732
  %v8467 = vmul.f32 %v8339, %v7737
  %v8468 = vmul.f32 %v8340, %v7742
  %v8469 = vmul.f32 %v8341, %v7747
  %v8470 = vmul.f32 %v8342, %v7752
  %v8471 = vmul.f32 %v8343, %v7757
  %v8472 = vmul.f32 %v8344, %v7762
  %v8473 = vmul.f32 %v8345, %v7767
  %v8474 = vmul.f32 %v8346, %v7772
  %v8475 = vmul.f32 %v8347, %v7777
  %v8476 = vmul.f32 %v8348, %v7782
  %v8477 = vmul.f32 %v8349, %v7787
  %v8478 = vmul.f32 %v8350, %v7792
  %v8479 = vmul.f32 %v8351, %v7797
  %v8480 = vmul.f32 %v8352, %v7802
  %v8481 = vmul.f32 %v8353, %v7807
  %v8482 = vmul.f32 %v8354, %v7812
  %v8483 = vmul.f32 %v8355, %v7817
  %v8484 = vmul.f32 %v8356, %v7822
  %v8485 = vmul.f32 %v8357, %v7827
  %v8486 = vmul.f32 %v8358, %v7832
  %v8487 = vmul.f32 %v8359, %v7837
  %v8488 = vmul.f32 %v8360, %v7842
  %v8489 = vmul.f32 %v8361, %v7847
  %v8490 = vmul.f32 %v8362, %v7852
  %v8491 = vmul.f32 %v8363, %v7857
  %v8492 = vmul.f32 %v8364, %v7862
  %v8493 = vmul.f32 %v8365, %v7867
  %v8494 = vmul.f32 %v8366, %v7872
  %v8495 = vmul.f32 %v8367, %v7877
  %v8496 = vmul.f32 %v8368, %v7882
  %v8497 = vmul.f32 %v8369, %v7887
  %v8498 = vmul.f32 %v8370, %v7892
  %v8499 = vmul.f32 %v8371, %v7897
  %v8500 = vmul.f32 %v8372, %v7902
  %v8501 = vmul.f32 %v8373, %v7907
  %v8502 = vmul.f32 %v8374, %v7912
  %v8503 = vmul.f32 %v8375, %v7917
  %v8504 = vmul.f32 %v8376, %v7922
  %v8505 = vmul.f32 %v8377, %v7927
  %v8506 = vmul.f32 %v8378, %v7932
  %v8507 = vmul.f32 %v8379, %v7937
  %v8508 = vmul.f32 %v8380, %v7942
  %v8509 = vmul.f32 %v8381, %v7947
  %v8510 = vmul.f32 %v8382, %v7952
  %v8511 = vmul.f32 %v8383, %v7957
  %v8512 = vmul.f32 %v8384, %v7962
  %v8513 = vmul.f32 %v8385, %v7967
  %v8514 = vmul.f32 %v8386, %v7972
  %v8515 = vmul.f32 %v8387, %v7977
  %v8516 = vmul.f32 %v8388, %v7982
  %v8517 = vmul.f32 %v8389, %v7987
  %v8518 = vmul.f32 %v8390, %v7992
  %v8519 = vmul.f32 %v8391, %v7997
  %v8520 = vmul.f32 %v8392, %v8002
  %v8521 = vmul.f32 %v8393, %v8007
  %v8522 = vmul.f32 %v8394, %v8012
  %v8523 = vmul.f32 %v8395, %v8017
  %v8524 = vmul.f32 %v8396, %v8022
  %v8525 = vmul.f32 %v8397, %v8027
  %v8526 = vmul.f32 %v8398, %v8032
  %v8527 = vmul.f32 %v8399, %v8037
  %v8528 = vmul.f32 %v8400, %v8042
  %v8529 = vmul.f32 %v8401, %v8047
  %v8530 = vmul.f32 %v8402, %v8052
  %v8531 = vmul.f32 %v8403, %v8057
  %v8532 = vmul.f32 %v8404, %v8062
  %v8533 = vmul.f32 %v8405, %v8067
  %v8534 = vmul.f32 %v8406, %v8072
  %v8535 = vmul.f32 %v8407, %v8077
  %v8536 = vmul.f32 %v8408, %v8082
  %v8537 = vmul.f32 %v8409, %v8087
  %v8538 = vmul.f32 %v8410, %v8092
  %v8539 = vmul.f32 %v8411, %v8097
  %v8540 = vmul.f32 %v8412, %v8102
  %v8541 = vmul.f32 %v8413, %v8107
  %v8542 = vmul.f32 %v8414, %v8112
  %v8543 = vmul.f32 %v8415, %v8117
  %v8544 = vmul.f32 %v8416, %v8122
  %v8545 = vmul.f32 %v8417, %v8127
  %v8546 = vmul.f32 %v8418, %v8132
  %v8547 = vmul.f32 %v8419, %v8137
  %v8548 = vmul.f32 %v8420, %v8142
  %v8549 = vmul.f32 %v8421, %v8147
  %v8550 = vmul.f32 %v8422, %v8152
  %v8551 = vmul.f32 %v8423, %v8157
  %v8552 = vmul.f32 %v8424, %v8162
  %v8553 = vmul.f32 %v8425, %v8167
  %v8554 = vmul.f32 %v8426, %v8172
  %v8555 = vmul.f32 %v8427, %v8177
  %v8556 = vmul.f32 %v8428, %v8182
  %v8557 = vmul.f32 %v8429, %v8187
  %v8558 = vmul.f32 %v8430, %v8192
  %v8559 = vmul.f32 %v8431, %v8197
  %v8560 = vmul.f32 %v8432, %v8202
  %v8561 = vmul.f32 %v8433, %v8207
  %v8562 = vmul.f32 %v8434, %v8212
  %v8563 = vmul.f32 %v8435, %v8217
  %v8564 = vmul.f32 %v8436, %v8222
  %v8565 = vmul.f32 %v8437, %v8227
  %v8566 = vmul.f32 %v8438, %v8232
  %v8567 = vmul.f32 %v8439, %v8237
  %v8568 = vmul.f32 %v8440, %v8242
  %v8569 = vmul.f32 %v8441, %v8247
  %v8570 = vmul.f32 %v8442, %v8252
  %v8571 = vmul.f32 %v8443, %v8257
  %v8572 = vmul.f32 %v8444, %v8262
  %v8573 = vmul.f32 %v8445, %v8267
  %v8574 = vmul.f32 %v8446, %v8272
  %v8575 = vmul.f32 %v8447, %v8277
  %v8576 = vmul.f32 %v8448, %v8282
  %v8577 = vmul.f32 %v8449, %v8287
  %v8578 = vmul.f32 %v8450, %v8292
  %v8579 = vmul.f32 %v8451, %v8297
  %v8580 = vmul.f32 %v8452, %v8302
  %v8581 = vmul.f32 %v8453, %v8307
  %v8582 = vmul.f32 %v8454, %v8312
  %v8583 = vmul.f32 %v8455, %v8317
  %v8584 = vmul.f32 %v8456, %v8322
  %v8585 = vmul.f32 %v8457, %v8327
  %v8586 = vadd.f32 %v8458, %v8459
  %v8587 = vrot.slane %v8586, 4
  %v8588 = vadd.f32 %v8586, %v8587
  %v8589 = vrot.slane %v8588, 2
  %v8590 = vadd.f32 %v8588, %v8589
  %v8591 = vrot.slane %v8590, 1
  %v8592 = vadd.f32 %v8590, %v8591
  %v8593 = vadd.f32 %v8460, %v8461
  %v8594 = vrot.slane %v8593, 4
  %v8595 = vadd.f32 %v8593, %v8594
  %v8596 = vrot.slane %v8595, 2
  %v8597 = vadd.f32 %v8595, %v8596
  %v8598 = vrot.slane %v8597, 1
  %v8599 = vadd.f32 %v8597, %v8598
  %v8600 = vadd.f32 %v8462, %v8463
  %v8601 = vrot.slane %v8600, 4
  %v8602 = vadd.f32 %v8600, %v8601
  %v8603 = vrot.slane %v8602, 2
  %v8604 = vadd.f32 %v8602, %v8603
  %v8605 = vrot.slane %v8604, 1
  %v8606 = vadd.f32 %v8604, %v8605
  %v8607 = vadd.f32 %v8464, %v8465
  %v8608 = vrot.slane %v8607, 4
  %v8609 = vadd.f32 %v8607, %v8608
  %v8610 = vrot.slane %v8609, 2
  %v8611 = vadd.f32 %v8609, %v8610
  %v8612 = vrot.slane %v8611, 1
  %v8613 = vadd.f32 %v8611, %v8612
  %v8614 = vadd.f32 %v8466, %v8467
  %v8615 = vrot.slane %v8614, 4
  %v8616 = vadd.f32 %v8614, %v8615
  %v8617 = vrot.slane %v8616, 2
  %v8618 = vadd.f32 %v8616, %v8617
  %v8619 = vrot.slane %v8618, 1
  %v8620 = vadd.f32 %v8618, %v8619
  %v8621 = vadd.f32 %v8468, %v8469
  %v8622 = vrot.slane %v8621, 4
  %v8623 = vadd.f32 %v8621, %v8622
  %v8624 = vrot.slane %v8623, 2
  %v8625 = vadd.f32 %v8623, %v8624
  %v8626 = vrot.slane %v8625, 1
  %v8627 = vadd.f32 %v8625, %v8626
  %v8628 = vadd.f32 %v8470, %v8471
  %v8629 = vrot.slane %v8628, 4
  %v8630 = vadd.f32 %v8628, %v8629
  %v8631 = vrot.slane %v8630, 2
  %v8632 = vadd.f32 %v8630, %v8631
  %v8633 = vrot.slane %v8632, 1
  %v8634 = vadd.f32 %v8632, %v8633
  %v8635 = vadd.f32 %v8472, %v8473
  %v8636 = vrot.slane %v8635, 4
  %v8637 = vadd.f32 %v8635, %v8636
  %v8638 = vrot.slane %v8637, 2
  %v8639 = vadd.f32 %v8637, %v8638
  %v8640 = vrot.slane %v8639, 1
  %v8641 = vadd.f32 %v8639, %v8640
  %v8642 = vadd.f32 %v8474, %v8475
  %v8643 = vrot.slane %v8642, 4
  %v8644 = vadd.f32 %v8642, %v8643
  %v8645 = vrot.slane %v8644, 2
  %v8646 = vadd.f32 %v8644, %v8645
  %v8647 = vrot.slane %v8646, 1
  %v8648 = vadd.f32 %v8646, %v8647
  %v8649 = vadd.f32 %v8476, %v8477
  %v8650 = vrot.slane %v8649, 4
  %v8651 = vadd.f32 %v8649, %v8650
  %v8652 = vrot.slane %v8651, 2
  %v8653 = vadd.f32 %v8651, %v8652
  %v8654 = vrot.slane %v8653, 1
  %v8655 = vadd.f32 %v8653, %v8654
  %v8656 = vadd.f32 %v8478, %v8479
  %v8657 = vrot.slane %v8656, 4
  %v8658 = vadd.f32 %v8656, %v8657
  %v8659 = vrot.slane %v8658, 2
  %v8660 = vadd.f32 %v8658, %v8659
  %v8661 = vrot.slane %v8660, 1
  %v8662 = vadd.f32 %v8660, %v8661
  %v8663 = vadd.f32 %v8480, %v8481
  %v8664 = vrot.slane %v8663, 4
  %v8665 = vadd.f32 %v8663, %v8664
  %v8666 = vrot.slane %v8665, 2
  %v8667 = vadd.f32 %v8665, %v8666
  %v8668 = vrot.slane %v8667, 1
  %v8669 = vadd.f32 %v8667, %v8668
  %v8670 = vadd.f32 %v8482, %v8483
  %v8671 = vrot.slane %v8670, 4
  %v8672 = vadd.f32 %v8670, %v8671
  %v8673 = vrot.slane %v8672, 2
  %v8674 = vadd.f32 %v8672, %v8673
  %v8675 = vrot.slane %v8674, 1
  %v8676 = vadd.f32 %v8674, %v8675
  %v8677 = vadd.f32 %v8484, %v8485
  %v8678 = vrot.slane %v8677, 4
  %v8679 = vadd.f32 %v8677, %v8678
  %v8680 = vrot.slane %v8679, 2
  %v8681 = vadd.f32 %v8679, %v8680
  %v8682 = vrot.slane %v8681, 1
  %v8683 = vadd.f32 %v8681, %v8682
  %v8684 = vadd.f32 %v8486, %v8487
  %v8685 = vrot.slane %v8684, 4
  %v8686 = vadd.f32 %v8684, %v8685
  %v8687 = vrot.slane %v8686, 2
  %v8688 = vadd.f32 %v8686, %v8687
  %v8689 = vrot.slane %v8688, 1
  %v8690 = vadd.f32 %v8688, %v8689
  %v8691 = vadd.f32 %v8488, %v8489
  %v8692 = vrot.slane %v8691, 4
  %v8693 = vadd.f32 %v8691, %v8692
  %v8694 = vrot.slane %v8693, 2
  %v8695 = vadd.f32 %v8693, %v8694
  %v8696 = vrot.slane %v8695, 1
  %v8697 = vadd.f32 %v8695, %v8696
  %v8698 = vadd.f32 %v8490, %v8491
  %v8699 = vrot.slane %v8698, 4
  %v8700 = vadd.f32 %v8698, %v8699
  %v8701 = vrot.slane %v8700, 2
  %v8702 = vadd.f32 %v8700, %v8701
  %v8703 = vrot.slane %v8702, 1
  %v8704 = vadd.f32 %v8702, %v8703
  %v8705 = vadd.f32 %v8492, %v8493
  %v8706 = vrot.slane %v8705, 4
  %v8707 = vadd.f32 %v8705, %v8706
  %v8708 = vrot.slane %v8707, 2
  %v8709 = vadd.f32 %v8707, %v8708
  %v8710 = vrot.slane %v8709, 1
  %v8711 = vadd.f32 %v8709, %v8710
  %v8712 = vadd.f32 %v8494, %v8495
  %v8713 = vrot.slane %v8712, 4
  %v8714 = vadd.f32 %v8712, %v8713
  %v8715 = vrot.slane %v8714, 2
  %v8716 = vadd.f32 %v8714, %v8715
  %v8717 = vrot.slane %v8716, 1
  %v8718 = vadd.f32 %v8716, %v8717
  %v8719 = vadd.f32 %v8496, %v8497
  %v8720 = vrot.slane %v8719, 4
  %v8721 = vadd.f32 %v8719, %v8720
  %v8722 = vrot.slane %v8721, 2
  %v8723 = vadd.f32 %v8721, %v8722
  %v8724 = vrot.slane %v8723, 1
  %v8725 = vadd.f32 %v8723, %v8724
  %v8726 = vadd.f32 %v8498, %v8499
  %v8727 = vrot.slane %v8726, 4
  %v8728 = vadd.f32 %v8726, %v8727
  %v8729 = vrot.slane %v8728, 2
  %v8730 = vadd.f32 %v8728, %v8729
  %v8731 = vrot.slane %v8730, 1
  %v8732 = vadd.f32 %v8730, %v8731
  %v8733 = vadd.f32 %v8500, %v8501
  %v8734 = vrot.slane %v8733, 4
  %v8735 = vadd.f32 %v8733, %v8734
  %v8736 = vrot.slane %v8735, 2
  %v8737 = vadd.f32 %v8735, %v8736
  %v8738 = vrot.slane %v8737, 1
  %v8739 = vadd.f32 %v8737, %v8738
  %v8740 = vadd.f32 %v8502, %v8503
  %v8741 = vrot.slane %v8740, 4
  %v8742 = vadd.f32 %v8740, %v8741
  %v8743 = vrot.slane %v8742, 2
  %v8744 = vadd.f32 %v8742, %v8743
  %v8745 = vrot.slane %v8744, 1
  %v8746 = vadd.f32 %v8744, %v8745
  %v8747 = vadd.f32 %v8504, %v8505
  %v8748 = vrot.slane %v8747, 4
  %v8749 = vadd.f32 %v8747, %v8748
  %v8750 = vrot.slane %v8749, 2
  %v8751 = vadd.f32 %v8749, %v8750
  %v8752 = vrot.slane %v8751, 1
  %v8753 = vadd.f32 %v8751, %v8752
  %v8754 = vadd.f32 %v8506, %v8507
  %v8755 = vrot.slane %v8754, 4
  %v8756 = vadd.f32 %v8754, %v8755
  %v8757 = vrot.slane %v8756, 2
  %v8758 = vadd.f32 %v8756, %v8757
  %v8759 = vrot.slane %v8758, 1
  %v8760 = vadd.f32 %v8758, %v8759
  %v8761 = vadd.f32 %v8508, %v8509
  %v8762 = vrot.slane %v8761, 4
  %v8763 = vadd.f32 %v8761, %v8762
  %v8764 = vrot.slane %v8763, 2
  %v8765 = vadd.f32 %v8763, %v8764
  %v8766 = vrot.slane %v8765, 1
  %v8767 = vadd.f32 %v8765, %v8766
  %v8768 = vadd.f32 %v8510, %v8511
  %v8769 = vrot.slane %v8768, 4
  %v8770 = vadd.f32 %v8768, %v8769
  %v8771 = vrot.slane %v8770, 2
  %v8772 = vadd.f32 %v8770, %v8771
  %v8773 = vrot.slane %v8772, 1
  %v8774 = vadd.f32 %v8772, %v8773
  %v8775 = vadd.f32 %v8512, %v8513
  %v8776 = vrot.slane %v8775, 4
  %v8777 = vadd.f32 %v8775, %v8776
  %v8778 = vrot.slane %v8777, 2
  %v8779 = vadd.f32 %v8777, %v8778
  %v8780 = vrot.slane %v8779, 1
  %v8781 = vadd.f32 %v8779, %v8780
  %v8782 = vadd.f32 %v8514, %v8515
  %v8783 = vrot.slane %v8782, 4
  %v8784 = vadd.f32 %v8782, %v8783
  %v8785 = vrot.slane %v8784, 2
  %v8786 = vadd.f32 %v8784, %v8785
  %v8787 = vrot.slane %v8786, 1
  %v8788 = vadd.f32 %v8786, %v8787
  %v8789 = vadd.f32 %v8516, %v8517
  %v8790 = vrot.slane %v8789, 4
  %v8791 = vadd.f32 %v8789, %v8790
  %v8792 = vrot.slane %v8791, 2
  %v8793 = vadd.f32 %v8791, %v8792
  %v8794 = vrot.slane %v8793, 1
  %v8795 = vadd.f32 %v8793, %v8794
  %v8796 = vadd.f32 %v8518, %v8519
  %v8797 = vrot.slane %v8796, 4
  %v8798 = vadd.f32 %v8796, %v8797
  %v8799 = vrot.slane %v8798, 2
  %v8800 = vadd.f32 %v8798, %v8799
  %v8801 = vrot.slane %v8800, 1
  %v8802 = vadd.f32 %v8800, %v8801
  %v8803 = vadd.f32 %v8520, %v8521
  %v8804 = vrot.slane %v8803, 4
  %v8805 = vadd.f32 %v8803, %v8804
  %v8806 = vrot.slane %v8805, 2
  %v8807 = vadd.f32 %v8805, %v8806
  %v8808 = vrot.slane %v8807, 1
  %v8809 = vadd.f32 %v8807, %v8808
  %v8810 = vadd.f32 %v8522, %v8523
  %v8811 = vrot.slane %v8810, 4
  %v8812 = vadd.f32 %v8810, %v8811
  %v8813 = vrot.slane %v8812, 2
  %v8814 = vadd.f32 %v8812, %v8813
  %v8815 = vrot.slane %v8814, 1
  %v8816 = vadd.f32 %v8814, %v8815
  %v8817 = vadd.f32 %v8524, %v8525
  %v8818 = vrot.slane %v8817, 4
  %v8819 = vadd.f32 %v8817, %v8818
  %v8820 = vrot.slane %v8819, 2
  %v8821 = vadd.f32 %v8819, %v8820
  %v8822 = vrot.slane %v8821, 1
  %v8823 = vadd.f32 %v8821, %v8822
  %v8824 = vadd.f32 %v8526, %v8527
  %v8825 = vrot.slane %v8824, 4
  %v8826 = vadd.f32 %v8824, %v8825
  %v8827 = vrot.slane %v8826, 2
  %v8828 = vadd.f32 %v8826, %v8827
  %v8829 = vrot.slane %v8828, 1
  %v8830 = vadd.f32 %v8828, %v8829
  %v8831 = vadd.f32 %v8528, %v8529
  %v8832 = vrot.slane %v8831, 4
  %v8833 = vadd.f32 %v8831, %v8832
  %v8834 = vrot.slane %v8833, 2
  %v8835 = vadd.f32 %v8833, %v8834
  %v8836 = vrot.slane %v8835, 1
  %v8837 = vadd.f32 %v8835, %v8836
  %v8838 = vadd.f32 %v8530, %v8531
  %v8839 = vrot.slane %v8838, 4
  %v8840 = vadd.f32 %v8838, %v8839
  %v8841 = vrot.slane %v8840, 2
  %v8842 = vadd.f32 %v8840, %v8841
  %v8843 = vrot.slane %v8842, 1
  %v8844 = vadd.f32 %v8842, %v8843
  %v8845 = vadd.f32 %v8532, %v8533
  %v8846 = vrot.slane %v8845, 4
  %v8847 = vadd.f32 %v8845, %v8846
  %v8848 = vrot.slane %v8847, 2
  %v8849 = vadd.f32 %v8847, %v8848
  %v8850 = vrot.slane %v8849, 1
  %v8851 = vadd.f32 %v8849, %v8850
  %v8852 = vadd.f32 %v8534, %v8535
  %v8853 = vrot.slane %v8852, 4
  %v8854 = vadd.f32 %v8852, %v8853
  %v8855 = vrot.slane %v8854, 2
  %v8856 = vadd.f32 %v8854, %v8855
  %v8857 = vrot.slane %v8856, 1
  %v8858 = vadd.f32 %v8856, %v8857
  %v8859 = vadd.f32 %v8536, %v8537
  %v8860 = vrot.slane %v8859, 4
  %v8861 = vadd.f32 %v8859, %v8860
  %v8862 = vrot.slane %v8861, 2
  %v8863 = vadd.f32 %v8861, %v8862
  %v8864 = vrot.slane %v8863, 1
  %v8865 = vadd.f32 %v8863, %v8864
  %v8866 = vadd.f32 %v8538, %v8539
  %v8867 = vrot.slane %v8866, 4
  %v8868 = vadd.f32 %v8866, %v8867
  %v8869 = vrot.slane %v8868, 2
  %v8870 = vadd.f32 %v8868, %v8869
  %v8871 = vrot.slane %v8870, 1
  %v8872 = vadd.f32 %v8870, %v8871
  %v8873 = vadd.f32 %v8540, %v8541
  %v8874 = vrot.slane %v8873, 4
  %v8875 = vadd.f32 %v8873, %v8874
  %v8876 = vrot.slane %v8875, 2
  %v8877 = vadd.f32 %v8875, %v8876
  %v8878 = vrot.slane %v8877, 1
  %v8879 = vadd.f32 %v8877, %v8878
  %v8880 = vadd.f32 %v8542, %v8543
  %v8881 = vrot.slane %v8880, 4
  %v8882 = vadd.f32 %v8880, %v8881
  %v8883 = vrot.slane %v8882, 2
  %v8884 = vadd.f32 %v8882, %v8883
  %v8885 = vrot.slane %v8884, 1
  %v8886 = vadd.f32 %v8884, %v8885
  %v8887 = vadd.f32 %v8544, %v8545
  %v8888 = vrot.slane %v8887, 4
  %v8889 = vadd.f32 %v8887, %v8888
  %v8890 = vrot.slane %v8889, 2
  %v8891 = vadd.f32 %v8889, %v8890
  %v8892 = vrot.slane %v8891, 1
  %v8893 = vadd.f32 %v8891, %v8892
  %v8894 = vadd.f32 %v8546, %v8547
  %v8895 = vrot.slane %v8894, 4
  %v8896 = vadd.f32 %v8894, %v8895
  %v8897 = vrot.slane %v8896, 2
  %v8898 = vadd.f32 %v8896, %v8897
  %v8899 = vrot.slane %v8898, 1
  %v8900 = vadd.f32 %v8898, %v8899
  %v8901 = vadd.f32 %v8548, %v8549
  %v8902 = vrot.slane %v8901, 4
  %v8903 = vadd.f32 %v8901, %v8902
  %v8904 = vrot.slane %v8903, 2
  %v8905 = vadd.f32 %v8903, %v8904
  %v8906 = vrot.slane %v8905, 1
  %v8907 = vadd.f32 %v8905, %v8906
  %v8908 = vadd.f32 %v8550, %v8551
  %v8909 = vrot.slane %v8908, 4
  %v8910 = vadd.f32 %v8908, %v8909
  %v8911 = vrot.slane %v8910, 2
  %v8912 = vadd.f32 %v8910, %v8911
  %v8913 = vrot.slane %v8912, 1
  %v8914 = vadd.f32 %v8912, %v8913
  %v8915 = vadd.f32 %v8552, %v8553
  %v8916 = vrot.slane %v8915, 4
  %v8917 = vadd.f32 %v8915, %v8916
  %v8918 = vrot.slane %v8917, 2
  %v8919 = vadd.f32 %v8917, %v8918
  %v8920 = vrot.slane %v8919, 1
  %v8921 = vadd.f32 %v8919, %v8920
  %v8922 = vadd.f32 %v8554, %v8555
  %v8923 = vrot.slane %v8922, 4
  %v8924 = vadd.f32 %v8922, %v8923
  %v8925 = vrot.slane %v8924, 2
  %v8926 = vadd.f32 %v8924, %v8925
  %v8927 = vrot.slane %v8926, 1
  %v8928 = vadd.f32 %v8926, %v8927
  %v8929 = vadd.f32 %v8556, %v8557
  %v8930 = vrot.slane %v8929, 4
  %v8931 = vadd.f32 %v8929, %v8930
  %v8932 = vrot.slane %v8931, 2
  %v8933 = vadd.f32 %v8931, %v8932
  %v8934 = vrot.slane %v8933, 1
  %v8935 = vadd.f32 %v8933, %v8934
  %v8936 = vadd.f32 %v8558, %v8559
  %v8937 = vrot.slane %v8936, 4
  %v8938 = vadd.f32 %v8936, %v8937
  %v8939 = vrot.slane %v8938, 2
  %v8940 = vadd.f32 %v8938, %v8939
  %v8941 = vrot.slane %v8940, 1
  %v8942 = vadd.f32 %v8940, %v8941
  %v8943 = vadd.f32 %v8560, %v8561
  %v8944 = vrot.slane %v8943, 4
  %v8945 = vadd.f32 %v8943, %v8944
  %v8946 = vrot.slane %v8945, 2
  %v8947 = vadd.f32 %v8945, %v8946
  %v8948 = vrot.slane %v8947, 1
  %v8949 = vadd.f32 %v8947, %v8948
  %v8950 = vadd.f32 %v8562, %v8563
  %v8951 = vrot.slane %v8950, 4
  %v8952 = vadd.f32 %v8950, %v8951
  %v8953 = vrot.slane %v8952, 2
  %v8954 = vadd.f32 %v8952, %v8953
  %v8955 = vrot.slane %v8954, 1
  %v8956 = vadd.f32 %v8954, %v8955
  %v8957 = vadd.f32 %v8564, %v8565
  %v8958 = vrot.slane %v8957, 4
  %v8959 = vadd.f32 %v8957, %v8958
  %v8960 = vrot.slane %v8959, 2
  %v8961 = vadd.f32 %v8959, %v8960
  %v8962 = vrot.slane %v8961, 1
  %v8963 = vadd.f32 %v8961, %v8962
  %v8964 = vadd.f32 %v8566, %v8567
  %v8965 = vrot.slane %v8964, 4
  %v8966 = vadd.f32 %v8964, %v8965
  %v8967 = vrot.slane %v8966, 2
  %v8968 = vadd.f32 %v8966, %v8967
  %v8969 = vrot.slane %v8968, 1
  %v8970 = vadd.f32 %v8968, %v8969
  %v8971 = vadd.f32 %v8568, %v8569
  %v8972 = vrot.slane %v8971, 4
  %v8973 = vadd.f32 %v8971, %v8972
  %v8974 = vrot.slane %v8973, 2
  %v8975 = vadd.f32 %v8973, %v8974
  %v8976 = vrot.slane %v8975, 1
  %v8977 = vadd.f32 %v8975, %v8976
  %v8978 = vadd.f32 %v8570, %v8571
  %v8979 = vrot.slane %v8978, 4
  %v8980 = vadd.f32 %v8978, %v8979
  %v8981 = vrot.slane %v8980, 2
  %v8982 = vadd.f32 %v8980, %v8981
  %v8983 = vrot.slane %v8982, 1
  %v8984 = vadd.f32 %v8982, %v8983
  %v8985 = vadd.f32 %v8572, %v8573
  %v8986 = vrot.slane %v8985, 4
  %v8987 = vadd.f32 %v8985, %v8986
  %v8988 = vrot.slane %v8987, 2
  %v8989 = vadd.f32 %v8987, %v8988
  %v8990 = vrot.slane %v8989, 1
  %v8991 = vadd.f32 %v8989, %v8990
  %v8992 = vadd.f32 %v8574, %v8575
  %v8993 = vrot.slane %v8992, 4
  %v8994 = vadd.f32 %v8992, %v8993
  %v8995 = vrot.slane %v8994, 2
  %v8996 = vadd.f32 %v8994, %v8995
  %v8997 = vrot.slane %v8996, 1
  %v8998 = vadd.f32 %v8996, %v8997
  %v8999 = vadd.f32 %v8576, %v8577
  %v9000 = vrot.slane %v8999, 4
  %v9001 = vadd.f32 %v8999, %v9000
  %v9002 = vrot.slane %v9001, 2
  %v9003 = vadd.f32 %v9001, %v9002
  %v9004 = vrot.slane %v9003, 1
  %v9005 = vadd.f32 %v9003, %v9004
  %v9006 = vadd.f32 %v8578, %v8579
  %v9007 = vrot.slane %v9006, 4
  %v9008 = vadd.f32 %v9006, %v9007
  %v9009 = vrot.slane %v9008, 2
  %v9010 = vadd.f32 %v9008, %v9009
  %v9011 = vrot.slane %v9010, 1
  %v9012 = vadd.f32 %v9010, %v9011
  %v9013 = vadd.f32 %v8580, %v8581
  %v9014 = vrot.slane %v9013, 4
  %v9015 = vadd.f32 %v9013, %v9014
  %v9016 = vrot.slane %v9015, 2
  %v9017 = vadd.f32 %v9015, %v9016
  %v9018 = vrot.slane %v9017, 1
  %v9019 = vadd.f32 %v9017, %v9018
  %v9020 = vadd.f32 %v8582, %v8583
  %v9021 = vrot.slane %v9020, 4
  %v9022 = vadd.f32 %v9020, %v9021
  %v9023 = vrot.slane %v9022, 2
  %v9024 = vadd.f32 %v9022, %v9023
  %v9025 = vrot.slane %v9024, 1
  %v9026 = vadd.f32 %v9024, %v9025
  %v9027 = vadd.f32 %v8584, %v8585
  %v9028 = vrot.slane %v9027, 4
  %v9029 = vadd.f32 %v9027, %v9028
  %v9030 = vrot.slane %v9029, 2
  %v9031 = vadd.f32 %v9029, %v9030
  %v9032 = vrot.slane %v9031, 1
  %v9033 = vadd.f32 %v9031, %v9032
  %v9034 = vld [vmem:[%s15] sm:$0x1]
  %v9036 = vlaneseq
  %v9037 = vshrl.u32 %v9036, 7
  %v9038 = vsub.s32 0, %v9037
  %v9039 = vrot.slane %v9034, %v9038
  %v9041 = vmul.f32 %v8592, %v9039
  %v9042 = vmul.f32 %v8599, %v9039
  %v9043 = vmul.f32 %v8606, %v9039
  %v9044 = vmul.f32 %v8613, %v9039
  %v9045 = vmul.f32 %v8620, %v9039
  %v9046 = vmul.f32 %v8627, %v9039
  %v9047 = vmul.f32 %v8634, %v9039
  %v9048 = vmul.f32 %v8641, %v9039
  %v9049 = vmul.f32 %v8648, %v9039
  %v9050 = vmul.f32 %v8655, %v9039
  %v9051 = vmul.f32 %v8662, %v9039
  %v9052 = vmul.f32 %v8669, %v9039
  %v9053 = vmul.f32 %v8676, %v9039
  %v9054 = vmul.f32 %v8683, %v9039
  %v9055 = vmul.f32 %v8690, %v9039
  %v9056 = vmul.f32 %v8697, %v9039
  %v9057 = vmul.f32 %v8704, %v9039
  %v9058 = vmul.f32 %v8711, %v9039
  %v9059 = vmul.f32 %v8718, %v9039
  %v9060 = vmul.f32 %v8725, %v9039
  %v9061 = vmul.f32 %v8732, %v9039
  %v9062 = vmul.f32 %v8739, %v9039
  %v9063 = vmul.f32 %v8746, %v9039
  %v9064 = vmul.f32 %v8753, %v9039
  %v9065 = vmul.f32 %v8760, %v9039
  %v9066 = vmul.f32 %v8767, %v9039
  %v9067 = vmul.f32 %v8774, %v9039
  %v9068 = vmul.f32 %v8781, %v9039
  %v9069 = vmul.f32 %v8788, %v9039
  %v9070 = vmul.f32 %v8795, %v9039
  %v9071 = vmul.f32 %v8802, %v9039
  %v9072 = vmul.f32 %v8809, %v9039
  %v9073 = vmul.f32 %v8816, %v9039
  %v9074 = vmul.f32 %v8823, %v9039
  %v9075 = vmul.f32 %v8830, %v9039
  %v9076 = vmul.f32 %v8837, %v9039
  %v9077 = vmul.f32 %v8844, %v9039
  %v9078 = vmul.f32 %v8851, %v9039
  %v9079 = vmul.f32 %v8858, %v9039
  %v9080 = vmul.f32 %v8865, %v9039
  %v9081 = vmul.f32 %v8872, %v9039
  %v9082 = vmul.f32 %v8879, %v9039
  %v9083 = vmul.f32 %v8886, %v9039
  %v9084 = vmul.f32 %v8893, %v9039
  %v9085 = vmul.f32 %v8900, %v9039
  %v9086 = vmul.f32 %v8907, %v9039
  %v9087 = vmul.f32 %v8914, %v9039
  %v9088 = vmul.f32 %v8921, %v9039
  %v9089 = vmul.f32 %v8928, %v9039
  %v9090 = vmul.f32 %v8935, %v9039
  %v9091 = vmul.f32 %v8942, %v9039
  %v9092 = vmul.f32 %v8949, %v9039
  %v9093 = vmul.f32 %v8956, %v9039
  %v9094 = vmul.f32 %v8963, %v9039
  %v9095 = vmul.f32 %v8970, %v9039
  %v9096 = vmul.f32 %v8977, %v9039
  %v9097 = vmul.f32 %v8984, %v9039
  %v9098 = vmul.f32 %v8991, %v9039
  %v9099 = vmul.f32 %v8998, %v9039
  %v9100 = vmul.f32 %v9005, %v9039
  %v9101 = vmul.f32 %v9012, %v9039
  %v9102 = vmul.f32 %v9019, %v9039
  %v9103 = vmul.f32 %v9026, %v9039
  %v9104 = vmul.f32 %v9033, %v9039
  %v9105 = vld [vmem:[%s16] sm:$0x1]
  %v9107 = vlaneseq
  %v9108 = vshrl.u32 %v9107, 7
  %v9109 = vsub.s32 0, %v9108
  %v9110 = vrot.slane %v9105, %v9109
  %v9112 = vadd.f32 %v9041, %v9110
  %v9113 = vadd.f32 %v9042, %v9110
  %v9114 = vadd.f32 %v9043, %v9110
  %v9115 = vadd.f32 %v9044, %v9110
  %v9116 = vadd.f32 %v9045, %v9110
  %v9117 = vadd.f32 %v9046, %v9110
  %v9118 = vadd.f32 %v9047, %v9110
  %v9119 = vadd.f32 %v9048, %v9110
  %v9120 = vadd.f32 %v9049, %v9110
  %v9121 = vadd.f32 %v9050, %v9110
  %v9122 = vadd.f32 %v9051, %v9110
  %v9123 = vadd.f32 %v9052, %v9110
  %v9124 = vadd.f32 %v9053, %v9110
  %v9125 = vadd.f32 %v9054, %v9110
  %v9126 = vadd.f32 %v9055, %v9110
  %v9127 = vadd.f32 %v9056, %v9110
  %v9128 = vadd.f32 %v9057, %v9110
  %v9129 = vadd.f32 %v9058, %v9110
  %v9130 = vadd.f32 %v9059, %v9110
  %v9131 = vadd.f32 %v9060, %v9110
  %v9132 = vadd.f32 %v9061, %v9110
  %v9133 = vadd.f32 %v9062, %v9110
  %v9134 = vadd.f32 %v9063, %v9110
  %v9135 = vadd.f32 %v9064, %v9110
  %v9136 = vadd.f32 %v9065, %v9110
  %v9137 = vadd.f32 %v9066, %v9110
  %v9138 = vadd.f32 %v9067, %v9110
  %v9139 = vadd.f32 %v9068, %v9110
  %v9140 = vadd.f32 %v9069, %v9110
  %v9141 = vadd.f32 %v9070, %v9110
  %v9142 = vadd.f32 %v9071, %v9110
  %v9143 = vadd.f32 %v9072, %v9110
  %v9144 = vadd.f32 %v9073, %v9110
  %v9145 = vadd.f32 %v9074, %v9110
  %v9146 = vadd.f32 %v9075, %v9110
  %v9147 = vadd.f32 %v9076, %v9110
  %v9148 = vadd.f32 %v9077, %v9110
  %v9149 = vadd.f32 %v9078, %v9110
  %v9150 = vadd.f32 %v9079, %v9110
  %v9151 = vadd.f32 %v9080, %v9110
  %v9152 = vadd.f32 %v9081, %v9110
  %v9153 = vadd.f32 %v9082, %v9110
  %v9154 = vadd.f32 %v9083, %v9110
  %v9155 = vadd.f32 %v9084, %v9110
  %v9156 = vadd.f32 %v9085, %v9110
  %v9157 = vadd.f32 %v9086, %v9110
  %v9158 = vadd.f32 %v9087, %v9110
  %v9159 = vadd.f32 %v9088, %v9110
  %v9160 = vadd.f32 %v9089, %v9110
  %v9161 = vadd.f32 %v9090, %v9110
  %v9162 = vadd.f32 %v9091, %v9110
  %v9163 = vadd.f32 %v9092, %v9110
  %v9164 = vadd.f32 %v9093, %v9110
  %v9165 = vadd.f32 %v9094, %v9110
  %v9166 = vadd.f32 %v9095, %v9110
  %v9167 = vadd.f32 %v9096, %v9110
  %v9168 = vadd.f32 %v9097, %v9110
  %v9169 = vadd.f32 %v9098, %v9110
  %v9170 = vadd.f32 %v9099, %v9110
  %v9171 = vadd.f32 %v9100, %v9110
  %v9172 = vadd.f32 %v9101, %v9110
  %v9173 = vadd.f32 %v9102, %v9110
  %v9174 = vadd.f32 %v9103, %v9110
  %v9175 = vadd.f32 %v9104, %v9110
  %v9176 = vmax.f32 %v9112, 0.0
  %v9177 = vmax.f32 %v9113, 0.0
  %v9178 = vmax.f32 %v9114, 0.0
  %v9179 = vmax.f32 %v9115, 0.0
  %v9180 = vmax.f32 %v9116, 0.0
  %v9181 = vmax.f32 %v9117, 0.0
  %v9182 = vmax.f32 %v9118, 0.0
  %v9183 = vmax.f32 %v9119, 0.0
  %v9184 = vmax.f32 %v9120, 0.0
  %v9185 = vmax.f32 %v9121, 0.0
  %v9186 = vmax.f32 %v9122, 0.0
  %v9187 = vmax.f32 %v9123, 0.0
  %v9188 = vmax.f32 %v9124, 0.0
  %v9189 = vmax.f32 %v9125, 0.0
  %v9190 = vmax.f32 %v9126, 0.0
  %v9191 = vmax.f32 %v9127, 0.0
  %v9192 = vmax.f32 %v9128, 0.0
  %v9193 = vmax.f32 %v9129, 0.0
  %v9194 = vmax.f32 %v9130, 0.0
  %v9195 = vmax.f32 %v9131, 0.0
  %v9196 = vmax.f32 %v9132, 0.0
  %v9197 = vmax.f32 %v9133, 0.0
  %v9198 = vmax.f32 %v9134, 0.0
  %v9199 = vmax.f32 %v9135, 0.0
  %v9200 = vmax.f32 %v9136, 0.0
  %v9201 = vmax.f32 %v9137, 0.0
  %v9202 = vmax.f32 %v9138, 0.0
  %v9203 = vmax.f32 %v9139, 0.0
  %v9204 = vmax.f32 %v9140, 0.0
  %v9205 = vmax.f32 %v9141, 0.0
  %v9206 = vmax.f32 %v9142, 0.0
  %v9207 = vmax.f32 %v9143, 0.0
  %v9208 = vmax.f32 %v9144, 0.0
  %v9209 = vmax.f32 %v9145, 0.0
  %v9210 = vmax.f32 %v9146, 0.0
  %v9211 = vmax.f32 %v9147, 0.0
  %v9212 = vmax.f32 %v9148, 0.0
  %v9213 = vmax.f32 %v9149, 0.0
  %v9214 = vmax.f32 %v9150, 0.0
  %v9215 = vmax.f32 %v9151, 0.0
  %v9216 = vmax.f32 %v9152, 0.0
  %v9217 = vmax.f32 %v9153, 0.0
  %v9218 = vmax.f32 %v9154, 0.0
  %v9219 = vmax.f32 %v9155, 0.0
  %v9220 = vmax.f32 %v9156, 0.0
  %v9221 = vmax.f32 %v9157, 0.0
  %v9222 = vmax.f32 %v9158, 0.0
  %v9223 = vmax.f32 %v9159, 0.0
  %v9224 = vmax.f32 %v9160, 0.0
  %v9225 = vmax.f32 %v9161, 0.0
  %v9226 = vmax.f32 %v9162, 0.0
  %v9227 = vmax.f32 %v9163, 0.0
  %v9228 = vmax.f32 %v9164, 0.0
  %v9229 = vmax.f32 %v9165, 0.0
  %v9230 = vmax.f32 %v9166, 0.0
  %v9231 = vmax.f32 %v9167, 0.0
  %v9232 = vmax.f32 %v9168, 0.0
  %v9233 = vmax.f32 %v9169, 0.0
  %v9234 = vmax.f32 %v9170, 0.0
  %v9235 = vmax.f32 %v9171, 0.0
  %v9236 = vmax.f32 %v9172, 0.0
  %v9237 = vmax.f32 %v9173, 0.0
  %v9238 = vmax.f32 %v9174, 0.0
  %v9239 = vmax.f32 %v9175, 0.0
  %v9240 = vld [vmem:[%s17] sm:$0xff]
  %v9241 = vld [vmem:[%s17 + $0x8] sm:$0xff]
  %v9242 = vld [vmem:[%s17 + $0x10] sm:$0xff]
  %v9243 = vld [vmem:[%s17 + $0x18] sm:$0xff]
  %v9244 = vld [vmem:[%s17 + $0x20] sm:$0xff]
  %v9245 = vld [vmem:[%s17 + $0x28] sm:$0xff]
  %v9246 = vld [vmem:[%s17 + $0x30] sm:$0xff]
  %v9247 = vld [vmem:[%s17 + $0x38] sm:$0xff]
  %v9248 = vld [vmem:[%s17 + $0x40] sm:$0xff]
  %v9249 = vld [vmem:[%s17 + $0x48] sm:$0xff]
  %v9250 = vld [vmem:[%s17 + $0x50] sm:$0xff]
  %v9251 = vld [vmem:[%s17 + $0x58] sm:$0xff]
  %v9252 = vld [vmem:[%s17 + $0x60] sm:$0xff]
  %v9253 = vld [vmem:[%s17 + $0x68] sm:$0xff]
  %v9254 = vld [vmem:[%s17 + $0x70] sm:$0xff]
  %v9255 = vld [vmem:[%s17 + $0x78] sm:$0xff]
  %v9256 = vld [vmem:[%s18] sm:$0x1]
  %v9258 = vlaneseq
  %v9259 = vshrl.u32 %v9258, 7
  %v9260 = vsub.s32 0, %v9259
  %v9261 = vrot.slane %v9256, %v9260
  %v9327 = vrot.slane %v9177, 7
  %vm9328 = vcmask 1041409
  %v9329 = vsel %vm9328, %v9327, %v9176
  %v9330 = vrot.slane %v9178, 6
  %vm9331 = vcmask 1042434
  %v9332 = vsel %vm9331, %v9330, %v9329
  %v9333 = vrot.slane %v9179, 5
  %vm9334 = vcmask 1043459
  %v9335 = vsel %vm9334, %v9333, %v9332
  %v9336 = vrot.slane %v9180, 4
  %vm9337 = vcmask 1044484
  %v9338 = vsel %vm9337, %v9336, %v9335
  %v9339 = vrot.slane %v9181, 3
  %vm9340 = vcmask 1045509
  %v9341 = vsel %vm9340, %v9339, %v9338
  %v9342 = vrot.slane %v9182, 2
  %vm9343 = vcmask 1046534
  %v9344 = vsel %vm9343, %v9342, %v9341
  %v9345 = vrot.slane %v9183, 1
  %vm9346 = vcmask 1047559
  %v9347 = vsel %vm9346, %v9345, %v9344
  %v9348 = vrot.slane %v9185, 7
  %v9349 = vsel %vm9328, %v9348, %v9184
  %v9350 = vrot.slane %v9186, 6
  %v9351 = vsel %vm9331, %v9350, %v9349
  %v9352 = vrot.slane %v9187, 5
  %v9353 = vsel %vm9334, %v9352, %v9351
  %v9354 = vrot.slane %v9188, 4
  %v9355 = vsel %vm9337, %v9354, %v9353
  %v9356 = vrot.slane %v9189, 3
  %v9357 = vsel %vm9340, %v9356, %v9355
  %v9358 = vrot.slane %v9190, 2
  %v9359 = vsel %vm9343, %v9358, %v9357
  %v9360 = vrot.slane %v9191, 1
  %v9361 = vsel %vm9346, %v9360, %v9359
  %v9362 = vrot.slane %v9193, 7
  %v9363 = vsel %vm9328, %v9362, %v9192
  %v9364 = vrot.slane %v9194, 6
  %v9365 = vsel %vm9331, %v9364, %v9363
  %v9366 = vrot.slane %v9195, 5
  %v9367 = vsel %vm9334, %v9366, %v9365
  %v9368 = vrot.slane %v9196, 4
  %v9369 = vsel %vm9337, %v9368, %v9367
  %v9370 = vrot.slane %v9197, 3
  %v9371 = vsel %vm9340, %v9370, %v9369
  %v9372 = vrot.slane %v9198, 2
  %v9373 = vsel %vm9343, %v9372, %v9371
  %v9374 = vrot.slane %v9199, 1
  %v9375 = vsel %vm9346, %v9374, %v9373
  %v9376 = vrot.slane %v9201, 7
  %v9377 = vsel %vm9328, %v9376, %v9200
  %v9378 = vrot.slane %v9202, 6
  %v9379 = vsel %vm9331, %v9378, %v9377
  %v9380 = vrot.slane %v9203, 5
  %v9381 = vsel %vm9334, %v9380, %v9379
  %v9382 = vrot.slane %v9204, 4
  %v9383 = vsel %vm9337, %v9382, %v9381
  %v9384 = vrot.slane %v9205, 3
  %v9385 = vsel %vm9340, %v9384, %v9383
  %v9386 = vrot.slane %v9206, 2
  %v9387 = vsel %vm9343, %v9386, %v9385
  %v9388 = vrot.slane %v9207, 1
  %v9389 = vsel %vm9346, %v9388, %v9387
  %v9390 = vrot.slane %v9209, 7
  %v9391 = vsel %vm9328, %v9390, %v9208
  %v9392 = vrot.slane %v9210, 6
  %v9393 = vsel %vm9331, %v9392, %v9391
  %v9394 = vrot.slane %v9211, 5
  %v9395 = vsel %vm9334, %v9394, %v9393
  %v9396 = vrot.slane %v9212, 4
  %v9397 = vsel %vm9337, %v9396, %v9395
  %v9398 = vrot.slane %v9213, 3
  %v9399 = vsel %vm9340, %v9398, %v9397
  %v9400 = vrot.slane %v9214, 2
  %v9401 = vsel %vm9343, %v9400, %v9399
  %v9402 = vrot.slane %v9215, 1
  %v9403 = vsel %vm9346, %v9402, %v9401
  %v9404 = vrot.slane %v9217, 7
  %v9405 = vsel %vm9328, %v9404, %v9216
  %v9406 = vrot.slane %v9218, 6
  %v9407 = vsel %vm9331, %v9406, %v9405
  %v9408 = vrot.slane %v9219, 5
  %v9409 = vsel %vm9334, %v9408, %v9407
  %v9410 = vrot.slane %v9220, 4
  %v9411 = vsel %vm9337, %v9410, %v9409
  %v9412 = vrot.slane %v9221, 3
  %v9413 = vsel %vm9340, %v9412, %v9411
  %v9414 = vrot.slane %v9222, 2
  %v9415 = vsel %vm9343, %v9414, %v9413
  %v9416 = vrot.slane %v9223, 1
  %v9417 = vsel %vm9346, %v9416, %v9415
  %v9418 = vrot.slane %v9225, 7
  %v9419 = vsel %vm9328, %v9418, %v9224
  %v9420 = vrot.slane %v9226, 6
  %v9421 = vsel %vm9331, %v9420, %v9419
  %v9422 = vrot.slane %v9227, 5
  %v9423 = vsel %vm9334, %v9422, %v9421
  %v9424 = vrot.slane %v9228, 4
  %v9425 = vsel %vm9337, %v9424, %v9423
  %v9426 = vrot.slane %v9229, 3
  %v9427 = vsel %vm9340, %v9426, %v9425
  %v9428 = vrot.slane %v9230, 2
  %v9429 = vsel %vm9343, %v9428, %v9427
  %v9430 = vrot.slane %v9231, 1
  %v9431 = vsel %vm9346, %v9430, %v9429
  %v9432 = vrot.slane %v9233, 7
  %v9433 = vsel %vm9328, %v9432, %v9232
  %v9434 = vrot.slane %v9234, 6
  %v9435 = vsel %vm9331, %v9434, %v9433
  %v9436 = vrot.slane %v9235, 5
  %v9437 = vsel %vm9334, %v9436, %v9435
  %v9438 = vrot.slane %v9236, 4
  %v9439 = vsel %vm9337, %v9438, %v9437
  %v9440 = vrot.slane %v9237, 3
  %v9441 = vsel %vm9340, %v9440, %v9439
  %v9442 = vrot.slane %v9238, 2
  %v9443 = vsel %vm9343, %v9442, %v9441
  %v9444 = vrot.slane %v9239, 1
  %v9445 = vsel %vm9346, %v9444, %v9443
  %9454 = vmatprep.subr.mxu0 0.0
  %9455 = vmatpush1.msra.mxu0 %v9255
  %9456 = vmatprep.subr.mxu0 0.0
  %9457 = vmatpush1.msra.mxu0 %v9254
  %9458 = vmatprep.subr.mxu0 0.0
  %9459 = vmatpush1.msra.mxu0 %v9253
  %9460 = vmatprep.subr.mxu0 0.0
  %9461 = vmatpush1.msra.mxu0 %v9252
  %9462 = vmatprep.subr.mxu0 0.0
  %9463 = vmatpush1.msra.mxu0 %v9251
  %9464 = vmatprep.subr.mxu0 0.0
  %9465 = vmatpush1.msra.mxu0 %v9250
  %9466 = vmatprep.subr.mxu0 0.0
  %9467 = vmatpush1.msra.mxu0 %v9249
  %9468 = vmatprep.subr.mxu0 0.0
  %9469 = vmatpush1.msra.mxu0 %v9248
  %9470 = vmatprep.subr.mxu0 0.0
  %9471 = vmatpush1.msra.mxu0 %v9247
  %9472 = vmatprep.subr.mxu0 0.0
  %9473 = vmatpush1.msra.mxu0 %v9246
  %9474 = vmatprep.subr.mxu0 0.0
  %9475 = vmatpush1.msra.mxu0 %v9245
  %9476 = vmatprep.subr.mxu0 0.0
  %9477 = vmatpush1.msra.mxu0 %v9244
  %9478 = vmatprep.subr.mxu0 0.0
  %9479 = vmatpush1.msra.mxu0 %v9243
  %9480 = vmatprep.subr.mxu0 0.0
  %9481 = vmatpush1.msra.mxu0 %v9242
  %9482 = vmatprep.subr.mxu0 0.0
  %9483 = vmatpush1.msra.mxu0 %v9241
  %9484 = vmatprep.subr.mxu0 0.0
  %9485 = vmatpush1.msra.mxu0 %v9240
  %9486 = vmatprep.subr.mxu0 0.0
  %9487 = vmatpush2.msra.mxu0 0.0
  %9488 = vmatprep.subr.mxu0 0.0
  %9489 = vmatpush2.msra.mxu0 0.0
  %9490 = vmatprep.subr.mxu0 0.0
  %9491 = vmatpush2.msra.mxu0 0.0
  %9492 = vmatprep.subr.mxu0 0.0
  %9493 = vmatpush2.msra.mxu0 0.0
  %9494 = vmatprep.subr.mxu0 0.0
  %9495 = vmatpush2.msra.mxu0 0.0
  %9496 = vmatprep.subr.mxu0 0.0
  %9497 = vmatpush2.msra.mxu0 0.0
  %9498 = vmatprep.subr.mxu0 0.0
  %9499 = vmatpush2.msra.mxu0 0.0
  %9500 = vmatprep.subr.mxu0 0.0
  %9501 = vmatpush2.msra.mxu0 0.0
  %9502 = vmatprep.subr.mxu0 0.0
  %9503 = vmatpush2.msra.mxu0 0.0
  %9504 = vmatprep.subr.mxu0 0.0
  %9505 = vmatpush2.msra.mxu0 0.0
  %9506 = vmatprep.subr.mxu0 0.0
  %9507 = vmatpush2.msra.mxu0 0.0
  %9508 = vmatprep.subr.mxu0 0.0
  %9509 = vmatpush2.msra.mxu0 0.0
  %9510 = vmatprep.subr.mxu0 0.0
  %9511 = vmatpush2.msra.mxu0 0.0
  %9512 = vmatprep.subr.mxu0 0.0
  %9513 = vmatpush2.msra.mxu0 0.0
  %9514 = vmatprep.subr.mxu0 0.0
  %9515 = vmatpush2.msra.mxu0 0.0
  %9516 = vmatprep.subr.mxu0 0.0
  %9517 = vmatpush2.msra.mxu0 0.0
  %9518 = vmatprep.mubr.f32.mxu0 0.0
  %9519 = vmatmul.mubr.f32.gmra.mxu0 %v9347
  %v9520 = vpop.f32.mrf.mxu0
  %v9521 = vadd.f32 %v9261, %v9520
  %v9522 = vpop.f32.mrf.mxu0
  %9523 = vmatprep.mubr.f32.mxu0 0.0
  %9524 = vmatmul.mubr.f32.gmra.mxu0 %v9361
  %v9525 = vpop.f32.mrf.mxu0
  %v9526 = vadd.f32 %v9261, %v9525
  %v9527 = vpop.f32.mrf.mxu0
  %9528 = vmatprep.mubr.f32.mxu0 0.0
  %9529 = vmatmul.mubr.f32.gmra.mxu0 %v9375
  %v9530 = vpop.f32.mrf.mxu0
  %v9531 = vadd.f32 %v9261, %v9530
  %v9532 = vpop.f32.mrf.mxu0
  %9533 = vmatprep.mubr.f32.mxu0 0.0
  %9534 = vmatmul.mubr.f32.gmra.mxu0 %v9389
  %v9535 = vpop.f32.mrf.mxu0
  %v9536 = vadd.f32 %v9261, %v9535
  %v9537 = vpop.f32.mrf.mxu0
  %9538 = vmatprep.mubr.f32.mxu0 0.0
  %9539 = vmatmul.mubr.f32.gmra.mxu0 %v9403
  %v9540 = vpop.f32.mrf.mxu0
  %v9541 = vadd.f32 %v9261, %v9540
  %v9542 = vpop.f32.mrf.mxu0
  %9543 = vmatprep.mubr.f32.mxu0 0.0
  %9544 = vmatmul.mubr.f32.gmra.mxu0 %v9417
  %v9545 = vpop.f32.mrf.mxu0
  %v9546 = vadd.f32 %v9261, %v9545
  %v9547 = vpop.f32.mrf.mxu0
  %9548 = vmatprep.mubr.f32.mxu0 0.0
  %9549 = vmatmul.mubr.f32.gmra.mxu0 %v9431
  %v9550 = vpop.f32.mrf.mxu0
  %v9551 = vadd.f32 %v9261, %v9550
  %v9552 = vpop.f32.mrf.mxu0
  %9553 = vmatprep.mubr.f32.mxu0 0.0
  %9554 = vmatmul.mubr.f32.gmra.mxu0 %v9445
  %v9555 = vpop.f32.mrf.mxu0
  %v9556 = vadd.f32 %v9261, %v9555
  %v9557 = vpop.f32.mrf.mxu0
  %9558 = vdwg.mxu0
  %v9559 = vld [vmem:[%s3] sm:$0xff]
  %v9560 = vld [vmem:[%s3 + $0x8] sm:$0xff]
  %v9561 = vld [vmem:[%s3 + $0x10] sm:$0xff]
  %v9562 = vld [vmem:[%s3 + $0x18] sm:$0xff]
  %v9563 = vld [vmem:[%s3 + $0x20] sm:$0xff]
  %v9564 = vld [vmem:[%s3 + $0x28] sm:$0xff]
  %v9565 = vld [vmem:[%s3 + $0x30] sm:$0xff]
  %v9566 = vld [vmem:[%s3 + $0x38] sm:$0xff]
  %v9567 = vadd.f32 %v9521, %v9559
  %v9568 = vadd.f32 %v9526, %v9560
  %v9569 = vadd.f32 %v9531, %v9561
  %v9570 = vadd.f32 %v9536, %v9562
  %v9571 = vadd.f32 %v9541, %v9563
  %v9572 = vadd.f32 %v9546, %v9564
  %v9573 = vadd.f32 %v9551, %v9565
  %v9574 = vadd.f32 %v9556, %v9566
  %v9575 = vmax.f32 %v9567, 0.0
  %v9576 = vmax.f32 %v9568, 0.0
  %v9577 = vmax.f32 %v9569, 0.0
  %v9578 = vmax.f32 %v9570, 0.0
  %v9579 = vmax.f32 %v9571, 0.0
  %v9580 = vmax.f32 %v9572, 0.0
  %v9581 = vmax.f32 %v9573, 0.0
  %v9582 = vmax.f32 %v9574, 0.0
  %9583 = vst [vmem:[%s19] sm:$0xff] %v9575
  %9584 = vst [vmem:[%s19 + $0x8] sm:$0xff] %v9576
  %9585 = vst [vmem:[%s19 + $0x10] sm:$0xff] %v9577
  %9586 = vst [vmem:[%s19 + $0x18] sm:$0xff] %v9578
  %9587 = vst [vmem:[%s19 + $0x20] sm:$0xff] %v9579
  %9588 = vst [vmem:[%s19 + $0x28] sm:$0xff] %v9580
  %9589 = vst [vmem:[%s19 + $0x30] sm:$0xff] %v9581
  %9590 = vst [vmem:[%s19 + $0x38] sm:$0xff] %v9582
  // Predicated region
  $region78: #{_forward.3} parent=0 // pred_check
    _
  $region79: #{_forward.3} parent=0 // pred_check_branch
    %9592 = sbr.rel (0) target = $region81
  $region80: #{_forward.3} parent=0 // pred_region
    _
  $region81: #{_forward.3} parent=0 // pred_fallthru
    _
  // Predicated region
  $region82: #{_forward.3} parent=0 // pred_check
    _
  $region83: #{_forward.3} parent=0 // pred_check_branch
    %9594 = sbr.rel (0) target = $region85
  $region84: #{_forward.3} parent=0 // pred_region
    _
  $region85: #{_forward.3} parent=0 // pred_fallthru
    _

</llo_original>
